<compile_context>
chip_gen: v7x
topology: tpu7x:2x2x1
jax: 0.10.0
libtpu: 0.0.40
codegen_flags: <defaults>
</compile_context>

<pallas_src>
import functools

import jax
import jax.numpy as jnp
from jax.experimental import pallas as pl
from jax.experimental.pallas import tpu as pltpu


def _round_up(v, m):
    return ((v + m - 1) // m) * m


# -----------------------------------------------------------------------------
# One-time parameter preparation (all padding / packing / casting lives here).
#
# Layout conventions used by the fused kernel:
#   * conv1 output position (oh, ow) = (2r + p, 2c + q) with r, c in [0,7),
#     parity plane index = 2p + q.
#   * Each plane is stored halo-padded on a 9x9 grid, flattened to j = R*9 + C
#     (R = r+1, C = c+1), rows padded 81 -> 96; the 4 planes' channels are
#     concatenated along lanes (4 * 64 = 256).
#   * conv2 tap (kh, kw) with kh = 2a + p, kw = 2d + q reads plane (p, q) at
#     flat offset shift s = a*9 + d; the 4 taps sharing a shift are fused into
#     one K=256 matmul.  conv2 output position (oh, ow) lives at flat row
#     i = oh*9 + ow of a 64-row accumulator (rows that don't correspond to a
#     valid position get zero classifier weight).
# -----------------------------------------------------------------------------
def prepare_params(params):
    w1, b1, w2, b2, wl, bl = params  # PyTorch layouts.

    # conv1: [25, 64] with t = kh*5 + kw, then block-diagonal over the 4 planes.
    w1m = w1.reshape(64, 25).T                                   # [t, cout]
    w1big = jnp.zeros((128, 256), jnp.float32)
    for g in range(4):
        w1big = w1big.at[g * 32:g * 32 + 25, g * 64:(g + 1) * 64].set(w1m)
    w1big = w1big.astype(jnp.bfloat16)
    b1big = jnp.tile(b1.astype(jnp.float32), 4).reshape(1, 256)

    # conv2: 9 shift-groups, each [256, 128] (zero rows for taps that fall
    # outside the 5x5 kernel).
    w2g = jnp.zeros((9, 256, 128), jnp.float32)
    for a in range(3):
        for d in range(3):
            for p in range(2):
                kh = 2 * a + p
                if kh >= 5:
                    continue
                for q in range(2):
                    kw = 2 * d + q
                    if kw >= 5:
                        continue
                    blk = w2[:, :, kh, kw].T                      # [cin, cout]
                    g = 2 * p + q
                    w2g = w2g.at[a * 3 + d, g * 64:(g + 1) * 64, :].set(blk)
    w2g = w2g.astype(jnp.bfloat16)
    b2r = b2.reshape(1, 128).astype(jnp.float32)

    # classifier: relaid to the in-kernel y2 layout [i = oh*9 + ow, cout],
    # matching PyTorch's NCHW .view(-1, 7*7*128) flatten order exactly.
    wlr = wl.reshape(128, 7, 7)                                   # [cout, oh, ow]
    wl64 = jnp.zeros((64, 128), jnp.float32)
    for oh in range(7):
        wl64 = wl64.at[oh * 9:oh * 9 + 7, :].set(wlr[:, oh, :].T)
    bl_vec = jnp.full((1, 128), bl.astype(jnp.float32)[0], jnp.float32)

    # Interior mask for the halo-padded plane rows (bias+ReLU would otherwise
    # leave relu(b1) in halo rows, which conv2 must see as exact zeros).
    idx = jnp.arange(96)
    r_ = idx // 9
    c_ = idx % 9
    interior = (r_ >= 1) & (r_ <= 7) & (c_ >= 1) & (c_ <= 7)
    mask = jnp.where(interior, 1.0, 0.0).astype(jnp.float32).reshape(96, 1)

    return (w1big, b1big, mask, w2g, b2r, wl64, bl_vec)


# -----------------------------------------------------------------------------
# Tiny per-call glue: conv1 patches in (batch, plane-flat j, plane*32 + t)
# order, bf16, batch padded to a multiple of the batch tile.  ~25 KB / image.
# -----------------------------------------------------------------------------
def _build_conv1_patches(x_nchw, n_pad):
    n = x_nchw.shape[0]
    x = x_nchw.reshape(n, 28, 28).astype(jnp.bfloat16)
    xp = jnp.pad(x, ((0, 0), (2, 2), (2, 2)))                     # [N,32,32]
    cols = []
    for kh in range(5):
        for kw in range(5):
            cols.append(xp[:, kh:kh + 28:2, kw:kw + 28:2])         # [N,14,14]
    pat = jnp.stack(cols, axis=-1)                                 # [N,oh,ow,25]
    pat = pat.reshape(n, 7, 2, 7, 2, 25)                           # oh=2r+p, ow=2c+q
    pat = pat.transpose(0, 1, 3, 2, 4, 5)                          # [N,r,c,p,q,25]
    pat = pat.reshape(n, 7, 7, 4, 25)                              # plane = 2p+q
    pat = jnp.pad(pat, ((0, 0), (0, 0), (0, 0), (0, 0), (0, 7)))   # t: 25 -> 32
    pat = pat.reshape(n, 7, 7, 128)                                # col = plane*32+t
    pat = jnp.pad(pat, ((0, 0), (1, 1), (1, 1), (0, 0)))           # halo -> 9x9
    pat = pat.reshape(n, 81, 128)
    pat = jnp.pad(pat, ((0, n_pad - n), (0, 15), (0, 0)))          # rows 81->96, batch pad
    return pat.reshape(n_pad * 96, 128)


# -----------------------------------------------------------------------------
# Fused kernel: conv1 + ReLU + conv2 + ReLU + Linear for one batch tile.
# -----------------------------------------------------------------------------
def _disc_fused_kernel(p1_ref, w1_ref, b1_ref, mask_ref, w2_ref, b2_ref,
                       wl_ref, bl_ref, o_ref, y1_scr, *, bt):
    # conv1 (all 4 parity planes at once via the block-diagonal weight),
    # fused bias + ReLU, halo rows zeroed; result stays in VMEM.
    y1 = jnp.dot(p1_ref[...], w1_ref[...], preferred_element_type=jnp.float32)
    y1 = jnp.maximum(y1 + b1_ref[...], 0.0)                        # [bt*96, 256]
    y1 = y1.reshape(bt, 96, 256) * mask_ref[...][None]             # zero halo rows
    y1_scr[...] = y1

    # conv2 as 9 shift-matmuls (4 taps fused along K=256 per shift), f32 acc.
    acc = None
    for a in range(3):
        for d in range(3):
            s = a * 9 + d
            lhs = y1_scr[:, s:s + 64, :].reshape(bt * 64, 256)
            contrib = jnp.dot(lhs.astype(jnp.bfloat16), w2_ref[a * 3 + d],
                              preferred_element_type=jnp.float32)
            acc = contrib if acc is None else acc + contrib
    y2 = jnp.maximum(acc + b2_ref[...], 0.0)                       # [bt*64, 128]

    # classifier: true (unpadded) weights via VPU multiply + reduce; rows of y2
    # that are not real output positions carry zero weight.
    prod = y2.reshape(bt, 64, 128) * wl_ref[...][None]
    out = jnp.sum(jnp.sum(prod, axis=2), axis=1, keepdims=True)    # [bt, 1]
    o_ref[...] = out + bl_ref[...]                                 # lane-dense write


# -----------------------------------------------------------------------------
# Forward (NCHW external interface).
# -----------------------------------------------------------------------------
def discriminator_forward(x_nchw, prepared):
    w1big, b1big, mask, w2g, b2r, wl64, bl_vec = prepared
    n = x_nchw.shape[0]

    # Batch tile: >=2 grid steps for decent batches (v7x megacore), VMEM-safe
    # everywhere (per-step working set ~7 MiB at bt=16).
    bt = 8 if n <= 32 else 16
    n_pad = _round_up(n, bt)
    grid = (n_pad // bt,)

    p1 = _build_conv1_patches(x_nchw, n_pad)                       # [n_pad*96, 128] bf16

    cost = pl.CostEstimate(
        flops=2 * n_pad * (96 * 128 * 256 + 9 * 64 * 256 * 128 + 64 * 128),
        transcendentals=0,
        bytes_accessed=(n_pad * 96 * 128 * 2 + n_pad * 128 * 4
                        + (128 * 256 + 9 * 256 * 128) * 2
                        + (256 + 96 + 128 + 64 * 128 + 128) * 4),
    )

    kernel = functools.partial(_disc_fused_kernel, bt=bt)
    out = pl.pallas_call(
        kernel,
        out_shape=jax.ShapeDtypeStruct((n_pad, 128), jnp.float32),
        grid_spec=pltpu.PrefetchScalarGridSpec(
            num_scalar_prefetch=0,
            grid=grid,
            in_specs=[
                pl.BlockSpec((bt * 96, 128), lambda i: (i, 0)),    # conv1 patches
                pl.BlockSpec((128, 256), lambda i: (0, 0)),        # w1 (block-diag)
                pl.BlockSpec((1, 256), lambda i: (0, 0)),          # b1
                pl.BlockSpec((96, 1), lambda i: (0, 0)),           # halo mask
                pl.BlockSpec((9, 256, 128), lambda i: (0, 0, 0)),  # w2 (grouped)
                pl.BlockSpec((1, 128), lambda i: (0, 0)),          # b2
                pl.BlockSpec((64, 128), lambda i: (0, 0)),         # linear weight
                pl.BlockSpec((1, 128), lambda i: (0, 0)),          # linear bias
            ],
            out_specs=pl.BlockSpec((bt, 128), lambda i: (i, 0)),
            scratch_shapes=[pltpu.VMEM((bt, 96, 256), jnp.float32)],
        ),
        compiler_params=pltpu.CompilerParams(
            dimension_semantics=("parallel",),
        ),
        cost_estimate=cost,
    )(p1, w1big, b1big, mask, w2g, b2r, wl64, bl_vec)

    return out[:n, 0:1]


def init_params(key):
    """Parameters in the original PyTorch layouts."""
    k1, k2, k3 = jax.random.split(key, 3)
    w1 = jax.random.normal(k1, (64, 1, 5, 5), jnp.float32) * 0.05
    b1 = jnp.zeros((64,), jnp.float32)
    w2 = jax.random.normal(k2, (128, 64, 5, 5), jnp.float32) * 0.02
    b2 = jnp.zeros((128,), jnp.float32)
    wl = jax.random.normal(k3, (1, 7 * 7 * 128), jnp.float32) * 0.01
    bl = jnp.zeros((1,), jnp.float32)
    return (w1, b1, w2, b2, wl, bl)


def reference_forward(x, params):
    """Pure-JAX f32 NCHW reference for correctness checking."""
    w1, b1, w2, b2, wl, bl = params
    dn = ("NCHW", "OIHW", "NCHW")
    y = jax.lax.conv_general_dilated(
        x, w1, (2, 2), ((2, 2), (2, 2)), dimension_numbers=dn
    ) + b1[None, :, None, None]
    y = jnp.maximum(y, 0.0)
    y = jax.lax.conv_general_dilated(
        y, w2, (2, 2), ((2, 2), (2, 2)), dimension_numbers=dn
    ) + b2[None, :, None, None]
    y = jnp.maximum(y, 0.0)
    flat = y.reshape(y.shape[0], -1)
    return flat @ wl.T + bl[None, :]


if __name__ == "__main__":
    key = jax.random.PRNGKey(0)
    kx, kp = jax.random.split(key)

    # Input shape fixed by the module: the 7*7*128 flatten implies 28x28, Cin=1.
    x = jax.random.normal(kx, (2, 1, 28, 28), jnp.float32)
    params = init_params(kp)
    prepared = prepare_params(params)

    forward = jax.jit(discriminator_forward)
    out = forward(x, prepared)
    out = jax.block_until_ready(out)

    ref = reference_forward(x, params)
    assert out.shape == (2, 1), out.shape
    # bf16 MXU operands with f32 accumulation -> loose-ish tolerance vs f32 ref.
    assert jnp.allclose(out, ref, atol=5e-2, rtol=5e-2), (out, ref)

    print("KERNEL_OK")
</pallas_src>

<mosaic_0001>
module attributes {stable_mosaic.version = 11 : i64} {
  func.func @_disc_fused_kernel(%arg0: i32, %arg1: memref<768x128xbf16, #tpu.memory_space<vmem>>, %arg2: memref<128x256xbf16, #tpu.memory_space<vmem>>, %arg3: memref<1x256xf32, #tpu.memory_space<vmem>>, %arg4: memref<96x1xf32, #tpu.memory_space<vmem>>, %arg5: memref<9x256x128xbf16, #tpu.memory_space<vmem>>, %arg6: memref<1x128xf32, #tpu.memory_space<vmem>>, %arg7: memref<64x128xf32, #tpu.memory_space<vmem>>, %arg8: memref<1x128xf32, #tpu.memory_space<vmem>>, %arg9: memref<8x128xf32, #tpu.memory_space<vmem>>, %arg10: memref<8x96x256xf32, #tpu.memory_space<vmem>>) attributes {dimension_semantics = [#tpu.dimension_semantics<parallel>], iteration_bounds = array<i64: 1>, scalar_prefetch = 0 : i64, scratch_operands = 1 : i64, tpu.core_type = #tpu.core_type<tc>, window_params = [{transform_indices = @transform_0, window_bounds = array<i64: 768, 128>}, {pipeline_mode = #tpu.pipeline_mode<synchronous>, transform_indices = @transform_1, window_bounds = array<i64: 128, 256>}, {pipeline_mode = #tpu.pipeline_mode<synchronous>, transform_indices = @transform_2, window_bounds = array<i64: 1, 256>}, {pipeline_mode = #tpu.pipeline_mode<synchronous>, transform_indices = @transform_3, window_bounds = array<i64: 96, 1>}, {pipeline_mode = #tpu.pipeline_mode<synchronous>, transform_indices = @transform_4, window_bounds = array<i64: 9, 256, 128>}, {pipeline_mode = #tpu.pipeline_mode<synchronous>, transform_indices = @transform_5, window_bounds = array<i64: 1, 128>}, {pipeline_mode = #tpu.pipeline_mode<synchronous>, transform_indices = @transform_6, window_bounds = array<i64: 64, 128>}, {pipeline_mode = #tpu.pipeline_mode<synchronous>, transform_indices = @transform_7, window_bounds = array<i64: 1, 128>}, {transform_indices = @transform_8, window_bounds = array<i64: 8, 128>}]} {
    %c0 = arith.constant 0 : index
    %c0_0 = arith.constant 0 : index
    %0 = vector.load %arg1[%c0, %c0_0] : memref<768x128xbf16, #tpu.memory_space<vmem>>, vector<768x128xbf16>
    %c0_1 = arith.constant 0 : index
    %c0_2 = arith.constant 0 : index
    %1 = vector.load %arg2[%c0_1, %c0_2] : memref<128x256xbf16, #tpu.memory_space<vmem>>, vector<128x256xbf16>
    %cst = arith.constant dense<0.000000e+00> : vector<768x256xf32>
    %2 = tpu.matmul %0, %1, %cst {dimension_numbers = #tpu.dot_dimension_numbers<[1], [0], [0], [1], [0, 0, 1, 1], [], []>} : vector<768x128xbf16>, vector<128x256xbf16>, vector<768x256xf32> -> vector<768x256xf32>
    %c0_3 = arith.constant 0 : index
    %c0_4 = arith.constant 0 : index
    %3 = vector.load %arg3[%c0_3, %c0_4] : memref<1x256xf32, #tpu.memory_space<vmem>>, vector<1x256xf32>
    %4 = vector.broadcast %3 : vector<1x256xf32> to vector<768x256xf32>
    %5 = arith.addf %2, %4 : vector<768x256xf32>
    %cst_5 = arith.constant 0.000000e+00 : f32
    %6 = vector.broadcast %cst_5 : f32 to vector<768x256xf32>
    %7 = arith.maximumf %5, %6 : vector<768x256xf32>
    %8 = vector.shape_cast %7 : vector<768x256xf32> to vector<8x96x256xf32>
    %c0_6 = arith.constant 0 : index
    %c0_7 = arith.constant 0 : index
    %9 = vector.load %arg4[%c0_6, %c0_7] : memref<96x1xf32, #tpu.memory_space<vmem>>, vector<96x1xf32>
    %10 = vector.shape_cast %9 : vector<96x1xf32> to vector<1x96x1xf32>
    %11 = vector.broadcast %10 : vector<1x96x1xf32> to vector<8x96x256xf32>
    %12 = arith.mulf %8, %11 : vector<8x96x256xf32>
    %c0_8 = arith.constant 0 : index
    %c0_9 = arith.constant 0 : index
    %c0_10 = arith.constant 0 : index
    %13 = vector.load %arg10[%c0_8, %c0_9, %c0_10] : memref<8x96x256xf32, #tpu.memory_space<vmem>>, vector<8x96x256xf32>
    tpu.vector_store %arg10[%c0_8, %c0_9, %c0_10], %12 {strides = array<i32>} : memref<8x96x256xf32, #tpu.memory_space<vmem>>, vector<8x96x256xf32>,
    %c0_11 = arith.constant 0 : index
    %c0_12 = arith.constant 0 : index
    %c0_13 = arith.constant 0 : index
    %14 = vector.load %arg10[%c0_11, %c0_12, %c0_13] : memref<8x96x256xf32, #tpu.memory_space<vmem>>, vector<8x64x256xf32>
    %15 = vector.shape_cast %14 : vector<8x64x256xf32> to vector<512x256xf32>
    %16 = arith.truncf %15 : vector<512x256xf32> to vector<512x256xbf16>
    %c0_14 = arith.constant 0 : index
    %c0_15 = arith.constant 0 : index
    %c0_16 = arith.constant 0 : index
    %17 = vector.load %arg5[%c0_14, %c0_15, %c0_16] : memref<9x256x128xbf16, #tpu.memory_space<vmem>>, vector<1x256x128xbf16>
    %18 = vector.shape_cast %17 : vector<1x256x128xbf16> to vector<256x128xbf16>
    %cst_17 = arith.constant dense<0.000000e+00> : vector<512x128xf32>
    %19 = tpu.matmul %16, %18, %cst_17 {dimension_numbers = #tpu.dot_dimension_numbers<[1], [0], [0], [1], [0, 0, 1, 1], [], []>} : vector<512x256xbf16>, vector<256x128xbf16>, vector<512x128xf32> -> vector<512x128xf32>
    %c0_18 = arith.constant 0 : index
    %c1 = arith.constant 1 : index
    %c0_19 = arith.constant 0 : index
    %20 = vector.load %arg10[%c0_18, %c1, %c0_19] : memref<8x96x256xf32, #tpu.memory_space<vmem>>, vector<8x64x256xf32>
    %21 = vector.shape_cast %20 : vector<8x64x256xf32> to vector<512x256xf32>
    %22 = arith.truncf %21 : vector<512x256xf32> to vector<512x256xbf16>
    %c1_20 = arith.constant 1 : index
    %c0_21 = arith.constant 0 : index
    %c0_22 = arith.constant 0 : index
    %23 = vector.load %arg5[%c1_20, %c0_21, %c0_22] : memref<9x256x128xbf16, #tpu.memory_space<vmem>>, vector<1x256x128xbf16>
    %24 = vector.shape_cast %23 : vector<1x256x128xbf16> to vector<256x128xbf16>
    %cst_23 = arith.constant dense<0.000000e+00> : vector<512x128xf32>
    %25 = tpu.matmul %22, %24, %cst_23 {dimension_numbers = #tpu.dot_dimension_numbers<[1], [0], [0], [1], [0, 0, 1, 1], [], []>} : vector<512x256xbf16>, vector<256x128xbf16>, vector<512x128xf32> -> vector<512x128xf32>
    %26 = arith.addf %19, %25 : vector<512x128xf32>
    %c0_24 = arith.constant 0 : index
    %c2 = arith.constant 2 : index
    %c0_25 = arith.constant 0 : index
    %27 = vector.load %arg10[%c0_24, %c2, %c0_25] : memref<8x96x256xf32, #tpu.memory_space<vmem>>, vector<8x64x256xf32>
    %28 = vector.shape_cast %27 : vector<8x64x256xf32> to vector<512x256xf32>
    %29 = arith.truncf %28 : vector<512x256xf32> to vector<512x256xbf16>
    %c2_26 = arith.constant 2 : index
    %c0_27 = arith.constant 0 : index
    %c0_28 = arith.constant 0 : index
    %30 = vector.load %arg5[%c2_26, %c0_27, %c0_28] : memref<9x256x128xbf16, #tpu.memory_space<vmem>>, vector<1x256x128xbf16>
    %31 = vector.shape_cast %30 : vector<1x256x128xbf16> to vector<256x128xbf16>
    %cst_29 = arith.constant dense<0.000000e+00> : vector<512x128xf32>
    %32 = tpu.matmul %29, %31, %cst_29 {dimension_numbers = #tpu.dot_dimension_numbers<[1], [0], [0], [1], [0, 0, 1, 1], [], []>} : vector<512x256xbf16>, vector<256x128xbf16>, vector<512x128xf32> -> vector<512x128xf32>
    %33 = arith.addf %26, %32 : vector<512x128xf32>
    %c0_30 = arith.constant 0 : index
    %c9 = arith.constant 9 : index
    %c0_31 = arith.constant 0 : index
    %34 = vector.load %arg10[%c0_30, %c9, %c0_31] : memref<8x96x256xf32, #tpu.memory_space<vmem>>, vector<8x64x256xf32>
    %35 = vector.shape_cast %34 : vector<8x64x256xf32> to vector<512x256xf32>
    %36 = arith.truncf %35 : vector<512x256xf32> to vector<512x256xbf16>
    %c3 = arith.constant 3 : index
    %c0_32 = arith.constant 0 : index
    %c0_33 = arith.constant 0 : index
    %37 = vector.load %arg5[%c3, %c0_32, %c0_33] : memref<9x256x128xbf16, #tpu.memory_space<vmem>>, vector<1x256x128xbf16>
    %38 = vector.shape_cast %37 : vector<1x256x128xbf16> to vector<256x128xbf16>
    %cst_34 = arith.constant dense<0.000000e+00> : vector<512x128xf32>
    %39 = tpu.matmul %36, %38, %cst_34 {dimension_numbers = #tpu.dot_dimension_numbers<[1], [0], [0], [1], [0, 0, 1, 1], [], []>} : vector<512x256xbf16>, vector<256x128xbf16>, vector<512x128xf32> -> vector<512x128xf32>
    %40 = arith.addf %33, %39 : vector<512x128xf32>
    %c0_35 = arith.constant 0 : index
    %c10 = arith.constant 10 : index
    %c0_36 = arith.constant 0 : index
    %41 = vector.load %arg10[%c0_35, %c10, %c0_36] : memref<8x96x256xf32, #tpu.memory_space<vmem>>, vector<8x64x256xf32>
    %42 = vector.shape_cast %41 : vector<8x64x256xf32> to vector<512x256xf32>
    %43 = arith.truncf %42 : vector<512x256xf32> to vector<512x256xbf16>
    %c4 = arith.constant 4 : index
    %c0_37 = arith.constant 0 : index
    %c0_38 = arith.constant 0 : index
    %44 = vector.load %arg5[%c4, %c0_37, %c0_38] : memref<9x256x128xbf16, #tpu.memory_space<vmem>>, vector<1x256x128xbf16>
    %45 = vector.shape_cast %44 : vector<1x256x128xbf16> to vector<256x128xbf16>
    %cst_39 = arith.constant dense<0.000000e+00> : vector<512x128xf32>
    %46 = tpu.matmul %43, %45, %cst_39 {dimension_numbers = #tpu.dot_dimension_numbers<[1], [0], [0], [1], [0, 0, 1, 1], [], []>} : vector<512x256xbf16>, vector<256x128xbf16>, vector<512x128xf32> -> vector<512x128xf32>
    %47 = arith.addf %40, %46 : vector<512x128xf32>
    %c0_40 = arith.constant 0 : index
    %c11 = arith.constant 11 : index
    %c0_41 = arith.constant 0 : index
    %48 = vector.load %arg10[%c0_40, %c11, %c0_41] : memref<8x96x256xf32, #tpu.memory_space<vmem>>, vector<8x64x256xf32>
    %49 = vector.shape_cast %48 : vector<8x64x256xf32> to vector<512x256xf32>
    %50 = arith.truncf %49 : vector<512x256xf32> to vector<512x256xbf16>
    %c5 = arith.constant 5 : index
    %c0_42 = arith.constant 0 : index
    %c0_43 = arith.constant 0 : index
    %51 = vector.load %arg5[%c5, %c0_42, %c0_43] : memref<9x256x128xbf16, #tpu.memory_space<vmem>>, vector<1x256x128xbf16>
    %52 = vector.shape_cast %51 : vector<1x256x128xbf16> to vector<256x128xbf16>
    %cst_44 = arith.constant dense<0.000000e+00> : vector<512x128xf32>
    %53 = tpu.matmul %50, %52, %cst_44 {dimension_numbers = #tpu.dot_dimension_numbers<[1], [0], [0], [1], [0, 0, 1, 1], [], []>} : vector<512x256xbf16>, vector<256x128xbf16>, vector<512x128xf32> -> vector<512x128xf32>
    %54 = arith.addf %47, %53 : vector<512x128xf32>
    %c0_45 = arith.constant 0 : index
    %c18 = arith.constant 18 : index
    %c0_46 = arith.constant 0 : index
    %55 = vector.load %arg10[%c0_45, %c18, %c0_46] : memref<8x96x256xf32, #tpu.memory_space<vmem>>, vector<8x64x256xf32>
    %56 = vector.shape_cast %55 : vector<8x64x256xf32> to vector<512x256xf32>
    %57 = arith.truncf %56 : vector<512x256xf32> to vector<512x256xbf16>
    %c6 = arith.constant 6 : index
    %c0_47 = arith.constant 0 : index
    %c0_48 = arith.constant 0 : index
    %58 = vector.load %arg5[%c6, %c0_47, %c0_48] : memref<9x256x128xbf16, #tpu.memory_space<vmem>>, vector<1x256x128xbf16>
    %59 = vector.shape_cast %58 : vector<1x256x128xbf16> to vector<256x128xbf16>
    %cst_49 = arith.constant dense<0.000000e+00> : vector<512x128xf32>
    %60 = tpu.matmul %57, %59, %cst_49 {dimension_numbers = #tpu.dot_dimension_numbers<[1], [0], [0], [1], [0, 0, 1, 1], [], []>} : vector<512x256xbf16>, vector<256x128xbf16>, vector<512x128xf32> -> vector<512x128xf32>
    %61 = arith.addf %54, %60 : vector<512x128xf32>
    %c0_50 = arith.constant 0 : index
    %c19 = arith.constant 19 : index
    %c0_51 = arith.constant 0 : index
    %62 = vector.load %arg10[%c0_50, %c19, %c0_51] : memref<8x96x256xf32, #tpu.memory_space<vmem>>, vector<8x64x256xf32>
    %63 = vector.shape_cast %62 : vector<8x64x256xf32> to vector<512x256xf32>
    %64 = arith.truncf %63 : vector<512x256xf32> to vector<512x256xbf16>
    %c7 = arith.constant 7 : index
    %c0_52 = arith.constant 0 : index
    %c0_53 = arith.constant 0 : index
    %65 = vector.load %arg5[%c7, %c0_52, %c0_53] : memref<9x256x128xbf16, #tpu.memory_space<vmem>>, vector<1x256x128xbf16>
    %66 = vector.shape_cast %65 : vector<1x256x128xbf16> to vector<256x128xbf16>
    %cst_54 = arith.constant dense<0.000000e+00> : vector<512x128xf32>
    %67 = tpu.matmul %64, %66, %cst_54 {dimension_numbers = #tpu.dot_dimension_numbers<[1], [0], [0], [1], [0, 0, 1, 1], [], []>} : vector<512x256xbf16>, vector<256x128xbf16>, vector<512x128xf32> -> vector<512x128xf32>
    %68 = arith.addf %61, %67 : vector<512x128xf32>
    %c0_55 = arith.constant 0 : index
    %c20 = arith.constant 20 : index
    %c0_56 = arith.constant 0 : index
    %69 = vector.load %arg10[%c0_55, %c20, %c0_56] : memref<8x96x256xf32, #tpu.memory_space<vmem>>, vector<8x64x256xf32>
    %70 = vector.shape_cast %69 : vector<8x64x256xf32> to vector<512x256xf32>
    %71 = arith.truncf %70 : vector<512x256xf32> to vector<512x256xbf16>
    %c8 = arith.constant 8 : index
    %c0_57 = arith.constant 0 : index
    %c0_58 = arith.constant 0 : index
    %72 = vector.load %arg5[%c8, %c0_57, %c0_58] : memref<9x256x128xbf16, #tpu.memory_space<vmem>>, vector<1x256x128xbf16>
    %73 = vector.shape_cast %72 : vector<1x256x128xbf16> to vector<256x128xbf16>
    %cst_59 = arith.constant dense<0.000000e+00> : vector<512x128xf32>
    %74 = tpu.matmul %71, %73, %cst_59 {dimension_numbers = #tpu.dot_dimension_numbers<[1], [0], [0], [1], [0, 0, 1, 1], [], []>} : vector<512x256xbf16>, vector<256x128xbf16>, vector<512x128xf32> -> vector<512x128xf32>
    %75 = arith.addf %68, %74 : vector<512x128xf32>
    %c0_60 = arith.constant 0 : index
    %c0_61 = arith.constant 0 : index
    %76 = vector.load %arg6[%c0_60, %c0_61] : memref<1x128xf32, #tpu.memory_space<vmem>>, vector<1x128xf32>
    %77 = vector.broadcast %76 : vector<1x128xf32> to vector<512x128xf32>
    %78 = arith.addf %75, %77 : vector<512x128xf32>
    %cst_62 = arith.constant 0.000000e+00 : f32
    %79 = vector.broadcast %cst_62 : f32 to vector<512x128xf32>
    %80 = arith.maximumf %78, %79 : vector<512x128xf32>
    %81 = vector.shape_cast %80 : vector<512x128xf32> to vector<8x64x128xf32>
    %c0_63 = arith.constant 0 : index
    %c0_64 = arith.constant 0 : index
    %82 = vector.load %arg7[%c0_63, %c0_64] : memref<64x128xf32, #tpu.memory_space<vmem>>, vector<64x128xf32>
    %83 = vector.shape_cast %82 : vector<64x128xf32> to vector<1x64x128xf32>
    %84 = vector.broadcast %83 : vector<1x64x128xf32> to vector<8x64x128xf32>
    %85 = arith.mulf %81, %84 : vector<8x64x128xf32>
    %cst_65 = arith.constant dense<0.000000e+00> : vector<8x64xf32>
    %86 = vector.multi_reduction <add>, %85, %cst_65 [2] : vector<8x64x128xf32> to vector<8x64xf32>
    %cst_66 = arith.constant dense<0.000000e+00> : vector<8xf32>
    %87 = vector.multi_reduction <add>, %86, %cst_66 [1] : vector<8x64xf32> to vector<8xf32>
    %88 = vector.shape_cast %87 : vector<8xf32> to vector<8x1xf32>
    %c0_67 = arith.constant 0 : index
    %c0_68 = arith.constant 0 : index
    %89 = vector.load %arg8[%c0_67, %c0_68] : memref<1x128xf32, #tpu.memory_space<vmem>>, vector<1x128xf32>
    %90 = vector.broadcast %88 : vector<8x1xf32> to vector<8x128xf32>
    %91 = vector.broadcast %89 : vector<1x128xf32> to vector<8x128xf32>
    %92 = arith.addf %90, %91 : vector<8x128xf32>
    %c0_69 = arith.constant 0 : index
    %c0_70 = arith.constant 0 : index
    %93 = vector.load %arg9[%c0_69, %c0_70] : memref<8x128xf32, #tpu.memory_space<vmem>>, vector<8x128xf32>
    tpu.vector_store %arg9[%c0_69, %c0_70], %92 {strides = array<i32>} : memref<8x128xf32, #tpu.memory_space<vmem>>, vector<8x128xf32>,
    return
  }
  func.func @transform_0(%arg0: i32) -> (i32, i32) {
    %c0_i32 = arith.constant 0 : i32
    %c0_i32_0 = arith.constant 0 : i32
    return %arg0, %c0_i32 : i32, i32
  }
  func.func @transform_1(%arg0: i32) -> (i32, i32) {
    %c0_i32 = arith.constant 0 : i32
    %c0_i32_0 = arith.constant 0 : i32
    %c0_i32_1 = arith.constant 0 : i32
    return %c0_i32, %c0_i32_0 : i32, i32
  }
  func.func @transform_2(%arg0: i32) -> (i32, i32) {
    %c0_i32 = arith.constant 0 : i32
    %c0_i32_0 = arith.constant 0 : i32
    %c0_i32_1 = arith.constant 0 : i32
    return %c0_i32, %c0_i32_0 : i32, i32
  }
  func.func @transform_3(%arg0: i32) -> (i32, i32) {
    %c0_i32 = arith.constant 0 : i32
    %c0_i32_0 = arith.constant 0 : i32
    %c0_i32_1 = arith.constant 0 : i32
    return %c0_i32, %c0_i32_0 : i32, i32
  }
  func.func @transform_4(%arg0: i32) -> (i32, i32, i32) {
    %c0_i32 = arith.constant 0 : i32
    %c0_i32_0 = arith.constant 0 : i32
    %c0_i32_1 = arith.constant 0 : i32
    %c0_i32_2 = arith.constant 0 : i32
    return %c0_i32, %c0_i32_0, %c0_i32_1 : i32, i32, i32
  }
  func.func @transform_5(%arg0: i32) -> (i32, i32) {
    %c0_i32 = arith.constant 0 : i32
    %c0_i32_0 = arith.constant 0 : i32
    %c0_i32_1 = arith.constant 0 : i32
    return %c0_i32, %c0_i32_0 : i32, i32
  }
  func.func @transform_6(%arg0: i32) -> (i32, i32) {
    %c0_i32 = arith.constant 0 : i32
    %c0_i32_0 = arith.constant 0 : i32
    %c0_i32_1 = arith.constant 0 : i32
    return %c0_i32, %c0_i32_0 : i32, i32
  }
  func.func @transform_7(%arg0: i32) -> (i32, i32) {
    %c0_i32 = arith.constant 0 : i32
    %c0_i32_0 = arith.constant 0 : i32
    %c0_i32_1 = arith.constant 0 : i32
    return %c0_i32, %c0_i32_0 : i32, i32
  }
  func.func @transform_8(%arg0: i32) -> (i32, i32) {
    %c0_i32 = arith.constant 0 : i32
    %c0_i32_0 = arith.constant 0 : i32
    return %arg0, %c0_i32 : i32, i32
  }
}

</mosaic_0001>

<llo_original>
// kernel: discriminator_forward.1
$region0: #{discriminator_forward.1}
  #allocation0 [shape = 'u32[]', space=smem, size = 0x4, offset = 0x4, fixed_abs, tag = 'smem constant byte address 0x4 - core index']
  #allocation1 [shape = 'u32[144,128]{1,0:T(1,128)}', space=vmem, size = 0x12000, scoped, tag = 'internal scratch']
  #allocation2 [shape = 'f32[8,96,256]{2,1,0:T(8,128)}', space=vmem, size = 0xc0000, scoped, tag = 'scratch operand']
  %s0 = inlined_call_operand.vmem [shape: bf16[768,128], index: 0, kind: input, shape index: {}]
  %s1 = inlined_call_operand.vmem [shape: bf16[128,256], index: 1, kind: input, shape index: {}]
  %s2 = inlined_call_operand.vmem [shape: f32[1,256], index: 2, kind: input, shape index: {}]
  %s3 = inlined_call_operand.vmem [shape: f32[96,1], index: 3, kind: input, shape index: {}]
  %s4 = inlined_call_operand.vmem [shape: bf16[9,256,128], index: 4, kind: input, shape index: {}]
  %s5 = inlined_call_operand.vmem [shape: f32[1,128], index: 5, kind: input, shape index: {}]
  %s6 = inlined_call_operand.vmem [shape: f32[64,128], index: 6, kind: input, shape index: {}]
  %s7 = inlined_call_operand.vmem [shape: f32[1,128], index: 7, kind: input, shape index: {}]
  %s8 = inlined_call_operand.vmem [shape: f32[8,128], index: 8, kind: output, shape index: {}]
  %s9 = sld [smem:[#allocation0]]
  $region42: #{discriminator_forward.1} parent=0
    _
  %s11 = ssub.s32 1, %s9
  %s12 = scalar_select 0, %s11, %s9
  // Predicated region
  $region2: #{discriminator_forward.1} parent=0 // pred_check
    _
  $region3: #{discriminator_forward.1} parent=0 // pred_check_branch
    %14 = sbr.rel (0) target = $region5
  $region4: #{discriminator_forward.1} parent=0 // pred_region
    _
  $region5: #{discriminator_forward.1} parent=0 // pred_fallthru
    _
  // Predicated region
  $region6: #{discriminator_forward.1} parent=0 // pred_check
    _
  $region7: #{discriminator_forward.1} parent=0 // pred_check_branch
    %16 = sbr.rel (0) target = $region9
  $region8: #{discriminator_forward.1} parent=0 // pred_region
    _
  $region9: #{discriminator_forward.1} parent=0 // pred_fallthru
    _
  // Predicated region
  $region10: #{discriminator_forward.1} parent=0 // pred_check
    _
  $region11: #{discriminator_forward.1} parent=0 // pred_check_branch
    %18 = sbr.rel (0) target = $region13
  $region12: #{discriminator_forward.1} parent=0 // pred_region
    _
  $region13: #{discriminator_forward.1} parent=0 // pred_fallthru
    _
  // Predicated region
  $region14: #{discriminator_forward.1} parent=0 // pred_check
    _
  $region15: #{discriminator_forward.1} parent=0 // pred_check_branch
    %20 = sbr.rel (0) target = $region17
  $region16: #{discriminator_forward.1} parent=0 // pred_region
    _
  $region17: #{discriminator_forward.1} parent=0 // pred_fallthru
    _
  // Predicated region
  $region18: #{discriminator_forward.1} parent=0 // pred_check
    _
  $region19: #{discriminator_forward.1} parent=0 // pred_check_branch
    %22 = sbr.rel (0) target = $region21
  $region20: #{discriminator_forward.1} parent=0 // pred_region
    _
  $region21: #{discriminator_forward.1} parent=0 // pred_fallthru
    _
  // Predicated region
  $region22: #{discriminator_forward.1} parent=0 // pred_check
    _
  $region23: #{discriminator_forward.1} parent=0 // pred_check_branch
    %24 = sbr.rel (0) target = $region25
  $region24: #{discriminator_forward.1} parent=0 // pred_region
    _
  $region25: #{discriminator_forward.1} parent=0 // pred_fallthru
    _
  // Predicated region
  $region26: #{discriminator_forward.1} parent=0 // pred_check
    _
  $region27: #{discriminator_forward.1} parent=0 // pred_check_branch
    %26 = sbr.rel (0) target = $region29
  $region28: #{discriminator_forward.1} parent=0 // pred_region
    _
  $region29: #{discriminator_forward.1} parent=0 // pred_fallthru
    _
  // Predicated region
  $region30: #{discriminator_forward.1} parent=0 // pred_check
    _
  $region31: #{discriminator_forward.1} parent=0 // pred_check_branch
    %28 = sbr.rel (0) target = $region33
  $region32: #{discriminator_forward.1} parent=0 // pred_region
    _
  $region33: #{discriminator_forward.1} parent=0 // pred_fallthru
    _
  %v30 = vld [vmem:[%s0] sm:$0xf]
  %v31 = vld [vmem:[%s0 + $0x4] sm:$0xf]
  %v32 = vld [vmem:[%s0 + $0x8] sm:$0xf]
  %v33 = vld [vmem:[%s0 + $0xc] sm:$0xf]
  %v34 = vld [vmem:[%s0 + $0x10] sm:$0xf]
  %v35 = vld [vmem:[%s0 + $0x14] sm:$0xf]
  %v36 = vld [vmem:[%s0 + $0x18] sm:$0xf]
  %v37 = vld [vmem:[%s0 + $0x1c] sm:$0xf]
  %v38 = vld [vmem:[%s0 + $0x20] sm:$0xf]
  %v39 = vld [vmem:[%s0 + $0x24] sm:$0xf]
  %v40 = vld [vmem:[%s0 + $0x28] sm:$0xf]
  %v41 = vld [vmem:[%s0 + $0x2c] sm:$0xf]
  %v42 = vld [vmem:[%s0 + $0x30] sm:$0xf]
  %v43 = vld [vmem:[%s0 + $0x34] sm:$0xf]
  %v44 = vld [vmem:[%s0 + $0x38] sm:$0xf]
  %v45 = vld [vmem:[%s0 + $0x3c] sm:$0xf]
  %v46 = vld [vmem:[%s0 + $0x40] sm:$0xf]
  %v47 = vld [vmem:[%s0 + $0x44] sm:$0xf]
  %v48 = vld [vmem:[%s0 + $0x48] sm:$0xf]
  %v49 = vld [vmem:[%s0 + $0x4c] sm:$0xf]
  %v50 = vld [vmem:[%s0 + $0x50] sm:$0xf]
  %v51 = vld [vmem:[%s0 + $0x54] sm:$0xf]
  %v52 = vld [vmem:[%s0 + $0x58] sm:$0xf]
  %v53 = vld [vmem:[%s0 + $0x5c] sm:$0xf]
  %v54 = vld [vmem:[%s0 + $0x60] sm:$0xf]
  %v55 = vld [vmem:[%s0 + $0x64] sm:$0xf]
  %v56 = vld [vmem:[%s0 + $0x68] sm:$0xf]
  %v57 = vld [vmem:[%s0 + $0x6c] sm:$0xf]
  %v58 = vld [vmem:[%s0 + $0x70] sm:$0xf]
  %v59 = vld [vmem:[%s0 + $0x74] sm:$0xf]
  %v60 = vld [vmem:[%s0 + $0x78] sm:$0xf]
  %v61 = vld [vmem:[%s0 + $0x7c] sm:$0xf]
  %v62 = vld [vmem:[%s0 + $0x80] sm:$0xf]
  %v63 = vld [vmem:[%s0 + $0x84] sm:$0xf]
  %v64 = vld [vmem:[%s0 + $0x88] sm:$0xf]
  %v65 = vld [vmem:[%s0 + $0x8c] sm:$0xf]
  %v66 = vld [vmem:[%s0 + $0x90] sm:$0xf]
  %v67 = vld [vmem:[%s0 + $0x94] sm:$0xf]
  %v68 = vld [vmem:[%s0 + $0x98] sm:$0xf]
  %v69 = vld [vmem:[%s0 + $0x9c] sm:$0xf]
  %v70 = vld [vmem:[%s0 + $0xa0] sm:$0xf]
  %v71 = vld [vmem:[%s0 + $0xa4] sm:$0xf]
  %v72 = vld [vmem:[%s0 + $0xa8] sm:$0xf]
  %v73 = vld [vmem:[%s0 + $0xac] sm:$0xf]
  %v74 = vld [vmem:[%s0 + $0xb0] sm:$0xf]
  %v75 = vld [vmem:[%s0 + $0xb4] sm:$0xf]
  %v76 = vld [vmem:[%s0 + $0xb8] sm:$0xf]
  %v77 = vld [vmem:[%s0 + $0xbc] sm:$0xf]
  %v78 = vld [vmem:[%s0 + $0xc0] sm:$0xf]
  %v79 = vld [vmem:[%s0 + $0xc4] sm:$0xf]
  %v80 = vld [vmem:[%s0 + $0xc8] sm:$0xf]
  %v81 = vld [vmem:[%s0 + $0xcc] sm:$0xf]
  %v82 = vld [vmem:[%s0 + $0xd0] sm:$0xf]
  %v83 = vld [vmem:[%s0 + $0xd4] sm:$0xf]
  %v84 = vld [vmem:[%s0 + $0xd8] sm:$0xf]
  %v85 = vld [vmem:[%s0 + $0xdc] sm:$0xf]
  %v86 = vld [vmem:[%s0 + $0xe0] sm:$0xf]
  %v87 = vld [vmem:[%s0 + $0xe4] sm:$0xf]
  %v88 = vld [vmem:[%s0 + $0xe8] sm:$0xf]
  %v89 = vld [vmem:[%s0 + $0xec] sm:$0xf]
  %v90 = vld [vmem:[%s0 + $0xf0] sm:$0xf]
  %v91 = vld [vmem:[%s0 + $0xf4] sm:$0xf]
  %v92 = vld [vmem:[%s0 + $0xf8] sm:$0xf]
  %v93 = vld [vmem:[%s0 + $0xfc] sm:$0xf]
  %v94 = vld [vmem:[%s0 + $0x100] sm:$0xf]
  %v95 = vld [vmem:[%s0 + $0x104] sm:$0xf]
  %v96 = vld [vmem:[%s0 + $0x108] sm:$0xf]
  %v97 = vld [vmem:[%s0 + $0x10c] sm:$0xf]
  %v98 = vld [vmem:[%s0 + $0x110] sm:$0xf]
  %v99 = vld [vmem:[%s0 + $0x114] sm:$0xf]
  %v100 = vld [vmem:[%s0 + $0x118] sm:$0xf]
  %v101 = vld [vmem:[%s0 + $0x11c] sm:$0xf]
  %v102 = vld [vmem:[%s0 + $0x120] sm:$0xf]
  %v103 = vld [vmem:[%s0 + $0x124] sm:$0xf]
  %v104 = vld [vmem:[%s0 + $0x128] sm:$0xf]
  %v105 = vld [vmem:[%s0 + $0x12c] sm:$0xf]
  %v106 = vld [vmem:[%s0 + $0x130] sm:$0xf]
  %v107 = vld [vmem:[%s0 + $0x134] sm:$0xf]
  %v108 = vld [vmem:[%s0 + $0x138] sm:$0xf]
  %v109 = vld [vmem:[%s0 + $0x13c] sm:$0xf]
  %v110 = vld [vmem:[%s0 + $0x140] sm:$0xf]
  %v111 = vld [vmem:[%s0 + $0x144] sm:$0xf]
  %v112 = vld [vmem:[%s0 + $0x148] sm:$0xf]
  %v113 = vld [vmem:[%s0 + $0x14c] sm:$0xf]
  %v114 = vld [vmem:[%s0 + $0x150] sm:$0xf]
  %v115 = vld [vmem:[%s0 + $0x154] sm:$0xf]
  %v116 = vld [vmem:[%s0 + $0x158] sm:$0xf]
  %v117 = vld [vmem:[%s0 + $0x15c] sm:$0xf]
  %v118 = vld [vmem:[%s0 + $0x160] sm:$0xf]
  %v119 = vld [vmem:[%s0 + $0x164] sm:$0xf]
  %v120 = vld [vmem:[%s0 + $0x168] sm:$0xf]
  %v121 = vld [vmem:[%s0 + $0x16c] sm:$0xf]
  %v122 = vld [vmem:[%s0 + $0x170] sm:$0xf]
  %v123 = vld [vmem:[%s0 + $0x174] sm:$0xf]
  %v124 = vld [vmem:[%s0 + $0x178] sm:$0xf]
  %v125 = vld [vmem:[%s0 + $0x17c] sm:$0xf]
  %v126 = vld [vmem:[%s1] sm:$0xff]
  %v127 = vld [vmem:[%s1 + $0x8] sm:$0xff]
  %v128 = vld [vmem:[%s1 + $0x10] sm:$0xff]
  %v129 = vld [vmem:[%s1 + $0x18] sm:$0xff]
  %v130 = vld [vmem:[%s1 + $0x20] sm:$0xff]
  %v131 = vld [vmem:[%s1 + $0x28] sm:$0xff]
  %v132 = vld [vmem:[%s1 + $0x30] sm:$0xff]
  %v133 = vld [vmem:[%s1 + $0x38] sm:$0xff]
  %v134 = vld [vmem:[%s1 + $0x40] sm:$0xff]
  %v135 = vld [vmem:[%s1 + $0x48] sm:$0xff]
  %v136 = vld [vmem:[%s1 + $0x50] sm:$0xff]
  %v137 = vld [vmem:[%s1 + $0x58] sm:$0xff]
  %v138 = vld [vmem:[%s1 + $0x60] sm:$0xff]
  %v139 = vld [vmem:[%s1 + $0x68] sm:$0xff]
  %v140 = vld [vmem:[%s1 + $0x70] sm:$0xff]
  %v141 = vld [vmem:[%s1 + $0x78] sm:$0xff]
  %v142 = vld [vmem:[%s2] sm:$0x3]
  %v144 = vlaneseq
  %v145 = vshrl.u32 %v144, 7
  %v146 = vsub.s32 0, %v145
  %v147 = vrot.slane %v142, %v146
  %v148 = vlaneseq
  %v149 = vshrl.u32 %v148, 7
  %v150 = vsub.s32 1, %v149
  %v151 = vrot.slane %v142, %v150
  %v250 = vunpack.c.l.b16 %v30
  %v251 = vunpack.c.l.b16 %v31
  %v252 = vunpack.c.l.b16 %v32
  %v253 = vunpack.c.l.b16 %v33
  %v254 = vunpack.c.l.b16 %v34
  %v255 = vunpack.c.l.b16 %v35
  %v256 = vunpack.c.l.b16 %v36
  %v257 = vunpack.c.l.b16 %v37
  %v258 = vunpack.c.l.b16 %v38
  %v259 = vunpack.c.l.b16 %v39
  %v260 = vunpack.c.l.b16 %v40
  %v261 = vunpack.c.l.b16 %v41
  %v262 = vunpack.c.l.b16 %v42
  %v263 = vunpack.c.l.b16 %v43
  %v264 = vunpack.c.l.b16 %v44
  %v265 = vunpack.c.l.b16 %v45
  %v266 = vunpack.c.l.b16 %v46
  %v267 = vunpack.c.l.b16 %v47
  %v268 = vunpack.c.l.b16 %v48
  %v269 = vunpack.c.l.b16 %v49
  %v270 = vunpack.c.l.b16 %v50
  %v271 = vunpack.c.l.b16 %v51
  %v272 = vunpack.c.l.b16 %v52
  %v273 = vunpack.c.l.b16 %v53
  %v274 = vunpack.c.l.b16 %v54
  %v275 = vunpack.c.l.b16 %v55
  %v276 = vunpack.c.l.b16 %v56
  %v277 = vunpack.c.l.b16 %v57
  %v278 = vunpack.c.l.b16 %v58
  %v279 = vunpack.c.l.b16 %v59
  %v280 = vunpack.c.l.b16 %v60
  %v281 = vunpack.c.l.b16 %v61
  %v282 = vunpack.c.l.b16 %v62
  %v283 = vunpack.c.l.b16 %v63
  %v284 = vunpack.c.l.b16 %v64
  %v285 = vunpack.c.l.b16 %v65
  %v286 = vunpack.c.l.b16 %v66
  %v287 = vunpack.c.l.b16 %v67
  %v288 = vunpack.c.l.b16 %v68
  %v289 = vunpack.c.l.b16 %v69
  %v290 = vunpack.c.l.b16 %v70
  %v291 = vunpack.c.l.b16 %v71
  %v292 = vunpack.c.l.b16 %v72
  %v293 = vunpack.c.l.b16 %v73
  %v294 = vunpack.c.l.b16 %v74
  %v295 = vunpack.c.l.b16 %v75
  %v296 = vunpack.c.l.b16 %v76
  %v297 = vunpack.c.l.b16 %v77
  %v298 = vunpack.c.l.b16 %v78
  %v299 = vunpack.c.l.b16 %v79
  %v300 = vunpack.c.l.b16 %v80
  %v301 = vunpack.c.l.b16 %v81
  %v302 = vunpack.c.l.b16 %v82
  %v303 = vunpack.c.l.b16 %v83
  %v304 = vunpack.c.l.b16 %v84
  %v305 = vunpack.c.l.b16 %v85
  %v306 = vunpack.c.l.b16 %v86
  %v307 = vunpack.c.l.b16 %v87
  %v308 = vunpack.c.l.b16 %v88
  %v309 = vunpack.c.l.b16 %v89
  %v310 = vunpack.c.l.b16 %v90
  %v311 = vunpack.c.l.b16 %v91
  %v312 = vunpack.c.l.b16 %v92
  %v313 = vunpack.c.l.b16 %v93
  %v314 = vunpack.c.l.b16 %v94
  %v315 = vunpack.c.l.b16 %v95
  %v316 = vunpack.c.l.b16 %v96
  %v317 = vunpack.c.l.b16 %v97
  %v318 = vunpack.c.l.b16 %v98
  %v319 = vunpack.c.l.b16 %v99
  %v320 = vunpack.c.l.b16 %v100
  %v321 = vunpack.c.l.b16 %v101
  %v322 = vunpack.c.l.b16 %v102
  %v323 = vunpack.c.l.b16 %v103
  %v324 = vunpack.c.l.b16 %v104
  %v325 = vunpack.c.l.b16 %v105
  %v326 = vunpack.c.l.b16 %v106
  %v327 = vunpack.c.l.b16 %v107
  %v328 = vunpack.c.l.b16 %v108
  %v329 = vunpack.c.l.b16 %v109
  %v330 = vunpack.c.l.b16 %v110
  %v331 = vunpack.c.l.b16 %v111
  %v332 = vunpack.c.l.b16 %v112
  %v333 = vunpack.c.l.b16 %v113
  %v334 = vunpack.c.l.b16 %v114
  %v335 = vunpack.c.l.b16 %v115
  %v336 = vunpack.c.l.b16 %v116
  %v337 = vunpack.c.l.b16 %v117
  %v338 = vunpack.c.l.b16 %v118
  %v339 = vunpack.c.l.b16 %v119
  %v340 = vunpack.c.l.b16 %v120
  %v341 = vunpack.c.l.b16 %v121
  %v342 = vunpack.c.l.b16 %v122
  %v343 = vunpack.c.l.b16 %v123
  %v344 = vunpack.c.l.b16 %v124
  %v345 = vunpack.c.l.b16 %v125
  %v346 = vpack.c.b16 %v251, %v250
  %v347 = vpack.c.b16 %v253, %v252
  %v348 = vpack.c.b16 %v255, %v254
  %v349 = vpack.c.b16 %v257, %v256
  %v350 = vpack.c.b16 %v259, %v258
  %v351 = vpack.c.b16 %v261, %v260
  %v352 = vpack.c.b16 %v263, %v262
  %v353 = vpack.c.b16 %v265, %v264
  %v354 = vpack.c.b16 %v267, %v266
  %v355 = vpack.c.b16 %v269, %v268
  %v356 = vpack.c.b16 %v271, %v270
  %v357 = vpack.c.b16 %v273, %v272
  %v358 = vpack.c.b16 %v275, %v274
  %v359 = vpack.c.b16 %v277, %v276
  %v360 = vpack.c.b16 %v279, %v278
  %v361 = vpack.c.b16 %v281, %v280
  %v362 = vpack.c.b16 %v283, %v282
  %v363 = vpack.c.b16 %v285, %v284
  %v364 = vpack.c.b16 %v287, %v286
  %v365 = vpack.c.b16 %v289, %v288
  %v366 = vpack.c.b16 %v291, %v290
  %v367 = vpack.c.b16 %v293, %v292
  %v368 = vpack.c.b16 %v295, %v294
  %v369 = vpack.c.b16 %v297, %v296
  %v370 = vpack.c.b16 %v299, %v298
  %v371 = vpack.c.b16 %v301, %v300
  %v372 = vpack.c.b16 %v303, %v302
  %v373 = vpack.c.b16 %v305, %v304
  %v374 = vpack.c.b16 %v307, %v306
  %v375 = vpack.c.b16 %v309, %v308
  %v376 = vpack.c.b16 %v311, %v310
  %v377 = vpack.c.b16 %v313, %v312
  %v378 = vpack.c.b16 %v315, %v314
  %v379 = vpack.c.b16 %v317, %v316
  %v380 = vpack.c.b16 %v319, %v318
  %v381 = vpack.c.b16 %v321, %v320
  %v382 = vpack.c.b16 %v323, %v322
  %v383 = vpack.c.b16 %v325, %v324
  %v384 = vpack.c.b16 %v327, %v326
  %v385 = vpack.c.b16 %v329, %v328
  %v386 = vpack.c.b16 %v331, %v330
  %v387 = vpack.c.b16 %v333, %v332
  %v388 = vpack.c.b16 %v335, %v334
  %v389 = vpack.c.b16 %v337, %v336
  %v390 = vpack.c.b16 %v339, %v338
  %v391 = vpack.c.b16 %v341, %v340
  %v392 = vpack.c.b16 %v343, %v342
  %v393 = vpack.c.b16 %v345, %v344
  %v458 = vunpack.c.l.b16 %v126
  %v459 = vunpack.c.h.b16 %v126
  %v460 = vunpack.c.l.b16 %v127
  %v461 = vunpack.c.h.b16 %v127
  %v462 = vunpack.c.l.b16 %v128
  %v463 = vunpack.c.h.b16 %v128
  %v464 = vunpack.c.l.b16 %v129
  %v465 = vunpack.c.h.b16 %v129
  %v466 = vunpack.c.l.b16 %v130
  %v467 = vunpack.c.h.b16 %v130
  %v468 = vunpack.c.l.b16 %v131
  %v469 = vunpack.c.h.b16 %v131
  %v470 = vunpack.c.l.b16 %v132
  %v471 = vunpack.c.h.b16 %v132
  %v472 = vunpack.c.l.b16 %v133
  %v473 = vunpack.c.h.b16 %v133
  %v474 = vunpack.c.l.b16 %v134
  %v475 = vunpack.c.h.b16 %v134
  %v476 = vunpack.c.l.b16 %v135
  %v477 = vunpack.c.h.b16 %v135
  %v478 = vunpack.c.l.b16 %v136
  %v479 = vunpack.c.h.b16 %v136
  %v480 = vunpack.c.l.b16 %v137
  %v481 = vunpack.c.h.b16 %v137
  %v482 = vunpack.c.l.b16 %v138
  %v483 = vunpack.c.h.b16 %v138
  %v484 = vunpack.c.l.b16 %v139
  %v485 = vunpack.c.h.b16 %v139
  %v486 = vunpack.c.l.b16 %v140
  %v487 = vunpack.c.h.b16 %v140
  %v488 = vunpack.c.l.b16 %v141
  %v489 = vunpack.c.h.b16 %v141
  %v490 = vpack.c.b16 %v460, %v458
  %v491 = vpack.c.b16 %v461, %v459
  %v492 = vpack.c.b16 %v464, %v462
  %v493 = vpack.c.b16 %v465, %v463
  %v494 = vpack.c.b16 %v468, %v466
  %v495 = vpack.c.b16 %v469, %v467
  %v496 = vpack.c.b16 %v472, %v470
  %v497 = vpack.c.b16 %v473, %v471
  %v498 = vpack.c.b16 %v476, %v474
  %v499 = vpack.c.b16 %v477, %v475
  %v500 = vpack.c.b16 %v480, %v478
  %v501 = vpack.c.b16 %v481, %v479
  %v502 = vpack.c.b16 %v484, %v482
  %v503 = vpack.c.b16 %v485, %v483
  %v504 = vpack.c.b16 %v488, %v486
  %v505 = vpack.c.b16 %v489, %v487
  %522 = vmatprep.subr.bf16.mxu0 %v491
  %523 = vmatpush1.bf16.msra.mxu0 %v490
  %524 = vmatprep.subr.bf16.mxu0 %v493
  %525 = vmatpush1.bf16.msra.mxu0 %v492
  %526 = vmatprep.subr.bf16.mxu0 %v495
  %527 = vmatpush1.bf16.msra.mxu0 %v494
  %528 = vmatprep.subr.bf16.mxu0 %v497
  %529 = vmatpush1.bf16.msra.mxu0 %v496
  %530 = vmatprep.subr.bf16.mxu0 %v499
  %531 = vmatpush1.bf16.msra.mxu0 %v498
  %532 = vmatprep.subr.bf16.mxu0 %v501
  %533 = vmatpush1.bf16.msra.mxu0 %v500
  %534 = vmatprep.subr.bf16.mxu0 %v503
  %535 = vmatpush1.bf16.msra.mxu0 %v502
  %536 = vmatprep.subr.bf16.mxu0 %v505
  %537 = vmatpush1.bf16.msra.mxu0 %v504
  %538 = vmatprep.subr.bf16.mxu0 0
  %539 = vmatpush1.bf16.msra.mxu0 0
  %540 = vmatprep.subr.bf16.mxu0 0
  %541 = vmatpush1.bf16.msra.mxu0 0
  %542 = vmatprep.subr.bf16.mxu0 0
  %543 = vmatpush1.bf16.msra.mxu0 0
  %544 = vmatprep.subr.bf16.mxu0 0
  %545 = vmatpush1.bf16.msra.mxu0 0
  %546 = vmatprep.subr.bf16.mxu0 0
  %547 = vmatpush1.bf16.msra.mxu0 0
  %548 = vmatprep.subr.bf16.mxu0 0
  %549 = vmatpush1.bf16.msra.mxu0 0
  %550 = vmatprep.subr.bf16.mxu0 0
  %551 = vmatpush1.bf16.msra.mxu0 0
  %552 = vmatprep.subr.bf16.mxu0 0
  %553 = vmatpush1.bf16.msra.mxu0 0
  %554 = vmatprep.mubr.bf16.mxu0 0
  %555 = vmatmul.mubr.bf16.gmra.mrb[0].mxu0 %v346
  %v556 = vpop.f32.mrb[0].mxu0
  %v557 = vadd.f32 %v147, %v556
  %v558 = vpop.f32.mrb[0].mxu0
  %v559 = vadd.f32 %v151, %v558
  %v560 = vpop.f32.mrb[0].mxu0
  %v561 = vadd.f32 %v147, %v560
  %v562 = vpop.f32.mrb[0].mxu0
  %v563 = vadd.f32 %v151, %v562
  %564 = vmatprep.mubr.bf16.mxu0 0
  %565 = vmatmul.mubr.bf16.gmra.mrb[0].mxu0 %v347
  %v566 = vpop.f32.mrb[0].mxu0
  %v567 = vadd.f32 %v147, %v566
  %v568 = vpop.f32.mrb[0].mxu0
  %v569 = vadd.f32 %v151, %v568
  %v570 = vpop.f32.mrb[0].mxu0
  %v571 = vadd.f32 %v147, %v570
  %v572 = vpop.f32.mrb[0].mxu0
  %v573 = vadd.f32 %v151, %v572
  %574 = vmatprep.mubr.bf16.mxu0 0
  %575 = vmatmul.mubr.bf16.gmra.mrb[0].mxu0 %v348
  %v576 = vpop.f32.mrb[0].mxu0
  %v577 = vadd.f32 %v147, %v576
  %v578 = vpop.f32.mrb[0].mxu0
  %v579 = vadd.f32 %v151, %v578
  %v580 = vpop.f32.mrb[0].mxu0
  %v581 = vadd.f32 %v147, %v580
  %v582 = vpop.f32.mrb[0].mxu0
  %v583 = vadd.f32 %v151, %v582
  %584 = vmatprep.mubr.bf16.mxu0 0
  %585 = vmatmul.mubr.bf16.gmra.mrb[0].mxu0 %v349
  %v586 = vpop.f32.mrb[0].mxu0
  %v587 = vadd.f32 %v147, %v586
  %v588 = vpop.f32.mrb[0].mxu0
  %v589 = vadd.f32 %v151, %v588
  %v590 = vpop.f32.mrb[0].mxu0
  %v591 = vadd.f32 %v147, %v590
  %v592 = vpop.f32.mrb[0].mxu0
  %v593 = vadd.f32 %v151, %v592
  %594 = vmatprep.mubr.bf16.mxu0 0
  %595 = vmatmul.mubr.bf16.gmra.mrb[0].mxu0 %v350
  %v596 = vpop.f32.mrb[0].mxu0
  %v597 = vadd.f32 %v147, %v596
  %v598 = vpop.f32.mrb[0].mxu0
  %v599 = vadd.f32 %v151, %v598
  %v600 = vpop.f32.mrb[0].mxu0
  %v601 = vadd.f32 %v147, %v600
  %v602 = vpop.f32.mrb[0].mxu0
  %v603 = vadd.f32 %v151, %v602
  %604 = vmatprep.mubr.bf16.mxu0 0
  %605 = vmatmul.mubr.bf16.gmra.mrb[0].mxu0 %v351
  %v606 = vpop.f32.mrb[0].mxu0
  %v607 = vadd.f32 %v147, %v606
  %v608 = vpop.f32.mrb[0].mxu0
  %v609 = vadd.f32 %v151, %v608
  %v610 = vpop.f32.mrb[0].mxu0
  %v611 = vadd.f32 %v147, %v610
  %v612 = vpop.f32.mrb[0].mxu0
  %v613 = vadd.f32 %v151, %v612
  %614 = vmatprep.mubr.bf16.mxu0 0
  %615 = vmatmul.mubr.bf16.gmra.mrb[0].mxu0 %v352
  %v616 = vpop.f32.mrb[0].mxu0
  %v617 = vadd.f32 %v147, %v616
  %v618 = vpop.f32.mrb[0].mxu0
  %v619 = vadd.f32 %v151, %v618
  %v620 = vpop.f32.mrb[0].mxu0
  %v621 = vadd.f32 %v147, %v620
  %v622 = vpop.f32.mrb[0].mxu0
  %v623 = vadd.f32 %v151, %v622
  %624 = vmatprep.mubr.bf16.mxu0 0
  %625 = vmatmul.mubr.bf16.gmra.mrb[0].mxu0 %v353
  %v626 = vpop.f32.mrb[0].mxu0
  %v627 = vadd.f32 %v147, %v626
  %v628 = vpop.f32.mrb[0].mxu0
  %v629 = vadd.f32 %v151, %v628
  %v630 = vpop.f32.mrb[0].mxu0
  %v631 = vadd.f32 %v147, %v630
  %v632 = vpop.f32.mrb[0].mxu0
  %v633 = vadd.f32 %v151, %v632
  %634 = vmatprep.mubr.bf16.mxu0 0
  %635 = vmatmul.mubr.bf16.gmra.mrb[0].mxu0 %v354
  %v636 = vpop.f32.mrb[0].mxu0
  %v637 = vadd.f32 %v147, %v636
  %v638 = vpop.f32.mrb[0].mxu0
  %v639 = vadd.f32 %v151, %v638
  %v640 = vpop.f32.mrb[0].mxu0
  %v641 = vadd.f32 %v147, %v640
  %v642 = vpop.f32.mrb[0].mxu0
  %v643 = vadd.f32 %v151, %v642
  %644 = vmatprep.mubr.bf16.mxu0 0
  %645 = vmatmul.mubr.bf16.gmra.mrb[0].mxu0 %v355
  %v646 = vpop.f32.mrb[0].mxu0
  %v647 = vadd.f32 %v147, %v646
  %v648 = vpop.f32.mrb[0].mxu0
  %v649 = vadd.f32 %v151, %v648
  %v650 = vpop.f32.mrb[0].mxu0
  %v651 = vadd.f32 %v147, %v650
  %v652 = vpop.f32.mrb[0].mxu0
  %v653 = vadd.f32 %v151, %v652
  %654 = vmatprep.mubr.bf16.mxu0 0
  %655 = vmatmul.mubr.bf16.gmra.mrb[0].mxu0 %v356
  %v656 = vpop.f32.mrb[0].mxu0
  %v657 = vadd.f32 %v147, %v656
  %v658 = vpop.f32.mrb[0].mxu0
  %v659 = vadd.f32 %v151, %v658
  %v660 = vpop.f32.mrb[0].mxu0
  %v661 = vadd.f32 %v147, %v660
  %v662 = vpop.f32.mrb[0].mxu0
  %v663 = vadd.f32 %v151, %v662
  %664 = vmatprep.mubr.bf16.mxu0 0
  %665 = vmatmul.mubr.bf16.gmra.mrb[0].mxu0 %v357
  %v666 = vpop.f32.mrb[0].mxu0
  %v667 = vadd.f32 %v147, %v666
  %v668 = vpop.f32.mrb[0].mxu0
  %v669 = vadd.f32 %v151, %v668
  %v670 = vpop.f32.mrb[0].mxu0
  %v671 = vadd.f32 %v147, %v670
  %v672 = vpop.f32.mrb[0].mxu0
  %v673 = vadd.f32 %v151, %v672
  %674 = vmatprep.mubr.bf16.mxu0 0
  %675 = vmatmul.mubr.bf16.gmra.mrb[0].mxu0 %v358
  %v676 = vpop.f32.mrb[0].mxu0
  %v677 = vadd.f32 %v147, %v676
  %v678 = vpop.f32.mrb[0].mxu0
  %v679 = vadd.f32 %v151, %v678
  %v680 = vpop.f32.mrb[0].mxu0
  %v681 = vadd.f32 %v147, %v680
  %v682 = vpop.f32.mrb[0].mxu0
  %v683 = vadd.f32 %v151, %v682
  %684 = vmatprep.mubr.bf16.mxu0 0
  %685 = vmatmul.mubr.bf16.gmra.mrb[0].mxu0 %v359
  %v686 = vpop.f32.mrb[0].mxu0
  %v687 = vadd.f32 %v147, %v686
  %v688 = vpop.f32.mrb[0].mxu0
  %v689 = vadd.f32 %v151, %v688
  %v690 = vpop.f32.mrb[0].mxu0
  %v691 = vadd.f32 %v147, %v690
  %v692 = vpop.f32.mrb[0].mxu0
  %v693 = vadd.f32 %v151, %v692
  %694 = vmatprep.mubr.bf16.mxu0 0
  %695 = vmatmul.mubr.bf16.gmra.mrb[0].mxu0 %v360
  %v696 = vpop.f32.mrb[0].mxu0
  %v697 = vadd.f32 %v147, %v696
  %v698 = vpop.f32.mrb[0].mxu0
  %v699 = vadd.f32 %v151, %v698
  %v700 = vpop.f32.mrb[0].mxu0
  %v701 = vadd.f32 %v147, %v700
  %v702 = vpop.f32.mrb[0].mxu0
  %v703 = vadd.f32 %v151, %v702
  %704 = vmatprep.mubr.bf16.mxu0 0
  %705 = vmatmul.mubr.bf16.gmra.mrb[0].mxu0 %v361
  %v706 = vpop.f32.mrb[0].mxu0
  %v707 = vadd.f32 %v147, %v706
  %v708 = vpop.f32.mrb[0].mxu0
  %v709 = vadd.f32 %v151, %v708
  %v710 = vpop.f32.mrb[0].mxu0
  %v711 = vadd.f32 %v147, %v710
  %v712 = vpop.f32.mrb[0].mxu0
  %v713 = vadd.f32 %v151, %v712
  %714 = vmatprep.mubr.bf16.mxu0 0
  %715 = vmatmul.mubr.bf16.gmra.mrb[0].mxu0 %v362
  %v716 = vpop.f32.mrb[0].mxu0
  %v717 = vadd.f32 %v147, %v716
  %v718 = vpop.f32.mrb[0].mxu0
  %v719 = vadd.f32 %v151, %v718
  %v720 = vpop.f32.mrb[0].mxu0
  %v721 = vadd.f32 %v147, %v720
  %v722 = vpop.f32.mrb[0].mxu0
  %v723 = vadd.f32 %v151, %v722
  %724 = vmatprep.mubr.bf16.mxu0 0
  %725 = vmatmul.mubr.bf16.gmra.mrb[0].mxu0 %v363
  %v726 = vpop.f32.mrb[0].mxu0
  %v727 = vadd.f32 %v147, %v726
  %v728 = vpop.f32.mrb[0].mxu0
  %v729 = vadd.f32 %v151, %v728
  %v730 = vpop.f32.mrb[0].mxu0
  %v731 = vadd.f32 %v147, %v730
  %v732 = vpop.f32.mrb[0].mxu0
  %v733 = vadd.f32 %v151, %v732
  %734 = vmatprep.mubr.bf16.mxu0 0
  %735 = vmatmul.mubr.bf16.gmra.mrb[0].mxu0 %v364
  %v736 = vpop.f32.mrb[0].mxu0
  %v737 = vadd.f32 %v147, %v736
  %v738 = vpop.f32.mrb[0].mxu0
  %v739 = vadd.f32 %v151, %v738
  %v740 = vpop.f32.mrb[0].mxu0
  %v741 = vadd.f32 %v147, %v740
  %v742 = vpop.f32.mrb[0].mxu0
  %v743 = vadd.f32 %v151, %v742
  %744 = vmatprep.mubr.bf16.mxu0 0
  %745 = vmatmul.mubr.bf16.gmra.mrb[0].mxu0 %v365
  %v746 = vpop.f32.mrb[0].mxu0
  %v747 = vadd.f32 %v147, %v746
  %v748 = vpop.f32.mrb[0].mxu0
  %v749 = vadd.f32 %v151, %v748
  %v750 = vpop.f32.mrb[0].mxu0
  %v751 = vadd.f32 %v147, %v750
  %v752 = vpop.f32.mrb[0].mxu0
  %v753 = vadd.f32 %v151, %v752
  %754 = vmatprep.mubr.bf16.mxu0 0
  %755 = vmatmul.mubr.bf16.gmra.mrb[0].mxu0 %v366
  %v756 = vpop.f32.mrb[0].mxu0
  %v757 = vadd.f32 %v147, %v756
  %v758 = vpop.f32.mrb[0].mxu0
  %v759 = vadd.f32 %v151, %v758
  %v760 = vpop.f32.mrb[0].mxu0
  %v761 = vadd.f32 %v147, %v760
  %v762 = vpop.f32.mrb[0].mxu0
  %v763 = vadd.f32 %v151, %v762
  %764 = vmatprep.mubr.bf16.mxu0 0
  %765 = vmatmul.mubr.bf16.gmra.mrb[0].mxu0 %v367
  %v766 = vpop.f32.mrb[0].mxu0
  %v767 = vadd.f32 %v147, %v766
  %v768 = vpop.f32.mrb[0].mxu0
  %v769 = vadd.f32 %v151, %v768
  %v770 = vpop.f32.mrb[0].mxu0
  %v771 = vadd.f32 %v147, %v770
  %v772 = vpop.f32.mrb[0].mxu0
  %v773 = vadd.f32 %v151, %v772
  %774 = vmatprep.mubr.bf16.mxu0 0
  %775 = vmatmul.mubr.bf16.gmra.mrb[0].mxu0 %v368
  %v776 = vpop.f32.mrb[0].mxu0
  %v777 = vadd.f32 %v147, %v776
  %v778 = vpop.f32.mrb[0].mxu0
  %v779 = vadd.f32 %v151, %v778
  %v780 = vpop.f32.mrb[0].mxu0
  %v781 = vadd.f32 %v147, %v780
  %v782 = vpop.f32.mrb[0].mxu0
  %v783 = vadd.f32 %v151, %v782
  %784 = vmatprep.mubr.bf16.mxu0 0
  %785 = vmatmul.mubr.bf16.gmra.mrb[0].mxu0 %v369
  %v786 = vpop.f32.mrb[0].mxu0
  %v787 = vadd.f32 %v147, %v786
  %v788 = vpop.f32.mrb[0].mxu0
  %v789 = vadd.f32 %v151, %v788
  %v790 = vpop.f32.mrb[0].mxu0
  %v791 = vadd.f32 %v147, %v790
  %v792 = vpop.f32.mrb[0].mxu0
  %v793 = vadd.f32 %v151, %v792
  %794 = vmatprep.mubr.bf16.mxu0 0
  %795 = vmatmul.mubr.bf16.gmra.mrb[0].mxu0 %v370
  %v796 = vpop.f32.mrb[0].mxu0
  %v797 = vadd.f32 %v147, %v796
  %v798 = vpop.f32.mrb[0].mxu0
  %v799 = vadd.f32 %v151, %v798
  %v800 = vpop.f32.mrb[0].mxu0
  %v801 = vadd.f32 %v147, %v800
  %v802 = vpop.f32.mrb[0].mxu0
  %v803 = vadd.f32 %v151, %v802
  %804 = vmatprep.mubr.bf16.mxu0 0
  %805 = vmatmul.mubr.bf16.gmra.mrb[0].mxu0 %v371
  %v806 = vpop.f32.mrb[0].mxu0
  %v807 = vadd.f32 %v147, %v806
  %v808 = vpop.f32.mrb[0].mxu0
  %v809 = vadd.f32 %v151, %v808
  %v810 = vpop.f32.mrb[0].mxu0
  %v811 = vadd.f32 %v147, %v810
  %v812 = vpop.f32.mrb[0].mxu0
  %v813 = vadd.f32 %v151, %v812
  %814 = vmatprep.mubr.bf16.mxu0 0
  %815 = vmatmul.mubr.bf16.gmra.mrb[0].mxu0 %v372
  %v816 = vpop.f32.mrb[0].mxu0
  %v817 = vadd.f32 %v147, %v816
  %v818 = vpop.f32.mrb[0].mxu0
  %v819 = vadd.f32 %v151, %v818
  %v820 = vpop.f32.mrb[0].mxu0
  %v821 = vadd.f32 %v147, %v820
  %v822 = vpop.f32.mrb[0].mxu0
  %v823 = vadd.f32 %v151, %v822
  %824 = vmatprep.mubr.bf16.mxu0 0
  %825 = vmatmul.mubr.bf16.gmra.mrb[0].mxu0 %v373
  %v826 = vpop.f32.mrb[0].mxu0
  %v827 = vadd.f32 %v147, %v826
  %v828 = vpop.f32.mrb[0].mxu0
  %v829 = vadd.f32 %v151, %v828
  %v830 = vpop.f32.mrb[0].mxu0
  %v831 = vadd.f32 %v147, %v830
  %v832 = vpop.f32.mrb[0].mxu0
  %v833 = vadd.f32 %v151, %v832
  %834 = vmatprep.mubr.bf16.mxu0 0
  %835 = vmatmul.mubr.bf16.gmra.mrb[0].mxu0 %v374
  %v836 = vpop.f32.mrb[0].mxu0
  %v837 = vadd.f32 %v147, %v836
  %v838 = vpop.f32.mrb[0].mxu0
  %v839 = vadd.f32 %v151, %v838
  %v840 = vpop.f32.mrb[0].mxu0
  %v841 = vadd.f32 %v147, %v840
  %v842 = vpop.f32.mrb[0].mxu0
  %v843 = vadd.f32 %v151, %v842
  %844 = vmatprep.mubr.bf16.mxu0 0
  %845 = vmatmul.mubr.bf16.gmra.mrb[0].mxu0 %v375
  %v846 = vpop.f32.mrb[0].mxu0
  %v847 = vadd.f32 %v147, %v846
  %v848 = vpop.f32.mrb[0].mxu0
  %v849 = vadd.f32 %v151, %v848
  %v850 = vpop.f32.mrb[0].mxu0
  %v851 = vadd.f32 %v147, %v850
  %v852 = vpop.f32.mrb[0].mxu0
  %v853 = vadd.f32 %v151, %v852
  %854 = vmatprep.mubr.bf16.mxu0 0
  %855 = vmatmul.mubr.bf16.gmra.mrb[0].mxu0 %v376
  %v856 = vpop.f32.mrb[0].mxu0
  %v857 = vadd.f32 %v147, %v856
  %v858 = vpop.f32.mrb[0].mxu0
  %v859 = vadd.f32 %v151, %v858
  %v860 = vpop.f32.mrb[0].mxu0
  %v861 = vadd.f32 %v147, %v860
  %v862 = vpop.f32.mrb[0].mxu0
  %v863 = vadd.f32 %v151, %v862
  %864 = vmatprep.mubr.bf16.mxu0 0
  %865 = vmatmul.mubr.bf16.gmra.mrb[0].mxu0 %v377
  %v866 = vpop.f32.mrb[0].mxu0
  %v867 = vadd.f32 %v147, %v866
  %v868 = vpop.f32.mrb[0].mxu0
  %v869 = vadd.f32 %v151, %v868
  %v870 = vpop.f32.mrb[0].mxu0
  %v871 = vadd.f32 %v147, %v870
  %v872 = vpop.f32.mrb[0].mxu0
  %v873 = vadd.f32 %v151, %v872
  %874 = vmatprep.mubr.bf16.mxu0 0
  %875 = vmatmul.mubr.bf16.gmra.mrb[0].mxu0 %v378
  %v876 = vpop.f32.mrb[0].mxu0
  %v877 = vadd.f32 %v147, %v876
  %v878 = vpop.f32.mrb[0].mxu0
  %v879 = vadd.f32 %v151, %v878
  %v880 = vpop.f32.mrb[0].mxu0
  %v881 = vadd.f32 %v147, %v880
  %v882 = vpop.f32.mrb[0].mxu0
  %v883 = vadd.f32 %v151, %v882
  %884 = vmatprep.mubr.bf16.mxu0 0
  %885 = vmatmul.mubr.bf16.gmra.mrb[0].mxu0 %v379
  %v886 = vpop.f32.mrb[0].mxu0
  %v887 = vadd.f32 %v147, %v886
  %v888 = vpop.f32.mrb[0].mxu0
  %v889 = vadd.f32 %v151, %v888
  %v890 = vpop.f32.mrb[0].mxu0
  %v891 = vadd.f32 %v147, %v890
  %v892 = vpop.f32.mrb[0].mxu0
  %v893 = vadd.f32 %v151, %v892
  %894 = vmatprep.mubr.bf16.mxu0 0
  %895 = vmatmul.mubr.bf16.gmra.mrb[0].mxu0 %v380
  %v896 = vpop.f32.mrb[0].mxu0
  %v897 = vadd.f32 %v147, %v896
  %v898 = vpop.f32.mrb[0].mxu0
  %v899 = vadd.f32 %v151, %v898
  %v900 = vpop.f32.mrb[0].mxu0
  %v901 = vadd.f32 %v147, %v900
  %v902 = vpop.f32.mrb[0].mxu0
  %v903 = vadd.f32 %v151, %v902
  %904 = vmatprep.mubr.bf16.mxu0 0
  %905 = vmatmul.mubr.bf16.gmra.mrb[0].mxu0 %v381
  %v906 = vpop.f32.mrb[0].mxu0
  %v907 = vadd.f32 %v147, %v906
  %v908 = vpop.f32.mrb[0].mxu0
  %v909 = vadd.f32 %v151, %v908
  %v910 = vpop.f32.mrb[0].mxu0
  %v911 = vadd.f32 %v147, %v910
  %v912 = vpop.f32.mrb[0].mxu0
  %v913 = vadd.f32 %v151, %v912
  %914 = vmatprep.mubr.bf16.mxu0 0
  %915 = vmatmul.mubr.bf16.gmra.mrb[0].mxu0 %v382
  %v916 = vpop.f32.mrb[0].mxu0
  %v917 = vadd.f32 %v147, %v916
  %v918 = vpop.f32.mrb[0].mxu0
  %v919 = vadd.f32 %v151, %v918
  %v920 = vpop.f32.mrb[0].mxu0
  %v921 = vadd.f32 %v147, %v920
  %v922 = vpop.f32.mrb[0].mxu0
  %v923 = vadd.f32 %v151, %v922
  %924 = vmatprep.mubr.bf16.mxu0 0
  %925 = vmatmul.mubr.bf16.gmra.mrb[0].mxu0 %v383
  %v926 = vpop.f32.mrb[0].mxu0
  %v927 = vadd.f32 %v147, %v926
  %v928 = vpop.f32.mrb[0].mxu0
  %v929 = vadd.f32 %v151, %v928
  %v930 = vpop.f32.mrb[0].mxu0
  %v931 = vadd.f32 %v147, %v930
  %v932 = vpop.f32.mrb[0].mxu0
  %v933 = vadd.f32 %v151, %v932
  %934 = vmatprep.mubr.bf16.mxu0 0
  %935 = vmatmul.mubr.bf16.gmra.mrb[0].mxu0 %v384
  %v936 = vpop.f32.mrb[0].mxu0
  %v937 = vadd.f32 %v147, %v936
  %v938 = vpop.f32.mrb[0].mxu0
  %v939 = vadd.f32 %v151, %v938
  %v940 = vpop.f32.mrb[0].mxu0
  %v941 = vadd.f32 %v147, %v940
  %v942 = vpop.f32.mrb[0].mxu0
  %v943 = vadd.f32 %v151, %v942
  %944 = vmatprep.mubr.bf16.mxu0 0
  %945 = vmatmul.mubr.bf16.gmra.mrb[0].mxu0 %v385
  %v946 = vpop.f32.mrb[0].mxu0
  %v947 = vadd.f32 %v147, %v946
  %v948 = vpop.f32.mrb[0].mxu0
  %v949 = vadd.f32 %v151, %v948
  %v950 = vpop.f32.mrb[0].mxu0
  %v951 = vadd.f32 %v147, %v950
  %v952 = vpop.f32.mrb[0].mxu0
  %v953 = vadd.f32 %v151, %v952
  %954 = vmatprep.mubr.bf16.mxu0 0
  %955 = vmatmul.mubr.bf16.gmra.mrb[0].mxu0 %v386
  %v956 = vpop.f32.mrb[0].mxu0
  %v957 = vadd.f32 %v147, %v956
  %v958 = vpop.f32.mrb[0].mxu0
  %v959 = vadd.f32 %v151, %v958
  %v960 = vpop.f32.mrb[0].mxu0
  %v961 = vadd.f32 %v147, %v960
  %v962 = vpop.f32.mrb[0].mxu0
  %v963 = vadd.f32 %v151, %v962
  %964 = vmatprep.mubr.bf16.mxu0 0
  %965 = vmatmul.mubr.bf16.gmra.mrb[0].mxu0 %v387
  %v966 = vpop.f32.mrb[0].mxu0
  %v967 = vadd.f32 %v147, %v966
  %v968 = vpop.f32.mrb[0].mxu0
  %v969 = vadd.f32 %v151, %v968
  %v970 = vpop.f32.mrb[0].mxu0
  %v971 = vadd.f32 %v147, %v970
  %v972 = vpop.f32.mrb[0].mxu0
  %v973 = vadd.f32 %v151, %v972
  %974 = vmatprep.mubr.bf16.mxu0 0
  %975 = vmatmul.mubr.bf16.gmra.mrb[0].mxu0 %v388
  %v976 = vpop.f32.mrb[0].mxu0
  %v977 = vadd.f32 %v147, %v976
  %v978 = vpop.f32.mrb[0].mxu0
  %v979 = vadd.f32 %v151, %v978
  %v980 = vpop.f32.mrb[0].mxu0
  %v981 = vadd.f32 %v147, %v980
  %v982 = vpop.f32.mrb[0].mxu0
  %v983 = vadd.f32 %v151, %v982
  %984 = vmatprep.mubr.bf16.mxu0 0
  %985 = vmatmul.mubr.bf16.gmra.mrb[0].mxu0 %v389
  %v986 = vpop.f32.mrb[0].mxu0
  %v987 = vadd.f32 %v147, %v986
  %v988 = vpop.f32.mrb[0].mxu0
  %v989 = vadd.f32 %v151, %v988
  %v990 = vpop.f32.mrb[0].mxu0
  %v991 = vadd.f32 %v147, %v990
  %v992 = vpop.f32.mrb[0].mxu0
  %v993 = vadd.f32 %v151, %v992
  %994 = vmatprep.mubr.bf16.mxu0 0
  %995 = vmatmul.mubr.bf16.gmra.mrb[0].mxu0 %v390
  %v996 = vpop.f32.mrb[0].mxu0
  %v997 = vadd.f32 %v147, %v996
  %v998 = vpop.f32.mrb[0].mxu0
  %v999 = vadd.f32 %v151, %v998
  %v1000 = vpop.f32.mrb[0].mxu0
  %v1001 = vadd.f32 %v147, %v1000
  %v1002 = vpop.f32.mrb[0].mxu0
  %v1003 = vadd.f32 %v151, %v1002
  %1004 = vmatprep.mubr.bf16.mxu0 0
  %1005 = vmatmul.mubr.bf16.gmra.mrb[0].mxu0 %v391
  %v1006 = vpop.f32.mrb[0].mxu0
  %v1007 = vadd.f32 %v147, %v1006
  %v1008 = vpop.f32.mrb[0].mxu0
  %v1009 = vadd.f32 %v151, %v1008
  %v1010 = vpop.f32.mrb[0].mxu0
  %v1011 = vadd.f32 %v147, %v1010
  %v1012 = vpop.f32.mrb[0].mxu0
  %v1013 = vadd.f32 %v151, %v1012
  %1014 = vmatprep.mubr.bf16.mxu0 0
  %1015 = vmatmul.mubr.bf16.gmra.mrb[0].mxu0 %v392
  %v1016 = vpop.f32.mrb[0].mxu0
  %v1017 = vadd.f32 %v147, %v1016
  %v1018 = vpop.f32.mrb[0].mxu0
  %v1019 = vadd.f32 %v151, %v1018
  %v1020 = vpop.f32.mrb[0].mxu0
  %v1021 = vadd.f32 %v147, %v1020
  %v1022 = vpop.f32.mrb[0].mxu0
  %v1023 = vadd.f32 %v151, %v1022
  %1024 = vmatprep.mubr.bf16.mxu0 0
  %1025 = vmatmul.mubr.bf16.gmra.mrb[0].mxu0 %v393
  %v1026 = vpop.f32.mrb[0].mxu0
  %v1027 = vadd.f32 %v147, %v1026
  %v1028 = vpop.f32.mrb[0].mxu0
  %v1029 = vadd.f32 %v151, %v1028
  %v1030 = vpop.f32.mrb[0].mxu0
  %v1031 = vadd.f32 %v147, %v1030
  %v1032 = vpop.f32.mrb[0].mxu0
  %v1033 = vadd.f32 %v151, %v1032
  %1034 = vdwg.mxu0
  %v1035 = vmax.f32 %v557, 0.0
  %v1036 = vmax.f32 %v559, 0.0
  %v1037 = vmax.f32 %v561, 0.0
  %v1038 = vmax.f32 %v563, 0.0
  %v1039 = vmax.f32 %v567, 0.0
  %v1040 = vmax.f32 %v569, 0.0
  %v1041 = vmax.f32 %v571, 0.0
  %v1042 = vmax.f32 %v573, 0.0
  %v1043 = vmax.f32 %v577, 0.0
  %v1044 = vmax.f32 %v579, 0.0
  %v1045 = vmax.f32 %v581, 0.0
  %v1046 = vmax.f32 %v583, 0.0
  %v1047 = vmax.f32 %v587, 0.0
  %v1048 = vmax.f32 %v589, 0.0
  %v1049 = vmax.f32 %v591, 0.0
  %v1050 = vmax.f32 %v593, 0.0
  %v1051 = vmax.f32 %v597, 0.0
  %v1052 = vmax.f32 %v599, 0.0
  %v1053 = vmax.f32 %v601, 0.0
  %v1054 = vmax.f32 %v603, 0.0
  %v1055 = vmax.f32 %v607, 0.0
  %v1056 = vmax.f32 %v609, 0.0
  %v1057 = vmax.f32 %v611, 0.0
  %v1058 = vmax.f32 %v613, 0.0
  %v1059 = vmax.f32 %v617, 0.0
  %v1060 = vmax.f32 %v619, 0.0
  %v1061 = vmax.f32 %v621, 0.0
  %v1062 = vmax.f32 %v623, 0.0
  %v1063 = vmax.f32 %v627, 0.0
  %v1064 = vmax.f32 %v629, 0.0
  %v1065 = vmax.f32 %v631, 0.0
  %v1066 = vmax.f32 %v633, 0.0
  %v1067 = vmax.f32 %v637, 0.0
  %v1068 = vmax.f32 %v639, 0.0
  %v1069 = vmax.f32 %v641, 0.0
  %v1070 = vmax.f32 %v643, 0.0
  %v1071 = vmax.f32 %v647, 0.0
  %v1072 = vmax.f32 %v649, 0.0
  %v1073 = vmax.f32 %v651, 0.0
  %v1074 = vmax.f32 %v653, 0.0
  %v1075 = vmax.f32 %v657, 0.0
  %v1076 = vmax.f32 %v659, 0.0
  %v1077 = vmax.f32 %v661, 0.0
  %v1078 = vmax.f32 %v663, 0.0
  %v1079 = vmax.f32 %v667, 0.0
  %v1080 = vmax.f32 %v669, 0.0
  %v1081 = vmax.f32 %v671, 0.0
  %v1082 = vmax.f32 %v673, 0.0
  %v1083 = vmax.f32 %v677, 0.0
  %v1084 = vmax.f32 %v679, 0.0
  %v1085 = vmax.f32 %v681, 0.0
  %v1086 = vmax.f32 %v683, 0.0
  %v1087 = vmax.f32 %v687, 0.0
  %v1088 = vmax.f32 %v689, 0.0
  %v1089 = vmax.f32 %v691, 0.0
  %v1090 = vmax.f32 %v693, 0.0
  %v1091 = vmax.f32 %v697, 0.0
  %v1092 = vmax.f32 %v699, 0.0
  %v1093 = vmax.f32 %v701, 0.0
  %v1094 = vmax.f32 %v703, 0.0
  %v1095 = vmax.f32 %v707, 0.0
  %v1096 = vmax.f32 %v709, 0.0
  %v1097 = vmax.f32 %v711, 0.0
  %v1098 = vmax.f32 %v713, 0.0
  %v1099 = vmax.f32 %v717, 0.0
  %v1100 = vmax.f32 %v719, 0.0
  %v1101 = vmax.f32 %v721, 0.0
  %v1102 = vmax.f32 %v723, 0.0
  %v1103 = vmax.f32 %v727, 0.0
  %v1104 = vmax.f32 %v729, 0.0
  %v1105 = vmax.f32 %v731, 0.0
  %v1106 = vmax.f32 %v733, 0.0
  %v1107 = vmax.f32 %v737, 0.0
  %v1108 = vmax.f32 %v739, 0.0
  %v1109 = vmax.f32 %v741, 0.0
  %v1110 = vmax.f32 %v743, 0.0
  %v1111 = vmax.f32 %v747, 0.0
  %v1112 = vmax.f32 %v749, 0.0
  %v1113 = vmax.f32 %v751, 0.0
  %v1114 = vmax.f32 %v753, 0.0
  %v1115 = vmax.f32 %v757, 0.0
  %v1116 = vmax.f32 %v759, 0.0
  %v1117 = vmax.f32 %v761, 0.0
  %v1118 = vmax.f32 %v763, 0.0
  %v1119 = vmax.f32 %v767, 0.0
  %v1120 = vmax.f32 %v769, 0.0
  %v1121 = vmax.f32 %v771, 0.0
  %v1122 = vmax.f32 %v773, 0.0
  %v1123 = vmax.f32 %v777, 0.0
  %v1124 = vmax.f32 %v779, 0.0
  %v1125 = vmax.f32 %v781, 0.0
  %v1126 = vmax.f32 %v783, 0.0
  %v1127 = vmax.f32 %v787, 0.0
  %v1128 = vmax.f32 %v789, 0.0
  %v1129 = vmax.f32 %v791, 0.0
  %v1130 = vmax.f32 %v793, 0.0
  %v1131 = vmax.f32 %v797, 0.0
  %v1132 = vmax.f32 %v799, 0.0
  %v1133 = vmax.f32 %v801, 0.0
  %v1134 = vmax.f32 %v803, 0.0
  %v1135 = vmax.f32 %v807, 0.0
  %v1136 = vmax.f32 %v809, 0.0
  %v1137 = vmax.f32 %v811, 0.0
  %v1138 = vmax.f32 %v813, 0.0
  %v1139 = vmax.f32 %v817, 0.0
  %v1140 = vmax.f32 %v819, 0.0
  %v1141 = vmax.f32 %v821, 0.0
  %v1142 = vmax.f32 %v823, 0.0
  %v1143 = vmax.f32 %v827, 0.0
  %v1144 = vmax.f32 %v829, 0.0
  %v1145 = vmax.f32 %v831, 0.0
  %v1146 = vmax.f32 %v833, 0.0
  %v1147 = vmax.f32 %v837, 0.0
  %v1148 = vmax.f32 %v839, 0.0
  %v1149 = vmax.f32 %v841, 0.0
  %v1150 = vmax.f32 %v843, 0.0
  %v1151 = vmax.f32 %v847, 0.0
  %v1152 = vmax.f32 %v849, 0.0
  %v1153 = vmax.f32 %v851, 0.0
  %v1154 = vmax.f32 %v853, 0.0
  %v1155 = vmax.f32 %v857, 0.0
  %v1156 = vmax.f32 %v859, 0.0
  %v1157 = vmax.f32 %v861, 0.0
  %v1158 = vmax.f32 %v863, 0.0
  %v1159 = vmax.f32 %v867, 0.0
  %v1160 = vmax.f32 %v869, 0.0
  %v1161 = vmax.f32 %v871, 0.0
  %v1162 = vmax.f32 %v873, 0.0
  %v1163 = vmax.f32 %v877, 0.0
  %v1164 = vmax.f32 %v879, 0.0
  %v1165 = vmax.f32 %v881, 0.0
  %v1166 = vmax.f32 %v883, 0.0
  %v1167 = vmax.f32 %v887, 0.0
  %v1168 = vmax.f32 %v889, 0.0
  %v1169 = vmax.f32 %v891, 0.0
  %v1170 = vmax.f32 %v893, 0.0
  %v1171 = vmax.f32 %v897, 0.0
  %v1172 = vmax.f32 %v899, 0.0
  %v1173 = vmax.f32 %v901, 0.0
  %v1174 = vmax.f32 %v903, 0.0
  %v1175 = vmax.f32 %v907, 0.0
  %v1176 = vmax.f32 %v909, 0.0
  %v1177 = vmax.f32 %v911, 0.0
  %v1178 = vmax.f32 %v913, 0.0
  %v1179 = vmax.f32 %v917, 0.0
  %v1180 = vmax.f32 %v919, 0.0
  %v1181 = vmax.f32 %v921, 0.0
  %v1182 = vmax.f32 %v923, 0.0
  %v1183 = vmax.f32 %v927, 0.0
  %v1184 = vmax.f32 %v929, 0.0
  %v1185 = vmax.f32 %v931, 0.0
  %v1186 = vmax.f32 %v933, 0.0
  %v1187 = vmax.f32 %v937, 0.0
  %v1188 = vmax.f32 %v939, 0.0
  %v1189 = vmax.f32 %v941, 0.0
  %v1190 = vmax.f32 %v943, 0.0
  %v1191 = vmax.f32 %v947, 0.0
  %v1192 = vmax.f32 %v949, 0.0
  %v1193 = vmax.f32 %v951, 0.0
  %v1194 = vmax.f32 %v953, 0.0
  %v1195 = vmax.f32 %v957, 0.0
  %v1196 = vmax.f32 %v959, 0.0
  %v1197 = vmax.f32 %v961, 0.0
  %v1198 = vmax.f32 %v963, 0.0
  %v1199 = vmax.f32 %v967, 0.0
  %v1200 = vmax.f32 %v969, 0.0
  %v1201 = vmax.f32 %v971, 0.0
  %v1202 = vmax.f32 %v973, 0.0
  %v1203 = vmax.f32 %v977, 0.0
  %v1204 = vmax.f32 %v979, 0.0
  %v1205 = vmax.f32 %v981, 0.0
  %v1206 = vmax.f32 %v983, 0.0
  %v1207 = vmax.f32 %v987, 0.0
  %v1208 = vmax.f32 %v989, 0.0
  %v1209 = vmax.f32 %v991, 0.0
  %v1210 = vmax.f32 %v993, 0.0
  %v1211 = vmax.f32 %v997, 0.0
  %v1212 = vmax.f32 %v999, 0.0
  %v1213 = vmax.f32 %v1001, 0.0
  %v1214 = vmax.f32 %v1003, 0.0
  %v1215 = vmax.f32 %v1007, 0.0
  %v1216 = vmax.f32 %v1009, 0.0
  %v1217 = vmax.f32 %v1011, 0.0
  %v1218 = vmax.f32 %v1013, 0.0
  %v1219 = vmax.f32 %v1017, 0.0
  %v1220 = vmax.f32 %v1019, 0.0
  %v1221 = vmax.f32 %v1021, 0.0
  %v1222 = vmax.f32 %v1023, 0.0
  %v1223 = vmax.f32 %v1027, 0.0
  %v1224 = vmax.f32 %v1029, 0.0
  %v1225 = vmax.f32 %v1031, 0.0
  %v1226 = vmax.f32 %v1033, 0.0
  %v1227 = vld [vmem:[%s3] sm:$0xff]
  %v1228 = vld [vmem:[%s3 + $0x8] sm:$0xff]
  %v1229 = vld [vmem:[%s3 + $0x10] sm:$0xff]
  %v1230 = vld [vmem:[%s3 + $0x18] sm:$0xff]
  %v1231 = vld [vmem:[%s3 + $0x20] sm:$0xff]
  %v1232 = vld [vmem:[%s3 + $0x28] sm:$0xff]
  %v1233 = vld [vmem:[%s3 + $0x30] sm:$0xff]
  %v1234 = vld [vmem:[%s3 + $0x38] sm:$0xff]
  %v1235 = vld [vmem:[%s3 + $0x40] sm:$0xff]
  %v1236 = vld [vmem:[%s3 + $0x48] sm:$0xff]
  %v1237 = vld [vmem:[%s3 + $0x50] sm:$0xff]
  %v1238 = vld [vmem:[%s3 + $0x58] sm:$0xff]
  %1240 = vset.pattern.permute.xlu0 0
  %1241 = vperm.xlu0 %1240, %v1227
  %v1242 = vpop.permute.xlu0 %1241
  %1245 = vset.pattern.permute.xlu0 0
  %1246 = vperm.xlu0 %1245, %v1228
  %v1247 = vpop.permute.xlu0 %1246
  %1250 = vset.pattern.permute.xlu0 0
  %1251 = vperm.xlu0 %1250, %v1229
  %v1252 = vpop.permute.xlu0 %1251
  %1255 = vset.pattern.permute.xlu0 0
  %1256 = vperm.xlu0 %1255, %v1230
  %v1257 = vpop.permute.xlu0 %1256
  %1260 = vset.pattern.permute.xlu0 0
  %1261 = vperm.xlu0 %1260, %v1231
  %v1262 = vpop.permute.xlu0 %1261
  %1265 = vset.pattern.permute.xlu0 0
  %1266 = vperm.xlu0 %1265, %v1232
  %v1267 = vpop.permute.xlu0 %1266
  %1270 = vset.pattern.permute.xlu0 0
  %1271 = vperm.xlu0 %1270, %v1233
  %v1272 = vpop.permute.xlu0 %1271
  %1275 = vset.pattern.permute.xlu0 0
  %1276 = vperm.xlu0 %1275, %v1234
  %v1277 = vpop.permute.xlu0 %1276
  %1280 = vset.pattern.permute.xlu0 0
  %1281 = vperm.xlu0 %1280, %v1235
  %v1282 = vpop.permute.xlu0 %1281
  %1285 = vset.pattern.permute.xlu0 0
  %1286 = vperm.xlu0 %1285, %v1236
  %v1287 = vpop.permute.xlu0 %1286
  %1290 = vset.pattern.permute.xlu0 0
  %1291 = vperm.xlu0 %1290, %v1237
  %v1292 = vpop.permute.xlu0 %1291
  %1295 = vset.pattern.permute.xlu0 0
  %1296 = vperm.xlu0 %1295, %v1238
  %v1297 = vpop.permute.xlu0 %1296
  %v1299 = vmul.f32 %v1035, %v1242
  %v1300 = vmul.f32 %v1036, %v1242
  %v1301 = vmul.f32 %v1037, %v1247
  %v1302 = vmul.f32 %v1038, %v1247
  %v1303 = vmul.f32 %v1039, %v1252
  %v1304 = vmul.f32 %v1040, %v1252
  %v1305 = vmul.f32 %v1041, %v1257
  %v1306 = vmul.f32 %v1042, %v1257
  %v1307 = vmul.f32 %v1043, %v1262
  %v1308 = vmul.f32 %v1044, %v1262
  %v1309 = vmul.f32 %v1045, %v1267
  %v1310 = vmul.f32 %v1046, %v1267
  %v1311 = vmul.f32 %v1047, %v1272
  %v1312 = vmul.f32 %v1048, %v1272
  %v1313 = vmul.f32 %v1049, %v1277
  %v1314 = vmul.f32 %v1050, %v1277
  %v1315 = vmul.f32 %v1051, %v1282
  %v1316 = vmul.f32 %v1052, %v1282
  %v1317 = vmul.f32 %v1053, %v1287
  %v1318 = vmul.f32 %v1054, %v1287
  %v1319 = vmul.f32 %v1055, %v1292
  %v1320 = vmul.f32 %v1056, %v1292
  %v1321 = vmul.f32 %v1057, %v1297
  %v1322 = vmul.f32 %v1058, %v1297
  %v1323 = vmul.f32 %v1059, %v1242
  %v1324 = vmul.f32 %v1060, %v1242
  %v1325 = vmul.f32 %v1061, %v1247
  %v1326 = vmul.f32 %v1062, %v1247
  %v1327 = vmul.f32 %v1063, %v1252
  %v1328 = vmul.f32 %v1064, %v1252
  %v1329 = vmul.f32 %v1065, %v1257
  %v1330 = vmul.f32 %v1066, %v1257
  %v1331 = vmul.f32 %v1067, %v1262
  %v1332 = vmul.f32 %v1068, %v1262
  %v1333 = vmul.f32 %v1069, %v1267
  %v1334 = vmul.f32 %v1070, %v1267
  %v1335 = vmul.f32 %v1071, %v1272
  %v1336 = vmul.f32 %v1072, %v1272
  %v1337 = vmul.f32 %v1073, %v1277
  %v1338 = vmul.f32 %v1074, %v1277
  %v1339 = vmul.f32 %v1075, %v1282
  %v1340 = vmul.f32 %v1076, %v1282
  %v1341 = vmul.f32 %v1077, %v1287
  %v1342 = vmul.f32 %v1078, %v1287
  %v1343 = vmul.f32 %v1079, %v1292
  %v1344 = vmul.f32 %v1080, %v1292
  %v1345 = vmul.f32 %v1081, %v1297
  %v1346 = vmul.f32 %v1082, %v1297
  %v1347 = vmul.f32 %v1083, %v1242
  %v1348 = vmul.f32 %v1084, %v1242
  %v1349 = vmul.f32 %v1085, %v1247
  %v1350 = vmul.f32 %v1086, %v1247
  %v1351 = vmul.f32 %v1087, %v1252
  %v1352 = vmul.f32 %v1088, %v1252
  %v1353 = vmul.f32 %v1089, %v1257
  %v1354 = vmul.f32 %v1090, %v1257
  %v1355 = vmul.f32 %v1091, %v1262
  %v1356 = vmul.f32 %v1092, %v1262
  %v1357 = vmul.f32 %v1093, %v1267
  %v1358 = vmul.f32 %v1094, %v1267
  %v1359 = vmul.f32 %v1095, %v1272
  %v1360 = vmul.f32 %v1096, %v1272
  %v1361 = vmul.f32 %v1097, %v1277
  %v1362 = vmul.f32 %v1098, %v1277
  %v1363 = vmul.f32 %v1099, %v1282
  %v1364 = vmul.f32 %v1100, %v1282
  %v1365 = vmul.f32 %v1101, %v1287
  %v1366 = vmul.f32 %v1102, %v1287
  %v1367 = vmul.f32 %v1103, %v1292
  %v1368 = vmul.f32 %v1104, %v1292
  %v1369 = vmul.f32 %v1105, %v1297
  %v1370 = vmul.f32 %v1106, %v1297
  %v1371 = vmul.f32 %v1107, %v1242
  %v1372 = vmul.f32 %v1108, %v1242
  %v1373 = vmul.f32 %v1109, %v1247
  %v1374 = vmul.f32 %v1110, %v1247
  %v1375 = vmul.f32 %v1111, %v1252
  %v1376 = vmul.f32 %v1112, %v1252
  %v1377 = vmul.f32 %v1113, %v1257
  %v1378 = vmul.f32 %v1114, %v1257
  %v1379 = vmul.f32 %v1115, %v1262
  %v1380 = vmul.f32 %v1116, %v1262
  %v1381 = vmul.f32 %v1117, %v1267
  %v1382 = vmul.f32 %v1118, %v1267
  %v1383 = vmul.f32 %v1119, %v1272
  %v1384 = vmul.f32 %v1120, %v1272
  %v1385 = vmul.f32 %v1121, %v1277
  %v1386 = vmul.f32 %v1122, %v1277
  %v1387 = vmul.f32 %v1123, %v1282
  %v1388 = vmul.f32 %v1124, %v1282
  %v1389 = vmul.f32 %v1125, %v1287
  %v1390 = vmul.f32 %v1126, %v1287
  %v1391 = vmul.f32 %v1127, %v1292
  %v1392 = vmul.f32 %v1128, %v1292
  %v1393 = vmul.f32 %v1129, %v1297
  %v1394 = vmul.f32 %v1130, %v1297
  %v1395 = vmul.f32 %v1131, %v1242
  %v1396 = vmul.f32 %v1132, %v1242
  %v1397 = vmul.f32 %v1133, %v1247
  %v1398 = vmul.f32 %v1134, %v1247
  %v1399 = vmul.f32 %v1135, %v1252
  %v1400 = vmul.f32 %v1136, %v1252
  %v1401 = vmul.f32 %v1137, %v1257
  %v1402 = vmul.f32 %v1138, %v1257
  %v1403 = vmul.f32 %v1139, %v1262
  %v1404 = vmul.f32 %v1140, %v1262
  %v1405 = vmul.f32 %v1141, %v1267
  %v1406 = vmul.f32 %v1142, %v1267
  %v1407 = vmul.f32 %v1143, %v1272
  %v1408 = vmul.f32 %v1144, %v1272
  %v1409 = vmul.f32 %v1145, %v1277
  %v1410 = vmul.f32 %v1146, %v1277
  %v1411 = vmul.f32 %v1147, %v1282
  %v1412 = vmul.f32 %v1148, %v1282
  %v1413 = vmul.f32 %v1149, %v1287
  %v1414 = vmul.f32 %v1150, %v1287
  %v1415 = vmul.f32 %v1151, %v1292
  %v1416 = vmul.f32 %v1152, %v1292
  %v1417 = vmul.f32 %v1153, %v1297
  %v1418 = vmul.f32 %v1154, %v1297
  %v1419 = vmul.f32 %v1155, %v1242
  %v1420 = vmul.f32 %v1156, %v1242
  %v1421 = vmul.f32 %v1157, %v1247
  %v1422 = vmul.f32 %v1158, %v1247
  %v1423 = vmul.f32 %v1159, %v1252
  %v1424 = vmul.f32 %v1160, %v1252
  %v1425 = vmul.f32 %v1161, %v1257
  %v1426 = vmul.f32 %v1162, %v1257
  %v1427 = vmul.f32 %v1163, %v1262
  %v1428 = vmul.f32 %v1164, %v1262
  %v1429 = vmul.f32 %v1165, %v1267
  %v1430 = vmul.f32 %v1166, %v1267
  %v1431 = vmul.f32 %v1167, %v1272
  %v1432 = vmul.f32 %v1168, %v1272
  %v1433 = vmul.f32 %v1169, %v1277
  %v1434 = vmul.f32 %v1170, %v1277
  %v1435 = vmul.f32 %v1171, %v1282
  %v1436 = vmul.f32 %v1172, %v1282
  %v1437 = vmul.f32 %v1173, %v1287
  %v1438 = vmul.f32 %v1174, %v1287
  %v1439 = vmul.f32 %v1175, %v1292
  %v1440 = vmul.f32 %v1176, %v1292
  %v1441 = vmul.f32 %v1177, %v1297
  %v1442 = vmul.f32 %v1178, %v1297
  %v1443 = vmul.f32 %v1179, %v1242
  %v1444 = vmul.f32 %v1180, %v1242
  %v1445 = vmul.f32 %v1181, %v1247
  %v1446 = vmul.f32 %v1182, %v1247
  %v1447 = vmul.f32 %v1183, %v1252
  %v1448 = vmul.f32 %v1184, %v1252
  %v1449 = vmul.f32 %v1185, %v1257
  %v1450 = vmul.f32 %v1186, %v1257
  %v1451 = vmul.f32 %v1187, %v1262
  %v1452 = vmul.f32 %v1188, %v1262
  %v1453 = vmul.f32 %v1189, %v1267
  %v1454 = vmul.f32 %v1190, %v1267
  %v1455 = vmul.f32 %v1191, %v1272
  %v1456 = vmul.f32 %v1192, %v1272
  %v1457 = vmul.f32 %v1193, %v1277
  %v1458 = vmul.f32 %v1194, %v1277
  %v1459 = vmul.f32 %v1195, %v1282
  %v1460 = vmul.f32 %v1196, %v1282
  %v1461 = vmul.f32 %v1197, %v1287
  %v1462 = vmul.f32 %v1198, %v1287
  %v1463 = vmul.f32 %v1199, %v1292
  %v1464 = vmul.f32 %v1200, %v1292
  %v1465 = vmul.f32 %v1201, %v1297
  %v1466 = vmul.f32 %v1202, %v1297
  %v1467 = vmul.f32 %v1203, %v1242
  %v1468 = vmul.f32 %v1204, %v1242
  %v1469 = vmul.f32 %v1205, %v1247
  %v1470 = vmul.f32 %v1206, %v1247
  %v1471 = vmul.f32 %v1207, %v1252
  %v1472 = vmul.f32 %v1208, %v1252
  %v1473 = vmul.f32 %v1209, %v1257
  %v1474 = vmul.f32 %v1210, %v1257
  %v1475 = vmul.f32 %v1211, %v1262
  %v1476 = vmul.f32 %v1212, %v1262
  %v1477 = vmul.f32 %v1213, %v1267
  %v1478 = vmul.f32 %v1214, %v1267
  %v1479 = vmul.f32 %v1215, %v1272
  %v1480 = vmul.f32 %v1216, %v1272
  %v1481 = vmul.f32 %v1217, %v1277
  %v1482 = vmul.f32 %v1218, %v1277
  %v1483 = vmul.f32 %v1219, %v1282
  %v1484 = vmul.f32 %v1220, %v1282
  %v1485 = vmul.f32 %v1221, %v1287
  %v1486 = vmul.f32 %v1222, %v1287
  %v1487 = vmul.f32 %v1223, %v1292
  %v1488 = vmul.f32 %v1224, %v1292
  %v1489 = vmul.f32 %v1225, %v1297
  %v1490 = vmul.f32 %v1226, %v1297
  %1491 = vst [vmem:[#allocation2] sm:$0xff] %v1299
  %1492 = vst [vmem:[#allocation2 + $0x8] sm:$0xff] %v1300
  %1493 = vst [vmem:[#allocation2 + $0x10] sm:$0xff] %v1301
  %1494 = vst [vmem:[#allocation2 + $0x18] sm:$0xff] %v1302
  %1495 = vst [vmem:[#allocation2 + $0x20] sm:$0xff] %v1303
  %1496 = vst [vmem:[#allocation2 + $0x28] sm:$0xff] %v1304
  %1497 = vst [vmem:[#allocation2 + $0x30] sm:$0xff] %v1305
  %1498 = vst [vmem:[#allocation2 + $0x38] sm:$0xff] %v1306
  %1499 = vst [vmem:[#allocation2 + $0x40] sm:$0xff] %v1307
  %1500 = vst [vmem:[#allocation2 + $0x48] sm:$0xff] %v1308
  %1501 = vst [vmem:[#allocation2 + $0x50] sm:$0xff] %v1309
  %1502 = vst [vmem:[#allocation2 + $0x58] sm:$0xff] %v1310
  %1503 = vst [vmem:[#allocation2 + $0x60] sm:$0xff] %v1311
  %1504 = vst [vmem:[#allocation2 + $0x68] sm:$0xff] %v1312
  %1505 = vst [vmem:[#allocation2 + $0x70] sm:$0xff] %v1313
  %1506 = vst [vmem:[#allocation2 + $0x78] sm:$0xff] %v1314
  %1507 = vst [vmem:[#allocation2 + $0x80] sm:$0xff] %v1315
  %1508 = vst [vmem:[#allocation2 + $0x88] sm:$0xff] %v1316
  %1509 = vst [vmem:[#allocation2 + $0x90] sm:$0xff] %v1317
  %1510 = vst [vmem:[#allocation2 + $0x98] sm:$0xff] %v1318
  %1511 = vst [vmem:[#allocation2 + $0xa0] sm:$0xff] %v1319
  %1512 = vst [vmem:[#allocation2 + $0xa8] sm:$0xff] %v1320
  %1513 = vst [vmem:[#allocation2 + $0xb0] sm:$0xff] %v1321
  %1514 = vst [vmem:[#allocation2 + $0xb8] sm:$0xff] %v1322
  %1515 = vst [vmem:[#allocation2 + $0xc0] sm:$0xff] %v1323
  %1516 = vst [vmem:[#allocation2 + $0xc8] sm:$0xff] %v1324
  %1517 = vst [vmem:[#allocation2 + $0xd0] sm:$0xff] %v1325
  %1518 = vst [vmem:[#allocation2 + $0xd8] sm:$0xff] %v1326
  %1519 = vst [vmem:[#allocation2 + $0xe0] sm:$0xff] %v1327
  %1520 = vst [vmem:[#allocation2 + $0xe8] sm:$0xff] %v1328
  %1521 = vst [vmem:[#allocation2 + $0xf0] sm:$0xff] %v1329
  %1522 = vst [vmem:[#allocation2 + $0xf8] sm:$0xff] %v1330
  %1523 = vst [vmem:[#allocation2 + $0x100] sm:$0xff] %v1331
  %1524 = vst [vmem:[#allocation2 + $0x108] sm:$0xff] %v1332
  %1525 = vst [vmem:[#allocation2 + $0x110] sm:$0xff] %v1333
  %1526 = vst [vmem:[#allocation2 + $0x118] sm:$0xff] %v1334
  %1527 = vst [vmem:[#allocation2 + $0x120] sm:$0xff] %v1335
  %1528 = vst [vmem:[#allocation2 + $0x128] sm:$0xff] %v1336
  %1529 = vst [vmem:[#allocation2 + $0x130] sm:$0xff] %v1337
  %1530 = vst [vmem:[#allocation2 + $0x138] sm:$0xff] %v1338
  %1531 = vst [vmem:[#allocation2 + $0x140] sm:$0xff] %v1339
  %1532 = vst [vmem:[#allocation2 + $0x148] sm:$0xff] %v1340
  %1533 = vst [vmem:[#allocation2 + $0x150] sm:$0xff] %v1341
  %1534 = vst [vmem:[#allocation2 + $0x158] sm:$0xff] %v1342
  %1535 = vst [vmem:[#allocation2 + $0x160] sm:$0xff] %v1343
  %1536 = vst [vmem:[#allocation2 + $0x168] sm:$0xff] %v1344
  %1537 = vst [vmem:[#allocation2 + $0x170] sm:$0xff] %v1345
  %1538 = vst [vmem:[#allocation2 + $0x178] sm:$0xff] %v1346
  %1539 = vst [vmem:[#allocation2 + $0x180] sm:$0xff] %v1347
  %1540 = vst [vmem:[#allocation2 + $0x188] sm:$0xff] %v1348
  %1541 = vst [vmem:[#allocation2 + $0x190] sm:$0xff] %v1349
  %1542 = vst [vmem:[#allocation2 + $0x198] sm:$0xff] %v1350
  %1543 = vst [vmem:[#allocation2 + $0x1a0] sm:$0xff] %v1351
  %1544 = vst [vmem:[#allocation2 + $0x1a8] sm:$0xff] %v1352
  %1545 = vst [vmem:[#allocation2 + $0x1b0] sm:$0xff] %v1353
  %1546 = vst [vmem:[#allocation2 + $0x1b8] sm:$0xff] %v1354
  %1547 = vst [vmem:[#allocation2 + $0x1c0] sm:$0xff] %v1355
  %1548 = vst [vmem:[#allocation2 + $0x1c8] sm:$0xff] %v1356
  %1549 = vst [vmem:[#allocation2 + $0x1d0] sm:$0xff] %v1357
  %1550 = vst [vmem:[#allocation2 + $0x1d8] sm:$0xff] %v1358
  %1551 = vst [vmem:[#allocation2 + $0x1e0] sm:$0xff] %v1359
  %1552 = vst [vmem:[#allocation2 + $0x1e8] sm:$0xff] %v1360
  %1553 = vst [vmem:[#allocation2 + $0x1f0] sm:$0xff] %v1361
  %1554 = vst [vmem:[#allocation2 + $0x1f8] sm:$0xff] %v1362
  %1555 = vst [vmem:[#allocation2 + $0x200] sm:$0xff] %v1363
  %1556 = vst [vmem:[#allocation2 + $0x208] sm:$0xff] %v1364
  %1557 = vst [vmem:[#allocation2 + $0x210] sm:$0xff] %v1365
  %1558 = vst [vmem:[#allocation2 + $0x218] sm:$0xff] %v1366
  %1559 = vst [vmem:[#allocation2 + $0x220] sm:$0xff] %v1367
  %1560 = vst [vmem:[#allocation2 + $0x228] sm:$0xff] %v1368
  %1561 = vst [vmem:[#allocation2 + $0x230] sm:$0xff] %v1369
  %1562 = vst [vmem:[#allocation2 + $0x238] sm:$0xff] %v1370
  %1563 = vst [vmem:[#allocation2 + $0x240] sm:$0xff] %v1371
  %1564 = vst [vmem:[#allocation2 + $0x248] sm:$0xff] %v1372
  %1565 = vst [vmem:[#allocation2 + $0x250] sm:$0xff] %v1373
  %1566 = vst [vmem:[#allocation2 + $0x258] sm:$0xff] %v1374
  %1567 = vst [vmem:[#allocation2 + $0x260] sm:$0xff] %v1375
  %1568 = vst [vmem:[#allocation2 + $0x268] sm:$0xff] %v1376
  %1569 = vst [vmem:[#allocation2 + $0x270] sm:$0xff] %v1377
  %1570 = vst [vmem:[#allocation2 + $0x278] sm:$0xff] %v1378
  %1571 = vst [vmem:[#allocation2 + $0x280] sm:$0xff] %v1379
  %1572 = vst [vmem:[#allocation2 + $0x288] sm:$0xff] %v1380
  %1573 = vst [vmem:[#allocation2 + $0x290] sm:$0xff] %v1381
  %1574 = vst [vmem:[#allocation2 + $0x298] sm:$0xff] %v1382
  %1575 = vst [vmem:[#allocation2 + $0x2a0] sm:$0xff] %v1383
  %1576 = vst [vmem:[#allocation2 + $0x2a8] sm:$0xff] %v1384
  %1577 = vst [vmem:[#allocation2 + $0x2b0] sm:$0xff] %v1385
  %1578 = vst [vmem:[#allocation2 + $0x2b8] sm:$0xff] %v1386
  %1579 = vst [vmem:[#allocation2 + $0x2c0] sm:$0xff] %v1387
  %1580 = vst [vmem:[#allocation2 + $0x2c8] sm:$0xff] %v1388
  %1581 = vst [vmem:[#allocation2 + $0x2d0] sm:$0xff] %v1389
  %1582 = vst [vmem:[#allocation2 + $0x2d8] sm:$0xff] %v1390
  %1583 = vst [vmem:[#allocation2 + $0x2e0] sm:$0xff] %v1391
  %1584 = vst [vmem:[#allocation2 + $0x2e8] sm:$0xff] %v1392
  %1585 = vst [vmem:[#allocation2 + $0x2f0] sm:$0xff] %v1393
  %1586 = vst [vmem:[#allocation2 + $0x2f8] sm:$0xff] %v1394
  %1587 = vst [vmem:[#allocation2 + $0x300] sm:$0xff] %v1395
  %1588 = vst [vmem:[#allocation2 + $0x308] sm:$0xff] %v1396
  %1589 = vst [vmem:[#allocation2 + $0x310] sm:$0xff] %v1397
  %1590 = vst [vmem:[#allocation2 + $0x318] sm:$0xff] %v1398
  %1591 = vst [vmem:[#allocation2 + $0x320] sm:$0xff] %v1399
  %1592 = vst [vmem:[#allocation2 + $0x328] sm:$0xff] %v1400
  %1593 = vst [vmem:[#allocation2 + $0x330] sm:$0xff] %v1401
  %1594 = vst [vmem:[#allocation2 + $0x338] sm:$0xff] %v1402
  %1595 = vst [vmem:[#allocation2 + $0x340] sm:$0xff] %v1403
  %1596 = vst [vmem:[#allocation2 + $0x348] sm:$0xff] %v1404
  %1597 = vst [vmem:[#allocation2 + $0x350] sm:$0xff] %v1405
  %1598 = vst [vmem:[#allocation2 + $0x358] sm:$0xff] %v1406
  %1599 = vst [vmem:[#allocation2 + $0x360] sm:$0xff] %v1407
  %1600 = vst [vmem:[#allocation2 + $0x368] sm:$0xff] %v1408
  %1601 = vst [vmem:[#allocation2 + $0x370] sm:$0xff] %v1409
  %1602 = vst [vmem:[#allocation2 + $0x378] sm:$0xff] %v1410
  %1603 = vst [vmem:[#allocation2 + $0x380] sm:$0xff] %v1411
  %1604 = vst [vmem:[#allocation2 + $0x388] sm:$0xff] %v1412
  %1605 = vst [vmem:[#allocation2 + $0x390] sm:$0xff] %v1413
  %1606 = vst [vmem:[#allocation2 + $0x398] sm:$0xff] %v1414
  %1607 = vst [vmem:[#allocation2 + $0x3a0] sm:$0xff] %v1415
  %1608 = vst [vmem:[#allocation2 + $0x3a8] sm:$0xff] %v1416
  %1609 = vst [vmem:[#allocation2 + $0x3b0] sm:$0xff] %v1417
  %1610 = vst [vmem:[#allocation2 + $0x3b8] sm:$0xff] %v1418
  %1611 = vst [vmem:[#allocation2 + $0x3c0] sm:$0xff] %v1419
  %1612 = vst [vmem:[#allocation2 + $0x3c8] sm:$0xff] %v1420
  %1613 = vst [vmem:[#allocation2 + $0x3d0] sm:$0xff] %v1421
  %1614 = vst [vmem:[#allocation2 + $0x3d8] sm:$0xff] %v1422
  %1615 = vst [vmem:[#allocation2 + $0x3e0] sm:$0xff] %v1423
  %1616 = vst [vmem:[#allocation2 + $0x3e8] sm:$0xff] %v1424
  %1617 = vst [vmem:[#allocation2 + $0x3f0] sm:$0xff] %v1425
  %1618 = vst [vmem:[#allocation2 + $0x3f8] sm:$0xff] %v1426
  %1619 = vst [vmem:[#allocation2 + $0x400] sm:$0xff] %v1427
  %1620 = vst [vmem:[#allocation2 + $0x408] sm:$0xff] %v1428
  %1621 = vst [vmem:[#allocation2 + $0x410] sm:$0xff] %v1429
  %1622 = vst [vmem:[#allocation2 + $0x418] sm:$0xff] %v1430
  %1623 = vst [vmem:[#allocation2 + $0x420] sm:$0xff] %v1431
  %1624 = vst [vmem:[#allocation2 + $0x428] sm:$0xff] %v1432
  %1625 = vst [vmem:[#allocation2 + $0x430] sm:$0xff] %v1433
  %1626 = vst [vmem:[#allocation2 + $0x438] sm:$0xff] %v1434
  %1627 = vst [vmem:[#allocation2 + $0x440] sm:$0xff] %v1435
  %1628 = vst [vmem:[#allocation2 + $0x448] sm:$0xff] %v1436
  %1629 = vst [vmem:[#allocation2 + $0x450] sm:$0xff] %v1437
  %1630 = vst [vmem:[#allocation2 + $0x458] sm:$0xff] %v1438
  %1631 = vst [vmem:[#allocation2 + $0x460] sm:$0xff] %v1439
  %1632 = vst [vmem:[#allocation2 + $0x468] sm:$0xff] %v1440
  %1633 = vst [vmem:[#allocation2 + $0x470] sm:$0xff] %v1441
  %1634 = vst [vmem:[#allocation2 + $0x478] sm:$0xff] %v1442
  %1635 = vst [vmem:[#allocation2 + $0x480] sm:$0xff] %v1443
  %1636 = vst [vmem:[#allocation2 + $0x488] sm:$0xff] %v1444
  %1637 = vst [vmem:[#allocation2 + $0x490] sm:$0xff] %v1445
  %1638 = vst [vmem:[#allocation2 + $0x498] sm:$0xff] %v1446
  %1639 = vst [vmem:[#allocation2 + $0x4a0] sm:$0xff] %v1447
  %1640 = vst [vmem:[#allocation2 + $0x4a8] sm:$0xff] %v1448
  %1641 = vst [vmem:[#allocation2 + $0x4b0] sm:$0xff] %v1449
  %1642 = vst [vmem:[#allocation2 + $0x4b8] sm:$0xff] %v1450
  %1643 = vst [vmem:[#allocation2 + $0x4c0] sm:$0xff] %v1451
  %1644 = vst [vmem:[#allocation2 + $0x4c8] sm:$0xff] %v1452
  %1645 = vst [vmem:[#allocation2 + $0x4d0] sm:$0xff] %v1453
  %1646 = vst [vmem:[#allocation2 + $0x4d8] sm:$0xff] %v1454
  %1647 = vst [vmem:[#allocation2 + $0x4e0] sm:$0xff] %v1455
  %1648 = vst [vmem:[#allocation2 + $0x4e8] sm:$0xff] %v1456
  %1649 = vst [vmem:[#allocation2 + $0x4f0] sm:$0xff] %v1457
  %1650 = vst [vmem:[#allocation2 + $0x4f8] sm:$0xff] %v1458
  %1651 = vst [vmem:[#allocation2 + $0x500] sm:$0xff] %v1459
  %1652 = vst [vmem:[#allocation2 + $0x508] sm:$0xff] %v1460
  %1653 = vst [vmem:[#allocation2 + $0x510] sm:$0xff] %v1461
  %1654 = vst [vmem:[#allocation2 + $0x518] sm:$0xff] %v1462
  %1655 = vst [vmem:[#allocation2 + $0x520] sm:$0xff] %v1463
  %1656 = vst [vmem:[#allocation2 + $0x528] sm:$0xff] %v1464
  %1657 = vst [vmem:[#allocation2 + $0x530] sm:$0xff] %v1465
  %1658 = vst [vmem:[#allocation2 + $0x538] sm:$0xff] %v1466
  %1659 = vst [vmem:[#allocation2 + $0x540] sm:$0xff] %v1467
  %1660 = vst [vmem:[#allocation2 + $0x548] sm:$0xff] %v1468
  %1661 = vst [vmem:[#allocation2 + $0x550] sm:$0xff] %v1469
  %1662 = vst [vmem:[#allocation2 + $0x558] sm:$0xff] %v1470
  %1663 = vst [vmem:[#allocation2 + $0x560] sm:$0xff] %v1471
  %1664 = vst [vmem:[#allocation2 + $0x568] sm:$0xff] %v1472
  %1665 = vst [vmem:[#allocation2 + $0x570] sm:$0xff] %v1473
  %1666 = vst [vmem:[#allocation2 + $0x578] sm:$0xff] %v1474
  %1667 = vst [vmem:[#allocation2 + $0x580] sm:$0xff] %v1475
  %1668 = vst [vmem:[#allocation2 + $0x588] sm:$0xff] %v1476
  %1669 = vst [vmem:[#allocation2 + $0x590] sm:$0xff] %v1477
  %1670 = vst [vmem:[#allocation2 + $0x598] sm:$0xff] %v1478
  %1671 = vst [vmem:[#allocation2 + $0x5a0] sm:$0xff] %v1479
  %1672 = vst [vmem:[#allocation2 + $0x5a8] sm:$0xff] %v1480
  %1673 = vst [vmem:[#allocation2 + $0x5b0] sm:$0xff] %v1481
  %1674 = vst [vmem:[#allocation2 + $0x5b8] sm:$0xff] %v1482
  %1675 = vst [vmem:[#allocation2 + $0x5c0] sm:$0xff] %v1483
  %1676 = vst [vmem:[#allocation2 + $0x5c8] sm:$0xff] %v1484
  %1677 = vst [vmem:[#allocation2 + $0x5d0] sm:$0xff] %v1485
  %1678 = vst [vmem:[#allocation2 + $0x5d8] sm:$0xff] %v1486
  %1679 = vst [vmem:[#allocation2 + $0x5e0] sm:$0xff] %v1487
  %1680 = vst [vmem:[#allocation2 + $0x5e8] sm:$0xff] %v1488
  %1681 = vst [vmem:[#allocation2 + $0x5f0] sm:$0xff] %v1489
  %1682 = vst [vmem:[#allocation2 + $0x5f8] sm:$0xff] %v1490
  %v1683 = vld [vmem:[#allocation2] sm:$0xff]
  %v1684 = vld [vmem:[#allocation2 + $0x8] sm:$0xff]
  %v1685 = vld [vmem:[#allocation2 + $0x10] sm:$0xff]
  %v1686 = vld [vmem:[#allocation2 + $0x18] sm:$0xff]
  %v1687 = vld [vmem:[#allocation2 + $0x20] sm:$0xff]
  %v1688 = vld [vmem:[#allocation2 + $0x28] sm:$0xff]
  %v1689 = vld [vmem:[#allocation2 + $0x30] sm:$0xff]
  %v1690 = vld [vmem:[#allocation2 + $0x38] sm:$0xff]
  %v1691 = vld [vmem:[#allocation2 + $0x40] sm:$0xff]
  %v1692 = vld [vmem:[#allocation2 + $0x48] sm:$0xff]
  %v1693 = vld [vmem:[#allocation2 + $0x50] sm:$0xff]
  %v1694 = vld [vmem:[#allocation2 + $0x58] sm:$0xff]
  %v1695 = vld [vmem:[#allocation2 + $0x60] sm:$0xff]
  %v1696 = vld [vmem:[#allocation2 + $0x68] sm:$0xff]
  %v1697 = vld [vmem:[#allocation2 + $0x70] sm:$0xff]
  %v1698 = vld [vmem:[#allocation2 + $0x78] sm:$0xff]
  %v1699 = vld [vmem:[#allocation2 + $0xc0] sm:$0xff]
  %v1700 = vld [vmem:[#allocation2 + $0xc8] sm:$0xff]
  %v1701 = vld [vmem:[#allocation2 + $0xd0] sm:$0xff]
  %v1702 = vld [vmem:[#allocation2 + $0xd8] sm:$0xff]
  %v1703 = vld [vmem:[#allocation2 + $0xe0] sm:$0xff]
  %v1704 = vld [vmem:[#allocation2 + $0xe8] sm:$0xff]
  %v1705 = vld [vmem:[#allocation2 + $0xf0] sm:$0xff]
  %v1706 = vld [vmem:[#allocation2 + $0xf8] sm:$0xff]
  %v1707 = vld [vmem:[#allocation2 + $0x100] sm:$0xff]
  %v1708 = vld [vmem:[#allocation2 + $0x108] sm:$0xff]
  %v1709 = vld [vmem:[#allocation2 + $0x110] sm:$0xff]
  %v1710 = vld [vmem:[#allocation2 + $0x118] sm:$0xff]
  %v1711 = vld [vmem:[#allocation2 + $0x120] sm:$0xff]
  %v1712 = vld [vmem:[#allocation2 + $0x128] sm:$0xff]
  %v1713 = vld [vmem:[#allocation2 + $0x130] sm:$0xff]
  %v1714 = vld [vmem:[#allocation2 + $0x138] sm:$0xff]
  %v1715 = vld [vmem:[#allocation2 + $0x180] sm:$0xff]
  %v1716 = vld [vmem:[#allocation2 + $0x188] sm:$0xff]
  %v1717 = vld [vmem:[#allocation2 + $0x190] sm:$0xff]
  %v1718 = vld [vmem:[#allocation2 + $0x198] sm:$0xff]
  %v1719 = vld [vmem:[#allocation2 + $0x1a0] sm:$0xff]
  %v1720 = vld [vmem:[#allocation2 + $0x1a8] sm:$0xff]
  %v1721 = vld [vmem:[#allocation2 + $0x1b0] sm:$0xff]
  %v1722 = vld [vmem:[#allocation2 + $0x1b8] sm:$0xff]
  %v1723 = vld [vmem:[#allocation2 + $0x1c0] sm:$0xff]
  %v1724 = vld [vmem:[#allocation2 + $0x1c8] sm:$0xff]
  %v1725 = vld [vmem:[#allocation2 + $0x1d0] sm:$0xff]
  %v1726 = vld [vmem:[#allocation2 + $0x1d8] sm:$0xff]
  %v1727 = vld [vmem:[#allocation2 + $0x1e0] sm:$0xff]
  %v1728 = vld [vmem:[#allocation2 + $0x1e8] sm:$0xff]
  %v1729 = vld [vmem:[#allocation2 + $0x1f0] sm:$0xff]
  %v1730 = vld [vmem:[#allocation2 + $0x1f8] sm:$0xff]
  %v1731 = vld [vmem:[#allocation2 + $0x240] sm:$0xff]
  %v1732 = vld [vmem:[#allocation2 + $0x248] sm:$0xff]
  %v1733 = vld [vmem:[#allocation2 + $0x250] sm:$0xff]
  %v1734 = vld [vmem:[#allocation2 + $0x258] sm:$0xff]
  %v1735 = vld [vmem:[#allocation2 + $0x260] sm:$0xff]
  %v1736 = vld [vmem:[#allocation2 + $0x268] sm:$0xff]
  %v1737 = vld [vmem:[#allocation2 + $0x270] sm:$0xff]
  %v1738 = vld [vmem:[#allocation2 + $0x278] sm:$0xff]
  %v1739 = vld [vmem:[#allocation2 + $0x280] sm:$0xff]
  %v1740 = vld [vmem:[#allocation2 + $0x288] sm:$0xff]
  %v1741 = vld [vmem:[#allocation2 + $0x290] sm:$0xff]
  %v1742 = vld [vmem:[#allocation2 + $0x298] sm:$0xff]
  %v1743 = vld [vmem:[#allocation2 + $0x2a0] sm:$0xff]
  %v1744 = vld [vmem:[#allocation2 + $0x2a8] sm:$0xff]
  %v1745 = vld [vmem:[#allocation2 + $0x2b0] sm:$0xff]
  %v1746 = vld [vmem:[#allocation2 + $0x2b8] sm:$0xff]
  %v1747 = vld [vmem:[#allocation2 + $0x300] sm:$0xff]
  %v1748 = vld [vmem:[#allocation2 + $0x308] sm:$0xff]
  %v1749 = vld [vmem:[#allocation2 + $0x310] sm:$0xff]
  %v1750 = vld [vmem:[#allocation2 + $0x318] sm:$0xff]
  %v1751 = vld [vmem:[#allocation2 + $0x320] sm:$0xff]
  %v1752 = vld [vmem:[#allocation2 + $0x328] sm:$0xff]
  %v1753 = vld [vmem:[#allocation2 + $0x330] sm:$0xff]
  %v1754 = vld [vmem:[#allocation2 + $0x338] sm:$0xff]
  %v1755 = vld [vmem:[#allocation2 + $0x340] sm:$0xff]
  %v1756 = vld [vmem:[#allocation2 + $0x348] sm:$0xff]
  %v1757 = vld [vmem:[#allocation2 + $0x350] sm:$0xff]
  %v1758 = vld [vmem:[#allocation2 + $0x358] sm:$0xff]
  %v1759 = vld [vmem:[#allocation2 + $0x360] sm:$0xff]
  %v1760 = vld [vmem:[#allocation2 + $0x368] sm:$0xff]
  %v1761 = vld [vmem:[#allocation2 + $0x370] sm:$0xff]
  %v1762 = vld [vmem:[#allocation2 + $0x378] sm:$0xff]
  %v1763 = vld [vmem:[#allocation2 + $0x3c0] sm:$0xff]
  %v1764 = vld [vmem:[#allocation2 + $0x3c8] sm:$0xff]
  %v1765 = vld [vmem:[#allocation2 + $0x3d0] sm:$0xff]
  %v1766 = vld [vmem:[#allocation2 + $0x3d8] sm:$0xff]
  %v1767 = vld [vmem:[#allocation2 + $0x3e0] sm:$0xff]
  %v1768 = vld [vmem:[#allocation2 + $0x3e8] sm:$0xff]
  %v1769 = vld [vmem:[#allocation2 + $0x3f0] sm:$0xff]
  %v1770 = vld [vmem:[#allocation2 + $0x3f8] sm:$0xff]
  %v1771 = vld [vmem:[#allocation2 + $0x400] sm:$0xff]
  %v1772 = vld [vmem:[#allocation2 + $0x408] sm:$0xff]
  %v1773 = vld [vmem:[#allocation2 + $0x410] sm:$0xff]
  %v1774 = vld [vmem:[#allocation2 + $0x418] sm:$0xff]
  %v1775 = vld [vmem:[#allocation2 + $0x420] sm:$0xff]
  %v1776 = vld [vmem:[#allocation2 + $0x428] sm:$0xff]
  %v1777 = vld [vmem:[#allocation2 + $0x430] sm:$0xff]
  %v1778 = vld [vmem:[#allocation2 + $0x438] sm:$0xff]
  %v1779 = vld [vmem:[#allocation2 + $0x480] sm:$0xff]
  %v1780 = vld [vmem:[#allocation2 + $0x488] sm:$0xff]
  %v1781 = vld [vmem:[#allocation2 + $0x490] sm:$0xff]
  %v1782 = vld [vmem:[#allocation2 + $0x498] sm:$0xff]
  %v1783 = vld [vmem:[#allocation2 + $0x4a0] sm:$0xff]
  %v1784 = vld [vmem:[#allocation2 + $0x4a8] sm:$0xff]
  %v1785 = vld [vmem:[#allocation2 + $0x4b0] sm:$0xff]
  %v1786 = vld [vmem:[#allocation2 + $0x4b8] sm:$0xff]
  %v1787 = vld [vmem:[#allocation2 + $0x4c0] sm:$0xff]
  %v1788 = vld [vmem:[#allocation2 + $0x4c8] sm:$0xff]
  %v1789 = vld [vmem:[#allocation2 + $0x4d0] sm:$0xff]
  %v1790 = vld [vmem:[#allocation2 + $0x4d8] sm:$0xff]
  %v1791 = vld [vmem:[#allocation2 + $0x4e0] sm:$0xff]
  %v1792 = vld [vmem:[#allocation2 + $0x4e8] sm:$0xff]
  %v1793 = vld [vmem:[#allocation2 + $0x4f0] sm:$0xff]
  %v1794 = vld [vmem:[#allocation2 + $0x4f8] sm:$0xff]
  %v1795 = vld [vmem:[#allocation2 + $0x540] sm:$0xff]
  %v1796 = vld [vmem:[#allocation2 + $0x548] sm:$0xff]
  %v1797 = vld [vmem:[#allocation2 + $0x550] sm:$0xff]
  %v1798 = vld [vmem:[#allocation2 + $0x558] sm:$0xff]
  %v1799 = vld [vmem:[#allocation2 + $0x560] sm:$0xff]
  %v1800 = vld [vmem:[#allocation2 + $0x568] sm:$0xff]
  %v1801 = vld [vmem:[#allocation2 + $0x570] sm:$0xff]
  %v1802 = vld [vmem:[#allocation2 + $0x578] sm:$0xff]
  %v1803 = vld [vmem:[#allocation2 + $0x580] sm:$0xff]
  %v1804 = vld [vmem:[#allocation2 + $0x588] sm:$0xff]
  %v1805 = vld [vmem:[#allocation2 + $0x590] sm:$0xff]
  %v1806 = vld [vmem:[#allocation2 + $0x598] sm:$0xff]
  %v1807 = vld [vmem:[#allocation2 + $0x5a0] sm:$0xff]
  %v1808 = vld [vmem:[#allocation2 + $0x5a8] sm:$0xff]
  %v1809 = vld [vmem:[#allocation2 + $0x5b0] sm:$0xff]
  %v1810 = vld [vmem:[#allocation2 + $0x5b8] sm:$0xff]
  %v1811 = vpack.c.bf16 %v1685, %v1683
  %v1812 = vpack.c.bf16 %v1686, %v1684
  %v1813 = vpack.c.bf16 %v1689, %v1687
  %v1814 = vpack.c.bf16 %v1690, %v1688
  %v1815 = vpack.c.bf16 %v1693, %v1691
  %v1816 = vpack.c.bf16 %v1694, %v1692
  %v1817 = vpack.c.bf16 %v1697, %v1695
  %v1818 = vpack.c.bf16 %v1698, %v1696
  %v1819 = vpack.c.bf16 %v1701, %v1699
  %v1820 = vpack.c.bf16 %v1702, %v1700
  %v1821 = vpack.c.bf16 %v1705, %v1703
  %v1822 = vpack.c.bf16 %v1706, %v1704
  %v1823 = vpack.c.bf16 %v1709, %v1707
  %v1824 = vpack.c.bf16 %v1710, %v1708
  %v1825 = vpack.c.bf16 %v1713, %v1711
  %v1826 = vpack.c.bf16 %v1714, %v1712
  %v1827 = vpack.c.bf16 %v1717, %v1715
  %v1828 = vpack.c.bf16 %v1718, %v1716
  %v1829 = vpack.c.bf16 %v1721, %v1719
  %v1830 = vpack.c.bf16 %v1722, %v1720
  %v1831 = vpack.c.bf16 %v1725, %v1723
  %v1832 = vpack.c.bf16 %v1726, %v1724
  %v1833 = vpack.c.bf16 %v1729, %v1727
  %v1834 = vpack.c.bf16 %v1730, %v1728
  %v1835 = vpack.c.bf16 %v1733, %v1731
  %v1836 = vpack.c.bf16 %v1734, %v1732
  %v1837 = vpack.c.bf16 %v1737, %v1735
  %v1838 = vpack.c.bf16 %v1738, %v1736
  %v1839 = vpack.c.bf16 %v1741, %v1739
  %v1840 = vpack.c.bf16 %v1742, %v1740
  %v1841 = vpack.c.bf16 %v1745, %v1743
  %v1842 = vpack.c.bf16 %v1746, %v1744
  %v1843 = vpack.c.bf16 %v1749, %v1747
  %v1844 = vpack.c.bf16 %v1750, %v1748
  %v1845 = vpack.c.bf16 %v1753, %v1751
  %v1846 = vpack.c.bf16 %v1754, %v1752
  %v1847 = vpack.c.bf16 %v1757, %v1755
  %v1848 = vpack.c.bf16 %v1758, %v1756
  %v1849 = vpack.c.bf16 %v1761, %v1759
  %v1850 = vpack.c.bf16 %v1762, %v1760
  %v1851 = vpack.c.bf16 %v1765, %v1763
  %v1852 = vpack.c.bf16 %v1766, %v1764
  %v1853 = vpack.c.bf16 %v1769, %v1767
  %v1854 = vpack.c.bf16 %v1770, %v1768
  %v1855 = vpack.c.bf16 %v1773, %v1771
  %v1856 = vpack.c.bf16 %v1774, %v1772
  %v1857 = vpack.c.bf16 %v1777, %v1775
  %v1858 = vpack.c.bf16 %v1778, %v1776
  %v1859 = vpack.c.bf16 %v1781, %v1779
  %v1860 = vpack.c.bf16 %v1782, %v1780
  %v1861 = vpack.c.bf16 %v1785, %v1783
  %v1862 = vpack.c.bf16 %v1786, %v1784
  %v1863 = vpack.c.bf16 %v1789, %v1787
  %v1864 = vpack.c.bf16 %v1790, %v1788
  %v1865 = vpack.c.bf16 %v1793, %v1791
  %v1866 = vpack.c.bf16 %v1794, %v1792
  %v1867 = vpack.c.bf16 %v1797, %v1795
  %v1868 = vpack.c.bf16 %v1798, %v1796
  %v1869 = vpack.c.bf16 %v1801, %v1799
  %v1870 = vpack.c.bf16 %v1802, %v1800
  %v1871 = vpack.c.bf16 %v1805, %v1803
  %v1872 = vpack.c.bf16 %v1806, %v1804
  %v1873 = vpack.c.bf16 %v1809, %v1807
  %v1874 = vpack.c.bf16 %v1810, %v1808
  %v1875 = vld [vmem:[%s4] sm:$0xf]
  %v1876 = vld [vmem:[%s4 + $0x4] sm:$0xf]
  %v1877 = vld [vmem:[%s4 + $0x8] sm:$0xf]
  %v1878 = vld [vmem:[%s4 + $0xc] sm:$0xf]
  %v1879 = vld [vmem:[%s4 + $0x10] sm:$0xf]
  %v1880 = vld [vmem:[%s4 + $0x14] sm:$0xf]
  %v1881 = vld [vmem:[%s4 + $0x18] sm:$0xf]
  %v1882 = vld [vmem:[%s4 + $0x1c] sm:$0xf]
  %v1883 = vld [vmem:[%s4 + $0x20] sm:$0xf]
  %v1884 = vld [vmem:[%s4 + $0x24] sm:$0xf]
  %v1885 = vld [vmem:[%s4 + $0x28] sm:$0xf]
  %v1886 = vld [vmem:[%s4 + $0x2c] sm:$0xf]
  %v1887 = vld [vmem:[%s4 + $0x30] sm:$0xf]
  %v1888 = vld [vmem:[%s4 + $0x34] sm:$0xf]
  %v1889 = vld [vmem:[%s4 + $0x38] sm:$0xf]
  %v1890 = vld [vmem:[%s4 + $0x3c] sm:$0xf]
  %v1891 = vld [vmem:[%s4 + $0x40] sm:$0xf]
  %v1892 = vld [vmem:[%s4 + $0x44] sm:$0xf]
  %v1893 = vld [vmem:[%s4 + $0x48] sm:$0xf]
  %v1894 = vld [vmem:[%s4 + $0x4c] sm:$0xf]
  %v1895 = vld [vmem:[%s4 + $0x50] sm:$0xf]
  %v1896 = vld [vmem:[%s4 + $0x54] sm:$0xf]
  %v1897 = vld [vmem:[%s4 + $0x58] sm:$0xf]
  %v1898 = vld [vmem:[%s4 + $0x5c] sm:$0xf]
  %v1899 = vld [vmem:[%s4 + $0x60] sm:$0xf]
  %v1900 = vld [vmem:[%s4 + $0x64] sm:$0xf]
  %v1901 = vld [vmem:[%s4 + $0x68] sm:$0xf]
  %v1902 = vld [vmem:[%s4 + $0x6c] sm:$0xf]
  %v1903 = vld [vmem:[%s4 + $0x70] sm:$0xf]
  %v1904 = vld [vmem:[%s4 + $0x74] sm:$0xf]
  %v1905 = vld [vmem:[%s4 + $0x78] sm:$0xf]
  %v1906 = vld [vmem:[%s4 + $0x7c] sm:$0xf]
  %v1907 = vld [vmem:[#allocation2] sm:$0xfe]
  %v1908 = vld [vmem:[#allocation2 + $0x8] sm:$0xfe]
  %v1909 = vld [vmem:[#allocation2 + $0x80] sm:$0x1]
  %v1910 = vld [vmem:[#allocation2 + $0x88] sm:$0x1]
  %v1911 = vld [vmem:[#allocation2 + $0xc0] sm:$0xfe]
  %v1912 = vld [vmem:[#allocation2 + $0xc8] sm:$0xfe]
  %v1913 = vld [vmem:[#allocation2 + $0x140] sm:$0x1]
  %v1914 = vld [vmem:[#allocation2 + $0x148] sm:$0x1]
  %v1915 = vld [vmem:[#allocation2 + $0x180] sm:$0xfe]
  %v1916 = vld [vmem:[#allocation2 + $0x188] sm:$0xfe]
  %v1917 = vld [vmem:[#allocation2 + $0x200] sm:$0x1]
  %v1918 = vld [vmem:[#allocation2 + $0x208] sm:$0x1]
  %v1919 = vld [vmem:[#allocation2 + $0x240] sm:$0xfe]
  %v1920 = vld [vmem:[#allocation2 + $0x248] sm:$0xfe]
  %v1921 = vld [vmem:[#allocation2 + $0x2c0] sm:$0x1]
  %v1922 = vld [vmem:[#allocation2 + $0x2c8] sm:$0x1]
  %v1923 = vld [vmem:[#allocation2 + $0x300] sm:$0xfe]
  %v1924 = vld [vmem:[#allocation2 + $0x308] sm:$0xfe]
  %v1925 = vld [vmem:[#allocation2 + $0x380] sm:$0x1]
  %v1926 = vld [vmem:[#allocation2 + $0x388] sm:$0x1]
  %v1927 = vld [vmem:[#allocation2 + $0x3c0] sm:$0xfe]
  %v1928 = vld [vmem:[#allocation2 + $0x3c8] sm:$0xfe]
  %v1929 = vld [vmem:[#allocation2 + $0x440] sm:$0x1]
  %v1930 = vld [vmem:[#allocation2 + $0x448] sm:$0x1]
  %v1931 = vld [vmem:[#allocation2 + $0x480] sm:$0xfe]
  %v1932 = vld [vmem:[#allocation2 + $0x488] sm:$0xfe]
  %v1933 = vld [vmem:[#allocation2 + $0x500] sm:$0x1]
  %v1934 = vld [vmem:[#allocation2 + $0x508] sm:$0x1]
  %v1935 = vld [vmem:[#allocation2 + $0x540] sm:$0xfe]
  %v1936 = vld [vmem:[#allocation2 + $0x548] sm:$0xfe]
  %v1937 = vld [vmem:[#allocation2 + $0x5c0] sm:$0x1]
  %v1938 = vld [vmem:[#allocation2 + $0x5c8] sm:$0x1]
  %vm2083 = vcmask 1046528
  %v2084 = vrot.slane %v1907, 1
  %v2085 = vrot.slane %v1685, 1
  %v2086 = vsel %vm2083, %v2084, %v2085
  %v2087 = vrot.slane %v1908, 1
  %v2088 = vrot.slane %v1686, 1
  %v2089 = vsel %vm2083, %v2087, %v2088
  %v2090 = vrot.slane %v1687, 1
  %v2091 = vsel %vm2083, %v2085, %v2090
  %v2092 = vrot.slane %v1688, 1
  %v2093 = vsel %vm2083, %v2088, %v2092
  %v2094 = vrot.slane %v1689, 1
  %v2095 = vsel %vm2083, %v2090, %v2094
  %v2096 = vrot.slane %v1690, 1
  %v2097 = vsel %vm2083, %v2092, %v2096
  %v2098 = vrot.slane %v1691, 1
  %v2099 = vsel %vm2083, %v2094, %v2098
  %v2100 = vrot.slane %v1692, 1
  %v2101 = vsel %vm2083, %v2096, %v2100
  %v2102 = vrot.slane %v1693, 1
  %v2103 = vsel %vm2083, %v2098, %v2102
  %v2104 = vrot.slane %v1694, 1
  %v2105 = vsel %vm2083, %v2100, %v2104
  %v2106 = vrot.slane %v1695, 1
  %v2107 = vsel %vm2083, %v2102, %v2106
  %v2108 = vrot.slane %v1696, 1
  %v2109 = vsel %vm2083, %v2104, %v2108
  %v2110 = vrot.slane %v1697, 1
  %v2111 = vsel %vm2083, %v2106, %v2110
  %v2112 = vrot.slane %v1698, 1
  %v2113 = vsel %vm2083, %v2108, %v2112
  %v2114 = vrot.slane %v1909, 1
  %v2115 = vsel %vm2083, %v2110, %v2114
  %v2116 = vrot.slane %v1910, 1
  %v2117 = vsel %vm2083, %v2112, %v2116
  %v2118 = vrot.slane %v1911, 1
  %v2119 = vrot.slane %v1701, 1
  %v2120 = vsel %vm2083, %v2118, %v2119
  %v2121 = vrot.slane %v1912, 1
  %v2122 = vrot.slane %v1702, 1
  %v2123 = vsel %vm2083, %v2121, %v2122
  %v2124 = vrot.slane %v1703, 1
  %v2125 = vsel %vm2083, %v2119, %v2124
  %v2126 = vrot.slane %v1704, 1
  %v2127 = vsel %vm2083, %v2122, %v2126
  %v2128 = vrot.slane %v1705, 1
  %v2129 = vsel %vm2083, %v2124, %v2128
  %v2130 = vrot.slane %v1706, 1
  %v2131 = vsel %vm2083, %v2126, %v2130
  %v2132 = vrot.slane %v1707, 1
  %v2133 = vsel %vm2083, %v2128, %v2132
  %v2134 = vrot.slane %v1708, 1
  %v2135 = vsel %vm2083, %v2130, %v2134
  %v2136 = vrot.slane %v1709, 1
  %v2137 = vsel %vm2083, %v2132, %v2136
  %v2138 = vrot.slane %v1710, 1
  %v2139 = vsel %vm2083, %v2134, %v2138
  %v2140 = vrot.slane %v1711, 1
  %v2141 = vsel %vm2083, %v2136, %v2140
  %v2142 = vrot.slane %v1712, 1
  %v2143 = vsel %vm2083, %v2138, %v2142
  %v2144 = vrot.slane %v1713, 1
  %v2145 = vsel %vm2083, %v2140, %v2144
  %v2146 = vrot.slane %v1714, 1
  %v2147 = vsel %vm2083, %v2142, %v2146
  %v2148 = vrot.slane %v1913, 1
  %v2149 = vsel %vm2083, %v2144, %v2148
  %v2150 = vrot.slane %v1914, 1
  %v2151 = vsel %vm2083, %v2146, %v2150
  %v2152 = vrot.slane %v1915, 1
  %v2153 = vrot.slane %v1717, 1
  %v2154 = vsel %vm2083, %v2152, %v2153
  %v2155 = vrot.slane %v1916, 1
  %v2156 = vrot.slane %v1718, 1
  %v2157 = vsel %vm2083, %v2155, %v2156
  %v2158 = vrot.slane %v1719, 1
  %v2159 = vsel %vm2083, %v2153, %v2158
  %v2160 = vrot.slane %v1720, 1
  %v2161 = vsel %vm2083, %v2156, %v2160
  %v2162 = vrot.slane %v1721, 1
  %v2163 = vsel %vm2083, %v2158, %v2162
  %v2164 = vrot.slane %v1722, 1
  %v2165 = vsel %vm2083, %v2160, %v2164
  %v2166 = vrot.slane %v1723, 1
  %v2167 = vsel %vm2083, %v2162, %v2166
  %v2168 = vrot.slane %v1724, 1
  %v2169 = vsel %vm2083, %v2164, %v2168
  %v2170 = vrot.slane %v1725, 1
  %v2171 = vsel %vm2083, %v2166, %v2170
  %v2172 = vrot.slane %v1726, 1
  %v2173 = vsel %vm2083, %v2168, %v2172
  %v2174 = vrot.slane %v1727, 1
  %v2175 = vsel %vm2083, %v2170, %v2174
  %v2176 = vrot.slane %v1728, 1
  %v2177 = vsel %vm2083, %v2172, %v2176
  %v2178 = vrot.slane %v1729, 1
  %v2179 = vsel %vm2083, %v2174, %v2178
  %v2180 = vrot.slane %v1730, 1
  %v2181 = vsel %vm2083, %v2176, %v2180
  %v2182 = vrot.slane %v1917, 1
  %v2183 = vsel %vm2083, %v2178, %v2182
  %v2184 = vrot.slane %v1918, 1
  %v2185 = vsel %vm2083, %v2180, %v2184
  %v2186 = vrot.slane %v1919, 1
  %v2187 = vrot.slane %v1733, 1
  %v2188 = vsel %vm2083, %v2186, %v2187
  %v2189 = vrot.slane %v1920, 1
  %v2190 = vrot.slane %v1734, 1
  %v2191 = vsel %vm2083, %v2189, %v2190
  %v2192 = vrot.slane %v1735, 1
  %v2193 = vsel %vm2083, %v2187, %v2192
  %v2194 = vrot.slane %v1736, 1
  %v2195 = vsel %vm2083, %v2190, %v2194
  %v2196 = vrot.slane %v1737, 1
  %v2197 = vsel %vm2083, %v2192, %v2196
  %v2198 = vrot.slane %v1738, 1
  %v2199 = vsel %vm2083, %v2194, %v2198
  %v2200 = vrot.slane %v1739, 1
  %v2201 = vsel %vm2083, %v2196, %v2200
  %v2202 = vrot.slane %v1740, 1
  %v2203 = vsel %vm2083, %v2198, %v2202
  %v2204 = vrot.slane %v1741, 1
  %v2205 = vsel %vm2083, %v2200, %v2204
  %v2206 = vrot.slane %v1742, 1
  %v2207 = vsel %vm2083, %v2202, %v2206
  %v2208 = vrot.slane %v1743, 1
  %v2209 = vsel %vm2083, %v2204, %v2208
  %v2210 = vrot.slane %v1744, 1
  %v2211 = vsel %vm2083, %v2206, %v2210
  %v2212 = vrot.slane %v1745, 1
  %v2213 = vsel %vm2083, %v2208, %v2212
  %v2214 = vrot.slane %v1746, 1
  %v2215 = vsel %vm2083, %v2210, %v2214
  %v2216 = vrot.slane %v1921, 1
  %v2217 = vsel %vm2083, %v2212, %v2216
  %v2218 = vrot.slane %v1922, 1
  %v2219 = vsel %vm2083, %v2214, %v2218
  %v2220 = vrot.slane %v1923, 1
  %v2221 = vrot.slane %v1749, 1
  %v2222 = vsel %vm2083, %v2220, %v2221
  %v2223 = vrot.slane %v1924, 1
  %v2224 = vrot.slane %v1750, 1
  %v2225 = vsel %vm2083, %v2223, %v2224
  %v2226 = vrot.slane %v1751, 1
  %v2227 = vsel %vm2083, %v2221, %v2226
  %v2228 = vrot.slane %v1752, 1
  %v2229 = vsel %vm2083, %v2224, %v2228
  %v2230 = vrot.slane %v1753, 1
  %v2231 = vsel %vm2083, %v2226, %v2230
  %v2232 = vrot.slane %v1754, 1
  %v2233 = vsel %vm2083, %v2228, %v2232
  %v2234 = vrot.slane %v1755, 1
  %v2235 = vsel %vm2083, %v2230, %v2234
  %v2236 = vrot.slane %v1756, 1
  %v2237 = vsel %vm2083, %v2232, %v2236
  %v2238 = vrot.slane %v1757, 1
  %v2239 = vsel %vm2083, %v2234, %v2238
  %v2240 = vrot.slane %v1758, 1
  %v2241 = vsel %vm2083, %v2236, %v2240
  %v2242 = vrot.slane %v1759, 1
  %v2243 = vsel %vm2083, %v2238, %v2242
  %v2244 = vrot.slane %v1760, 1
  %v2245 = vsel %vm2083, %v2240, %v2244
  %v2246 = vrot.slane %v1761, 1
  %v2247 = vsel %vm2083, %v2242, %v2246
  %v2248 = vrot.slane %v1762, 1
  %v2249 = vsel %vm2083, %v2244, %v2248
  %v2250 = vrot.slane %v1925, 1
  %v2251 = vsel %vm2083, %v2246, %v2250
  %v2252 = vrot.slane %v1926, 1
  %v2253 = vsel %vm2083, %v2248, %v2252
  %v2254 = vrot.slane %v1927, 1
  %v2255 = vrot.slane %v1765, 1
  %v2256 = vsel %vm2083, %v2254, %v2255
  %v2257 = vrot.slane %v1928, 1
  %v2258 = vrot.slane %v1766, 1
  %v2259 = vsel %vm2083, %v2257, %v2258
  %v2260 = vrot.slane %v1767, 1
  %v2261 = vsel %vm2083, %v2255, %v2260
  %v2262 = vrot.slane %v1768, 1
  %v2263 = vsel %vm2083, %v2258, %v2262
  %v2264 = vrot.slane %v1769, 1
  %v2265 = vsel %vm2083, %v2260, %v2264
  %v2266 = vrot.slane %v1770, 1
  %v2267 = vsel %vm2083, %v2262, %v2266
  %v2268 = vrot.slane %v1771, 1
  %v2269 = vsel %vm2083, %v2264, %v2268
  %v2270 = vrot.slane %v1772, 1
  %v2271 = vsel %vm2083, %v2266, %v2270
  %v2272 = vrot.slane %v1773, 1
  %v2273 = vsel %vm2083, %v2268, %v2272
  %v2274 = vrot.slane %v1774, 1
  %v2275 = vsel %vm2083, %v2270, %v2274
  %v2276 = vrot.slane %v1775, 1
  %v2277 = vsel %vm2083, %v2272, %v2276
  %v2278 = vrot.slane %v1776, 1
  %v2279 = vsel %vm2083, %v2274, %v2278
  %v2280 = vrot.slane %v1777, 1
  %v2281 = vsel %vm2083, %v2276, %v2280
  %v2282 = vrot.slane %v1778, 1
  %v2283 = vsel %vm2083, %v2278, %v2282
  %v2284 = vrot.slane %v1929, 1
  %v2285 = vsel %vm2083, %v2280, %v2284
  %v2286 = vrot.slane %v1930, 1
  %v2287 = vsel %vm2083, %v2282, %v2286
  %v2288 = vrot.slane %v1931, 1
  %v2289 = vrot.slane %v1781, 1
  %v2290 = vsel %vm2083, %v2288, %v2289
  %v2291 = vrot.slane %v1932, 1
  %v2292 = vrot.slane %v1782, 1
  %v2293 = vsel %vm2083, %v2291, %v2292
  %v2294 = vrot.slane %v1783, 1
  %v2295 = vsel %vm2083, %v2289, %v2294
  %v2296 = vrot.slane %v1784, 1
  %v2297 = vsel %vm2083, %v2292, %v2296
  %v2298 = vrot.slane %v1785, 1
  %v2299 = vsel %vm2083, %v2294, %v2298
  %v2300 = vrot.slane %v1786, 1
  %v2301 = vsel %vm2083, %v2296, %v2300
  %v2302 = vrot.slane %v1787, 1
  %v2303 = vsel %vm2083, %v2298, %v2302
  %v2304 = vrot.slane %v1788, 1
  %v2305 = vsel %vm2083, %v2300, %v2304
  %v2306 = vrot.slane %v1789, 1
  %v2307 = vsel %vm2083, %v2302, %v2306
  %v2308 = vrot.slane %v1790, 1
  %v2309 = vsel %vm2083, %v2304, %v2308
  %v2310 = vrot.slane %v1791, 1
  %v2311 = vsel %vm2083, %v2306, %v2310
  %v2312 = vrot.slane %v1792, 1
  %v2313 = vsel %vm2083, %v2308, %v2312
  %v2314 = vrot.slane %v1793, 1
  %v2315 = vsel %vm2083, %v2310, %v2314
  %v2316 = vrot.slane %v1794, 1
  %v2317 = vsel %vm2083, %v2312, %v2316
  %v2318 = vrot.slane %v1933, 1
  %v2319 = vsel %vm2083, %v2314, %v2318
  %v2320 = vrot.slane %v1934, 1
  %v2321 = vsel %vm2083, %v2316, %v2320
  %v2322 = vrot.slane %v1935, 1
  %v2323 = vrot.slane %v1797, 1
  %v2324 = vsel %vm2083, %v2322, %v2323
  %v2325 = vrot.slane %v1936, 1
  %v2326 = vrot.slane %v1798, 1
  %v2327 = vsel %vm2083, %v2325, %v2326
  %v2328 = vrot.slane %v1799, 1
  %v2329 = vsel %vm2083, %v2323, %v2328
  %v2330 = vrot.slane %v1800, 1
  %v2331 = vsel %vm2083, %v2326, %v2330
  %v2332 = vrot.slane %v1801, 1
  %v2333 = vsel %vm2083, %v2328, %v2332
  %v2334 = vrot.slane %v1802, 1
  %v2335 = vsel %vm2083, %v2330, %v2334
  %v2336 = vrot.slane %v1803, 1
  %v2337 = vsel %vm2083, %v2332, %v2336
  %v2338 = vrot.slane %v1804, 1
  %v2339 = vsel %vm2083, %v2334, %v2338
  %v2340 = vrot.slane %v1805, 1
  %v2341 = vsel %vm2083, %v2336, %v2340
  %v2342 = vrot.slane %v1806, 1
  %v2343 = vsel %vm2083, %v2338, %v2342
  %v2344 = vrot.slane %v1807, 1
  %v2345 = vsel %vm2083, %v2340, %v2344
  %v2346 = vrot.slane %v1808, 1
  %v2347 = vsel %vm2083, %v2342, %v2346
  %v2348 = vrot.slane %v1809, 1
  %v2349 = vsel %vm2083, %v2344, %v2348
  %v2350 = vrot.slane %v1810, 1
  %v2351 = vsel %vm2083, %v2346, %v2350
  %v2352 = vrot.slane %v1937, 1
  %v2353 = vsel %vm2083, %v2348, %v2352
  %v2354 = vrot.slane %v1938, 1
  %v2355 = vsel %vm2083, %v2350, %v2354
  %v2484 = vpack.c.bf16 %v2091, %v2086
  %v2485 = vpack.c.bf16 %v2093, %v2089
  %v2486 = vpack.c.bf16 %v2099, %v2095
  %v2487 = vpack.c.bf16 %v2101, %v2097
  %v2488 = vpack.c.bf16 %v2107, %v2103
  %v2489 = vpack.c.bf16 %v2109, %v2105
  %v2490 = vpack.c.bf16 %v2115, %v2111
  %v2491 = vpack.c.bf16 %v2117, %v2113
  %v2492 = vpack.c.bf16 %v2125, %v2120
  %v2493 = vpack.c.bf16 %v2127, %v2123
  %v2494 = vpack.c.bf16 %v2133, %v2129
  %v2495 = vpack.c.bf16 %v2135, %v2131
  %v2496 = vpack.c.bf16 %v2141, %v2137
  %v2497 = vpack.c.bf16 %v2143, %v2139
  %v2498 = vpack.c.bf16 %v2149, %v2145
  %v2499 = vpack.c.bf16 %v2151, %v2147
  %v2500 = vpack.c.bf16 %v2159, %v2154
  %v2501 = vpack.c.bf16 %v2161, %v2157
  %v2502 = vpack.c.bf16 %v2167, %v2163
  %v2503 = vpack.c.bf16 %v2169, %v2165
  %v2504 = vpack.c.bf16 %v2175, %v2171
  %v2505 = vpack.c.bf16 %v2177, %v2173
  %v2506 = vpack.c.bf16 %v2183, %v2179
  %v2507 = vpack.c.bf16 %v2185, %v2181
  %v2508 = vpack.c.bf16 %v2193, %v2188
  %v2509 = vpack.c.bf16 %v2195, %v2191
  %v2510 = vpack.c.bf16 %v2201, %v2197
  %v2511 = vpack.c.bf16 %v2203, %v2199
  %v2512 = vpack.c.bf16 %v2209, %v2205
  %v2513 = vpack.c.bf16 %v2211, %v2207
  %v2514 = vpack.c.bf16 %v2217, %v2213
  %v2515 = vpack.c.bf16 %v2219, %v2215
  %v2516 = vpack.c.bf16 %v2227, %v2222
  %v2517 = vpack.c.bf16 %v2229, %v2225
  %v2518 = vpack.c.bf16 %v2235, %v2231
  %v2519 = vpack.c.bf16 %v2237, %v2233
  %v2520 = vpack.c.bf16 %v2243, %v2239
  %v2521 = vpack.c.bf16 %v2245, %v2241
  %v2522 = vpack.c.bf16 %v2251, %v2247
  %v2523 = vpack.c.bf16 %v2253, %v2249
  %v2524 = vpack.c.bf16 %v2261, %v2256
  %v2525 = vpack.c.bf16 %v2263, %v2259
  %v2526 = vpack.c.bf16 %v2269, %v2265
  %v2527 = vpack.c.bf16 %v2271, %v2267
  %v2528 = vpack.c.bf16 %v2277, %v2273
  %v2529 = vpack.c.bf16 %v2279, %v2275
  %v2530 = vpack.c.bf16 %v2285, %v2281
  %v2531 = vpack.c.bf16 %v2287, %v2283
  %v2532 = vpack.c.bf16 %v2295, %v2290
  %v2533 = vpack.c.bf16 %v2297, %v2293
  %v2534 = vpack.c.bf16 %v2303, %v2299
  %v2535 = vpack.c.bf16 %v2305, %v2301
  %v2536 = vpack.c.bf16 %v2311, %v2307
  %v2537 = vpack.c.bf16 %v2313, %v2309
  %v2538 = vpack.c.bf16 %v2319, %v2315
  %v2539 = vpack.c.bf16 %v2321, %v2317
  %v2540 = vpack.c.bf16 %v2329, %v2324
  %v2541 = vpack.c.bf16 %v2331, %v2327
  %v2542 = vpack.c.bf16 %v2337, %v2333
  %v2543 = vpack.c.bf16 %v2339, %v2335
  %v2544 = vpack.c.bf16 %v2345, %v2341
  %v2545 = vpack.c.bf16 %v2347, %v2343
  %v2546 = vpack.c.bf16 %v2353, %v2349
  %v2547 = vpack.c.bf16 %v2355, %v2351
  %s2548 = scalar_lea.vmem %s4, 128
  %v2549 = vld [vmem:[%s2548] sm:$0xf]
  %v2550 = vld [vmem:[%s2548 + $0x4] sm:$0xf]
  %v2551 = vld [vmem:[%s2548 + $0x8] sm:$0xf]
  %v2552 = vld [vmem:[%s2548 + $0xc] sm:$0xf]
  %v2553 = vld [vmem:[%s2548 + $0x10] sm:$0xf]
  %v2554 = vld [vmem:[%s2548 + $0x14] sm:$0xf]
  %v2555 = vld [vmem:[%s2548 + $0x18] sm:$0xf]
  %v2556 = vld [vmem:[%s2548 + $0x1c] sm:$0xf]
  %v2557 = vld [vmem:[%s2548 + $0x20] sm:$0xf]
  %v2558 = vld [vmem:[%s2548 + $0x24] sm:$0xf]
  %v2559 = vld [vmem:[%s2548 + $0x28] sm:$0xf]
  %v2560 = vld [vmem:[%s2548 + $0x2c] sm:$0xf]
  %v2561 = vld [vmem:[%s2548 + $0x30] sm:$0xf]
  %v2562 = vld [vmem:[%s2548 + $0x34] sm:$0xf]
  %v2563 = vld [vmem:[%s2548 + $0x38] sm:$0xf]
  %v2564 = vld [vmem:[%s2548 + $0x3c] sm:$0xf]
  %v2565 = vld [vmem:[%s2548 + $0x40] sm:$0xf]
  %v2566 = vld [vmem:[%s2548 + $0x44] sm:$0xf]
  %v2567 = vld [vmem:[%s2548 + $0x48] sm:$0xf]
  %v2568 = vld [vmem:[%s2548 + $0x4c] sm:$0xf]
  %v2569 = vld [vmem:[%s2548 + $0x50] sm:$0xf]
  %v2570 = vld [vmem:[%s2548 + $0x54] sm:$0xf]
  %v2571 = vld [vmem:[%s2548 + $0x58] sm:$0xf]
  %v2572 = vld [vmem:[%s2548 + $0x5c] sm:$0xf]
  %v2573 = vld [vmem:[%s2548 + $0x60] sm:$0xf]
  %v2574 = vld [vmem:[%s2548 + $0x64] sm:$0xf]
  %v2575 = vld [vmem:[%s2548 + $0x68] sm:$0xf]
  %v2576 = vld [vmem:[%s2548 + $0x6c] sm:$0xf]
  %v2577 = vld [vmem:[%s2548 + $0x70] sm:$0xf]
  %v2578 = vld [vmem:[%s2548 + $0x74] sm:$0xf]
  %v2579 = vld [vmem:[%s2548 + $0x78] sm:$0xf]
  %v2580 = vld [vmem:[%s2548 + $0x7c] sm:$0xf]
  %v2613 = vunpack.c.l.b16 %v2549
  %v2614 = vunpack.c.l.b16 %v2550
  %v2615 = vunpack.c.l.b16 %v2551
  %v2616 = vunpack.c.l.b16 %v2552
  %v2617 = vunpack.c.l.b16 %v2553
  %v2618 = vunpack.c.l.b16 %v2554
  %v2619 = vunpack.c.l.b16 %v2555
  %v2620 = vunpack.c.l.b16 %v2556
  %v2621 = vunpack.c.l.b16 %v2557
  %v2622 = vunpack.c.l.b16 %v2558
  %v2623 = vunpack.c.l.b16 %v2559
  %v2624 = vunpack.c.l.b16 %v2560
  %v2625 = vunpack.c.l.b16 %v2561
  %v2626 = vunpack.c.l.b16 %v2562
  %v2627 = vunpack.c.l.b16 %v2563
  %v2628 = vunpack.c.l.b16 %v2564
  %v2629 = vunpack.c.l.b16 %v2565
  %v2630 = vunpack.c.l.b16 %v2566
  %v2631 = vunpack.c.l.b16 %v2567
  %v2632 = vunpack.c.l.b16 %v2568
  %v2633 = vunpack.c.l.b16 %v2569
  %v2634 = vunpack.c.l.b16 %v2570
  %v2635 = vunpack.c.l.b16 %v2571
  %v2636 = vunpack.c.l.b16 %v2572
  %v2637 = vunpack.c.l.b16 %v2573
  %v2638 = vunpack.c.l.b16 %v2574
  %v2639 = vunpack.c.l.b16 %v2575
  %v2640 = vunpack.c.l.b16 %v2576
  %v2641 = vunpack.c.l.b16 %v2577
  %v2642 = vunpack.c.l.b16 %v2578
  %v2643 = vunpack.c.l.b16 %v2579
  %v2644 = vunpack.c.l.b16 %v2580
  %v2645 = vpack.c.b16 %v2614, %v2613
  %v2646 = vpack.c.b16 %v2616, %v2615
  %v2647 = vpack.c.b16 %v2618, %v2617
  %v2648 = vpack.c.b16 %v2620, %v2619
  %v2649 = vpack.c.b16 %v2622, %v2621
  %v2650 = vpack.c.b16 %v2624, %v2623
  %v2651 = vpack.c.b16 %v2626, %v2625
  %v2652 = vpack.c.b16 %v2628, %v2627
  %v2653 = vpack.c.b16 %v2630, %v2629
  %v2654 = vpack.c.b16 %v2632, %v2631
  %v2655 = vpack.c.b16 %v2634, %v2633
  %v2656 = vpack.c.b16 %v2636, %v2635
  %v2657 = vpack.c.b16 %v2638, %v2637
  %v2658 = vpack.c.b16 %v2640, %v2639
  %v2659 = vpack.c.b16 %v2642, %v2641
  %v2660 = vpack.c.b16 %v2644, %v2643
  %2677 = vmatprep.subr.bf16.mxu0 0
  %2678 = vmatpush1.bf16.msra.mxu0 %v2645
  %2679 = vmatprep.subr.bf16.mxu0 0
  %2680 = vmatpush1.bf16.msra.mxu0 %v2646
  %2681 = vmatprep.subr.bf16.mxu0 0
  %2682 = vmatpush1.bf16.msra.mxu0 %v2647
  %2683 = vmatprep.subr.bf16.mxu0 0
  %2684 = vmatpush1.bf16.msra.mxu0 %v2648
  %2685 = vmatprep.subr.bf16.mxu0 0
  %2686 = vmatpush1.bf16.msra.mxu0 %v2649
  %2687 = vmatprep.subr.bf16.mxu0 0
  %2688 = vmatpush1.bf16.msra.mxu0 %v2650
  %2689 = vmatprep.subr.bf16.mxu0 0
  %2690 = vmatpush1.bf16.msra.mxu0 %v2651
  %2691 = vmatprep.subr.bf16.mxu0 0
  %2692 = vmatpush1.bf16.msra.mxu0 %v2652
  %2693 = vmatprep.subr.bf16.mxu0 0
  %2694 = vmatpush1.bf16.msra.mxu0 %v2653
  %2695 = vmatprep.subr.bf16.mxu0 0
  %2696 = vmatpush1.bf16.msra.mxu0 %v2654
  %2697 = vmatprep.subr.bf16.mxu0 0
  %2698 = vmatpush1.bf16.msra.mxu0 %v2655
  %2699 = vmatprep.subr.bf16.mxu0 0
  %2700 = vmatpush1.bf16.msra.mxu0 %v2656
  %2701 = vmatprep.subr.bf16.mxu0 0
  %2702 = vmatpush1.bf16.msra.mxu0 %v2657
  %2703 = vmatprep.subr.bf16.mxu0 0
  %2704 = vmatpush1.bf16.msra.mxu0 %v2658
  %2705 = vmatprep.subr.bf16.mxu0 0
  %2706 = vmatpush1.bf16.msra.mxu0 %v2659
  %2707 = vmatprep.subr.bf16.mxu0 0
  %2708 = vmatpush1.bf16.msra.mxu0 %v2660
  %2709 = vmatprep.mubr.bf16.mxu0 %v2485
  %2710 = vmatmul.mubr.bf16.gmra.mrb[0].mxu0 %v2484
  %v2711 = vpop.f32.mrb[0].mxu0
  %v2712 = vadd.f32 0.0, %v2711
  %v2713 = vpop.f32.mrb[0].mxu0
  %v2714 = vpop.f32.mrb[0].mxu0
  %v2715 = vadd.f32 0.0, %v2714
  %v2716 = vpop.f32.mrb[0].mxu0
  %2717 = vmatprep.mubr.bf16.mxu0 %v2487
  %2718 = vmatmul.mubr.bf16.gmra.mrb[0].mxu0 %v2486
  %v2719 = vpop.f32.mrb[0].mxu0
  %v2720 = vadd.f32 0.0, %v2719
  %v2721 = vpop.f32.mrb[0].mxu0
  %v2722 = vpop.f32.mrb[0].mxu0
  %v2723 = vadd.f32 0.0, %v2722
  %v2724 = vpop.f32.mrb[0].mxu0
  %2725 = vmatprep.mubr.bf16.mxu0 %v2489
  %2726 = vmatmul.mubr.bf16.gmra.mrb[0].mxu0 %v2488
  %v2727 = vpop.f32.mrb[0].mxu0
  %v2728 = vadd.f32 0.0, %v2727
  %v2729 = vpop.f32.mrb[0].mxu0
  %v2730 = vpop.f32.mrb[0].mxu0
  %v2731 = vadd.f32 0.0, %v2730
  %v2732 = vpop.f32.mrb[0].mxu0
  %2733 = vmatprep.mubr.bf16.mxu0 %v2491
  %2734 = vmatmul.mubr.bf16.gmra.mrb[0].mxu0 %v2490
  %v2735 = vpop.f32.mrb[0].mxu0
  %v2736 = vadd.f32 0.0, %v2735
  %v2737 = vpop.f32.mrb[0].mxu0
  %v2738 = vpop.f32.mrb[0].mxu0
  %v2739 = vadd.f32 0.0, %v2738
  %v2740 = vpop.f32.mrb[0].mxu0
  %2741 = vmatprep.mubr.bf16.mxu0 %v2493
  %2742 = vmatmul.mubr.bf16.gmra.mrb[0].mxu0 %v2492
  %v2743 = vpop.f32.mrb[0].mxu0
  %v2744 = vadd.f32 0.0, %v2743
  %v2745 = vpop.f32.mrb[0].mxu0
  %v2746 = vpop.f32.mrb[0].mxu0
  %v2747 = vadd.f32 0.0, %v2746
  %v2748 = vpop.f32.mrb[0].mxu0
  %2749 = vmatprep.mubr.bf16.mxu0 %v2495
  %2750 = vmatmul.mubr.bf16.gmra.mrb[0].mxu0 %v2494
  %v2751 = vpop.f32.mrb[0].mxu0
  %v2752 = vadd.f32 0.0, %v2751
  %v2753 = vpop.f32.mrb[0].mxu0
  %v2754 = vpop.f32.mrb[0].mxu0
  %v2755 = vadd.f32 0.0, %v2754
  %v2756 = vpop.f32.mrb[0].mxu0
  %2757 = vmatprep.mubr.bf16.mxu0 %v2497
  %2758 = vmatmul.mubr.bf16.gmra.mrb[0].mxu0 %v2496
  %v2759 = vpop.f32.mrb[0].mxu0
  %v2760 = vadd.f32 0.0, %v2759
  %v2761 = vpop.f32.mrb[0].mxu0
  %v2762 = vpop.f32.mrb[0].mxu0
  %v2763 = vadd.f32 0.0, %v2762
  %v2764 = vpop.f32.mrb[0].mxu0
  %2765 = vmatprep.mubr.bf16.mxu0 %v2499
  %2766 = vmatmul.mubr.bf16.gmra.mrb[0].mxu0 %v2498
  %v2767 = vpop.f32.mrb[0].mxu0
  %v2768 = vadd.f32 0.0, %v2767
  %v2769 = vpop.f32.mrb[0].mxu0
  %v2770 = vpop.f32.mrb[0].mxu0
  %v2771 = vadd.f32 0.0, %v2770
  %v2772 = vpop.f32.mrb[0].mxu0
  %2773 = vmatprep.mubr.bf16.mxu0 %v2501
  %2774 = vmatmul.mubr.bf16.gmra.mrb[0].mxu0 %v2500
  %v2775 = vpop.f32.mrb[0].mxu0
  %v2776 = vadd.f32 0.0, %v2775
  %v2777 = vpop.f32.mrb[0].mxu0
  %v2778 = vpop.f32.mrb[0].mxu0
  %v2779 = vadd.f32 0.0, %v2778
  %v2780 = vpop.f32.mrb[0].mxu0
  %2781 = vmatprep.mubr.bf16.mxu0 %v2503
  %2782 = vmatmul.mubr.bf16.gmra.mrb[0].mxu0 %v2502
  %v2783 = vpop.f32.mrb[0].mxu0
  %v2784 = vadd.f32 0.0, %v2783
  %v2785 = vpop.f32.mrb[0].mxu0
  %v2786 = vpop.f32.mrb[0].mxu0
  %v2787 = vadd.f32 0.0, %v2786
  %v2788 = vpop.f32.mrb[0].mxu0
  %2789 = vmatprep.mubr.bf16.mxu0 %v2505
  %2790 = vmatmul.mubr.bf16.gmra.mrb[0].mxu0 %v2504
  %v2791 = vpop.f32.mrb[0].mxu0
  %v2792 = vadd.f32 0.0, %v2791
  %v2793 = vpop.f32.mrb[0].mxu0
  %v2794 = vpop.f32.mrb[0].mxu0
  %v2795 = vadd.f32 0.0, %v2794
  %v2796 = vpop.f32.mrb[0].mxu0
  %2797 = vmatprep.mubr.bf16.mxu0 %v2507
  %2798 = vmatmul.mubr.bf16.gmra.mrb[0].mxu0 %v2506
  %v2799 = vpop.f32.mrb[0].mxu0
  %v2800 = vadd.f32 0.0, %v2799
  %v2801 = vpop.f32.mrb[0].mxu0
  %v2802 = vpop.f32.mrb[0].mxu0
  %v2803 = vadd.f32 0.0, %v2802
  %v2804 = vpop.f32.mrb[0].mxu0
  %2805 = vmatprep.mubr.bf16.mxu0 %v2509
  %2806 = vmatmul.mubr.bf16.gmra.mrb[0].mxu0 %v2508
  %v2807 = vpop.f32.mrb[0].mxu0
  %v2808 = vadd.f32 0.0, %v2807
  %v2809 = vpop.f32.mrb[0].mxu0
  %v2810 = vpop.f32.mrb[0].mxu0
  %v2811 = vadd.f32 0.0, %v2810
  %v2812 = vpop.f32.mrb[0].mxu0
  %2813 = vmatprep.mubr.bf16.mxu0 %v2511
  %2814 = vmatmul.mubr.bf16.gmra.mrb[0].mxu0 %v2510
  %v2815 = vpop.f32.mrb[0].mxu0
  %v2816 = vadd.f32 0.0, %v2815
  %v2817 = vpop.f32.mrb[0].mxu0
  %v2818 = vpop.f32.mrb[0].mxu0
  %v2819 = vadd.f32 0.0, %v2818
  %v2820 = vpop.f32.mrb[0].mxu0
  %2821 = vmatprep.mubr.bf16.mxu0 %v2513
  %2822 = vmatmul.mubr.bf16.gmra.mrb[0].mxu0 %v2512
  %v2823 = vpop.f32.mrb[0].mxu0
  %v2824 = vadd.f32 0.0, %v2823
  %v2825 = vpop.f32.mrb[0].mxu0
  %v2826 = vpop.f32.mrb[0].mxu0
  %v2827 = vadd.f32 0.0, %v2826
  %v2828 = vpop.f32.mrb[0].mxu0
  %2829 = vmatprep.mubr.bf16.mxu0 %v2515
  %2830 = vmatmul.mubr.bf16.gmra.mrb[0].mxu0 %v2514
  %v2831 = vpop.f32.mrb[0].mxu0
  %v2832 = vadd.f32 0.0, %v2831
  %v2833 = vpop.f32.mrb[0].mxu0
  %v2834 = vpop.f32.mrb[0].mxu0
  %v2835 = vadd.f32 0.0, %v2834
  %v2836 = vpop.f32.mrb[0].mxu0
  %2837 = vmatprep.mubr.bf16.mxu0 %v2517
  %2838 = vmatmul.mubr.bf16.gmra.mrb[0].mxu0 %v2516
  %v2839 = vpop.f32.mrb[0].mxu0
  %v2840 = vadd.f32 0.0, %v2839
  %v2841 = vpop.f32.mrb[0].mxu0
  %v2842 = vpop.f32.mrb[0].mxu0
  %v2843 = vadd.f32 0.0, %v2842
  %v2844 = vpop.f32.mrb[0].mxu0
  %2845 = vmatprep.mubr.bf16.mxu0 %v2519
  %2846 = vmatmul.mubr.bf16.gmra.mrb[0].mxu0 %v2518
  %v2847 = vpop.f32.mrb[0].mxu0
  %v2848 = vadd.f32 0.0, %v2847
  %v2849 = vpop.f32.mrb[0].mxu0
  %v2850 = vpop.f32.mrb[0].mxu0
  %v2851 = vadd.f32 0.0, %v2850
  %v2852 = vpop.f32.mrb[0].mxu0
  %2853 = vmatprep.mubr.bf16.mxu0 %v2521
  %2854 = vmatmul.mubr.bf16.gmra.mrb[0].mxu0 %v2520
  %v2855 = vpop.f32.mrb[0].mxu0
  %v2856 = vadd.f32 0.0, %v2855
  %v2857 = vpop.f32.mrb[0].mxu0
  %v2858 = vpop.f32.mrb[0].mxu0
  %v2859 = vadd.f32 0.0, %v2858
  %v2860 = vpop.f32.mrb[0].mxu0
  %2861 = vmatprep.mubr.bf16.mxu0 %v2523
  %2862 = vmatmul.mubr.bf16.gmra.mrb[0].mxu0 %v2522
  %v2863 = vpop.f32.mrb[0].mxu0
  %v2864 = vadd.f32 0.0, %v2863
  %v2865 = vpop.f32.mrb[0].mxu0
  %v2866 = vpop.f32.mrb[0].mxu0
  %v2867 = vadd.f32 0.0, %v2866
  %v2868 = vpop.f32.mrb[0].mxu0
  %2869 = vmatprep.mubr.bf16.mxu0 %v2525
  %2870 = vmatmul.mubr.bf16.gmra.mrb[0].mxu0 %v2524
  %v2871 = vpop.f32.mrb[0].mxu0
  %v2872 = vadd.f32 0.0, %v2871
  %v2873 = vpop.f32.mrb[0].mxu0
  %v2874 = vpop.f32.mrb[0].mxu0
  %v2875 = vadd.f32 0.0, %v2874
  %v2876 = vpop.f32.mrb[0].mxu0
  %2877 = vmatprep.mubr.bf16.mxu0 %v2527
  %2878 = vmatmul.mubr.bf16.gmra.mrb[0].mxu0 %v2526
  %v2879 = vpop.f32.mrb[0].mxu0
  %v2880 = vadd.f32 0.0, %v2879
  %v2881 = vpop.f32.mrb[0].mxu0
  %v2882 = vpop.f32.mrb[0].mxu0
  %v2883 = vadd.f32 0.0, %v2882
  %v2884 = vpop.f32.mrb[0].mxu0
  %2885 = vmatprep.mubr.bf16.mxu0 %v2529
  %2886 = vmatmul.mubr.bf16.gmra.mrb[0].mxu0 %v2528
  %v2887 = vpop.f32.mrb[0].mxu0
  %v2888 = vadd.f32 0.0, %v2887
  %v2889 = vpop.f32.mrb[0].mxu0
  %v2890 = vpop.f32.mrb[0].mxu0
  %v2891 = vadd.f32 0.0, %v2890
  %v2892 = vpop.f32.mrb[0].mxu0
  %2893 = vmatprep.mubr.bf16.mxu0 %v2531
  %2894 = vmatmul.mubr.bf16.gmra.mrb[0].mxu0 %v2530
  %v2895 = vpop.f32.mrb[0].mxu0
  %v2896 = vadd.f32 0.0, %v2895
  %v2897 = vpop.f32.mrb[0].mxu0
  %v2898 = vpop.f32.mrb[0].mxu0
  %v2899 = vadd.f32 0.0, %v2898
  %v2900 = vpop.f32.mrb[0].mxu0
  %2901 = vmatprep.mubr.bf16.mxu0 %v2533
  %2902 = vmatmul.mubr.bf16.gmra.mrb[0].mxu0 %v2532
  %v2903 = vpop.f32.mrb[0].mxu0
  %v2904 = vadd.f32 0.0, %v2903
  %v2905 = vpop.f32.mrb[0].mxu0
  %v2906 = vpop.f32.mrb[0].mxu0
  %v2907 = vadd.f32 0.0, %v2906
  %v2908 = vpop.f32.mrb[0].mxu0
  %2909 = vmatprep.mubr.bf16.mxu0 %v2535
  %2910 = vmatmul.mubr.bf16.gmra.mrb[0].mxu0 %v2534
  %v2911 = vpop.f32.mrb[0].mxu0
  %v2912 = vadd.f32 0.0, %v2911
  %v2913 = vpop.f32.mrb[0].mxu0
  %v2914 = vpop.f32.mrb[0].mxu0
  %v2915 = vadd.f32 0.0, %v2914
  %v2916 = vpop.f32.mrb[0].mxu0
  %2917 = vmatprep.mubr.bf16.mxu0 %v2537
  %2918 = vmatmul.mubr.bf16.gmra.mrb[0].mxu0 %v2536
  %v2919 = vpop.f32.mrb[0].mxu0
  %v2920 = vadd.f32 0.0, %v2919
  %v2921 = vpop.f32.mrb[0].mxu0
  %v2922 = vpop.f32.mrb[0].mxu0
  %v2923 = vadd.f32 0.0, %v2922
  %v2924 = vpop.f32.mrb[0].mxu0
  %2925 = vmatprep.mubr.bf16.mxu0 %v2539
  %2926 = vmatmul.mubr.bf16.gmra.mrb[0].mxu0 %v2538
  %v2927 = vpop.f32.mrb[0].mxu0
  %v2928 = vadd.f32 0.0, %v2927
  %v2929 = vpop.f32.mrb[0].mxu0
  %v2930 = vpop.f32.mrb[0].mxu0
  %v2931 = vadd.f32 0.0, %v2930
  %v2932 = vpop.f32.mrb[0].mxu0
  %2933 = vmatprep.mubr.bf16.mxu0 %v2541
  %2934 = vmatmul.mubr.bf16.gmra.mrb[0].mxu0 %v2540
  %v2935 = vpop.f32.mrb[0].mxu0
  %v2936 = vadd.f32 0.0, %v2935
  %v2937 = vpop.f32.mrb[0].mxu0
  %v2938 = vpop.f32.mrb[0].mxu0
  %v2939 = vadd.f32 0.0, %v2938
  %v2940 = vpop.f32.mrb[0].mxu0
  %2941 = vmatprep.mubr.bf16.mxu0 %v2543
  %2942 = vmatmul.mubr.bf16.gmra.mrb[0].mxu0 %v2542
  %v2943 = vpop.f32.mrb[0].mxu0
  %v2944 = vadd.f32 0.0, %v2943
  %v2945 = vpop.f32.mrb[0].mxu0
  %v2946 = vpop.f32.mrb[0].mxu0
  %v2947 = vadd.f32 0.0, %v2946
  %v2948 = vpop.f32.mrb[0].mxu0
  %2949 = vmatprep.mubr.bf16.mxu0 %v2545
  %2950 = vmatmul.mubr.bf16.gmra.mrb[0].mxu0 %v2544
  %v2951 = vpop.f32.mrb[0].mxu0
  %v2952 = vadd.f32 0.0, %v2951
  %v2953 = vpop.f32.mrb[0].mxu0
  %v2954 = vpop.f32.mrb[0].mxu0
  %v2955 = vadd.f32 0.0, %v2954
  %v2956 = vpop.f32.mrb[0].mxu0
  %2957 = vmatprep.mubr.bf16.mxu0 %v2547
  %2958 = vmatmul.mubr.bf16.gmra.mrb[0].mxu0 %v2546
  %v2959 = vpop.f32.mrb[0].mxu0
  %v2960 = vadd.f32 0.0, %v2959
  %v2961 = vpop.f32.mrb[0].mxu0
  %v2962 = vpop.f32.mrb[0].mxu0
  %v2963 = vadd.f32 0.0, %v2962
  %v2964 = vpop.f32.mrb[0].mxu0
  %2965 = vdwg.mxu0
  %v2998 = vunpack.c.l.b16 %v1875
  %v2999 = vunpack.c.l.b16 %v1876
  %v3000 = vunpack.c.l.b16 %v1877
  %v3001 = vunpack.c.l.b16 %v1878
  %v3002 = vunpack.c.l.b16 %v1879
  %v3003 = vunpack.c.l.b16 %v1880
  %v3004 = vunpack.c.l.b16 %v1881
  %v3005 = vunpack.c.l.b16 %v1882
  %v3006 = vunpack.c.l.b16 %v1883
  %v3007 = vunpack.c.l.b16 %v1884
  %v3008 = vunpack.c.l.b16 %v1885
  %v3009 = vunpack.c.l.b16 %v1886
  %v3010 = vunpack.c.l.b16 %v1887
  %v3011 = vunpack.c.l.b16 %v1888
  %v3012 = vunpack.c.l.b16 %v1889
  %v3013 = vunpack.c.l.b16 %v1890
  %v3014 = vunpack.c.l.b16 %v1891
  %v3015 = vunpack.c.l.b16 %v1892
  %v3016 = vunpack.c.l.b16 %v1893
  %v3017 = vunpack.c.l.b16 %v1894
  %v3018 = vunpack.c.l.b16 %v1895
  %v3019 = vunpack.c.l.b16 %v1896
  %v3020 = vunpack.c.l.b16 %v1897
  %v3021 = vunpack.c.l.b16 %v1898
  %v3022 = vunpack.c.l.b16 %v1899
  %v3023 = vunpack.c.l.b16 %v1900
  %v3024 = vunpack.c.l.b16 %v1901
  %v3025 = vunpack.c.l.b16 %v1902
  %v3026 = vunpack.c.l.b16 %v1903
  %v3027 = vunpack.c.l.b16 %v1904
  %v3028 = vunpack.c.l.b16 %v1905
  %v3029 = vunpack.c.l.b16 %v1906
  %v3030 = vpack.c.b16 %v2999, %v2998
  %v3031 = vpack.c.b16 %v3001, %v3000
  %v3032 = vpack.c.b16 %v3003, %v3002
  %v3033 = vpack.c.b16 %v3005, %v3004
  %v3034 = vpack.c.b16 %v3007, %v3006
  %v3035 = vpack.c.b16 %v3009, %v3008
  %v3036 = vpack.c.b16 %v3011, %v3010
  %v3037 = vpack.c.b16 %v3013, %v3012
  %v3038 = vpack.c.b16 %v3015, %v3014
  %v3039 = vpack.c.b16 %v3017, %v3016
  %v3040 = vpack.c.b16 %v3019, %v3018
  %v3041 = vpack.c.b16 %v3021, %v3020
  %v3042 = vpack.c.b16 %v3023, %v3022
  %v3043 = vpack.c.b16 %v3025, %v3024
  %v3044 = vpack.c.b16 %v3027, %v3026
  %v3045 = vpack.c.b16 %v3029, %v3028
  %3062 = vmatprep.subr.bf16.mxu0 0
  %3063 = vmatpush1.bf16.msra.mxu0 %v3030
  %3064 = vmatprep.subr.bf16.mxu0 0
  %3065 = vmatpush1.bf16.msra.mxu0 %v3031
  %3066 = vmatprep.subr.bf16.mxu0 0
  %3067 = vmatpush1.bf16.msra.mxu0 %v3032
  %3068 = vmatprep.subr.bf16.mxu0 0
  %3069 = vmatpush1.bf16.msra.mxu0 %v3033
  %3070 = vmatprep.subr.bf16.mxu0 0
  %3071 = vmatpush1.bf16.msra.mxu0 %v3034
  %3072 = vmatprep.subr.bf16.mxu0 0
  %3073 = vmatpush1.bf16.msra.mxu0 %v3035
  %3074 = vmatprep.subr.bf16.mxu0 0
  %3075 = vmatpush1.bf16.msra.mxu0 %v3036
  %3076 = vmatprep.subr.bf16.mxu0 0
  %3077 = vmatpush1.bf16.msra.mxu0 %v3037
  %3078 = vmatprep.subr.bf16.mxu0 0
  %3079 = vmatpush1.bf16.msra.mxu0 %v3038
  %3080 = vmatprep.subr.bf16.mxu0 0
  %3081 = vmatpush1.bf16.msra.mxu0 %v3039
  %3082 = vmatprep.subr.bf16.mxu0 0
  %3083 = vmatpush1.bf16.msra.mxu0 %v3040
  %3084 = vmatprep.subr.bf16.mxu0 0
  %3085 = vmatpush1.bf16.msra.mxu0 %v3041
  %3086 = vmatprep.subr.bf16.mxu0 0
  %3087 = vmatpush1.bf16.msra.mxu0 %v3042
  %3088 = vmatprep.subr.bf16.mxu0 0
  %3089 = vmatpush1.bf16.msra.mxu0 %v3043
  %3090 = vmatprep.subr.bf16.mxu0 0
  %3091 = vmatpush1.bf16.msra.mxu0 %v3044
  %3092 = vmatprep.subr.bf16.mxu0 0
  %3093 = vmatpush1.bf16.msra.mxu0 %v3045
  %3094 = vmatprep.mubr.bf16.mxu0 %v1812
  %3095 = vmatmul.mubr.bf16.gmra.mrb[0].mxu0 %v1811
  %v3096 = vpop.f32.mrb[0].mxu0
  %v3097 = vadd.f32 %v2712, %v3096
  %v3098 = vpop.f32.mrb[0].mxu0
  %v3099 = vpop.f32.mrb[0].mxu0
  %v3100 = vadd.f32 %v2715, %v3099
  %v3101 = vpop.f32.mrb[0].mxu0
  %3102 = vmatprep.mubr.bf16.mxu0 %v1814
  %3103 = vmatmul.mubr.bf16.gmra.mrb[0].mxu0 %v1813
  %v3104 = vpop.f32.mrb[0].mxu0
  %v3105 = vadd.f32 %v2720, %v3104
  %v3106 = vpop.f32.mrb[0].mxu0
  %v3107 = vpop.f32.mrb[0].mxu0
  %v3108 = vadd.f32 %v2723, %v3107
  %v3109 = vpop.f32.mrb[0].mxu0
  %3110 = vmatprep.mubr.bf16.mxu0 %v1816
  %3111 = vmatmul.mubr.bf16.gmra.mrb[0].mxu0 %v1815
  %v3112 = vpop.f32.mrb[0].mxu0
  %v3113 = vadd.f32 %v2728, %v3112
  %v3114 = vpop.f32.mrb[0].mxu0
  %v3115 = vpop.f32.mrb[0].mxu0
  %v3116 = vadd.f32 %v2731, %v3115
  %v3117 = vpop.f32.mrb[0].mxu0
  %3118 = vmatprep.mubr.bf16.mxu0 %v1818
  %3119 = vmatmul.mubr.bf16.gmra.mrb[0].mxu0 %v1817
  %v3120 = vpop.f32.mrb[0].mxu0
  %v3121 = vadd.f32 %v2736, %v3120
  %v3122 = vpop.f32.mrb[0].mxu0
  %v3123 = vpop.f32.mrb[0].mxu0
  %v3124 = vadd.f32 %v2739, %v3123
  %v3125 = vpop.f32.mrb[0].mxu0
  %3126 = vmatprep.mubr.bf16.mxu0 %v1820
  %3127 = vmatmul.mubr.bf16.gmra.mrb[0].mxu0 %v1819
  %v3128 = vpop.f32.mrb[0].mxu0
  %v3129 = vadd.f32 %v2744, %v3128
  %v3130 = vpop.f32.mrb[0].mxu0
  %v3131 = vpop.f32.mrb[0].mxu0
  %v3132 = vadd.f32 %v2747, %v3131
  %v3133 = vpop.f32.mrb[0].mxu0
  %3134 = vmatprep.mubr.bf16.mxu0 %v1822
  %3135 = vmatmul.mubr.bf16.gmra.mrb[0].mxu0 %v1821
  %v3136 = vpop.f32.mrb[0].mxu0
  %v3137 = vadd.f32 %v2752, %v3136
  %v3138 = vpop.f32.mrb[0].mxu0
  %v3139 = vpop.f32.mrb[0].mxu0
  %v3140 = vadd.f32 %v2755, %v3139
  %v3141 = vpop.f32.mrb[0].mxu0
  %3142 = vmatprep.mubr.bf16.mxu0 %v1824
  %3143 = vmatmul.mubr.bf16.gmra.mrb[0].mxu0 %v1823
  %v3144 = vpop.f32.mrb[0].mxu0
  %v3145 = vadd.f32 %v2760, %v3144
  %v3146 = vpop.f32.mrb[0].mxu0
  %v3147 = vpop.f32.mrb[0].mxu0
  %v3148 = vadd.f32 %v2763, %v3147
  %v3149 = vpop.f32.mrb[0].mxu0
  %3150 = vmatprep.mubr.bf16.mxu0 %v1826
  %3151 = vmatmul.mubr.bf16.gmra.mrb[0].mxu0 %v1825
  %v3152 = vpop.f32.mrb[0].mxu0
  %v3153 = vadd.f32 %v2768, %v3152
  %v3154 = vpop.f32.mrb[0].mxu0
  %v3155 = vpop.f32.mrb[0].mxu0
  %v3156 = vadd.f32 %v2771, %v3155
  %v3157 = vpop.f32.mrb[0].mxu0
  %3158 = vmatprep.mubr.bf16.mxu0 %v1828
  %3159 = vmatmul.mubr.bf16.gmra.mrb[0].mxu0 %v1827
  %v3160 = vpop.f32.mrb[0].mxu0
  %v3161 = vadd.f32 %v2776, %v3160
  %v3162 = vpop.f32.mrb[0].mxu0
  %v3163 = vpop.f32.mrb[0].mxu0
  %v3164 = vadd.f32 %v2779, %v3163
  %v3165 = vpop.f32.mrb[0].mxu0
  %3166 = vmatprep.mubr.bf16.mxu0 %v1830
  %3167 = vmatmul.mubr.bf16.gmra.mrb[0].mxu0 %v1829
  %v3168 = vpop.f32.mrb[0].mxu0
  %v3169 = vadd.f32 %v2784, %v3168
  %v3170 = vpop.f32.mrb[0].mxu0
  %v3171 = vpop.f32.mrb[0].mxu0
  %v3172 = vadd.f32 %v2787, %v3171
  %v3173 = vpop.f32.mrb[0].mxu0
  %3174 = vmatprep.mubr.bf16.mxu0 %v1832
  %3175 = vmatmul.mubr.bf16.gmra.mrb[0].mxu0 %v1831
  %v3176 = vpop.f32.mrb[0].mxu0
  %v3177 = vadd.f32 %v2792, %v3176
  %v3178 = vpop.f32.mrb[0].mxu0
  %v3179 = vpop.f32.mrb[0].mxu0
  %v3180 = vadd.f32 %v2795, %v3179
  %v3181 = vpop.f32.mrb[0].mxu0
  %3182 = vmatprep.mubr.bf16.mxu0 %v1834
  %3183 = vmatmul.mubr.bf16.gmra.mrb[0].mxu0 %v1833
  %v3184 = vpop.f32.mrb[0].mxu0
  %v3185 = vadd.f32 %v2800, %v3184
  %v3186 = vpop.f32.mrb[0].mxu0
  %v3187 = vpop.f32.mrb[0].mxu0
  %v3188 = vadd.f32 %v2803, %v3187
  %v3189 = vpop.f32.mrb[0].mxu0
  %3190 = vmatprep.mubr.bf16.mxu0 %v1836
  %3191 = vmatmul.mubr.bf16.gmra.mrb[0].mxu0 %v1835
  %v3192 = vpop.f32.mrb[0].mxu0
  %v3193 = vadd.f32 %v2808, %v3192
  %v3194 = vpop.f32.mrb[0].mxu0
  %v3195 = vpop.f32.mrb[0].mxu0
  %v3196 = vadd.f32 %v2811, %v3195
  %v3197 = vpop.f32.mrb[0].mxu0
  %3198 = vmatprep.mubr.bf16.mxu0 %v1838
  %3199 = vmatmul.mubr.bf16.gmra.mrb[0].mxu0 %v1837
  %v3200 = vpop.f32.mrb[0].mxu0
  %v3201 = vadd.f32 %v2816, %v3200
  %v3202 = vpop.f32.mrb[0].mxu0
  %v3203 = vpop.f32.mrb[0].mxu0
  %v3204 = vadd.f32 %v2819, %v3203
  %v3205 = vpop.f32.mrb[0].mxu0
  %3206 = vmatprep.mubr.bf16.mxu0 %v1840
  %3207 = vmatmul.mubr.bf16.gmra.mrb[0].mxu0 %v1839
  %v3208 = vpop.f32.mrb[0].mxu0
  %v3209 = vadd.f32 %v2824, %v3208
  %v3210 = vpop.f32.mrb[0].mxu0
  %v3211 = vpop.f32.mrb[0].mxu0
  %v3212 = vadd.f32 %v2827, %v3211
  %v3213 = vpop.f32.mrb[0].mxu0
  %3214 = vmatprep.mubr.bf16.mxu0 %v1842
  %3215 = vmatmul.mubr.bf16.gmra.mrb[0].mxu0 %v1841
  %v3216 = vpop.f32.mrb[0].mxu0
  %v3217 = vadd.f32 %v2832, %v3216
  %v3218 = vpop.f32.mrb[0].mxu0
  %v3219 = vpop.f32.mrb[0].mxu0
  %v3220 = vadd.f32 %v2835, %v3219
  %v3221 = vpop.f32.mrb[0].mxu0
  %3222 = vmatprep.mubr.bf16.mxu0 %v1844
  %3223 = vmatmul.mubr.bf16.gmra.mrb[0].mxu0 %v1843
  %v3224 = vpop.f32.mrb[0].mxu0
  %v3225 = vadd.f32 %v2840, %v3224
  %v3226 = vpop.f32.mrb[0].mxu0
  %v3227 = vpop.f32.mrb[0].mxu0
  %v3228 = vadd.f32 %v2843, %v3227
  %v3229 = vpop.f32.mrb[0].mxu0
  %3230 = vmatprep.mubr.bf16.mxu0 %v1846
  %3231 = vmatmul.mubr.bf16.gmra.mrb[0].mxu0 %v1845
  %v3232 = vpop.f32.mrb[0].mxu0
  %v3233 = vadd.f32 %v2848, %v3232
  %v3234 = vpop.f32.mrb[0].mxu0
  %v3235 = vpop.f32.mrb[0].mxu0
  %v3236 = vadd.f32 %v2851, %v3235
  %v3237 = vpop.f32.mrb[0].mxu0
  %3238 = vmatprep.mubr.bf16.mxu0 %v1848
  %3239 = vmatmul.mubr.bf16.gmra.mrb[0].mxu0 %v1847
  %v3240 = vpop.f32.mrb[0].mxu0
  %v3241 = vadd.f32 %v2856, %v3240
  %v3242 = vpop.f32.mrb[0].mxu0
  %v3243 = vpop.f32.mrb[0].mxu0
  %v3244 = vadd.f32 %v2859, %v3243
  %v3245 = vpop.f32.mrb[0].mxu0
  %3246 = vmatprep.mubr.bf16.mxu0 %v1850
  %3247 = vmatmul.mubr.bf16.gmra.mrb[0].mxu0 %v1849
  %v3248 = vpop.f32.mrb[0].mxu0
  %v3249 = vadd.f32 %v2864, %v3248
  %v3250 = vpop.f32.mrb[0].mxu0
  %v3251 = vpop.f32.mrb[0].mxu0
  %v3252 = vadd.f32 %v2867, %v3251
  %v3253 = vpop.f32.mrb[0].mxu0
  %3254 = vmatprep.mubr.bf16.mxu0 %v1852
  %3255 = vmatmul.mubr.bf16.gmra.mrb[0].mxu0 %v1851
  %v3256 = vpop.f32.mrb[0].mxu0
  %v3257 = vadd.f32 %v2872, %v3256
  %v3258 = vpop.f32.mrb[0].mxu0
  %v3259 = vpop.f32.mrb[0].mxu0
  %v3260 = vadd.f32 %v2875, %v3259
  %v3261 = vpop.f32.mrb[0].mxu0
  %3262 = vmatprep.mubr.bf16.mxu0 %v1854
  %3263 = vmatmul.mubr.bf16.gmra.mrb[0].mxu0 %v1853
  %v3264 = vpop.f32.mrb[0].mxu0
  %v3265 = vadd.f32 %v2880, %v3264
  %v3266 = vpop.f32.mrb[0].mxu0
  %v3267 = vpop.f32.mrb[0].mxu0
  %v3268 = vadd.f32 %v2883, %v3267
  %v3269 = vpop.f32.mrb[0].mxu0
  %3270 = vmatprep.mubr.bf16.mxu0 %v1856
  %3271 = vmatmul.mubr.bf16.gmra.mrb[0].mxu0 %v1855
  %v3272 = vpop.f32.mrb[0].mxu0
  %v3273 = vadd.f32 %v2888, %v3272
  %v3274 = vpop.f32.mrb[0].mxu0
  %v3275 = vpop.f32.mrb[0].mxu0
  %v3276 = vadd.f32 %v2891, %v3275
  %v3277 = vpop.f32.mrb[0].mxu0
  %3278 = vmatprep.mubr.bf16.mxu0 %v1858
  %3279 = vmatmul.mubr.bf16.gmra.mrb[0].mxu0 %v1857
  %v3280 = vpop.f32.mrb[0].mxu0
  %v3281 = vadd.f32 %v2896, %v3280
  %v3282 = vpop.f32.mrb[0].mxu0
  %v3283 = vpop.f32.mrb[0].mxu0
  %v3284 = vadd.f32 %v2899, %v3283
  %v3285 = vpop.f32.mrb[0].mxu0
  %3286 = vmatprep.mubr.bf16.mxu0 %v1860
  %3287 = vmatmul.mubr.bf16.gmra.mrb[0].mxu0 %v1859
  %v3288 = vpop.f32.mrb[0].mxu0
  %v3289 = vadd.f32 %v2904, %v3288
  %v3290 = vpop.f32.mrb[0].mxu0
  %v3291 = vpop.f32.mrb[0].mxu0
  %v3292 = vadd.f32 %v2907, %v3291
  %v3293 = vpop.f32.mrb[0].mxu0
  %3294 = vmatprep.mubr.bf16.mxu0 %v1862
  %3295 = vmatmul.mubr.bf16.gmra.mrb[0].mxu0 %v1861
  %v3296 = vpop.f32.mrb[0].mxu0
  %v3297 = vadd.f32 %v2912, %v3296
  %v3298 = vpop.f32.mrb[0].mxu0
  %v3299 = vpop.f32.mrb[0].mxu0
  %v3300 = vadd.f32 %v2915, %v3299
  %v3301 = vpop.f32.mrb[0].mxu0
  %3302 = vmatprep.mubr.bf16.mxu0 %v1864
  %3303 = vmatmul.mubr.bf16.gmra.mrb[0].mxu0 %v1863
  %v3304 = vpop.f32.mrb[0].mxu0
  %v3305 = vadd.f32 %v2920, %v3304
  %v3306 = vpop.f32.mrb[0].mxu0
  %v3307 = vpop.f32.mrb[0].mxu0
  %v3308 = vadd.f32 %v2923, %v3307
  %v3309 = vpop.f32.mrb[0].mxu0
  %3310 = vmatprep.mubr.bf16.mxu0 %v1866
  %3311 = vmatmul.mubr.bf16.gmra.mrb[0].mxu0 %v1865
  %v3312 = vpop.f32.mrb[0].mxu0
  %v3313 = vadd.f32 %v2928, %v3312
  %v3314 = vpop.f32.mrb[0].mxu0
  %v3315 = vpop.f32.mrb[0].mxu0
  %v3316 = vadd.f32 %v2931, %v3315
  %v3317 = vpop.f32.mrb[0].mxu0
  %3318 = vmatprep.mubr.bf16.mxu0 %v1868
  %3319 = vmatmul.mubr.bf16.gmra.mrb[0].mxu0 %v1867
  %v3320 = vpop.f32.mrb[0].mxu0
  %v3321 = vadd.f32 %v2936, %v3320
  %v3322 = vpop.f32.mrb[0].mxu0
  %v3323 = vpop.f32.mrb[0].mxu0
  %v3324 = vadd.f32 %v2939, %v3323
  %v3325 = vpop.f32.mrb[0].mxu0
  %3326 = vmatprep.mubr.bf16.mxu0 %v1870
  %3327 = vmatmul.mubr.bf16.gmra.mrb[0].mxu0 %v1869
  %v3328 = vpop.f32.mrb[0].mxu0
  %v3329 = vadd.f32 %v2944, %v3328
  %v3330 = vpop.f32.mrb[0].mxu0
  %v3331 = vpop.f32.mrb[0].mxu0
  %v3332 = vadd.f32 %v2947, %v3331
  %v3333 = vpop.f32.mrb[0].mxu0
  %3334 = vmatprep.mubr.bf16.mxu0 %v1872
  %3335 = vmatmul.mubr.bf16.gmra.mrb[0].mxu0 %v1871
  %v3336 = vpop.f32.mrb[0].mxu0
  %v3337 = vadd.f32 %v2952, %v3336
  %v3338 = vpop.f32.mrb[0].mxu0
  %v3339 = vpop.f32.mrb[0].mxu0
  %v3340 = vadd.f32 %v2955, %v3339
  %v3341 = vpop.f32.mrb[0].mxu0
  %3342 = vmatprep.mubr.bf16.mxu0 %v1874
  %3343 = vmatmul.mubr.bf16.gmra.mrb[0].mxu0 %v1873
  %v3344 = vpop.f32.mrb[0].mxu0
  %v3345 = vadd.f32 %v2960, %v3344
  %v3346 = vpop.f32.mrb[0].mxu0
  %v3347 = vpop.f32.mrb[0].mxu0
  %v3348 = vadd.f32 %v2963, %v3347
  %v3349 = vpop.f32.mrb[0].mxu0
  %3350 = vdwg.mxu0
  %v3351 = vld [vmem:[#allocation2] sm:$0xfc]
  %v3352 = vld [vmem:[#allocation2 + $0x8] sm:$0xfc]
  %v3353 = vld [vmem:[#allocation2 + $0x80] sm:$0x3]
  %v3354 = vld [vmem:[#allocation2 + $0x88] sm:$0x3]
  %v3355 = vld [vmem:[#allocation2 + $0xc0] sm:$0xfc]
  %v3356 = vld [vmem:[#allocation2 + $0xc8] sm:$0xfc]
  %v3357 = vld [vmem:[#allocation2 + $0x140] sm:$0x3]
  %v3358 = vld [vmem:[#allocation2 + $0x148] sm:$0x3]
  %v3359 = vld [vmem:[#allocation2 + $0x180] sm:$0xfc]
  %v3360 = vld [vmem:[#allocation2 + $0x188] sm:$0xfc]
  %v3361 = vld [vmem:[#allocation2 + $0x200] sm:$0x3]
  %v3362 = vld [vmem:[#allocation2 + $0x208] sm:$0x3]
  %v3363 = vld [vmem:[#allocation2 + $0x240] sm:$0xfc]
  %v3364 = vld [vmem:[#allocation2 + $0x248] sm:$0xfc]
  %v3365 = vld [vmem:[#allocation2 + $0x2c0] sm:$0x3]
  %v3366 = vld [vmem:[#allocation2 + $0x2c8] sm:$0x3]
  %v3367 = vld [vmem:[#allocation2 + $0x300] sm:$0xfc]
  %v3368 = vld [vmem:[#allocation2 + $0x308] sm:$0xfc]
  %v3369 = vld [vmem:[#allocation2 + $0x380] sm:$0x3]
  %v3370 = vld [vmem:[#allocation2 + $0x388] sm:$0x3]
  %v3371 = vld [vmem:[#allocation2 + $0x3c0] sm:$0xfc]
  %v3372 = vld [vmem:[#allocation2 + $0x3c8] sm:$0xfc]
  %v3373 = vld [vmem:[#allocation2 + $0x440] sm:$0x3]
  %v3374 = vld [vmem:[#allocation2 + $0x448] sm:$0x3]
  %v3375 = vld [vmem:[#allocation2 + $0x480] sm:$0xfc]
  %v3376 = vld [vmem:[#allocation2 + $0x488] sm:$0xfc]
  %v3377 = vld [vmem:[#allocation2 + $0x500] sm:$0x3]
  %v3378 = vld [vmem:[#allocation2 + $0x508] sm:$0x3]
  %v3379 = vld [vmem:[#allocation2 + $0x540] sm:$0xfc]
  %v3380 = vld [vmem:[#allocation2 + $0x548] sm:$0xfc]
  %v3381 = vld [vmem:[#allocation2 + $0x5c0] sm:$0x3]
  %v3382 = vld [vmem:[#allocation2 + $0x5c8] sm:$0x3]
  %vm3415 = vcmask 1045504
  %v3416 = vrot.slane %v3351, 2
  %v3417 = vrot.slane %v1685, 2
  %v3418 = vsel %vm3415, %v3416, %v3417
  %v3419 = vrot.slane %v3352, 2
  %v3420 = vrot.slane %v1686, 2
  %v3421 = vsel %vm3415, %v3419, %v3420
  %v3422 = vrot.slane %v1687, 2
  %v3423 = vsel %vm3415, %v3417, %v3422
  %v3424 = vrot.slane %v1688, 2
  %v3425 = vsel %vm3415, %v3420, %v3424
  %v3426 = vrot.slane %v1689, 2
  %v3427 = vsel %vm3415, %v3422, %v3426
  %v3428 = vrot.slane %v1690, 2
  %v3429 = vsel %vm3415, %v3424, %v3428
  %v3430 = vrot.slane %v1691, 2
  %v3431 = vsel %vm3415, %v3426, %v3430
  %v3432 = vrot.slane %v1692, 2
  %v3433 = vsel %vm3415, %v3428, %v3432
  %v3434 = vrot.slane %v1693, 2
  %v3435 = vsel %vm3415, %v3430, %v3434
  %v3436 = vrot.slane %v1694, 2
  %v3437 = vsel %vm3415, %v3432, %v3436
  %v3438 = vrot.slane %v1695, 2
  %v3439 = vsel %vm3415, %v3434, %v3438
  %v3440 = vrot.slane %v1696, 2
  %v3441 = vsel %vm3415, %v3436, %v3440
  %v3442 = vrot.slane %v1697, 2
  %v3443 = vsel %vm3415, %v3438, %v3442
  %v3444 = vrot.slane %v1698, 2
  %v3445 = vsel %vm3415, %v3440, %v3444
  %v3446 = vrot.slane %v3353, 2
  %v3447 = vsel %vm3415, %v3442, %v3446
  %v3448 = vrot.slane %v3354, 2
  %v3449 = vsel %vm3415, %v3444, %v3448
  %v3450 = vrot.slane %v3355, 2
  %v3451 = vrot.slane %v1701, 2
  %v3452 = vsel %vm3415, %v3450, %v3451
  %v3453 = vrot.slane %v3356, 2
  %v3454 = vrot.slane %v1702, 2
  %v3455 = vsel %vm3415, %v3453, %v3454
  %v3456 = vrot.slane %v1703, 2
  %v3457 = vsel %vm3415, %v3451, %v3456
  %v3458 = vrot.slane %v1704, 2
  %v3459 = vsel %vm3415, %v3454, %v3458
  %v3460 = vrot.slane %v1705, 2
  %v3461 = vsel %vm3415, %v3456, %v3460
  %v3462 = vrot.slane %v1706, 2
  %v3463 = vsel %vm3415, %v3458, %v3462
  %v3464 = vrot.slane %v1707, 2
  %v3465 = vsel %vm3415, %v3460, %v3464
  %v3466 = vrot.slane %v1708, 2
  %v3467 = vsel %vm3415, %v3462, %v3466
  %v3468 = vrot.slane %v1709, 2
  %v3469 = vsel %vm3415, %v3464, %v3468
  %v3470 = vrot.slane %v1710, 2
  %v3471 = vsel %vm3415, %v3466, %v3470
  %v3472 = vrot.slane %v1711, 2
  %v3473 = vsel %vm3415, %v3468, %v3472
  %v3474 = vrot.slane %v1712, 2
  %v3475 = vsel %vm3415, %v3470, %v3474
  %v3476 = vrot.slane %v1713, 2
  %v3477 = vsel %vm3415, %v3472, %v3476
  %v3478 = vrot.slane %v1714, 2
  %v3479 = vsel %vm3415, %v3474, %v3478
  %v3480 = vrot.slane %v3357, 2
  %v3481 = vsel %vm3415, %v3476, %v3480
  %v3482 = vrot.slane %v3358, 2
  %v3483 = vsel %vm3415, %v3478, %v3482
  %v3484 = vrot.slane %v3359, 2
  %v3485 = vrot.slane %v1717, 2
  %v3486 = vsel %vm3415, %v3484, %v3485
  %v3487 = vrot.slane %v3360, 2
  %v3488 = vrot.slane %v1718, 2
  %v3489 = vsel %vm3415, %v3487, %v3488
  %v3490 = vrot.slane %v1719, 2
  %v3491 = vsel %vm3415, %v3485, %v3490
  %v3492 = vrot.slane %v1720, 2
  %v3493 = vsel %vm3415, %v3488, %v3492
  %v3494 = vrot.slane %v1721, 2
  %v3495 = vsel %vm3415, %v3490, %v3494
  %v3496 = vrot.slane %v1722, 2
  %v3497 = vsel %vm3415, %v3492, %v3496
  %v3498 = vrot.slane %v1723, 2
  %v3499 = vsel %vm3415, %v3494, %v3498
  %v3500 = vrot.slane %v1724, 2
  %v3501 = vsel %vm3415, %v3496, %v3500
  %v3502 = vrot.slane %v1725, 2
  %v3503 = vsel %vm3415, %v3498, %v3502
  %v3504 = vrot.slane %v1726, 2
  %v3505 = vsel %vm3415, %v3500, %v3504
  %v3506 = vrot.slane %v1727, 2
  %v3507 = vsel %vm3415, %v3502, %v3506
  %v3508 = vrot.slane %v1728, 2
  %v3509 = vsel %vm3415, %v3504, %v3508
  %v3510 = vrot.slane %v1729, 2
  %v3511 = vsel %vm3415, %v3506, %v3510
  %v3512 = vrot.slane %v1730, 2
  %v3513 = vsel %vm3415, %v3508, %v3512
  %v3514 = vrot.slane %v3361, 2
  %v3515 = vsel %vm3415, %v3510, %v3514
  %v3516 = vrot.slane %v3362, 2
  %v3517 = vsel %vm3415, %v3512, %v3516
  %v3518 = vrot.slane %v3363, 2
  %v3519 = vrot.slane %v1733, 2
  %v3520 = vsel %vm3415, %v3518, %v3519
  %v3521 = vrot.slane %v3364, 2
  %v3522 = vrot.slane %v1734, 2
  %v3523 = vsel %vm3415, %v3521, %v3522
  %v3524 = vrot.slane %v1735, 2
  %v3525 = vsel %vm3415, %v3519, %v3524
  %v3526 = vrot.slane %v1736, 2
  %v3527 = vsel %vm3415, %v3522, %v3526
  %v3528 = vrot.slane %v1737, 2
  %v3529 = vsel %vm3415, %v3524, %v3528
  %v3530 = vrot.slane %v1738, 2
  %v3531 = vsel %vm3415, %v3526, %v3530
  %v3532 = vrot.slane %v1739, 2
  %v3533 = vsel %vm3415, %v3528, %v3532
  %v3534 = vrot.slane %v1740, 2
  %v3535 = vsel %vm3415, %v3530, %v3534
  %v3536 = vrot.slane %v1741, 2
  %v3537 = vsel %vm3415, %v3532, %v3536
  %v3538 = vrot.slane %v1742, 2
  %v3539 = vsel %vm3415, %v3534, %v3538
  %v3540 = vrot.slane %v1743, 2
  %v3541 = vsel %vm3415, %v3536, %v3540
  %v3542 = vrot.slane %v1744, 2
  %v3543 = vsel %vm3415, %v3538, %v3542
  %v3544 = vrot.slane %v1745, 2
  %v3545 = vsel %vm3415, %v3540, %v3544
  %v3546 = vrot.slane %v1746, 2
  %v3547 = vsel %vm3415, %v3542, %v3546
  %v3548 = vrot.slane %v3365, 2
  %v3549 = vsel %vm3415, %v3544, %v3548
  %v3550 = vrot.slane %v3366, 2
  %v3551 = vsel %vm3415, %v3546, %v3550
  %v3552 = vrot.slane %v3367, 2
  %v3553 = vrot.slane %v1749, 2
  %v3554 = vsel %vm3415, %v3552, %v3553
  %v3555 = vrot.slane %v3368, 2
  %v3556 = vrot.slane %v1750, 2
  %v3557 = vsel %vm3415, %v3555, %v3556
  %v3558 = vrot.slane %v1751, 2
  %v3559 = vsel %vm3415, %v3553, %v3558
  %v3560 = vrot.slane %v1752, 2
  %v3561 = vsel %vm3415, %v3556, %v3560
  %v3562 = vrot.slane %v1753, 2
  %v3563 = vsel %vm3415, %v3558, %v3562
  %v3564 = vrot.slane %v1754, 2
  %v3565 = vsel %vm3415, %v3560, %v3564
  %v3566 = vrot.slane %v1755, 2
  %v3567 = vsel %vm3415, %v3562, %v3566
  %v3568 = vrot.slane %v1756, 2
  %v3569 = vsel %vm3415, %v3564, %v3568
  %v3570 = vrot.slane %v1757, 2
  %v3571 = vsel %vm3415, %v3566, %v3570
  %v3572 = vrot.slane %v1758, 2
  %v3573 = vsel %vm3415, %v3568, %v3572
  %v3574 = vrot.slane %v1759, 2
  %v3575 = vsel %vm3415, %v3570, %v3574
  %v3576 = vrot.slane %v1760, 2
  %v3577 = vsel %vm3415, %v3572, %v3576
  %v3578 = vrot.slane %v1761, 2
  %v3579 = vsel %vm3415, %v3574, %v3578
  %v3580 = vrot.slane %v1762, 2
  %v3581 = vsel %vm3415, %v3576, %v3580
  %v3582 = vrot.slane %v3369, 2
  %v3583 = vsel %vm3415, %v3578, %v3582
  %v3584 = vrot.slane %v3370, 2
  %v3585 = vsel %vm3415, %v3580, %v3584
  %v3586 = vrot.slane %v3371, 2
  %v3587 = vrot.slane %v1765, 2
  %v3588 = vsel %vm3415, %v3586, %v3587
  %v3589 = vrot.slane %v3372, 2
  %v3590 = vrot.slane %v1766, 2
  %v3591 = vsel %vm3415, %v3589, %v3590
  %v3592 = vrot.slane %v1767, 2
  %v3593 = vsel %vm3415, %v3587, %v3592
  %v3594 = vrot.slane %v1768, 2
  %v3595 = vsel %vm3415, %v3590, %v3594
  %v3596 = vrot.slane %v1769, 2
  %v3597 = vsel %vm3415, %v3592, %v3596
  %v3598 = vrot.slane %v1770, 2
  %v3599 = vsel %vm3415, %v3594, %v3598
  %v3600 = vrot.slane %v1771, 2
  %v3601 = vsel %vm3415, %v3596, %v3600
  %v3602 = vrot.slane %v1772, 2
  %v3603 = vsel %vm3415, %v3598, %v3602
  %v3604 = vrot.slane %v1773, 2
  %v3605 = vsel %vm3415, %v3600, %v3604
  %v3606 = vrot.slane %v1774, 2
  %v3607 = vsel %vm3415, %v3602, %v3606
  %v3608 = vrot.slane %v1775, 2
  %v3609 = vsel %vm3415, %v3604, %v3608
  %v3610 = vrot.slane %v1776, 2
  %v3611 = vsel %vm3415, %v3606, %v3610
  %v3612 = vrot.slane %v1777, 2
  %v3613 = vsel %vm3415, %v3608, %v3612
  %v3614 = vrot.slane %v1778, 2
  %v3615 = vsel %vm3415, %v3610, %v3614
  %v3616 = vrot.slane %v3373, 2
  %v3617 = vsel %vm3415, %v3612, %v3616
  %v3618 = vrot.slane %v3374, 2
  %v3619 = vsel %vm3415, %v3614, %v3618
  %v3620 = vrot.slane %v3375, 2
  %v3621 = vrot.slane %v1781, 2
  %v3622 = vsel %vm3415, %v3620, %v3621
  %v3623 = vrot.slane %v3376, 2
  %v3624 = vrot.slane %v1782, 2
  %v3625 = vsel %vm3415, %v3623, %v3624
  %v3626 = vrot.slane %v1783, 2
  %v3627 = vsel %vm3415, %v3621, %v3626
  %v3628 = vrot.slane %v1784, 2
  %v3629 = vsel %vm3415, %v3624, %v3628
  %v3630 = vrot.slane %v1785, 2
  %v3631 = vsel %vm3415, %v3626, %v3630
  %v3632 = vrot.slane %v1786, 2
  %v3633 = vsel %vm3415, %v3628, %v3632
  %v3634 = vrot.slane %v1787, 2
  %v3635 = vsel %vm3415, %v3630, %v3634
  %v3636 = vrot.slane %v1788, 2
  %v3637 = vsel %vm3415, %v3632, %v3636
  %v3638 = vrot.slane %v1789, 2
  %v3639 = vsel %vm3415, %v3634, %v3638
  %v3640 = vrot.slane %v1790, 2
  %v3641 = vsel %vm3415, %v3636, %v3640
  %v3642 = vrot.slane %v1791, 2
  %v3643 = vsel %vm3415, %v3638, %v3642
  %v3644 = vrot.slane %v1792, 2
  %v3645 = vsel %vm3415, %v3640, %v3644
  %v3646 = vrot.slane %v1793, 2
  %v3647 = vsel %vm3415, %v3642, %v3646
  %v3648 = vrot.slane %v1794, 2
  %v3649 = vsel %vm3415, %v3644, %v3648
  %v3650 = vrot.slane %v3377, 2
  %v3651 = vsel %vm3415, %v3646, %v3650
  %v3652 = vrot.slane %v3378, 2
  %v3653 = vsel %vm3415, %v3648, %v3652
  %v3654 = vrot.slane %v3379, 2
  %v3655 = vrot.slane %v1797, 2
  %v3656 = vsel %vm3415, %v3654, %v3655
  %v3657 = vrot.slane %v3380, 2
  %v3658 = vrot.slane %v1798, 2
  %v3659 = vsel %vm3415, %v3657, %v3658
  %v3660 = vrot.slane %v1799, 2
  %v3661 = vsel %vm3415, %v3655, %v3660
  %v3662 = vrot.slane %v1800, 2
  %v3663 = vsel %vm3415, %v3658, %v3662
  %v3664 = vrot.slane %v1801, 2
  %v3665 = vsel %vm3415, %v3660, %v3664
  %v3666 = vrot.slane %v1802, 2
  %v3667 = vsel %vm3415, %v3662, %v3666
  %v3668 = vrot.slane %v1803, 2
  %v3669 = vsel %vm3415, %v3664, %v3668
  %v3670 = vrot.slane %v1804, 2
  %v3671 = vsel %vm3415, %v3666, %v3670
  %v3672 = vrot.slane %v1805, 2
  %v3673 = vsel %vm3415, %v3668, %v3672
  %v3674 = vrot.slane %v1806, 2
  %v3675 = vsel %vm3415, %v3670, %v3674
  %v3676 = vrot.slane %v1807, 2
  %v3677 = vsel %vm3415, %v3672, %v3676
  %v3678 = vrot.slane %v1808, 2
  %v3679 = vsel %vm3415, %v3674, %v3678
  %v3680 = vrot.slane %v1809, 2
  %v3681 = vsel %vm3415, %v3676, %v3680
  %v3682 = vrot.slane %v1810, 2
  %v3683 = vsel %vm3415, %v3678, %v3682
  %v3684 = vrot.slane %v3381, 2
  %v3685 = vsel %vm3415, %v3680, %v3684
  %v3686 = vrot.slane %v3382, 2
  %v3687 = vsel %vm3415, %v3682, %v3686
  %v3816 = vpack.c.bf16 %v3423, %v3418
  %v3817 = vpack.c.bf16 %v3425, %v3421
  %v3818 = vpack.c.bf16 %v3431, %v3427
  %v3819 = vpack.c.bf16 %v3433, %v3429
  %v3820 = vpack.c.bf16 %v3439, %v3435
  %v3821 = vpack.c.bf16 %v3441, %v3437
  %v3822 = vpack.c.bf16 %v3447, %v3443
  %v3823 = vpack.c.bf16 %v3449, %v3445
  %v3824 = vpack.c.bf16 %v3457, %v3452
  %v3825 = vpack.c.bf16 %v3459, %v3455
  %v3826 = vpack.c.bf16 %v3465, %v3461
  %v3827 = vpack.c.bf16 %v3467, %v3463
  %v3828 = vpack.c.bf16 %v3473, %v3469
  %v3829 = vpack.c.bf16 %v3475, %v3471
  %v3830 = vpack.c.bf16 %v3481, %v3477
  %v3831 = vpack.c.bf16 %v3483, %v3479
  %v3832 = vpack.c.bf16 %v3491, %v3486
  %v3833 = vpack.c.bf16 %v3493, %v3489
  %v3834 = vpack.c.bf16 %v3499, %v3495
  %v3835 = vpack.c.bf16 %v3501, %v3497
  %v3836 = vpack.c.bf16 %v3507, %v3503
  %v3837 = vpack.c.bf16 %v3509, %v3505
  %v3838 = vpack.c.bf16 %v3515, %v3511
  %v3839 = vpack.c.bf16 %v3517, %v3513
  %v3840 = vpack.c.bf16 %v3525, %v3520
  %v3841 = vpack.c.bf16 %v3527, %v3523
  %v3842 = vpack.c.bf16 %v3533, %v3529
  %v3843 = vpack.c.bf16 %v3535, %v3531
  %v3844 = vpack.c.bf16 %v3541, %v3537
  %v3845 = vpack.c.bf16 %v3543, %v3539
  %v3846 = vpack.c.bf16 %v3549, %v3545
  %v3847 = vpack.c.bf16 %v3551, %v3547
  %v3848 = vpack.c.bf16 %v3559, %v3554
  %v3849 = vpack.c.bf16 %v3561, %v3557
  %v3850 = vpack.c.bf16 %v3567, %v3563
  %v3851 = vpack.c.bf16 %v3569, %v3565
  %v3852 = vpack.c.bf16 %v3575, %v3571
  %v3853 = vpack.c.bf16 %v3577, %v3573
  %v3854 = vpack.c.bf16 %v3583, %v3579
  %v3855 = vpack.c.bf16 %v3585, %v3581
  %v3856 = vpack.c.bf16 %v3593, %v3588
  %v3857 = vpack.c.bf16 %v3595, %v3591
  %v3858 = vpack.c.bf16 %v3601, %v3597
  %v3859 = vpack.c.bf16 %v3603, %v3599
  %v3860 = vpack.c.bf16 %v3609, %v3605
  %v3861 = vpack.c.bf16 %v3611, %v3607
  %v3862 = vpack.c.bf16 %v3617, %v3613
  %v3863 = vpack.c.bf16 %v3619, %v3615
  %v3864 = vpack.c.bf16 %v3627, %v3622
  %v3865 = vpack.c.bf16 %v3629, %v3625
  %v3866 = vpack.c.bf16 %v3635, %v3631
  %v3867 = vpack.c.bf16 %v3637, %v3633
  %v3868 = vpack.c.bf16 %v3643, %v3639
  %v3869 = vpack.c.bf16 %v3645, %v3641
  %v3870 = vpack.c.bf16 %v3651, %v3647
  %v3871 = vpack.c.bf16 %v3653, %v3649
  %v3872 = vpack.c.bf16 %v3661, %v3656
  %v3873 = vpack.c.bf16 %v3663, %v3659
  %v3874 = vpack.c.bf16 %v3669, %v3665
  %v3875 = vpack.c.bf16 %v3671, %v3667
  %v3876 = vpack.c.bf16 %v3677, %v3673
  %v3877 = vpack.c.bf16 %v3679, %v3675
  %v3878 = vpack.c.bf16 %v3685, %v3681
  %v3879 = vpack.c.bf16 %v3687, %v3683
  %s3880 = scalar_lea.vmem %s4, 256
  %v3881 = vld [vmem:[%s3880] sm:$0xf]
  %v3882 = vld [vmem:[%s3880 + $0x4] sm:$0xf]
  %v3883 = vld [vmem:[%s3880 + $0x8] sm:$0xf]
  %v3884 = vld [vmem:[%s3880 + $0xc] sm:$0xf]
  %v3885 = vld [vmem:[%s3880 + $0x10] sm:$0xf]
  %v3886 = vld [vmem:[%s3880 + $0x14] sm:$0xf]
  %v3887 = vld [vmem:[%s3880 + $0x18] sm:$0xf]
  %v3888 = vld [vmem:[%s3880 + $0x1c] sm:$0xf]
  %v3889 = vld [vmem:[%s3880 + $0x20] sm:$0xf]
  %v3890 = vld [vmem:[%s3880 + $0x24] sm:$0xf]
  %v3891 = vld [vmem:[%s3880 + $0x28] sm:$0xf]
  %v3892 = vld [vmem:[%s3880 + $0x2c] sm:$0xf]
  %v3893 = vld [vmem:[%s3880 + $0x30] sm:$0xf]
  %v3894 = vld [vmem:[%s3880 + $0x34] sm:$0xf]
  %v3895 = vld [vmem:[%s3880 + $0x38] sm:$0xf]
  %v3896 = vld [vmem:[%s3880 + $0x3c] sm:$0xf]
  %v3897 = vld [vmem:[%s3880 + $0x40] sm:$0xf]
  %v3898 = vld [vmem:[%s3880 + $0x44] sm:$0xf]
  %v3899 = vld [vmem:[%s3880 + $0x48] sm:$0xf]
  %v3900 = vld [vmem:[%s3880 + $0x4c] sm:$0xf]
  %v3901 = vld [vmem:[%s3880 + $0x50] sm:$0xf]
  %v3902 = vld [vmem:[%s3880 + $0x54] sm:$0xf]
  %v3903 = vld [vmem:[%s3880 + $0x58] sm:$0xf]
  %v3904 = vld [vmem:[%s3880 + $0x5c] sm:$0xf]
  %v3905 = vld [vmem:[%s3880 + $0x60] sm:$0xf]
  %v3906 = vld [vmem:[%s3880 + $0x64] sm:$0xf]
  %v3907 = vld [vmem:[%s3880 + $0x68] sm:$0xf]
  %v3908 = vld [vmem:[%s3880 + $0x6c] sm:$0xf]
  %v3909 = vld [vmem:[%s3880 + $0x70] sm:$0xf]
  %v3910 = vld [vmem:[%s3880 + $0x74] sm:$0xf]
  %v3911 = vld [vmem:[%s3880 + $0x78] sm:$0xf]
  %v3912 = vld [vmem:[%s3880 + $0x7c] sm:$0xf]
  %v3945 = vunpack.c.l.b16 %v3881
  %v3946 = vunpack.c.l.b16 %v3882
  %v3947 = vunpack.c.l.b16 %v3883
  %v3948 = vunpack.c.l.b16 %v3884
  %v3949 = vunpack.c.l.b16 %v3885
  %v3950 = vunpack.c.l.b16 %v3886
  %v3951 = vunpack.c.l.b16 %v3887
  %v3952 = vunpack.c.l.b16 %v3888
  %v3953 = vunpack.c.l.b16 %v3889
  %v3954 = vunpack.c.l.b16 %v3890
  %v3955 = vunpack.c.l.b16 %v3891
  %v3956 = vunpack.c.l.b16 %v3892
  %v3957 = vunpack.c.l.b16 %v3893
  %v3958 = vunpack.c.l.b16 %v3894
  %v3959 = vunpack.c.l.b16 %v3895
  %v3960 = vunpack.c.l.b16 %v3896
  %v3961 = vunpack.c.l.b16 %v3897
  %v3962 = vunpack.c.l.b16 %v3898
  %v3963 = vunpack.c.l.b16 %v3899
  %v3964 = vunpack.c.l.b16 %v3900
  %v3965 = vunpack.c.l.b16 %v3901
  %v3966 = vunpack.c.l.b16 %v3902
  %v3967 = vunpack.c.l.b16 %v3903
  %v3968 = vunpack.c.l.b16 %v3904
  %v3969 = vunpack.c.l.b16 %v3905
  %v3970 = vunpack.c.l.b16 %v3906
  %v3971 = vunpack.c.l.b16 %v3907
  %v3972 = vunpack.c.l.b16 %v3908
  %v3973 = vunpack.c.l.b16 %v3909
  %v3974 = vunpack.c.l.b16 %v3910
  %v3975 = vunpack.c.l.b16 %v3911
  %v3976 = vunpack.c.l.b16 %v3912
  %v3977 = vpack.c.b16 %v3946, %v3945
  %v3978 = vpack.c.b16 %v3948, %v3947
  %v3979 = vpack.c.b16 %v3950, %v3949
  %v3980 = vpack.c.b16 %v3952, %v3951
  %v3981 = vpack.c.b16 %v3954, %v3953
  %v3982 = vpack.c.b16 %v3956, %v3955
  %v3983 = vpack.c.b16 %v3958, %v3957
  %v3984 = vpack.c.b16 %v3960, %v3959
  %v3985 = vpack.c.b16 %v3962, %v3961
  %v3986 = vpack.c.b16 %v3964, %v3963
  %v3987 = vpack.c.b16 %v3966, %v3965
  %v3988 = vpack.c.b16 %v3968, %v3967
  %v3989 = vpack.c.b16 %v3970, %v3969
  %v3990 = vpack.c.b16 %v3972, %v3971
  %v3991 = vpack.c.b16 %v3974, %v3973
  %v3992 = vpack.c.b16 %v3976, %v3975
  %4009 = vmatprep.subr.bf16.mxu0 0
  %4010 = vmatpush1.bf16.msra.mxu0 %v3977
  %4011 = vmatprep.subr.bf16.mxu0 0
  %4012 = vmatpush1.bf16.msra.mxu0 %v3978
  %4013 = vmatprep.subr.bf16.mxu0 0
  %4014 = vmatpush1.bf16.msra.mxu0 %v3979
  %4015 = vmatprep.subr.bf16.mxu0 0
  %4016 = vmatpush1.bf16.msra.mxu0 %v3980
  %4017 = vmatprep.subr.bf16.mxu0 0
  %4018 = vmatpush1.bf16.msra.mxu0 %v3981
  %4019 = vmatprep.subr.bf16.mxu0 0
  %4020 = vmatpush1.bf16.msra.mxu0 %v3982
  %4021 = vmatprep.subr.bf16.mxu0 0
  %4022 = vmatpush1.bf16.msra.mxu0 %v3983
  %4023 = vmatprep.subr.bf16.mxu0 0
  %4024 = vmatpush1.bf16.msra.mxu0 %v3984
  %4025 = vmatprep.subr.bf16.mxu0 0
  %4026 = vmatpush1.bf16.msra.mxu0 %v3985
  %4027 = vmatprep.subr.bf16.mxu0 0
  %4028 = vmatpush1.bf16.msra.mxu0 %v3986
  %4029 = vmatprep.subr.bf16.mxu0 0
  %4030 = vmatpush1.bf16.msra.mxu0 %v3987
  %4031 = vmatprep.subr.bf16.mxu0 0
  %4032 = vmatpush1.bf16.msra.mxu0 %v3988
  %4033 = vmatprep.subr.bf16.mxu0 0
  %4034 = vmatpush1.bf16.msra.mxu0 %v3989
  %4035 = vmatprep.subr.bf16.mxu0 0
  %4036 = vmatpush1.bf16.msra.mxu0 %v3990
  %4037 = vmatprep.subr.bf16.mxu0 0
  %4038 = vmatpush1.bf16.msra.mxu0 %v3991
  %4039 = vmatprep.subr.bf16.mxu0 0
  %4040 = vmatpush1.bf16.msra.mxu0 %v3992
  %4041 = vmatprep.mubr.bf16.mxu0 %v3817
  %4042 = vmatmul.mubr.bf16.gmra.mrb[0].mxu0 %v3816
  %v4043 = vpop.f32.mrb[0].mxu0
  %v4044 = vadd.f32 0.0, %v4043
  %v4045 = vpop.f32.mrb[0].mxu0
  %v4046 = vpop.f32.mrb[0].mxu0
  %v4047 = vadd.f32 0.0, %v4046
  %v4048 = vpop.f32.mrb[0].mxu0
  %4049 = vmatprep.mubr.bf16.mxu0 %v3819
  %4050 = vmatmul.mubr.bf16.gmra.mrb[0].mxu0 %v3818
  %v4051 = vpop.f32.mrb[0].mxu0
  %v4052 = vadd.f32 0.0, %v4051
  %v4053 = vpop.f32.mrb[0].mxu0
  %v4054 = vpop.f32.mrb[0].mxu0
  %v4055 = vadd.f32 0.0, %v4054
  %v4056 = vpop.f32.mrb[0].mxu0
  %4057 = vmatprep.mubr.bf16.mxu0 %v3821
  %4058 = vmatmul.mubr.bf16.gmra.mrb[0].mxu0 %v3820
  %v4059 = vpop.f32.mrb[0].mxu0
  %v4060 = vadd.f32 0.0, %v4059
  %v4061 = vpop.f32.mrb[0].mxu0
  %v4062 = vpop.f32.mrb[0].mxu0
  %v4063 = vadd.f32 0.0, %v4062
  %v4064 = vpop.f32.mrb[0].mxu0
  %4065 = vmatprep.mubr.bf16.mxu0 %v3823
  %4066 = vmatmul.mubr.bf16.gmra.mrb[0].mxu0 %v3822
  %v4067 = vpop.f32.mrb[0].mxu0
  %v4068 = vadd.f32 0.0, %v4067
  %v4069 = vpop.f32.mrb[0].mxu0
  %v4070 = vpop.f32.mrb[0].mxu0
  %v4071 = vadd.f32 0.0, %v4070
  %v4072 = vpop.f32.mrb[0].mxu0
  %4073 = vmatprep.mubr.bf16.mxu0 %v3825
  %4074 = vmatmul.mubr.bf16.gmra.mrb[0].mxu0 %v3824
  %v4075 = vpop.f32.mrb[0].mxu0
  %v4076 = vadd.f32 0.0, %v4075
  %v4077 = vpop.f32.mrb[0].mxu0
  %v4078 = vpop.f32.mrb[0].mxu0
  %v4079 = vadd.f32 0.0, %v4078
  %v4080 = vpop.f32.mrb[0].mxu0
  %4081 = vmatprep.mubr.bf16.mxu0 %v3827
  %4082 = vmatmul.mubr.bf16.gmra.mrb[0].mxu0 %v3826
  %v4083 = vpop.f32.mrb[0].mxu0
  %v4084 = vadd.f32 0.0, %v4083
  %v4085 = vpop.f32.mrb[0].mxu0
  %v4086 = vpop.f32.mrb[0].mxu0
  %v4087 = vadd.f32 0.0, %v4086
  %v4088 = vpop.f32.mrb[0].mxu0
  %4089 = vmatprep.mubr.bf16.mxu0 %v3829
  %4090 = vmatmul.mubr.bf16.gmra.mrb[0].mxu0 %v3828
  %v4091 = vpop.f32.mrb[0].mxu0
  %v4092 = vadd.f32 0.0, %v4091
  %v4093 = vpop.f32.mrb[0].mxu0
  %v4094 = vpop.f32.mrb[0].mxu0
  %v4095 = vadd.f32 0.0, %v4094
  %v4096 = vpop.f32.mrb[0].mxu0
  %4097 = vmatprep.mubr.bf16.mxu0 %v3831
  %4098 = vmatmul.mubr.bf16.gmra.mrb[0].mxu0 %v3830
  %v4099 = vpop.f32.mrb[0].mxu0
  %v4100 = vadd.f32 0.0, %v4099
  %v4101 = vpop.f32.mrb[0].mxu0
  %v4102 = vpop.f32.mrb[0].mxu0
  %v4103 = vadd.f32 0.0, %v4102
  %v4104 = vpop.f32.mrb[0].mxu0
  %4105 = vmatprep.mubr.bf16.mxu0 %v3833
  %4106 = vmatmul.mubr.bf16.gmra.mrb[0].mxu0 %v3832
  %v4107 = vpop.f32.mrb[0].mxu0
  %v4108 = vadd.f32 0.0, %v4107
  %v4109 = vpop.f32.mrb[0].mxu0
  %v4110 = vpop.f32.mrb[0].mxu0
  %v4111 = vadd.f32 0.0, %v4110
  %v4112 = vpop.f32.mrb[0].mxu0
  %4113 = vmatprep.mubr.bf16.mxu0 %v3835
  %4114 = vmatmul.mubr.bf16.gmra.mrb[0].mxu0 %v3834
  %v4115 = vpop.f32.mrb[0].mxu0
  %v4116 = vadd.f32 0.0, %v4115
  %v4117 = vpop.f32.mrb[0].mxu0
  %v4118 = vpop.f32.mrb[0].mxu0
  %v4119 = vadd.f32 0.0, %v4118
  %v4120 = vpop.f32.mrb[0].mxu0
  %4121 = vmatprep.mubr.bf16.mxu0 %v3837
  %4122 = vmatmul.mubr.bf16.gmra.mrb[0].mxu0 %v3836
  %v4123 = vpop.f32.mrb[0].mxu0
  %v4124 = vadd.f32 0.0, %v4123
  %v4125 = vpop.f32.mrb[0].mxu0
  %v4126 = vpop.f32.mrb[0].mxu0
  %v4127 = vadd.f32 0.0, %v4126
  %v4128 = vpop.f32.mrb[0].mxu0
  %4129 = vmatprep.mubr.bf16.mxu0 %v3839
  %4130 = vmatmul.mubr.bf16.gmra.mrb[0].mxu0 %v3838
  %v4131 = vpop.f32.mrb[0].mxu0
  %v4132 = vadd.f32 0.0, %v4131
  %v4133 = vpop.f32.mrb[0].mxu0
  %v4134 = vpop.f32.mrb[0].mxu0
  %v4135 = vadd.f32 0.0, %v4134
  %v4136 = vpop.f32.mrb[0].mxu0
  %4137 = vmatprep.mubr.bf16.mxu0 %v3841
  %4138 = vmatmul.mubr.bf16.gmra.mrb[0].mxu0 %v3840
  %v4139 = vpop.f32.mrb[0].mxu0
  %v4140 = vadd.f32 0.0, %v4139
  %v4141 = vpop.f32.mrb[0].mxu0
  %v4142 = vpop.f32.mrb[0].mxu0
  %v4143 = vadd.f32 0.0, %v4142
  %v4144 = vpop.f32.mrb[0].mxu0
  %4145 = vmatprep.mubr.bf16.mxu0 %v3843
  %4146 = vmatmul.mubr.bf16.gmra.mrb[0].mxu0 %v3842
  %v4147 = vpop.f32.mrb[0].mxu0
  %v4148 = vadd.f32 0.0, %v4147
  %v4149 = vpop.f32.mrb[0].mxu0
  %v4150 = vpop.f32.mrb[0].mxu0
  %v4151 = vadd.f32 0.0, %v4150
  %v4152 = vpop.f32.mrb[0].mxu0
  %4153 = vmatprep.mubr.bf16.mxu0 %v3845
  %4154 = vmatmul.mubr.bf16.gmra.mrb[0].mxu0 %v3844
  %v4155 = vpop.f32.mrb[0].mxu0
  %v4156 = vadd.f32 0.0, %v4155
  %v4157 = vpop.f32.mrb[0].mxu0
  %v4158 = vpop.f32.mrb[0].mxu0
  %v4159 = vadd.f32 0.0, %v4158
  %v4160 = vpop.f32.mrb[0].mxu0
  %4161 = vmatprep.mubr.bf16.mxu0 %v3847
  %4162 = vmatmul.mubr.bf16.gmra.mrb[0].mxu0 %v3846
  %v4163 = vpop.f32.mrb[0].mxu0
  %v4164 = vadd.f32 0.0, %v4163
  %v4165 = vpop.f32.mrb[0].mxu0
  %v4166 = vpop.f32.mrb[0].mxu0
  %v4167 = vadd.f32 0.0, %v4166
  %v4168 = vpop.f32.mrb[0].mxu0
  %4169 = vmatprep.mubr.bf16.mxu0 %v3849
  %4170 = vmatmul.mubr.bf16.gmra.mrb[0].mxu0 %v3848
  %v4171 = vpop.f32.mrb[0].mxu0
  %v4172 = vadd.f32 0.0, %v4171
  %v4173 = vpop.f32.mrb[0].mxu0
  %v4174 = vpop.f32.mrb[0].mxu0
  %v4175 = vadd.f32 0.0, %v4174
  %v4176 = vpop.f32.mrb[0].mxu0
  %4177 = vmatprep.mubr.bf16.mxu0 %v3851
  %4178 = vmatmul.mubr.bf16.gmra.mrb[0].mxu0 %v3850
  %v4179 = vpop.f32.mrb[0].mxu0
  %v4180 = vadd.f32 0.0, %v4179
  %v4181 = vpop.f32.mrb[0].mxu0
  %v4182 = vpop.f32.mrb[0].mxu0
  %v4183 = vadd.f32 0.0, %v4182
  %v4184 = vpop.f32.mrb[0].mxu0
  %4185 = vmatprep.mubr.bf16.mxu0 %v3853
  %4186 = vmatmul.mubr.bf16.gmra.mrb[0].mxu0 %v3852
  %v4187 = vpop.f32.mrb[0].mxu0
  %v4188 = vadd.f32 0.0, %v4187
  %v4189 = vpop.f32.mrb[0].mxu0
  %v4190 = vpop.f32.mrb[0].mxu0
  %v4191 = vadd.f32 0.0, %v4190
  %v4192 = vpop.f32.mrb[0].mxu0
  %4193 = vmatprep.mubr.bf16.mxu0 %v3855
  %4194 = vmatmul.mubr.bf16.gmra.mrb[0].mxu0 %v3854
  %v4195 = vpop.f32.mrb[0].mxu0
  %v4196 = vadd.f32 0.0, %v4195
  %v4197 = vpop.f32.mrb[0].mxu0
  %v4198 = vpop.f32.mrb[0].mxu0
  %v4199 = vadd.f32 0.0, %v4198
  %v4200 = vpop.f32.mrb[0].mxu0
  %4201 = vmatprep.mubr.bf16.mxu0 %v3857
  %4202 = vmatmul.mubr.bf16.gmra.mrb[0].mxu0 %v3856
  %v4203 = vpop.f32.mrb[0].mxu0
  %v4204 = vadd.f32 0.0, %v4203
  %v4205 = vpop.f32.mrb[0].mxu0
  %v4206 = vpop.f32.mrb[0].mxu0
  %v4207 = vadd.f32 0.0, %v4206
  %v4208 = vpop.f32.mrb[0].mxu0
  %4209 = vmatprep.mubr.bf16.mxu0 %v3859
  %4210 = vmatmul.mubr.bf16.gmra.mrb[0].mxu0 %v3858
  %v4211 = vpop.f32.mrb[0].mxu0
  %v4212 = vadd.f32 0.0, %v4211
  %v4213 = vpop.f32.mrb[0].mxu0
  %v4214 = vpop.f32.mrb[0].mxu0
  %v4215 = vadd.f32 0.0, %v4214
  %v4216 = vpop.f32.mrb[0].mxu0
  %4217 = vmatprep.mubr.bf16.mxu0 %v3861
  %4218 = vmatmul.mubr.bf16.gmra.mrb[0].mxu0 %v3860
  %v4219 = vpop.f32.mrb[0].mxu0
  %v4220 = vadd.f32 0.0, %v4219
  %v4221 = vpop.f32.mrb[0].mxu0
  %v4222 = vpop.f32.mrb[0].mxu0
  %v4223 = vadd.f32 0.0, %v4222
  %v4224 = vpop.f32.mrb[0].mxu0
  %4225 = vmatprep.mubr.bf16.mxu0 %v3863
  %4226 = vmatmul.mubr.bf16.gmra.mrb[0].mxu0 %v3862
  %v4227 = vpop.f32.mrb[0].mxu0
  %v4228 = vadd.f32 0.0, %v4227
  %v4229 = vpop.f32.mrb[0].mxu0
  %v4230 = vpop.f32.mrb[0].mxu0
  %v4231 = vadd.f32 0.0, %v4230
  %v4232 = vpop.f32.mrb[0].mxu0
  %4233 = vmatprep.mubr.bf16.mxu0 %v3865
  %4234 = vmatmul.mubr.bf16.gmra.mrb[0].mxu0 %v3864
  %v4235 = vpop.f32.mrb[0].mxu0
  %v4236 = vadd.f32 0.0, %v4235
  %v4237 = vpop.f32.mrb[0].mxu0
  %v4238 = vpop.f32.mrb[0].mxu0
  %v4239 = vadd.f32 0.0, %v4238
  %v4240 = vpop.f32.mrb[0].mxu0
  %4241 = vmatprep.mubr.bf16.mxu0 %v3867
  %4242 = vmatmul.mubr.bf16.gmra.mrb[0].mxu0 %v3866
  %v4243 = vpop.f32.mrb[0].mxu0
  %v4244 = vadd.f32 0.0, %v4243
  %v4245 = vpop.f32.mrb[0].mxu0
  %v4246 = vpop.f32.mrb[0].mxu0
  %v4247 = vadd.f32 0.0, %v4246
  %v4248 = vpop.f32.mrb[0].mxu0
  %4249 = vmatprep.mubr.bf16.mxu0 %v3869
  %4250 = vmatmul.mubr.bf16.gmra.mrb[0].mxu0 %v3868
  %v4251 = vpop.f32.mrb[0].mxu0
  %v4252 = vadd.f32 0.0, %v4251
  %v4253 = vpop.f32.mrb[0].mxu0
  %v4254 = vpop.f32.mrb[0].mxu0
  %v4255 = vadd.f32 0.0, %v4254
  %v4256 = vpop.f32.mrb[0].mxu0
  %4257 = vmatprep.mubr.bf16.mxu0 %v3871
  %4258 = vmatmul.mubr.bf16.gmra.mrb[0].mxu0 %v3870
  %v4259 = vpop.f32.mrb[0].mxu0
  %v4260 = vadd.f32 0.0, %v4259
  %v4261 = vpop.f32.mrb[0].mxu0
  %v4262 = vpop.f32.mrb[0].mxu0
  %v4263 = vadd.f32 0.0, %v4262
  %v4264 = vpop.f32.mrb[0].mxu0
  %4265 = vmatprep.mubr.bf16.mxu0 %v3873
  %4266 = vmatmul.mubr.bf16.gmra.mrb[0].mxu0 %v3872
  %v4267 = vpop.f32.mrb[0].mxu0
  %v4268 = vadd.f32 0.0, %v4267
  %v4269 = vpop.f32.mrb[0].mxu0
  %v4270 = vpop.f32.mrb[0].mxu0
  %v4271 = vadd.f32 0.0, %v4270
  %v4272 = vpop.f32.mrb[0].mxu0
  %4273 = vmatprep.mubr.bf16.mxu0 %v3875
  %4274 = vmatmul.mubr.bf16.gmra.mrb[0].mxu0 %v3874
  %v4275 = vpop.f32.mrb[0].mxu0
  %v4276 = vadd.f32 0.0, %v4275
  %v4277 = vpop.f32.mrb[0].mxu0
  %v4278 = vpop.f32.mrb[0].mxu0
  %v4279 = vadd.f32 0.0, %v4278
  %v4280 = vpop.f32.mrb[0].mxu0
  %4281 = vmatprep.mubr.bf16.mxu0 %v3877
  %4282 = vmatmul.mubr.bf16.gmra.mrb[0].mxu0 %v3876
  %v4283 = vpop.f32.mrb[0].mxu0
  %v4284 = vadd.f32 0.0, %v4283
  %v4285 = vpop.f32.mrb[0].mxu0
  %v4286 = vpop.f32.mrb[0].mxu0
  %v4287 = vadd.f32 0.0, %v4286
  %v4288 = vpop.f32.mrb[0].mxu0
  %4289 = vmatprep.mubr.bf16.mxu0 %v3879
  %4290 = vmatmul.mubr.bf16.gmra.mrb[0].mxu0 %v3878
  %v4291 = vpop.f32.mrb[0].mxu0
  %v4292 = vadd.f32 0.0, %v4291
  %v4293 = vpop.f32.mrb[0].mxu0
  %v4294 = vpop.f32.mrb[0].mxu0
  %v4295 = vadd.f32 0.0, %v4294
  %v4296 = vpop.f32.mrb[0].mxu0
  %4297 = vdwg.mxu0
  %v4298 = vadd.f32 %v3097, %v4044
  %v4299 = vadd.f32 %v3100, %v4047
  %v4300 = vadd.f32 %v3105, %v4052
  %v4301 = vadd.f32 %v3108, %v4055
  %v4302 = vadd.f32 %v3113, %v4060
  %v4303 = vadd.f32 %v3116, %v4063
  %v4304 = vadd.f32 %v3121, %v4068
  %v4305 = vadd.f32 %v3124, %v4071
  %v4306 = vadd.f32 %v3129, %v4076
  %v4307 = vadd.f32 %v3132, %v4079
  %v4308 = vadd.f32 %v3137, %v4084
  %v4309 = vadd.f32 %v3140, %v4087
  %v4310 = vadd.f32 %v3145, %v4092
  %v4311 = vadd.f32 %v3148, %v4095
  %v4312 = vadd.f32 %v3153, %v4100
  %v4313 = vadd.f32 %v3156, %v4103
  %v4314 = vadd.f32 %v3161, %v4108
  %v4315 = vadd.f32 %v3164, %v4111
  %v4316 = vadd.f32 %v3169, %v4116
  %v4317 = vadd.f32 %v3172, %v4119
  %v4318 = vadd.f32 %v3177, %v4124
  %v4319 = vadd.f32 %v3180, %v4127
  %v4320 = vadd.f32 %v3185, %v4132
  %v4321 = vadd.f32 %v3188, %v4135
  %v4322 = vadd.f32 %v3193, %v4140
  %v4323 = vadd.f32 %v3196, %v4143
  %v4324 = vadd.f32 %v3201, %v4148
  %v4325 = vadd.f32 %v3204, %v4151
  %v4326 = vadd.f32 %v3209, %v4156
  %v4327 = vadd.f32 %v3212, %v4159
  %v4328 = vadd.f32 %v3217, %v4164
  %v4329 = vadd.f32 %v3220, %v4167
  %v4330 = vadd.f32 %v3225, %v4172
  %v4331 = vadd.f32 %v3228, %v4175
  %v4332 = vadd.f32 %v3233, %v4180
  %v4333 = vadd.f32 %v3236, %v4183
  %v4334 = vadd.f32 %v3241, %v4188
  %v4335 = vadd.f32 %v3244, %v4191
  %v4336 = vadd.f32 %v3249, %v4196
  %v4337 = vadd.f32 %v3252, %v4199
  %v4338 = vadd.f32 %v3257, %v4204
  %v4339 = vadd.f32 %v3260, %v4207
  %v4340 = vadd.f32 %v3265, %v4212
  %v4341 = vadd.f32 %v3268, %v4215
  %v4342 = vadd.f32 %v3273, %v4220
  %v4343 = vadd.f32 %v3276, %v4223
  %v4344 = vadd.f32 %v3281, %v4228
  %v4345 = vadd.f32 %v3284, %v4231
  %v4346 = vadd.f32 %v3289, %v4236
  %v4347 = vadd.f32 %v3292, %v4239
  %v4348 = vadd.f32 %v3297, %v4244
  %v4349 = vadd.f32 %v3300, %v4247
  %v4350 = vadd.f32 %v3305, %v4252
  %v4351 = vadd.f32 %v3308, %v4255
  %v4352 = vadd.f32 %v3313, %v4260
  %v4353 = vadd.f32 %v3316, %v4263
  %v4354 = vadd.f32 %v3321, %v4268
  %v4355 = vadd.f32 %v3324, %v4271
  %v4356 = vadd.f32 %v3329, %v4276
  %v4357 = vadd.f32 %v3332, %v4279
  %v4358 = vadd.f32 %v3337, %v4284
  %v4359 = vadd.f32 %v3340, %v4287
  %v4360 = vadd.f32 %v3345, %v4292
  %v4361 = vadd.f32 %v3348, %v4295
  %v4362 = vld [vmem:[#allocation2 + $0x10] sm:$0xfe]
  %v4363 = vld [vmem:[#allocation2 + $0x18] sm:$0xfe]
  %v4364 = vld [vmem:[#allocation2 + $0x20] sm:$0xff]
  %v4365 = vld [vmem:[#allocation2 + $0x28] sm:$0xff]
  %v4366 = vld [vmem:[#allocation2 + $0x30] sm:$0xff]
  %v4367 = vld [vmem:[#allocation2 + $0x38] sm:$0xff]
  %v4368 = vld [vmem:[#allocation2 + $0x40] sm:$0xff]
  %v4369 = vld [vmem:[#allocation2 + $0x48] sm:$0xff]
  %v4370 = vld [vmem:[#allocation2 + $0x50] sm:$0xff]
  %v4371 = vld [vmem:[#allocation2 + $0x58] sm:$0xff]
  %v4372 = vld [vmem:[#allocation2 + $0x60] sm:$0xff]
  %v4373 = vld [vmem:[#allocation2 + $0x68] sm:$0xff]
  %v4374 = vld [vmem:[#allocation2 + $0x70] sm:$0xff]
  %v4375 = vld [vmem:[#allocation2 + $0x78] sm:$0xff]
  %v4376 = vld [vmem:[#allocation2 + $0x80] sm:$0xff]
  %v4377 = vld [vmem:[#allocation2 + $0x88] sm:$0xff]
  %v4378 = vld [vmem:[#allocation2 + $0x90] sm:$0x1]
  %v4379 = vld [vmem:[#allocation2 + $0x98] sm:$0x1]
  %v4380 = vld [vmem:[#allocation2 + $0xd0] sm:$0xfe]
  %v4381 = vld [vmem:[#allocation2 + $0xd8] sm:$0xfe]
  %v4382 = vld [vmem:[#allocation2 + $0xe0] sm:$0xff]
  %v4383 = vld [vmem:[#allocation2 + $0xe8] sm:$0xff]
  %v4384 = vld [vmem:[#allocation2 + $0xf0] sm:$0xff]
  %v4385 = vld [vmem:[#allocation2 + $0xf8] sm:$0xff]
  %v4386 = vld [vmem:[#allocation2 + $0x100] sm:$0xff]
  %v4387 = vld [vmem:[#allocation2 + $0x108] sm:$0xff]
  %v4388 = vld [vmem:[#allocation2 + $0x110] sm:$0xff]
  %v4389 = vld [vmem:[#allocation2 + $0x118] sm:$0xff]
  %v4390 = vld [vmem:[#allocation2 + $0x120] sm:$0xff]
  %v4391 = vld [vmem:[#allocation2 + $0x128] sm:$0xff]
  %v4392 = vld [vmem:[#allocation2 + $0x130] sm:$0xff]
  %v4393 = vld [vmem:[#allocation2 + $0x138] sm:$0xff]
  %v4394 = vld [vmem:[#allocation2 + $0x140] sm:$0xff]
  %v4395 = vld [vmem:[#allocation2 + $0x148] sm:$0xff]
  %v4396 = vld [vmem:[#allocation2 + $0x150] sm:$0x1]
  %v4397 = vld [vmem:[#allocation2 + $0x158] sm:$0x1]
  %v4398 = vld [vmem:[#allocation2 + $0x190] sm:$0xfe]
  %v4399 = vld [vmem:[#allocation2 + $0x198] sm:$0xfe]
  %v4400 = vld [vmem:[#allocation2 + $0x1a0] sm:$0xff]
  %v4401 = vld [vmem:[#allocation2 + $0x1a8] sm:$0xff]
  %v4402 = vld [vmem:[#allocation2 + $0x1b0] sm:$0xff]
  %v4403 = vld [vmem:[#allocation2 + $0x1b8] sm:$0xff]
  %v4404 = vld [vmem:[#allocation2 + $0x1c0] sm:$0xff]
  %v4405 = vld [vmem:[#allocation2 + $0x1c8] sm:$0xff]
  %v4406 = vld [vmem:[#allocation2 + $0x1d0] sm:$0xff]
  %v4407 = vld [vmem:[#allocation2 + $0x1d8] sm:$0xff]
  %v4408 = vld [vmem:[#allocation2 + $0x1e0] sm:$0xff]
  %v4409 = vld [vmem:[#allocation2 + $0x1e8] sm:$0xff]
  %v4410 = vld [vmem:[#allocation2 + $0x1f0] sm:$0xff]
  %v4411 = vld [vmem:[#allocation2 + $0x1f8] sm:$0xff]
  %v4412 = vld [vmem:[#allocation2 + $0x200] sm:$0xff]
  %v4413 = vld [vmem:[#allocation2 + $0x208] sm:$0xff]
  %v4414 = vld [vmem:[#allocation2 + $0x210] sm:$0x1]
  %v4415 = vld [vmem:[#allocation2 + $0x218] sm:$0x1]
  %v4416 = vld [vmem:[#allocation2 + $0x250] sm:$0xfe]
  %v4417 = vld [vmem:[#allocation2 + $0x258] sm:$0xfe]
  %v4418 = vld [vmem:[#allocation2 + $0x260] sm:$0xff]
  %v4419 = vld [vmem:[#allocation2 + $0x268] sm:$0xff]
  %v4420 = vld [vmem:[#allocation2 + $0x270] sm:$0xff]
  %v4421 = vld [vmem:[#allocation2 + $0x278] sm:$0xff]
  %v4422 = vld [vmem:[#allocation2 + $0x280] sm:$0xff]
  %v4423 = vld [vmem:[#allocation2 + $0x288] sm:$0xff]
  %v4424 = vld [vmem:[#allocation2 + $0x290] sm:$0xff]
  %v4425 = vld [vmem:[#allocation2 + $0x298] sm:$0xff]
  %v4426 = vld [vmem:[#allocation2 + $0x2a0] sm:$0xff]
  %v4427 = vld [vmem:[#allocation2 + $0x2a8] sm:$0xff]
  %v4428 = vld [vmem:[#allocation2 + $0x2b0] sm:$0xff]
  %v4429 = vld [vmem:[#allocation2 + $0x2b8] sm:$0xff]
  %v4430 = vld [vmem:[#allocation2 + $0x2c0] sm:$0xff]
  %v4431 = vld [vmem:[#allocation2 + $0x2c8] sm:$0xff]
  %v4432 = vld [vmem:[#allocation2 + $0x2d0] sm:$0x1]
  %v4433 = vld [vmem:[#allocation2 + $0x2d8] sm:$0x1]
  %v4434 = vld [vmem:[#allocation2 + $0x310] sm:$0xfe]
  %v4435 = vld [vmem:[#allocation2 + $0x318] sm:$0xfe]
  %v4436 = vld [vmem:[#allocation2 + $0x320] sm:$0xff]
  %v4437 = vld [vmem:[#allocation2 + $0x328] sm:$0xff]
  %v4438 = vld [vmem:[#allocation2 + $0x330] sm:$0xff]
  %v4439 = vld [vmem:[#allocation2 + $0x338] sm:$0xff]
  %v4440 = vld [vmem:[#allocation2 + $0x340] sm:$0xff]
  %v4441 = vld [vmem:[#allocation2 + $0x348] sm:$0xff]
  %v4442 = vld [vmem:[#allocation2 + $0x350] sm:$0xff]
  %v4443 = vld [vmem:[#allocation2 + $0x358] sm:$0xff]
  %v4444 = vld [vmem:[#allocation2 + $0x360] sm:$0xff]
  %v4445 = vld [vmem:[#allocation2 + $0x368] sm:$0xff]
  %v4446 = vld [vmem:[#allocation2 + $0x370] sm:$0xff]
  %v4447 = vld [vmem:[#allocation2 + $0x378] sm:$0xff]
  %v4448 = vld [vmem:[#allocation2 + $0x380] sm:$0xff]
  %v4449 = vld [vmem:[#allocation2 + $0x388] sm:$0xff]
  %v4450 = vld [vmem:[#allocation2 + $0x390] sm:$0x1]
  %v4451 = vld [vmem:[#allocation2 + $0x398] sm:$0x1]
  %v4452 = vld [vmem:[#allocation2 + $0x3d0] sm:$0xfe]
  %v4453 = vld [vmem:[#allocation2 + $0x3d8] sm:$0xfe]
  %v4454 = vld [vmem:[#allocation2 + $0x3e0] sm:$0xff]
  %v4455 = vld [vmem:[#allocation2 + $0x3e8] sm:$0xff]
  %v4456 = vld [vmem:[#allocation2 + $0x3f0] sm:$0xff]
  %v4457 = vld [vmem:[#allocation2 + $0x3f8] sm:$0xff]
  %v4458 = vld [vmem:[#allocation2 + $0x400] sm:$0xff]
  %v4459 = vld [vmem:[#allocation2 + $0x408] sm:$0xff]
  %v4460 = vld [vmem:[#allocation2 + $0x410] sm:$0xff]
  %v4461 = vld [vmem:[#allocation2 + $0x418] sm:$0xff]
  %v4462 = vld [vmem:[#allocation2 + $0x420] sm:$0xff]
  %v4463 = vld [vmem:[#allocation2 + $0x428] sm:$0xff]
  %v4464 = vld [vmem:[#allocation2 + $0x430] sm:$0xff]
  %v4465 = vld [vmem:[#allocation2 + $0x438] sm:$0xff]
  %v4466 = vld [vmem:[#allocation2 + $0x440] sm:$0xff]
  %v4467 = vld [vmem:[#allocation2 + $0x448] sm:$0xff]
  %v4468 = vld [vmem:[#allocation2 + $0x450] sm:$0x1]
  %v4469 = vld [vmem:[#allocation2 + $0x458] sm:$0x1]
  %v4470 = vld [vmem:[#allocation2 + $0x490] sm:$0xfe]
  %v4471 = vld [vmem:[#allocation2 + $0x498] sm:$0xfe]
  %v4472 = vld [vmem:[#allocation2 + $0x4a0] sm:$0xff]
  %v4473 = vld [vmem:[#allocation2 + $0x4a8] sm:$0xff]
  %v4474 = vld [vmem:[#allocation2 + $0x4b0] sm:$0xff]
  %v4475 = vld [vmem:[#allocation2 + $0x4b8] sm:$0xff]
  %v4476 = vld [vmem:[#allocation2 + $0x4c0] sm:$0xff]
  %v4477 = vld [vmem:[#allocation2 + $0x4c8] sm:$0xff]
  %v4478 = vld [vmem:[#allocation2 + $0x4d0] sm:$0xff]
  %v4479 = vld [vmem:[#allocation2 + $0x4d8] sm:$0xff]
  %v4480 = vld [vmem:[#allocation2 + $0x4e0] sm:$0xff]
  %v4481 = vld [vmem:[#allocation2 + $0x4e8] sm:$0xff]
  %v4482 = vld [vmem:[#allocation2 + $0x4f0] sm:$0xff]
  %v4483 = vld [vmem:[#allocation2 + $0x4f8] sm:$0xff]
  %v4484 = vld [vmem:[#allocation2 + $0x500] sm:$0xff]
  %v4485 = vld [vmem:[#allocation2 + $0x508] sm:$0xff]
  %v4486 = vld [vmem:[#allocation2 + $0x510] sm:$0x1]
  %v4487 = vld [vmem:[#allocation2 + $0x518] sm:$0x1]
  %v4488 = vld [vmem:[#allocation2 + $0x550] sm:$0xfe]
  %v4489 = vld [vmem:[#allocation2 + $0x558] sm:$0xfe]
  %v4490 = vld [vmem:[#allocation2 + $0x560] sm:$0xff]
  %v4491 = vld [vmem:[#allocation2 + $0x568] sm:$0xff]
  %v4492 = vld [vmem:[#allocation2 + $0x570] sm:$0xff]
  %v4493 = vld [vmem:[#allocation2 + $0x578] sm:$0xff]
  %v4494 = vld [vmem:[#allocation2 + $0x580] sm:$0xff]
  %v4495 = vld [vmem:[#allocation2 + $0x588] sm:$0xff]
  %v4496 = vld [vmem:[#allocation2 + $0x590] sm:$0xff]
  %v4497 = vld [vmem:[#allocation2 + $0x598] sm:$0xff]
  %v4498 = vld [vmem:[#allocation2 + $0x5a0] sm:$0xff]
  %v4499 = vld [vmem:[#allocation2 + $0x5a8] sm:$0xff]
  %v4500 = vld [vmem:[#allocation2 + $0x5b0] sm:$0xff]
  %v4501 = vld [vmem:[#allocation2 + $0x5b8] sm:$0xff]
  %v4502 = vld [vmem:[#allocation2 + $0x5c0] sm:$0xff]
  %v4503 = vld [vmem:[#allocation2 + $0x5c8] sm:$0xff]
  %v4504 = vld [vmem:[#allocation2 + $0x5d0] sm:$0x1]
  %v4505 = vld [vmem:[#allocation2 + $0x5d8] sm:$0x1]
  %v4650 = vrot.slane %v4362, 1
  %v4651 = vrot.slane %v4364, 1
  %v4652 = vsel %vm2083, %v4650, %v4651
  %v4653 = vrot.slane %v4363, 1
  %v4654 = vrot.slane %v4365, 1
  %v4655 = vsel %vm2083, %v4653, %v4654
  %v4656 = vrot.slane %v4366, 1
  %v4657 = vsel %vm2083, %v4651, %v4656
  %v4658 = vrot.slane %v4367, 1
  %v4659 = vsel %vm2083, %v4654, %v4658
  %v4660 = vrot.slane %v4368, 1
  %v4661 = vsel %vm2083, %v4656, %v4660
  %v4662 = vrot.slane %v4369, 1
  %v4663 = vsel %vm2083, %v4658, %v4662
  %v4664 = vrot.slane %v4370, 1
  %v4665 = vsel %vm2083, %v4660, %v4664
  %v4666 = vrot.slane %v4371, 1
  %v4667 = vsel %vm2083, %v4662, %v4666
  %v4668 = vrot.slane %v4372, 1
  %v4669 = vsel %vm2083, %v4664, %v4668
  %v4670 = vrot.slane %v4373, 1
  %v4671 = vsel %vm2083, %v4666, %v4670
  %v4672 = vrot.slane %v4374, 1
  %v4673 = vsel %vm2083, %v4668, %v4672
  %v4674 = vrot.slane %v4375, 1
  %v4675 = vsel %vm2083, %v4670, %v4674
  %v4676 = vrot.slane %v4376, 1
  %v4677 = vsel %vm2083, %v4672, %v4676
  %v4678 = vrot.slane %v4377, 1
  %v4679 = vsel %vm2083, %v4674, %v4678
  %v4680 = vrot.slane %v4378, 1
  %v4681 = vsel %vm2083, %v4676, %v4680
  %v4682 = vrot.slane %v4379, 1
  %v4683 = vsel %vm2083, %v4678, %v4682
  %v4684 = vrot.slane %v4380, 1
  %v4685 = vrot.slane %v4382, 1
  %v4686 = vsel %vm2083, %v4684, %v4685
  %v4687 = vrot.slane %v4381, 1
  %v4688 = vrot.slane %v4383, 1
  %v4689 = vsel %vm2083, %v4687, %v4688
  %v4690 = vrot.slane %v4384, 1
  %v4691 = vsel %vm2083, %v4685, %v4690
  %v4692 = vrot.slane %v4385, 1
  %v4693 = vsel %vm2083, %v4688, %v4692
  %v4694 = vrot.slane %v4386, 1
  %v4695 = vsel %vm2083, %v4690, %v4694
  %v4696 = vrot.slane %v4387, 1
  %v4697 = vsel %vm2083, %v4692, %v4696
  %v4698 = vrot.slane %v4388, 1
  %v4699 = vsel %vm2083, %v4694, %v4698
  %v4700 = vrot.slane %v4389, 1
  %v4701 = vsel %vm2083, %v4696, %v4700
  %v4702 = vrot.slane %v4390, 1
  %v4703 = vsel %vm2083, %v4698, %v4702
  %v4704 = vrot.slane %v4391, 1
  %v4705 = vsel %vm2083, %v4700, %v4704
  %v4706 = vrot.slane %v4392, 1
  %v4707 = vsel %vm2083, %v4702, %v4706
  %v4708 = vrot.slane %v4393, 1
  %v4709 = vsel %vm2083, %v4704, %v4708
  %v4710 = vrot.slane %v4394, 1
  %v4711 = vsel %vm2083, %v4706, %v4710
  %v4712 = vrot.slane %v4395, 1
  %v4713 = vsel %vm2083, %v4708, %v4712
  %v4714 = vrot.slane %v4396, 1
  %v4715 = vsel %vm2083, %v4710, %v4714
  %v4716 = vrot.slane %v4397, 1
  %v4717 = vsel %vm2083, %v4712, %v4716
  %v4718 = vrot.slane %v4398, 1
  %v4719 = vrot.slane %v4400, 1
  %v4720 = vsel %vm2083, %v4718, %v4719
  %v4721 = vrot.slane %v4399, 1
  %v4722 = vrot.slane %v4401, 1
  %v4723 = vsel %vm2083, %v4721, %v4722
  %v4724 = vrot.slane %v4402, 1
  %v4725 = vsel %vm2083, %v4719, %v4724
  %v4726 = vrot.slane %v4403, 1
  %v4727 = vsel %vm2083, %v4722, %v4726
  %v4728 = vrot.slane %v4404, 1
  %v4729 = vsel %vm2083, %v4724, %v4728
  %v4730 = vrot.slane %v4405, 1
  %v4731 = vsel %vm2083, %v4726, %v4730
  %v4732 = vrot.slane %v4406, 1
  %v4733 = vsel %vm2083, %v4728, %v4732
  %v4734 = vrot.slane %v4407, 1
  %v4735 = vsel %vm2083, %v4730, %v4734
  %v4736 = vrot.slane %v4408, 1
  %v4737 = vsel %vm2083, %v4732, %v4736
  %v4738 = vrot.slane %v4409, 1
  %v4739 = vsel %vm2083, %v4734, %v4738
  %v4740 = vrot.slane %v4410, 1
  %v4741 = vsel %vm2083, %v4736, %v4740
  %v4742 = vrot.slane %v4411, 1
  %v4743 = vsel %vm2083, %v4738, %v4742
  %v4744 = vrot.slane %v4412, 1
  %v4745 = vsel %vm2083, %v4740, %v4744
  %v4746 = vrot.slane %v4413, 1
  %v4747 = vsel %vm2083, %v4742, %v4746
  %v4748 = vrot.slane %v4414, 1
  %v4749 = vsel %vm2083, %v4744, %v4748
  %v4750 = vrot.slane %v4415, 1
  %v4751 = vsel %vm2083, %v4746, %v4750
  %v4752 = vrot.slane %v4416, 1
  %v4753 = vrot.slane %v4418, 1
  %v4754 = vsel %vm2083, %v4752, %v4753
  %v4755 = vrot.slane %v4417, 1
  %v4756 = vrot.slane %v4419, 1
  %v4757 = vsel %vm2083, %v4755, %v4756
  %v4758 = vrot.slane %v4420, 1
  %v4759 = vsel %vm2083, %v4753, %v4758
  %v4760 = vrot.slane %v4421, 1
  %v4761 = vsel %vm2083, %v4756, %v4760
  %v4762 = vrot.slane %v4422, 1
  %v4763 = vsel %vm2083, %v4758, %v4762
  %v4764 = vrot.slane %v4423, 1
  %v4765 = vsel %vm2083, %v4760, %v4764
  %v4766 = vrot.slane %v4424, 1
  %v4767 = vsel %vm2083, %v4762, %v4766
  %v4768 = vrot.slane %v4425, 1
  %v4769 = vsel %vm2083, %v4764, %v4768
  %v4770 = vrot.slane %v4426, 1
  %v4771 = vsel %vm2083, %v4766, %v4770
  %v4772 = vrot.slane %v4427, 1
  %v4773 = vsel %vm2083, %v4768, %v4772
  %v4774 = vrot.slane %v4428, 1
  %v4775 = vsel %vm2083, %v4770, %v4774
  %v4776 = vrot.slane %v4429, 1
  %v4777 = vsel %vm2083, %v4772, %v4776
  %v4778 = vrot.slane %v4430, 1
  %v4779 = vsel %vm2083, %v4774, %v4778
  %v4780 = vrot.slane %v4431, 1
  %v4781 = vsel %vm2083, %v4776, %v4780
  %v4782 = vrot.slane %v4432, 1
  %v4783 = vsel %vm2083, %v4778, %v4782
  %v4784 = vrot.slane %v4433, 1
  %v4785 = vsel %vm2083, %v4780, %v4784
  %v4786 = vrot.slane %v4434, 1
  %v4787 = vrot.slane %v4436, 1
  %v4788 = vsel %vm2083, %v4786, %v4787
  %v4789 = vrot.slane %v4435, 1
  %v4790 = vrot.slane %v4437, 1
  %v4791 = vsel %vm2083, %v4789, %v4790
  %v4792 = vrot.slane %v4438, 1
  %v4793 = vsel %vm2083, %v4787, %v4792
  %v4794 = vrot.slane %v4439, 1
  %v4795 = vsel %vm2083, %v4790, %v4794
  %v4796 = vrot.slane %v4440, 1
  %v4797 = vsel %vm2083, %v4792, %v4796
  %v4798 = vrot.slane %v4441, 1
  %v4799 = vsel %vm2083, %v4794, %v4798
  %v4800 = vrot.slane %v4442, 1
  %v4801 = vsel %vm2083, %v4796, %v4800
  %v4802 = vrot.slane %v4443, 1
  %v4803 = vsel %vm2083, %v4798, %v4802
  %v4804 = vrot.slane %v4444, 1
  %v4805 = vsel %vm2083, %v4800, %v4804
  %v4806 = vrot.slane %v4445, 1
  %v4807 = vsel %vm2083, %v4802, %v4806
  %v4808 = vrot.slane %v4446, 1
  %v4809 = vsel %vm2083, %v4804, %v4808
  %v4810 = vrot.slane %v4447, 1
  %v4811 = vsel %vm2083, %v4806, %v4810
  %v4812 = vrot.slane %v4448, 1
  %v4813 = vsel %vm2083, %v4808, %v4812
  %v4814 = vrot.slane %v4449, 1
  %v4815 = vsel %vm2083, %v4810, %v4814
  %v4816 = vrot.slane %v4450, 1
  %v4817 = vsel %vm2083, %v4812, %v4816
  %v4818 = vrot.slane %v4451, 1
  %v4819 = vsel %vm2083, %v4814, %v4818
  %v4820 = vrot.slane %v4452, 1
  %v4821 = vrot.slane %v4454, 1
  %v4822 = vsel %vm2083, %v4820, %v4821
  %v4823 = vrot.slane %v4453, 1
  %v4824 = vrot.slane %v4455, 1
  %v4825 = vsel %vm2083, %v4823, %v4824
  %v4826 = vrot.slane %v4456, 1
  %v4827 = vsel %vm2083, %v4821, %v4826
  %v4828 = vrot.slane %v4457, 1
  %v4829 = vsel %vm2083, %v4824, %v4828
  %v4830 = vrot.slane %v4458, 1
  %v4831 = vsel %vm2083, %v4826, %v4830
  %v4832 = vrot.slane %v4459, 1
  %v4833 = vsel %vm2083, %v4828, %v4832
  %v4834 = vrot.slane %v4460, 1
  %v4835 = vsel %vm2083, %v4830, %v4834
  %v4836 = vrot.slane %v4461, 1
  %v4837 = vsel %vm2083, %v4832, %v4836
  %v4838 = vrot.slane %v4462, 1
  %v4839 = vsel %vm2083, %v4834, %v4838
  %v4840 = vrot.slane %v4463, 1
  %v4841 = vsel %vm2083, %v4836, %v4840
  %v4842 = vrot.slane %v4464, 1
  %v4843 = vsel %vm2083, %v4838, %v4842
  %v4844 = vrot.slane %v4465, 1
  %v4845 = vsel %vm2083, %v4840, %v4844
  %v4846 = vrot.slane %v4466, 1
  %v4847 = vsel %vm2083, %v4842, %v4846
  %v4848 = vrot.slane %v4467, 1
  %v4849 = vsel %vm2083, %v4844, %v4848
  %v4850 = vrot.slane %v4468, 1
  %v4851 = vsel %vm2083, %v4846, %v4850
  %v4852 = vrot.slane %v4469, 1
  %v4853 = vsel %vm2083, %v4848, %v4852
  %v4854 = vrot.slane %v4470, 1
  %v4855 = vrot.slane %v4472, 1
  %v4856 = vsel %vm2083, %v4854, %v4855
  %v4857 = vrot.slane %v4471, 1
  %v4858 = vrot.slane %v4473, 1
  %v4859 = vsel %vm2083, %v4857, %v4858
  %v4860 = vrot.slane %v4474, 1
  %v4861 = vsel %vm2083, %v4855, %v4860
  %v4862 = vrot.slane %v4475, 1
  %v4863 = vsel %vm2083, %v4858, %v4862
  %v4864 = vrot.slane %v4476, 1
  %v4865 = vsel %vm2083, %v4860, %v4864
  %v4866 = vrot.slane %v4477, 1
  %v4867 = vsel %vm2083, %v4862, %v4866
  %v4868 = vrot.slane %v4478, 1
  %v4869 = vsel %vm2083, %v4864, %v4868
  %v4870 = vrot.slane %v4479, 1
  %v4871 = vsel %vm2083, %v4866, %v4870
  %v4872 = vrot.slane %v4480, 1
  %v4873 = vsel %vm2083, %v4868, %v4872
  %v4874 = vrot.slane %v4481, 1
  %v4875 = vsel %vm2083, %v4870, %v4874
  %v4876 = vrot.slane %v4482, 1
  %v4877 = vsel %vm2083, %v4872, %v4876
  %v4878 = vrot.slane %v4483, 1
  %v4879 = vsel %vm2083, %v4874, %v4878
  %v4880 = vrot.slane %v4484, 1
  %v4881 = vsel %vm2083, %v4876, %v4880
  %v4882 = vrot.slane %v4485, 1
  %v4883 = vsel %vm2083, %v4878, %v4882
  %v4884 = vrot.slane %v4486, 1
  %v4885 = vsel %vm2083, %v4880, %v4884
  %v4886 = vrot.slane %v4487, 1
  %v4887 = vsel %vm2083, %v4882, %v4886
  %v4888 = vrot.slane %v4488, 1
  %v4889 = vrot.slane %v4490, 1
  %v4890 = vsel %vm2083, %v4888, %v4889
  %v4891 = vrot.slane %v4489, 1
  %v4892 = vrot.slane %v4491, 1
  %v4893 = vsel %vm2083, %v4891, %v4892
  %v4894 = vrot.slane %v4492, 1
  %v4895 = vsel %vm2083, %v4889, %v4894
  %v4896 = vrot.slane %v4493, 1
  %v4897 = vsel %vm2083, %v4892, %v4896
  %v4898 = vrot.slane %v4494, 1
  %v4899 = vsel %vm2083, %v4894, %v4898
  %v4900 = vrot.slane %v4495, 1
  %v4901 = vsel %vm2083, %v4896, %v4900
  %v4902 = vrot.slane %v4496, 1
  %v4903 = vsel %vm2083, %v4898, %v4902
  %v4904 = vrot.slane %v4497, 1
  %v4905 = vsel %vm2083, %v4900, %v4904
  %v4906 = vrot.slane %v4498, 1
  %v4907 = vsel %vm2083, %v4902, %v4906
  %v4908 = vrot.slane %v4499, 1
  %v4909 = vsel %vm2083, %v4904, %v4908
  %v4910 = vrot.slane %v4500, 1
  %v4911 = vsel %vm2083, %v4906, %v4910
  %v4912 = vrot.slane %v4501, 1
  %v4913 = vsel %vm2083, %v4908, %v4912
  %v4914 = vrot.slane %v4502, 1
  %v4915 = vsel %vm2083, %v4910, %v4914
  %v4916 = vrot.slane %v4503, 1
  %v4917 = vsel %vm2083, %v4912, %v4916
  %v4918 = vrot.slane %v4504, 1
  %v4919 = vsel %vm2083, %v4914, %v4918
  %v4920 = vrot.slane %v4505, 1
  %v4921 = vsel %vm2083, %v4916, %v4920
  %v5050 = vpack.c.bf16 %v4657, %v4652
  %v5051 = vpack.c.bf16 %v4659, %v4655
  %v5052 = vpack.c.bf16 %v4665, %v4661
  %v5053 = vpack.c.bf16 %v4667, %v4663
  %v5054 = vpack.c.bf16 %v4673, %v4669
  %v5055 = vpack.c.bf16 %v4675, %v4671
  %v5056 = vpack.c.bf16 %v4681, %v4677
  %v5057 = vpack.c.bf16 %v4683, %v4679
  %v5058 = vpack.c.bf16 %v4691, %v4686
  %v5059 = vpack.c.bf16 %v4693, %v4689
  %v5060 = vpack.c.bf16 %v4699, %v4695
  %v5061 = vpack.c.bf16 %v4701, %v4697
  %v5062 = vpack.c.bf16 %v4707, %v4703
  %v5063 = vpack.c.bf16 %v4709, %v4705
  %v5064 = vpack.c.bf16 %v4715, %v4711
  %v5065 = vpack.c.bf16 %v4717, %v4713
  %v5066 = vpack.c.bf16 %v4725, %v4720
  %v5067 = vpack.c.bf16 %v4727, %v4723
  %v5068 = vpack.c.bf16 %v4733, %v4729
  %v5069 = vpack.c.bf16 %v4735, %v4731
  %v5070 = vpack.c.bf16 %v4741, %v4737
  %v5071 = vpack.c.bf16 %v4743, %v4739
  %v5072 = vpack.c.bf16 %v4749, %v4745
  %v5073 = vpack.c.bf16 %v4751, %v4747
  %v5074 = vpack.c.bf16 %v4759, %v4754
  %v5075 = vpack.c.bf16 %v4761, %v4757
  %v5076 = vpack.c.bf16 %v4767, %v4763
  %v5077 = vpack.c.bf16 %v4769, %v4765
  %v5078 = vpack.c.bf16 %v4775, %v4771
  %v5079 = vpack.c.bf16 %v4777, %v4773
  %v5080 = vpack.c.bf16 %v4783, %v4779
  %v5081 = vpack.c.bf16 %v4785, %v4781
  %v5082 = vpack.c.bf16 %v4793, %v4788
  %v5083 = vpack.c.bf16 %v4795, %v4791
  %v5084 = vpack.c.bf16 %v4801, %v4797
  %v5085 = vpack.c.bf16 %v4803, %v4799
  %v5086 = vpack.c.bf16 %v4809, %v4805
  %v5087 = vpack.c.bf16 %v4811, %v4807
  %v5088 = vpack.c.bf16 %v4817, %v4813
  %v5089 = vpack.c.bf16 %v4819, %v4815
  %v5090 = vpack.c.bf16 %v4827, %v4822
  %v5091 = vpack.c.bf16 %v4829, %v4825
  %v5092 = vpack.c.bf16 %v4835, %v4831
  %v5093 = vpack.c.bf16 %v4837, %v4833
  %v5094 = vpack.c.bf16 %v4843, %v4839
  %v5095 = vpack.c.bf16 %v4845, %v4841
  %v5096 = vpack.c.bf16 %v4851, %v4847
  %v5097 = vpack.c.bf16 %v4853, %v4849
  %v5098 = vpack.c.bf16 %v4861, %v4856
  %v5099 = vpack.c.bf16 %v4863, %v4859
  %v5100 = vpack.c.bf16 %v4869, %v4865
  %v5101 = vpack.c.bf16 %v4871, %v4867
  %v5102 = vpack.c.bf16 %v4877, %v4873
  %v5103 = vpack.c.bf16 %v4879, %v4875
  %v5104 = vpack.c.bf16 %v4885, %v4881
  %v5105 = vpack.c.bf16 %v4887, %v4883
  %v5106 = vpack.c.bf16 %v4895, %v4890
  %v5107 = vpack.c.bf16 %v4897, %v4893
  %v5108 = vpack.c.bf16 %v4903, %v4899
  %v5109 = vpack.c.bf16 %v4905, %v4901
  %v5110 = vpack.c.bf16 %v4911, %v4907
  %v5111 = vpack.c.bf16 %v4913, %v4909
  %v5112 = vpack.c.bf16 %v4919, %v4915
  %v5113 = vpack.c.bf16 %v4921, %v4917
  %s5114 = scalar_lea.vmem %s4, 384
  %v5115 = vld [vmem:[%s5114] sm:$0xf]
  %v5116 = vld [vmem:[%s5114 + $0x4] sm:$0xf]
  %v5117 = vld [vmem:[%s5114 + $0x8] sm:$0xf]
  %v5118 = vld [vmem:[%s5114 + $0xc] sm:$0xf]
  %v5119 = vld [vmem:[%s5114 + $0x10] sm:$0xf]
  %v5120 = vld [vmem:[%s5114 + $0x14] sm:$0xf]
  %v5121 = vld [vmem:[%s5114 + $0x18] sm:$0xf]
  %v5122 = vld [vmem:[%s5114 + $0x1c] sm:$0xf]
  %v5123 = vld [vmem:[%s5114 + $0x20] sm:$0xf]
  %v5124 = vld [vmem:[%s5114 + $0x24] sm:$0xf]
  %v5125 = vld [vmem:[%s5114 + $0x28] sm:$0xf]
  %v5126 = vld [vmem:[%s5114 + $0x2c] sm:$0xf]
  %v5127 = vld [vmem:[%s5114 + $0x30] sm:$0xf]
  %v5128 = vld [vmem:[%s5114 + $0x34] sm:$0xf]
  %v5129 = vld [vmem:[%s5114 + $0x38] sm:$0xf]
  %v5130 = vld [vmem:[%s5114 + $0x3c] sm:$0xf]
  %v5131 = vld [vmem:[%s5114 + $0x40] sm:$0xf]
  %v5132 = vld [vmem:[%s5114 + $0x44] sm:$0xf]
  %v5133 = vld [vmem:[%s5114 + $0x48] sm:$0xf]
  %v5134 = vld [vmem:[%s5114 + $0x4c] sm:$0xf]
  %v5135 = vld [vmem:[%s5114 + $0x50] sm:$0xf]
  %v5136 = vld [vmem:[%s5114 + $0x54] sm:$0xf]
  %v5137 = vld [vmem:[%s5114 + $0x58] sm:$0xf]
  %v5138 = vld [vmem:[%s5114 + $0x5c] sm:$0xf]
  %v5139 = vld [vmem:[%s5114 + $0x60] sm:$0xf]
  %v5140 = vld [vmem:[%s5114 + $0x64] sm:$0xf]
  %v5141 = vld [vmem:[%s5114 + $0x68] sm:$0xf]
  %v5142 = vld [vmem:[%s5114 + $0x6c] sm:$0xf]
  %v5143 = vld [vmem:[%s5114 + $0x70] sm:$0xf]
  %v5144 = vld [vmem:[%s5114 + $0x74] sm:$0xf]
  %v5145 = vld [vmem:[%s5114 + $0x78] sm:$0xf]
  %v5146 = vld [vmem:[%s5114 + $0x7c] sm:$0xf]
  %v5179 = vunpack.c.l.b16 %v5115
  %v5180 = vunpack.c.l.b16 %v5116
  %v5181 = vunpack.c.l.b16 %v5117
  %v5182 = vunpack.c.l.b16 %v5118
  %v5183 = vunpack.c.l.b16 %v5119
  %v5184 = vunpack.c.l.b16 %v5120
  %v5185 = vunpack.c.l.b16 %v5121
  %v5186 = vunpack.c.l.b16 %v5122
  %v5187 = vunpack.c.l.b16 %v5123
  %v5188 = vunpack.c.l.b16 %v5124
  %v5189 = vunpack.c.l.b16 %v5125
  %v5190 = vunpack.c.l.b16 %v5126
  %v5191 = vunpack.c.l.b16 %v5127
  %v5192 = vunpack.c.l.b16 %v5128
  %v5193 = vunpack.c.l.b16 %v5129
  %v5194 = vunpack.c.l.b16 %v5130
  %v5195 = vunpack.c.l.b16 %v5131
  %v5196 = vunpack.c.l.b16 %v5132
  %v5197 = vunpack.c.l.b16 %v5133
  %v5198 = vunpack.c.l.b16 %v5134
  %v5199 = vunpack.c.l.b16 %v5135
  %v5200 = vunpack.c.l.b16 %v5136
  %v5201 = vunpack.c.l.b16 %v5137
  %v5202 = vunpack.c.l.b16 %v5138
  %v5203 = vunpack.c.l.b16 %v5139
  %v5204 = vunpack.c.l.b16 %v5140
  %v5205 = vunpack.c.l.b16 %v5141
  %v5206 = vunpack.c.l.b16 %v5142
  %v5207 = vunpack.c.l.b16 %v5143
  %v5208 = vunpack.c.l.b16 %v5144
  %v5209 = vunpack.c.l.b16 %v5145
  %v5210 = vunpack.c.l.b16 %v5146
  %v5211 = vpack.c.b16 %v5180, %v5179
  %v5212 = vpack.c.b16 %v5182, %v5181
  %v5213 = vpack.c.b16 %v5184, %v5183
  %v5214 = vpack.c.b16 %v5186, %v5185
  %v5215 = vpack.c.b16 %v5188, %v5187
  %v5216 = vpack.c.b16 %v5190, %v5189
  %v5217 = vpack.c.b16 %v5192, %v5191
  %v5218 = vpack.c.b16 %v5194, %v5193
  %v5219 = vpack.c.b16 %v5196, %v5195
  %v5220 = vpack.c.b16 %v5198, %v5197
  %v5221 = vpack.c.b16 %v5200, %v5199
  %v5222 = vpack.c.b16 %v5202, %v5201
  %v5223 = vpack.c.b16 %v5204, %v5203
  %v5224 = vpack.c.b16 %v5206, %v5205
  %v5225 = vpack.c.b16 %v5208, %v5207
  %v5226 = vpack.c.b16 %v5210, %v5209
  %5243 = vmatprep.subr.bf16.mxu0 0
  %5244 = vmatpush1.bf16.msra.mxu0 %v5211
  %5245 = vmatprep.subr.bf16.mxu0 0
  %5246 = vmatpush1.bf16.msra.mxu0 %v5212
  %5247 = vmatprep.subr.bf16.mxu0 0
  %5248 = vmatpush1.bf16.msra.mxu0 %v5213
  %5249 = vmatprep.subr.bf16.mxu0 0
  %5250 = vmatpush1.bf16.msra.mxu0 %v5214
  %5251 = vmatprep.subr.bf16.mxu0 0
  %5252 = vmatpush1.bf16.msra.mxu0 %v5215
  %5253 = vmatprep.subr.bf16.mxu0 0
  %5254 = vmatpush1.bf16.msra.mxu0 %v5216
  %5255 = vmatprep.subr.bf16.mxu0 0
  %5256 = vmatpush1.bf16.msra.mxu0 %v5217
  %5257 = vmatprep.subr.bf16.mxu0 0
  %5258 = vmatpush1.bf16.msra.mxu0 %v5218
  %5259 = vmatprep.subr.bf16.mxu0 0
  %5260 = vmatpush1.bf16.msra.mxu0 %v5219
  %5261 = vmatprep.subr.bf16.mxu0 0
  %5262 = vmatpush1.bf16.msra.mxu0 %v5220
  %5263 = vmatprep.subr.bf16.mxu0 0
  %5264 = vmatpush1.bf16.msra.mxu0 %v5221
  %5265 = vmatprep.subr.bf16.mxu0 0
  %5266 = vmatpush1.bf16.msra.mxu0 %v5222
  %5267 = vmatprep.subr.bf16.mxu0 0
  %5268 = vmatpush1.bf16.msra.mxu0 %v5223
  %5269 = vmatprep.subr.bf16.mxu0 0
  %5270 = vmatpush1.bf16.msra.mxu0 %v5224
  %5271 = vmatprep.subr.bf16.mxu0 0
  %5272 = vmatpush1.bf16.msra.mxu0 %v5225
  %5273 = vmatprep.subr.bf16.mxu0 0
  %5274 = vmatpush1.bf16.msra.mxu0 %v5226
  %5275 = vmatprep.mubr.bf16.mxu0 %v5051
  %5276 = vmatmul.mubr.bf16.gmra.mrb[0].mxu0 %v5050
  %v5277 = vpop.f32.mrb[0].mxu0
  %v5278 = vadd.f32 0.0, %v5277
  %v5279 = vpop.f32.mrb[0].mxu0
  %v5280 = vpop.f32.mrb[0].mxu0
  %v5281 = vadd.f32 0.0, %v5280
  %v5282 = vpop.f32.mrb[0].mxu0
  %5283 = vmatprep.mubr.bf16.mxu0 %v5053
  %5284 = vmatmul.mubr.bf16.gmra.mrb[0].mxu0 %v5052
  %v5285 = vpop.f32.mrb[0].mxu0
  %v5286 = vadd.f32 0.0, %v5285
  %v5287 = vpop.f32.mrb[0].mxu0
  %v5288 = vpop.f32.mrb[0].mxu0
  %v5289 = vadd.f32 0.0, %v5288
  %v5290 = vpop.f32.mrb[0].mxu0
  %5291 = vmatprep.mubr.bf16.mxu0 %v5055
  %5292 = vmatmul.mubr.bf16.gmra.mrb[0].mxu0 %v5054
  %v5293 = vpop.f32.mrb[0].mxu0
  %v5294 = vadd.f32 0.0, %v5293
  %v5295 = vpop.f32.mrb[0].mxu0
  %v5296 = vpop.f32.mrb[0].mxu0
  %v5297 = vadd.f32 0.0, %v5296
  %v5298 = vpop.f32.mrb[0].mxu0
  %5299 = vmatprep.mubr.bf16.mxu0 %v5057
  %5300 = vmatmul.mubr.bf16.gmra.mrb[0].mxu0 %v5056
  %v5301 = vpop.f32.mrb[0].mxu0
  %v5302 = vadd.f32 0.0, %v5301
  %v5303 = vpop.f32.mrb[0].mxu0
  %v5304 = vpop.f32.mrb[0].mxu0
  %v5305 = vadd.f32 0.0, %v5304
  %v5306 = vpop.f32.mrb[0].mxu0
  %5307 = vmatprep.mubr.bf16.mxu0 %v5059
  %5308 = vmatmul.mubr.bf16.gmra.mrb[0].mxu0 %v5058
  %v5309 = vpop.f32.mrb[0].mxu0
  %v5310 = vadd.f32 0.0, %v5309
  %v5311 = vpop.f32.mrb[0].mxu0
  %v5312 = vpop.f32.mrb[0].mxu0
  %v5313 = vadd.f32 0.0, %v5312
  %v5314 = vpop.f32.mrb[0].mxu0
  %5315 = vmatprep.mubr.bf16.mxu0 %v5061
  %5316 = vmatmul.mubr.bf16.gmra.mrb[0].mxu0 %v5060
  %v5317 = vpop.f32.mrb[0].mxu0
  %v5318 = vadd.f32 0.0, %v5317
  %v5319 = vpop.f32.mrb[0].mxu0
  %v5320 = vpop.f32.mrb[0].mxu0
  %v5321 = vadd.f32 0.0, %v5320
  %v5322 = vpop.f32.mrb[0].mxu0
  %5323 = vmatprep.mubr.bf16.mxu0 %v5063
  %5324 = vmatmul.mubr.bf16.gmra.mrb[0].mxu0 %v5062
  %v5325 = vpop.f32.mrb[0].mxu0
  %v5326 = vadd.f32 0.0, %v5325
  %v5327 = vpop.f32.mrb[0].mxu0
  %v5328 = vpop.f32.mrb[0].mxu0
  %v5329 = vadd.f32 0.0, %v5328
  %v5330 = vpop.f32.mrb[0].mxu0
  %5331 = vmatprep.mubr.bf16.mxu0 %v5065
  %5332 = vmatmul.mubr.bf16.gmra.mrb[0].mxu0 %v5064
  %v5333 = vpop.f32.mrb[0].mxu0
  %v5334 = vadd.f32 0.0, %v5333
  %v5335 = vpop.f32.mrb[0].mxu0
  %v5336 = vpop.f32.mrb[0].mxu0
  %v5337 = vadd.f32 0.0, %v5336
  %v5338 = vpop.f32.mrb[0].mxu0
  %5339 = vmatprep.mubr.bf16.mxu0 %v5067
  %5340 = vmatmul.mubr.bf16.gmra.mrb[0].mxu0 %v5066
  %v5341 = vpop.f32.mrb[0].mxu0
  %v5342 = vadd.f32 0.0, %v5341
  %v5343 = vpop.f32.mrb[0].mxu0
  %v5344 = vpop.f32.mrb[0].mxu0
  %v5345 = vadd.f32 0.0, %v5344
  %v5346 = vpop.f32.mrb[0].mxu0
  %5347 = vmatprep.mubr.bf16.mxu0 %v5069
  %5348 = vmatmul.mubr.bf16.gmra.mrb[0].mxu0 %v5068
  %v5349 = vpop.f32.mrb[0].mxu0
  %v5350 = vadd.f32 0.0, %v5349
  %v5351 = vpop.f32.mrb[0].mxu0
  %v5352 = vpop.f32.mrb[0].mxu0
  %v5353 = vadd.f32 0.0, %v5352
  %v5354 = vpop.f32.mrb[0].mxu0
  %5355 = vmatprep.mubr.bf16.mxu0 %v5071
  %5356 = vmatmul.mubr.bf16.gmra.mrb[0].mxu0 %v5070
  %v5357 = vpop.f32.mrb[0].mxu0
  %v5358 = vadd.f32 0.0, %v5357
  %v5359 = vpop.f32.mrb[0].mxu0
  %v5360 = vpop.f32.mrb[0].mxu0
  %v5361 = vadd.f32 0.0, %v5360
  %v5362 = vpop.f32.mrb[0].mxu0
  %5363 = vmatprep.mubr.bf16.mxu0 %v5073
  %5364 = vmatmul.mubr.bf16.gmra.mrb[0].mxu0 %v5072
  %v5365 = vpop.f32.mrb[0].mxu0
  %v5366 = vadd.f32 0.0, %v5365
  %v5367 = vpop.f32.mrb[0].mxu0
  %v5368 = vpop.f32.mrb[0].mxu0
  %v5369 = vadd.f32 0.0, %v5368
  %v5370 = vpop.f32.mrb[0].mxu0
  %5371 = vmatprep.mubr.bf16.mxu0 %v5075
  %5372 = vmatmul.mubr.bf16.gmra.mrb[0].mxu0 %v5074
  %v5373 = vpop.f32.mrb[0].mxu0
  %v5374 = vadd.f32 0.0, %v5373
  %v5375 = vpop.f32.mrb[0].mxu0
  %v5376 = vpop.f32.mrb[0].mxu0
  %v5377 = vadd.f32 0.0, %v5376
  %v5378 = vpop.f32.mrb[0].mxu0
  %5379 = vmatprep.mubr.bf16.mxu0 %v5077
  %5380 = vmatmul.mubr.bf16.gmra.mrb[0].mxu0 %v5076
  %v5381 = vpop.f32.mrb[0].mxu0
  %v5382 = vadd.f32 0.0, %v5381
  %v5383 = vpop.f32.mrb[0].mxu0
  %v5384 = vpop.f32.mrb[0].mxu0
  %v5385 = vadd.f32 0.0, %v5384
  %v5386 = vpop.f32.mrb[0].mxu0
  %5387 = vmatprep.mubr.bf16.mxu0 %v5079
  %5388 = vmatmul.mubr.bf16.gmra.mrb[0].mxu0 %v5078
  %v5389 = vpop.f32.mrb[0].mxu0
  %v5390 = vadd.f32 0.0, %v5389
  %v5391 = vpop.f32.mrb[0].mxu0
  %v5392 = vpop.f32.mrb[0].mxu0
  %v5393 = vadd.f32 0.0, %v5392
  %v5394 = vpop.f32.mrb[0].mxu0
  %5395 = vmatprep.mubr.bf16.mxu0 %v5081
  %5396 = vmatmul.mubr.bf16.gmra.mrb[0].mxu0 %v5080
  %v5397 = vpop.f32.mrb[0].mxu0
  %v5398 = vadd.f32 0.0, %v5397
  %v5399 = vpop.f32.mrb[0].mxu0
  %v5400 = vpop.f32.mrb[0].mxu0
  %v5401 = vadd.f32 0.0, %v5400
  %v5402 = vpop.f32.mrb[0].mxu0
  %5403 = vmatprep.mubr.bf16.mxu0 %v5083
  %5404 = vmatmul.mubr.bf16.gmra.mrb[0].mxu0 %v5082
  %v5405 = vpop.f32.mrb[0].mxu0
  %v5406 = vadd.f32 0.0, %v5405
  %v5407 = vpop.f32.mrb[0].mxu0
  %v5408 = vpop.f32.mrb[0].mxu0
  %v5409 = vadd.f32 0.0, %v5408
  %v5410 = vpop.f32.mrb[0].mxu0
  %5411 = vmatprep.mubr.bf16.mxu0 %v5085
  %5412 = vmatmul.mubr.bf16.gmra.mrb[0].mxu0 %v5084
  %v5413 = vpop.f32.mrb[0].mxu0
  %v5414 = vadd.f32 0.0, %v5413
  %v5415 = vpop.f32.mrb[0].mxu0
  %v5416 = vpop.f32.mrb[0].mxu0
  %v5417 = vadd.f32 0.0, %v5416
  %v5418 = vpop.f32.mrb[0].mxu0
  %5419 = vmatprep.mubr.bf16.mxu0 %v5087
  %5420 = vmatmul.mubr.bf16.gmra.mrb[0].mxu0 %v5086
  %v5421 = vpop.f32.mrb[0].mxu0
  %v5422 = vadd.f32 0.0, %v5421
  %v5423 = vpop.f32.mrb[0].mxu0
  %v5424 = vpop.f32.mrb[0].mxu0
  %v5425 = vadd.f32 0.0, %v5424
  %v5426 = vpop.f32.mrb[0].mxu0
  %5427 = vmatprep.mubr.bf16.mxu0 %v5089
  %5428 = vmatmul.mubr.bf16.gmra.mrb[0].mxu0 %v5088
  %v5429 = vpop.f32.mrb[0].mxu0
  %v5430 = vadd.f32 0.0, %v5429
  %v5431 = vpop.f32.mrb[0].mxu0
  %v5432 = vpop.f32.mrb[0].mxu0
  %v5433 = vadd.f32 0.0, %v5432
  %v5434 = vpop.f32.mrb[0].mxu0
  %5435 = vmatprep.mubr.bf16.mxu0 %v5091
  %5436 = vmatmul.mubr.bf16.gmra.mrb[0].mxu0 %v5090
  %v5437 = vpop.f32.mrb[0].mxu0
  %v5438 = vadd.f32 0.0, %v5437
  %v5439 = vpop.f32.mrb[0].mxu0
  %v5440 = vpop.f32.mrb[0].mxu0
  %v5441 = vadd.f32 0.0, %v5440
  %v5442 = vpop.f32.mrb[0].mxu0
  %5443 = vmatprep.mubr.bf16.mxu0 %v5093
  %5444 = vmatmul.mubr.bf16.gmra.mrb[0].mxu0 %v5092
  %v5445 = vpop.f32.mrb[0].mxu0
  %v5446 = vadd.f32 0.0, %v5445
  %v5447 = vpop.f32.mrb[0].mxu0
  %v5448 = vpop.f32.mrb[0].mxu0
  %v5449 = vadd.f32 0.0, %v5448
  %v5450 = vpop.f32.mrb[0].mxu0
  %5451 = vmatprep.mubr.bf16.mxu0 %v5095
  %5452 = vmatmul.mubr.bf16.gmra.mrb[0].mxu0 %v5094
  %v5453 = vpop.f32.mrb[0].mxu0
  %v5454 = vadd.f32 0.0, %v5453
  %v5455 = vpop.f32.mrb[0].mxu0
  %v5456 = vpop.f32.mrb[0].mxu0
  %v5457 = vadd.f32 0.0, %v5456
  %v5458 = vpop.f32.mrb[0].mxu0
  %5459 = vmatprep.mubr.bf16.mxu0 %v5097
  %5460 = vmatmul.mubr.bf16.gmra.mrb[0].mxu0 %v5096
  %v5461 = vpop.f32.mrb[0].mxu0
  %v5462 = vadd.f32 0.0, %v5461
  %v5463 = vpop.f32.mrb[0].mxu0
  %v5464 = vpop.f32.mrb[0].mxu0
  %v5465 = vadd.f32 0.0, %v5464
  %v5466 = vpop.f32.mrb[0].mxu0
  %5467 = vmatprep.mubr.bf16.mxu0 %v5099
  %5468 = vmatmul.mubr.bf16.gmra.mrb[0].mxu0 %v5098
  %v5469 = vpop.f32.mrb[0].mxu0
  %v5470 = vadd.f32 0.0, %v5469
  %v5471 = vpop.f32.mrb[0].mxu0
  %v5472 = vpop.f32.mrb[0].mxu0
  %v5473 = vadd.f32 0.0, %v5472
  %v5474 = vpop.f32.mrb[0].mxu0
  %5475 = vmatprep.mubr.bf16.mxu0 %v5101
  %5476 = vmatmul.mubr.bf16.gmra.mrb[0].mxu0 %v5100
  %v5477 = vpop.f32.mrb[0].mxu0
  %v5478 = vadd.f32 0.0, %v5477
  %v5479 = vpop.f32.mrb[0].mxu0
  %v5480 = vpop.f32.mrb[0].mxu0
  %v5481 = vadd.f32 0.0, %v5480
  %v5482 = vpop.f32.mrb[0].mxu0
  %5483 = vmatprep.mubr.bf16.mxu0 %v5103
  %5484 = vmatmul.mubr.bf16.gmra.mrb[0].mxu0 %v5102
  %v5485 = vpop.f32.mrb[0].mxu0
  %v5486 = vadd.f32 0.0, %v5485
  %v5487 = vpop.f32.mrb[0].mxu0
  %v5488 = vpop.f32.mrb[0].mxu0
  %v5489 = vadd.f32 0.0, %v5488
  %v5490 = vpop.f32.mrb[0].mxu0
  %5491 = vmatprep.mubr.bf16.mxu0 %v5105
  %5492 = vmatmul.mubr.bf16.gmra.mrb[0].mxu0 %v5104
  %v5493 = vpop.f32.mrb[0].mxu0
  %v5494 = vadd.f32 0.0, %v5493
  %v5495 = vpop.f32.mrb[0].mxu0
  %v5496 = vpop.f32.mrb[0].mxu0
  %v5497 = vadd.f32 0.0, %v5496
  %v5498 = vpop.f32.mrb[0].mxu0
  %5499 = vmatprep.mubr.bf16.mxu0 %v5107
  %5500 = vmatmul.mubr.bf16.gmra.mrb[0].mxu0 %v5106
  %v5501 = vpop.f32.mrb[0].mxu0
  %v5502 = vadd.f32 0.0, %v5501
  %v5503 = vpop.f32.mrb[0].mxu0
  %v5504 = vpop.f32.mrb[0].mxu0
  %v5505 = vadd.f32 0.0, %v5504
  %v5506 = vpop.f32.mrb[0].mxu0
  %5507 = vmatprep.mubr.bf16.mxu0 %v5109
  %5508 = vmatmul.mubr.bf16.gmra.mrb[0].mxu0 %v5108
  %v5509 = vpop.f32.mrb[0].mxu0
  %v5510 = vadd.f32 0.0, %v5509
  %v5511 = vpop.f32.mrb[0].mxu0
  %v5512 = vpop.f32.mrb[0].mxu0
  %v5513 = vadd.f32 0.0, %v5512
  %v5514 = vpop.f32.mrb[0].mxu0
  %5515 = vmatprep.mubr.bf16.mxu0 %v5111
  %5516 = vmatmul.mubr.bf16.gmra.mrb[0].mxu0 %v5110
  %v5517 = vpop.f32.mrb[0].mxu0
  %v5518 = vadd.f32 0.0, %v5517
  %v5519 = vpop.f32.mrb[0].mxu0
  %v5520 = vpop.f32.mrb[0].mxu0
  %v5521 = vadd.f32 0.0, %v5520
  %v5522 = vpop.f32.mrb[0].mxu0
  %5523 = vmatprep.mubr.bf16.mxu0 %v5113
  %5524 = vmatmul.mubr.bf16.gmra.mrb[0].mxu0 %v5112
  %v5525 = vpop.f32.mrb[0].mxu0
  %v5526 = vadd.f32 0.0, %v5525
  %v5527 = vpop.f32.mrb[0].mxu0
  %v5528 = vpop.f32.mrb[0].mxu0
  %v5529 = vadd.f32 0.0, %v5528
  %v5530 = vpop.f32.mrb[0].mxu0
  %5531 = vdwg.mxu0
  %v5532 = vadd.f32 %v4298, %v5278
  %v5533 = vadd.f32 %v4299, %v5281
  %v5534 = vadd.f32 %v4300, %v5286
  %v5535 = vadd.f32 %v4301, %v5289
  %v5536 = vadd.f32 %v4302, %v5294
  %v5537 = vadd.f32 %v4303, %v5297
  %v5538 = vadd.f32 %v4304, %v5302
  %v5539 = vadd.f32 %v4305, %v5305
  %v5540 = vadd.f32 %v4306, %v5310
  %v5541 = vadd.f32 %v4307, %v5313
  %v5542 = vadd.f32 %v4308, %v5318
  %v5543 = vadd.f32 %v4309, %v5321
  %v5544 = vadd.f32 %v4310, %v5326
  %v5545 = vadd.f32 %v4311, %v5329
  %v5546 = vadd.f32 %v4312, %v5334
  %v5547 = vadd.f32 %v4313, %v5337
  %v5548 = vadd.f32 %v4314, %v5342
  %v5549 = vadd.f32 %v4315, %v5345
  %v5550 = vadd.f32 %v4316, %v5350
  %v5551 = vadd.f32 %v4317, %v5353
  %v5552 = vadd.f32 %v4318, %v5358
  %v5553 = vadd.f32 %v4319, %v5361
  %v5554 = vadd.f32 %v4320, %v5366
  %v5555 = vadd.f32 %v4321, %v5369
  %v5556 = vadd.f32 %v4322, %v5374
  %v5557 = vadd.f32 %v4323, %v5377
  %v5558 = vadd.f32 %v4324, %v5382
  %v5559 = vadd.f32 %v4325, %v5385
  %v5560 = vadd.f32 %v4326, %v5390
  %v5561 = vadd.f32 %v4327, %v5393
  %v5562 = vadd.f32 %v4328, %v5398
  %v5563 = vadd.f32 %v4329, %v5401
  %v5564 = vadd.f32 %v4330, %v5406
  %v5565 = vadd.f32 %v4331, %v5409
  %v5566 = vadd.f32 %v4332, %v5414
  %v5567 = vadd.f32 %v4333, %v5417
  %v5568 = vadd.f32 %v4334, %v5422
  %v5569 = vadd.f32 %v4335, %v5425
  %v5570 = vadd.f32 %v4336, %v5430
  %v5571 = vadd.f32 %v4337, %v5433
  %v5572 = vadd.f32 %v4338, %v5438
  %v5573 = vadd.f32 %v4339, %v5441
  %v5574 = vadd.f32 %v4340, %v5446
  %v5575 = vadd.f32 %v4341, %v5449
  %v5576 = vadd.f32 %v4342, %v5454
  %v5577 = vadd.f32 %v4343, %v5457
  %v5578 = vadd.f32 %v4344, %v5462
  %v5579 = vadd.f32 %v4345, %v5465
  %v5580 = vadd.f32 %v4346, %v5470
  %v5581 = vadd.f32 %v4347, %v5473
  %v5582 = vadd.f32 %v4348, %v5478
  %v5583 = vadd.f32 %v4349, %v5481
  %v5584 = vadd.f32 %v4350, %v5486
  %v5585 = vadd.f32 %v4351, %v5489
  %v5586 = vadd.f32 %v4352, %v5494
  %v5587 = vadd.f32 %v4353, %v5497
  %v5588 = vadd.f32 %v4354, %v5502
  %v5589 = vadd.f32 %v4355, %v5505
  %v5590 = vadd.f32 %v4356, %v5510
  %v5591 = vadd.f32 %v4357, %v5513
  %v5592 = vadd.f32 %v4358, %v5518
  %v5593 = vadd.f32 %v4359, %v5521
  %v5594 = vadd.f32 %v4360, %v5526
  %v5595 = vadd.f32 %v4361, %v5529
  %v5596 = vld [vmem:[#allocation2 + $0x10] sm:$0xfc]
  %v5597 = vld [vmem:[#allocation2 + $0x18] sm:$0xfc]
  %v5598 = vld [vmem:[#allocation2 + $0x90] sm:$0x3]
  %v5599 = vld [vmem:[#allocation2 + $0x98] sm:$0x3]
  %v5600 = vld [vmem:[#allocation2 + $0xd0] sm:$0xfc]
  %v5601 = vld [vmem:[#allocation2 + $0xd8] sm:$0xfc]
  %v5602 = vld [vmem:[#allocation2 + $0x150] sm:$0x3]
  %v5603 = vld [vmem:[#allocation2 + $0x158] sm:$0x3]
  %v5604 = vld [vmem:[#allocation2 + $0x190] sm:$0xfc]
  %v5605 = vld [vmem:[#allocation2 + $0x198] sm:$0xfc]
  %v5606 = vld [vmem:[#allocation2 + $0x210] sm:$0x3]
  %v5607 = vld [vmem:[#allocation2 + $0x218] sm:$0x3]
  %v5608 = vld [vmem:[#allocation2 + $0x250] sm:$0xfc]
  %v5609 = vld [vmem:[#allocation2 + $0x258] sm:$0xfc]
  %v5610 = vld [vmem:[#allocation2 + $0x2d0] sm:$0x3]
  %v5611 = vld [vmem:[#allocation2 + $0x2d8] sm:$0x3]
  %v5612 = vld [vmem:[#allocation2 + $0x310] sm:$0xfc]
  %v5613 = vld [vmem:[#allocation2 + $0x318] sm:$0xfc]
  %v5614 = vld [vmem:[#allocation2 + $0x390] sm:$0x3]
  %v5615 = vld [vmem:[#allocation2 + $0x398] sm:$0x3]
  %v5616 = vld [vmem:[#allocation2 + $0x3d0] sm:$0xfc]
  %v5617 = vld [vmem:[#allocation2 + $0x3d8] sm:$0xfc]
  %v5618 = vld [vmem:[#allocation2 + $0x450] sm:$0x3]
  %v5619 = vld [vmem:[#allocation2 + $0x458] sm:$0x3]
  %v5620 = vld [vmem:[#allocation2 + $0x490] sm:$0xfc]
  %v5621 = vld [vmem:[#allocation2 + $0x498] sm:$0xfc]
  %v5622 = vld [vmem:[#allocation2 + $0x510] sm:$0x3]
  %v5623 = vld [vmem:[#allocation2 + $0x518] sm:$0x3]
  %v5624 = vld [vmem:[#allocation2 + $0x550] sm:$0xfc]
  %v5625 = vld [vmem:[#allocation2 + $0x558] sm:$0xfc]
  %v5626 = vld [vmem:[#allocation2 + $0x5d0] sm:$0x3]
  %v5627 = vld [vmem:[#allocation2 + $0x5d8] sm:$0x3]
  %v5660 = vrot.slane %v5596, 2
  %v5661 = vrot.slane %v4364, 2
  %v5662 = vsel %vm3415, %v5660, %v5661
  %v5663 = vrot.slane %v5597, 2
  %v5664 = vrot.slane %v4365, 2
  %v5665 = vsel %vm3415, %v5663, %v5664
  %v5666 = vrot.slane %v4366, 2
  %v5667 = vsel %vm3415, %v5661, %v5666
  %v5668 = vrot.slane %v4367, 2
  %v5669 = vsel %vm3415, %v5664, %v5668
  %v5670 = vrot.slane %v4368, 2
  %v5671 = vsel %vm3415, %v5666, %v5670
  %v5672 = vrot.slane %v4369, 2
  %v5673 = vsel %vm3415, %v5668, %v5672
  %v5674 = vrot.slane %v4370, 2
  %v5675 = vsel %vm3415, %v5670, %v5674
  %v5676 = vrot.slane %v4371, 2
  %v5677 = vsel %vm3415, %v5672, %v5676
  %v5678 = vrot.slane %v4372, 2
  %v5679 = vsel %vm3415, %v5674, %v5678
  %v5680 = vrot.slane %v4373, 2
  %v5681 = vsel %vm3415, %v5676, %v5680
  %v5682 = vrot.slane %v4374, 2
  %v5683 = vsel %vm3415, %v5678, %v5682
  %v5684 = vrot.slane %v4375, 2
  %v5685 = vsel %vm3415, %v5680, %v5684
  %v5686 = vrot.slane %v4376, 2
  %v5687 = vsel %vm3415, %v5682, %v5686
  %v5688 = vrot.slane %v4377, 2
  %v5689 = vsel %vm3415, %v5684, %v5688
  %v5690 = vrot.slane %v5598, 2
  %v5691 = vsel %vm3415, %v5686, %v5690
  %v5692 = vrot.slane %v5599, 2
  %v5693 = vsel %vm3415, %v5688, %v5692
  %v5694 = vrot.slane %v5600, 2
  %v5695 = vrot.slane %v4382, 2
  %v5696 = vsel %vm3415, %v5694, %v5695
  %v5697 = vrot.slane %v5601, 2
  %v5698 = vrot.slane %v4383, 2
  %v5699 = vsel %vm3415, %v5697, %v5698
  %v5700 = vrot.slane %v4384, 2
  %v5701 = vsel %vm3415, %v5695, %v5700
  %v5702 = vrot.slane %v4385, 2
  %v5703 = vsel %vm3415, %v5698, %v5702
  %v5704 = vrot.slane %v4386, 2
  %v5705 = vsel %vm3415, %v5700, %v5704
  %v5706 = vrot.slane %v4387, 2
  %v5707 = vsel %vm3415, %v5702, %v5706
  %v5708 = vrot.slane %v4388, 2
  %v5709 = vsel %vm3415, %v5704, %v5708
  %v5710 = vrot.slane %v4389, 2
  %v5711 = vsel %vm3415, %v5706, %v5710
  %v5712 = vrot.slane %v4390, 2
  %v5713 = vsel %vm3415, %v5708, %v5712
  %v5714 = vrot.slane %v4391, 2
  %v5715 = vsel %vm3415, %v5710, %v5714
  %v5716 = vrot.slane %v4392, 2
  %v5717 = vsel %vm3415, %v5712, %v5716
  %v5718 = vrot.slane %v4393, 2
  %v5719 = vsel %vm3415, %v5714, %v5718
  %v5720 = vrot.slane %v4394, 2
  %v5721 = vsel %vm3415, %v5716, %v5720
  %v5722 = vrot.slane %v4395, 2
  %v5723 = vsel %vm3415, %v5718, %v5722
  %v5724 = vrot.slane %v5602, 2
  %v5725 = vsel %vm3415, %v5720, %v5724
  %v5726 = vrot.slane %v5603, 2
  %v5727 = vsel %vm3415, %v5722, %v5726
  %v5728 = vrot.slane %v5604, 2
  %v5729 = vrot.slane %v4400, 2
  %v5730 = vsel %vm3415, %v5728, %v5729
  %v5731 = vrot.slane %v5605, 2
  %v5732 = vrot.slane %v4401, 2
  %v5733 = vsel %vm3415, %v5731, %v5732
  %v5734 = vrot.slane %v4402, 2
  %v5735 = vsel %vm3415, %v5729, %v5734
  %v5736 = vrot.slane %v4403, 2
  %v5737 = vsel %vm3415, %v5732, %v5736
  %v5738 = vrot.slane %v4404, 2
  %v5739 = vsel %vm3415, %v5734, %v5738
  %v5740 = vrot.slane %v4405, 2
  %v5741 = vsel %vm3415, %v5736, %v5740
  %v5742 = vrot.slane %v4406, 2
  %v5743 = vsel %vm3415, %v5738, %v5742
  %v5744 = vrot.slane %v4407, 2
  %v5745 = vsel %vm3415, %v5740, %v5744
  %v5746 = vrot.slane %v4408, 2
  %v5747 = vsel %vm3415, %v5742, %v5746
  %v5748 = vrot.slane %v4409, 2
  %v5749 = vsel %vm3415, %v5744, %v5748
  %v5750 = vrot.slane %v4410, 2
  %v5751 = vsel %vm3415, %v5746, %v5750
  %v5752 = vrot.slane %v4411, 2
  %v5753 = vsel %vm3415, %v5748, %v5752
  %v5754 = vrot.slane %v4412, 2
  %v5755 = vsel %vm3415, %v5750, %v5754
  %v5756 = vrot.slane %v4413, 2
  %v5757 = vsel %vm3415, %v5752, %v5756
  %v5758 = vrot.slane %v5606, 2
  %v5759 = vsel %vm3415, %v5754, %v5758
  %v5760 = vrot.slane %v5607, 2
  %v5761 = vsel %vm3415, %v5756, %v5760
  %v5762 = vrot.slane %v5608, 2
  %v5763 = vrot.slane %v4418, 2
  %v5764 = vsel %vm3415, %v5762, %v5763
  %v5765 = vrot.slane %v5609, 2
  %v5766 = vrot.slane %v4419, 2
  %v5767 = vsel %vm3415, %v5765, %v5766
  %v5768 = vrot.slane %v4420, 2
  %v5769 = vsel %vm3415, %v5763, %v5768
  %v5770 = vrot.slane %v4421, 2
  %v5771 = vsel %vm3415, %v5766, %v5770
  %v5772 = vrot.slane %v4422, 2
  %v5773 = vsel %vm3415, %v5768, %v5772
  %v5774 = vrot.slane %v4423, 2
  %v5775 = vsel %vm3415, %v5770, %v5774
  %v5776 = vrot.slane %v4424, 2
  %v5777 = vsel %vm3415, %v5772, %v5776
  %v5778 = vrot.slane %v4425, 2
  %v5779 = vsel %vm3415, %v5774, %v5778
  %v5780 = vrot.slane %v4426, 2
  %v5781 = vsel %vm3415, %v5776, %v5780
  %v5782 = vrot.slane %v4427, 2
  %v5783 = vsel %vm3415, %v5778, %v5782
  %v5784 = vrot.slane %v4428, 2
  %v5785 = vsel %vm3415, %v5780, %v5784
  %v5786 = vrot.slane %v4429, 2
  %v5787 = vsel %vm3415, %v5782, %v5786
  %v5788 = vrot.slane %v4430, 2
  %v5789 = vsel %vm3415, %v5784, %v5788
  %v5790 = vrot.slane %v4431, 2
  %v5791 = vsel %vm3415, %v5786, %v5790
  %v5792 = vrot.slane %v5610, 2
  %v5793 = vsel %vm3415, %v5788, %v5792
  %v5794 = vrot.slane %v5611, 2
  %v5795 = vsel %vm3415, %v5790, %v5794
  %v5796 = vrot.slane %v5612, 2
  %v5797 = vrot.slane %v4436, 2
  %v5798 = vsel %vm3415, %v5796, %v5797
  %v5799 = vrot.slane %v5613, 2
  %v5800 = vrot.slane %v4437, 2
  %v5801 = vsel %vm3415, %v5799, %v5800
  %v5802 = vrot.slane %v4438, 2
  %v5803 = vsel %vm3415, %v5797, %v5802
  %v5804 = vrot.slane %v4439, 2
  %v5805 = vsel %vm3415, %v5800, %v5804
  %v5806 = vrot.slane %v4440, 2
  %v5807 = vsel %vm3415, %v5802, %v5806
  %v5808 = vrot.slane %v4441, 2
  %v5809 = vsel %vm3415, %v5804, %v5808
  %v5810 = vrot.slane %v4442, 2
  %v5811 = vsel %vm3415, %v5806, %v5810
  %v5812 = vrot.slane %v4443, 2
  %v5813 = vsel %vm3415, %v5808, %v5812
  %v5814 = vrot.slane %v4444, 2
  %v5815 = vsel %vm3415, %v5810, %v5814
  %v5816 = vrot.slane %v4445, 2
  %v5817 = vsel %vm3415, %v5812, %v5816
  %v5818 = vrot.slane %v4446, 2
  %v5819 = vsel %vm3415, %v5814, %v5818
  %v5820 = vrot.slane %v4447, 2
  %v5821 = vsel %vm3415, %v5816, %v5820
  %v5822 = vrot.slane %v4448, 2
  %v5823 = vsel %vm3415, %v5818, %v5822
  %v5824 = vrot.slane %v4449, 2
  %v5825 = vsel %vm3415, %v5820, %v5824
  %v5826 = vrot.slane %v5614, 2
  %v5827 = vsel %vm3415, %v5822, %v5826
  %v5828 = vrot.slane %v5615, 2
  %v5829 = vsel %vm3415, %v5824, %v5828
  %v5830 = vrot.slane %v5616, 2
  %v5831 = vrot.slane %v4454, 2
  %v5832 = vsel %vm3415, %v5830, %v5831
  %v5833 = vrot.slane %v5617, 2
  %v5834 = vrot.slane %v4455, 2
  %v5835 = vsel %vm3415, %v5833, %v5834
  %v5836 = vrot.slane %v4456, 2
  %v5837 = vsel %vm3415, %v5831, %v5836
  %v5838 = vrot.slane %v4457, 2
  %v5839 = vsel %vm3415, %v5834, %v5838
  %v5840 = vrot.slane %v4458, 2
  %v5841 = vsel %vm3415, %v5836, %v5840
  %v5842 = vrot.slane %v4459, 2
  %v5843 = vsel %vm3415, %v5838, %v5842
  %v5844 = vrot.slane %v4460, 2
  %v5845 = vsel %vm3415, %v5840, %v5844
  %v5846 = vrot.slane %v4461, 2
  %v5847 = vsel %vm3415, %v5842, %v5846
  %v5848 = vrot.slane %v4462, 2
  %v5849 = vsel %vm3415, %v5844, %v5848
  %v5850 = vrot.slane %v4463, 2
  %v5851 = vsel %vm3415, %v5846, %v5850
  %v5852 = vrot.slane %v4464, 2
  %v5853 = vsel %vm3415, %v5848, %v5852
  %v5854 = vrot.slane %v4465, 2
  %v5855 = vsel %vm3415, %v5850, %v5854
  %v5856 = vrot.slane %v4466, 2
  %v5857 = vsel %vm3415, %v5852, %v5856
  %v5858 = vrot.slane %v4467, 2
  %v5859 = vsel %vm3415, %v5854, %v5858
  %v5860 = vrot.slane %v5618, 2
  %v5861 = vsel %vm3415, %v5856, %v5860
  %v5862 = vrot.slane %v5619, 2
  %v5863 = vsel %vm3415, %v5858, %v5862
  %v5864 = vrot.slane %v5620, 2
  %v5865 = vrot.slane %v4472, 2
  %v5866 = vsel %vm3415, %v5864, %v5865
  %v5867 = vrot.slane %v5621, 2
  %v5868 = vrot.slane %v4473, 2
  %v5869 = vsel %vm3415, %v5867, %v5868
  %v5870 = vrot.slane %v4474, 2
  %v5871 = vsel %vm3415, %v5865, %v5870
  %v5872 = vrot.slane %v4475, 2
  %v5873 = vsel %vm3415, %v5868, %v5872
  %v5874 = vrot.slane %v4476, 2
  %v5875 = vsel %vm3415, %v5870, %v5874
  %v5876 = vrot.slane %v4477, 2
  %v5877 = vsel %vm3415, %v5872, %v5876
  %v5878 = vrot.slane %v4478, 2
  %v5879 = vsel %vm3415, %v5874, %v5878
  %v5880 = vrot.slane %v4479, 2
  %v5881 = vsel %vm3415, %v5876, %v5880
  %v5882 = vrot.slane %v4480, 2
  %v5883 = vsel %vm3415, %v5878, %v5882
  %v5884 = vrot.slane %v4481, 2
  %v5885 = vsel %vm3415, %v5880, %v5884
  %v5886 = vrot.slane %v4482, 2
  %v5887 = vsel %vm3415, %v5882, %v5886
  %v5888 = vrot.slane %v4483, 2
  %v5889 = vsel %vm3415, %v5884, %v5888
  %v5890 = vrot.slane %v4484, 2
  %v5891 = vsel %vm3415, %v5886, %v5890
  %v5892 = vrot.slane %v4485, 2
  %v5893 = vsel %vm3415, %v5888, %v5892
  %v5894 = vrot.slane %v5622, 2
  %v5895 = vsel %vm3415, %v5890, %v5894
  %v5896 = vrot.slane %v5623, 2
  %v5897 = vsel %vm3415, %v5892, %v5896
  %v5898 = vrot.slane %v5624, 2
  %v5899 = vrot.slane %v4490, 2
  %v5900 = vsel %vm3415, %v5898, %v5899
  %v5901 = vrot.slane %v5625, 2
  %v5902 = vrot.slane %v4491, 2
  %v5903 = vsel %vm3415, %v5901, %v5902
  %v5904 = vrot.slane %v4492, 2
  %v5905 = vsel %vm3415, %v5899, %v5904
  %v5906 = vrot.slane %v4493, 2
  %v5907 = vsel %vm3415, %v5902, %v5906
  %v5908 = vrot.slane %v4494, 2
  %v5909 = vsel %vm3415, %v5904, %v5908
  %v5910 = vrot.slane %v4495, 2
  %v5911 = vsel %vm3415, %v5906, %v5910
  %v5912 = vrot.slane %v4496, 2
  %v5913 = vsel %vm3415, %v5908, %v5912
  %v5914 = vrot.slane %v4497, 2
  %v5915 = vsel %vm3415, %v5910, %v5914
  %v5916 = vrot.slane %v4498, 2
  %v5917 = vsel %vm3415, %v5912, %v5916
  %v5918 = vrot.slane %v4499, 2
  %v5919 = vsel %vm3415, %v5914, %v5918
  %v5920 = vrot.slane %v4500, 2
  %v5921 = vsel %vm3415, %v5916, %v5920
  %v5922 = vrot.slane %v4501, 2
  %v5923 = vsel %vm3415, %v5918, %v5922
  %v5924 = vrot.slane %v4502, 2
  %v5925 = vsel %vm3415, %v5920, %v5924
  %v5926 = vrot.slane %v4503, 2
  %v5927 = vsel %vm3415, %v5922, %v5926
  %v5928 = vrot.slane %v5626, 2
  %v5929 = vsel %vm3415, %v5924, %v5928
  %v5930 = vrot.slane %v5627, 2
  %v5931 = vsel %vm3415, %v5926, %v5930
  %v6060 = vpack.c.bf16 %v5667, %v5662
  %v6061 = vpack.c.bf16 %v5669, %v5665
  %v6062 = vpack.c.bf16 %v5675, %v5671
  %v6063 = vpack.c.bf16 %v5677, %v5673
  %v6064 = vpack.c.bf16 %v5683, %v5679
  %v6065 = vpack.c.bf16 %v5685, %v5681
  %v6066 = vpack.c.bf16 %v5691, %v5687
  %v6067 = vpack.c.bf16 %v5693, %v5689
  %v6068 = vpack.c.bf16 %v5701, %v5696
  %v6069 = vpack.c.bf16 %v5703, %v5699
  %v6070 = vpack.c.bf16 %v5709, %v5705
  %v6071 = vpack.c.bf16 %v5711, %v5707
  %v6072 = vpack.c.bf16 %v5717, %v5713
  %v6073 = vpack.c.bf16 %v5719, %v5715
  %v6074 = vpack.c.bf16 %v5725, %v5721
  %v6075 = vpack.c.bf16 %v5727, %v5723
  %v6076 = vpack.c.bf16 %v5735, %v5730
  %v6077 = vpack.c.bf16 %v5737, %v5733
  %v6078 = vpack.c.bf16 %v5743, %v5739
  %v6079 = vpack.c.bf16 %v5745, %v5741
  %v6080 = vpack.c.bf16 %v5751, %v5747
  %v6081 = vpack.c.bf16 %v5753, %v5749
  %v6082 = vpack.c.bf16 %v5759, %v5755
  %v6083 = vpack.c.bf16 %v5761, %v5757
  %v6084 = vpack.c.bf16 %v5769, %v5764
  %v6085 = vpack.c.bf16 %v5771, %v5767
  %v6086 = vpack.c.bf16 %v5777, %v5773
  %v6087 = vpack.c.bf16 %v5779, %v5775
  %v6088 = vpack.c.bf16 %v5785, %v5781
  %v6089 = vpack.c.bf16 %v5787, %v5783
  %v6090 = vpack.c.bf16 %v5793, %v5789
  %v6091 = vpack.c.bf16 %v5795, %v5791
  %v6092 = vpack.c.bf16 %v5803, %v5798
  %v6093 = vpack.c.bf16 %v5805, %v5801
  %v6094 = vpack.c.bf16 %v5811, %v5807
  %v6095 = vpack.c.bf16 %v5813, %v5809
  %v6096 = vpack.c.bf16 %v5819, %v5815
  %v6097 = vpack.c.bf16 %v5821, %v5817
  %v6098 = vpack.c.bf16 %v5827, %v5823
  %v6099 = vpack.c.bf16 %v5829, %v5825
  %v6100 = vpack.c.bf16 %v5837, %v5832
  %v6101 = vpack.c.bf16 %v5839, %v5835
  %v6102 = vpack.c.bf16 %v5845, %v5841
  %v6103 = vpack.c.bf16 %v5847, %v5843
  %v6104 = vpack.c.bf16 %v5853, %v5849
  %v6105 = vpack.c.bf16 %v5855, %v5851
  %v6106 = vpack.c.bf16 %v5861, %v5857
  %v6107 = vpack.c.bf16 %v5863, %v5859
  %v6108 = vpack.c.bf16 %v5871, %v5866
  %v6109 = vpack.c.bf16 %v5873, %v5869
  %v6110 = vpack.c.bf16 %v5879, %v5875
  %v6111 = vpack.c.bf16 %v5881, %v5877
  %v6112 = vpack.c.bf16 %v5887, %v5883
  %v6113 = vpack.c.bf16 %v5889, %v5885
  %v6114 = vpack.c.bf16 %v5895, %v5891
  %v6115 = vpack.c.bf16 %v5897, %v5893
  %v6116 = vpack.c.bf16 %v5905, %v5900
  %v6117 = vpack.c.bf16 %v5907, %v5903
  %v6118 = vpack.c.bf16 %v5913, %v5909
  %v6119 = vpack.c.bf16 %v5915, %v5911
  %v6120 = vpack.c.bf16 %v5921, %v5917
  %v6121 = vpack.c.bf16 %v5923, %v5919
  %v6122 = vpack.c.bf16 %v5929, %v5925
  %v6123 = vpack.c.bf16 %v5931, %v5927
  %s6124 = scalar_lea.vmem %s4, 512
  %v6125 = vld [vmem:[%s6124] sm:$0xf]
  %v6126 = vld [vmem:[%s6124 + $0x4] sm:$0xf]
  %v6127 = vld [vmem:[%s6124 + $0x8] sm:$0xf]
  %v6128 = vld [vmem:[%s6124 + $0xc] sm:$0xf]
  %v6129 = vld [vmem:[%s6124 + $0x10] sm:$0xf]
  %v6130 = vld [vmem:[%s6124 + $0x14] sm:$0xf]
  %v6131 = vld [vmem:[%s6124 + $0x18] sm:$0xf]
  %v6132 = vld [vmem:[%s6124 + $0x1c] sm:$0xf]
  %v6133 = vld [vmem:[%s6124 + $0x20] sm:$0xf]
  %v6134 = vld [vmem:[%s6124 + $0x24] sm:$0xf]
  %v6135 = vld [vmem:[%s6124 + $0x28] sm:$0xf]
  %v6136 = vld [vmem:[%s6124 + $0x2c] sm:$0xf]
  %v6137 = vld [vmem:[%s6124 + $0x30] sm:$0xf]
  %v6138 = vld [vmem:[%s6124 + $0x34] sm:$0xf]
  %v6139 = vld [vmem:[%s6124 + $0x38] sm:$0xf]
  %v6140 = vld [vmem:[%s6124 + $0x3c] sm:$0xf]
  %v6141 = vld [vmem:[%s6124 + $0x40] sm:$0xf]
  %v6142 = vld [vmem:[%s6124 + $0x44] sm:$0xf]
  %v6143 = vld [vmem:[%s6124 + $0x48] sm:$0xf]
  %v6144 = vld [vmem:[%s6124 + $0x4c] sm:$0xf]
  %v6145 = vld [vmem:[%s6124 + $0x50] sm:$0xf]
  %v6146 = vld [vmem:[%s6124 + $0x54] sm:$0xf]
  %v6147 = vld [vmem:[%s6124 + $0x58] sm:$0xf]
  %v6148 = vld [vmem:[%s6124 + $0x5c] sm:$0xf]
  %v6149 = vld [vmem:[%s6124 + $0x60] sm:$0xf]
  %v6150 = vld [vmem:[%s6124 + $0x64] sm:$0xf]
  %v6151 = vld [vmem:[%s6124 + $0x68] sm:$0xf]
  %v6152 = vld [vmem:[%s6124 + $0x6c] sm:$0xf]
  %v6153 = vld [vmem:[%s6124 + $0x70] sm:$0xf]
  %v6154 = vld [vmem:[%s6124 + $0x74] sm:$0xf]
  %v6155 = vld [vmem:[%s6124 + $0x78] sm:$0xf]
  %v6156 = vld [vmem:[%s6124 + $0x7c] sm:$0xf]
  %v6189 = vunpack.c.l.b16 %v6125
  %v6190 = vunpack.c.l.b16 %v6126
  %v6191 = vunpack.c.l.b16 %v6127
  %v6192 = vunpack.c.l.b16 %v6128
  %v6193 = vunpack.c.l.b16 %v6129
  %v6194 = vunpack.c.l.b16 %v6130
  %v6195 = vunpack.c.l.b16 %v6131
  %v6196 = vunpack.c.l.b16 %v6132
  %v6197 = vunpack.c.l.b16 %v6133
  %v6198 = vunpack.c.l.b16 %v6134
  %v6199 = vunpack.c.l.b16 %v6135
  %v6200 = vunpack.c.l.b16 %v6136
  %v6201 = vunpack.c.l.b16 %v6137
  %v6202 = vunpack.c.l.b16 %v6138
  %v6203 = vunpack.c.l.b16 %v6139
  %v6204 = vunpack.c.l.b16 %v6140
  %v6205 = vunpack.c.l.b16 %v6141
  %v6206 = vunpack.c.l.b16 %v6142
  %v6207 = vunpack.c.l.b16 %v6143
  %v6208 = vunpack.c.l.b16 %v6144
  %v6209 = vunpack.c.l.b16 %v6145
  %v6210 = vunpack.c.l.b16 %v6146
  %v6211 = vunpack.c.l.b16 %v6147
  %v6212 = vunpack.c.l.b16 %v6148
  %v6213 = vunpack.c.l.b16 %v6149
  %v6214 = vunpack.c.l.b16 %v6150
  %v6215 = vunpack.c.l.b16 %v6151
  %v6216 = vunpack.c.l.b16 %v6152
  %v6217 = vunpack.c.l.b16 %v6153
  %v6218 = vunpack.c.l.b16 %v6154
  %v6219 = vunpack.c.l.b16 %v6155
  %v6220 = vunpack.c.l.b16 %v6156
  %v6221 = vpack.c.b16 %v6190, %v6189
  %v6222 = vpack.c.b16 %v6192, %v6191
  %v6223 = vpack.c.b16 %v6194, %v6193
  %v6224 = vpack.c.b16 %v6196, %v6195
  %v6225 = vpack.c.b16 %v6198, %v6197
  %v6226 = vpack.c.b16 %v6200, %v6199
  %v6227 = vpack.c.b16 %v6202, %v6201
  %v6228 = vpack.c.b16 %v6204, %v6203
  %v6229 = vpack.c.b16 %v6206, %v6205
  %v6230 = vpack.c.b16 %v6208, %v6207
  %v6231 = vpack.c.b16 %v6210, %v6209
  %v6232 = vpack.c.b16 %v6212, %v6211
  %v6233 = vpack.c.b16 %v6214, %v6213
  %v6234 = vpack.c.b16 %v6216, %v6215
  %v6235 = vpack.c.b16 %v6218, %v6217
  %v6236 = vpack.c.b16 %v6220, %v6219
  %6253 = vmatprep.subr.bf16.mxu0 0
  %6254 = vmatpush1.bf16.msra.mxu0 %v6221
  %6255 = vmatprep.subr.bf16.mxu0 0
  %6256 = vmatpush1.bf16.msra.mxu0 %v6222
  %6257 = vmatprep.subr.bf16.mxu0 0
  %6258 = vmatpush1.bf16.msra.mxu0 %v6223
  %6259 = vmatprep.subr.bf16.mxu0 0
  %6260 = vmatpush1.bf16.msra.mxu0 %v6224
  %6261 = vmatprep.subr.bf16.mxu0 0
  %6262 = vmatpush1.bf16.msra.mxu0 %v6225
  %6263 = vmatprep.subr.bf16.mxu0 0
  %6264 = vmatpush1.bf16.msra.mxu0 %v6226
  %6265 = vmatprep.subr.bf16.mxu0 0
  %6266 = vmatpush1.bf16.msra.mxu0 %v6227
  %6267 = vmatprep.subr.bf16.mxu0 0
  %6268 = vmatpush1.bf16.msra.mxu0 %v6228
  %6269 = vmatprep.subr.bf16.mxu0 0
  %6270 = vmatpush1.bf16.msra.mxu0 %v6229
  %6271 = vmatprep.subr.bf16.mxu0 0
  %6272 = vmatpush1.bf16.msra.mxu0 %v6230
  %6273 = vmatprep.subr.bf16.mxu0 0
  %6274 = vmatpush1.bf16.msra.mxu0 %v6231
  %6275 = vmatprep.subr.bf16.mxu0 0
  %6276 = vmatpush1.bf16.msra.mxu0 %v6232
  %6277 = vmatprep.subr.bf16.mxu0 0
  %6278 = vmatpush1.bf16.msra.mxu0 %v6233
  %6279 = vmatprep.subr.bf16.mxu0 0
  %6280 = vmatpush1.bf16.msra.mxu0 %v6234
  %6281 = vmatprep.subr.bf16.mxu0 0
  %6282 = vmatpush1.bf16.msra.mxu0 %v6235
  %6283 = vmatprep.subr.bf16.mxu0 0
  %6284 = vmatpush1.bf16.msra.mxu0 %v6236
  %6285 = vmatprep.mubr.bf16.mxu0 %v6061
  %6286 = vmatmul.mubr.bf16.gmra.mrb[0].mxu0 %v6060
  %v6287 = vpop.f32.mrb[0].mxu0
  %v6288 = vadd.f32 0.0, %v6287
  %v6289 = vpop.f32.mrb[0].mxu0
  %v6290 = vpop.f32.mrb[0].mxu0
  %v6291 = vadd.f32 0.0, %v6290
  %v6292 = vpop.f32.mrb[0].mxu0
  %6293 = vmatprep.mubr.bf16.mxu0 %v6063
  %6294 = vmatmul.mubr.bf16.gmra.mrb[0].mxu0 %v6062
  %v6295 = vpop.f32.mrb[0].mxu0
  %v6296 = vadd.f32 0.0, %v6295
  %v6297 = vpop.f32.mrb[0].mxu0
  %v6298 = vpop.f32.mrb[0].mxu0
  %v6299 = vadd.f32 0.0, %v6298
  %v6300 = vpop.f32.mrb[0].mxu0
  %6301 = vmatprep.mubr.bf16.mxu0 %v6065
  %6302 = vmatmul.mubr.bf16.gmra.mrb[0].mxu0 %v6064
  %v6303 = vpop.f32.mrb[0].mxu0
  %v6304 = vadd.f32 0.0, %v6303
  %v6305 = vpop.f32.mrb[0].mxu0
  %v6306 = vpop.f32.mrb[0].mxu0
  %v6307 = vadd.f32 0.0, %v6306
  %v6308 = vpop.f32.mrb[0].mxu0
  %6309 = vmatprep.mubr.bf16.mxu0 %v6067
  %6310 = vmatmul.mubr.bf16.gmra.mrb[0].mxu0 %v6066
  %v6311 = vpop.f32.mrb[0].mxu0
  %v6312 = vadd.f32 0.0, %v6311
  %v6313 = vpop.f32.mrb[0].mxu0
  %v6314 = vpop.f32.mrb[0].mxu0
  %v6315 = vadd.f32 0.0, %v6314
  %v6316 = vpop.f32.mrb[0].mxu0
  %6317 = vmatprep.mubr.bf16.mxu0 %v6069
  %6318 = vmatmul.mubr.bf16.gmra.mrb[0].mxu0 %v6068
  %v6319 = vpop.f32.mrb[0].mxu0
  %v6320 = vadd.f32 0.0, %v6319
  %v6321 = vpop.f32.mrb[0].mxu0
  %v6322 = vpop.f32.mrb[0].mxu0
  %v6323 = vadd.f32 0.0, %v6322
  %v6324 = vpop.f32.mrb[0].mxu0
  %6325 = vmatprep.mubr.bf16.mxu0 %v6071
  %6326 = vmatmul.mubr.bf16.gmra.mrb[0].mxu0 %v6070
  %v6327 = vpop.f32.mrb[0].mxu0
  %v6328 = vadd.f32 0.0, %v6327
  %v6329 = vpop.f32.mrb[0].mxu0
  %v6330 = vpop.f32.mrb[0].mxu0
  %v6331 = vadd.f32 0.0, %v6330
  %v6332 = vpop.f32.mrb[0].mxu0
  %6333 = vmatprep.mubr.bf16.mxu0 %v6073
  %6334 = vmatmul.mubr.bf16.gmra.mrb[0].mxu0 %v6072
  %v6335 = vpop.f32.mrb[0].mxu0
  %v6336 = vadd.f32 0.0, %v6335
  %v6337 = vpop.f32.mrb[0].mxu0
  %v6338 = vpop.f32.mrb[0].mxu0
  %v6339 = vadd.f32 0.0, %v6338
  %v6340 = vpop.f32.mrb[0].mxu0
  %6341 = vmatprep.mubr.bf16.mxu0 %v6075
  %6342 = vmatmul.mubr.bf16.gmra.mrb[0].mxu0 %v6074
  %v6343 = vpop.f32.mrb[0].mxu0
  %v6344 = vadd.f32 0.0, %v6343
  %v6345 = vpop.f32.mrb[0].mxu0
  %v6346 = vpop.f32.mrb[0].mxu0
  %v6347 = vadd.f32 0.0, %v6346
  %v6348 = vpop.f32.mrb[0].mxu0
  %6349 = vmatprep.mubr.bf16.mxu0 %v6077
  %6350 = vmatmul.mubr.bf16.gmra.mrb[0].mxu0 %v6076
  %v6351 = vpop.f32.mrb[0].mxu0
  %v6352 = vadd.f32 0.0, %v6351
  %v6353 = vpop.f32.mrb[0].mxu0
  %v6354 = vpop.f32.mrb[0].mxu0
  %v6355 = vadd.f32 0.0, %v6354
  %v6356 = vpop.f32.mrb[0].mxu0
  %6357 = vmatprep.mubr.bf16.mxu0 %v6079
  %6358 = vmatmul.mubr.bf16.gmra.mrb[0].mxu0 %v6078
  %v6359 = vpop.f32.mrb[0].mxu0
  %v6360 = vadd.f32 0.0, %v6359
  %v6361 = vpop.f32.mrb[0].mxu0
  %v6362 = vpop.f32.mrb[0].mxu0
  %v6363 = vadd.f32 0.0, %v6362
  %v6364 = vpop.f32.mrb[0].mxu0
  %6365 = vmatprep.mubr.bf16.mxu0 %v6081
  %6366 = vmatmul.mubr.bf16.gmra.mrb[0].mxu0 %v6080
  %v6367 = vpop.f32.mrb[0].mxu0
  %v6368 = vadd.f32 0.0, %v6367
  %v6369 = vpop.f32.mrb[0].mxu0
  %v6370 = vpop.f32.mrb[0].mxu0
  %v6371 = vadd.f32 0.0, %v6370
  %v6372 = vpop.f32.mrb[0].mxu0
  %6373 = vmatprep.mubr.bf16.mxu0 %v6083
  %6374 = vmatmul.mubr.bf16.gmra.mrb[0].mxu0 %v6082
  %v6375 = vpop.f32.mrb[0].mxu0
  %v6376 = vadd.f32 0.0, %v6375
  %v6377 = vpop.f32.mrb[0].mxu0
  %v6378 = vpop.f32.mrb[0].mxu0
  %v6379 = vadd.f32 0.0, %v6378
  %v6380 = vpop.f32.mrb[0].mxu0
  %6381 = vmatprep.mubr.bf16.mxu0 %v6085
  %6382 = vmatmul.mubr.bf16.gmra.mrb[0].mxu0 %v6084
  %v6383 = vpop.f32.mrb[0].mxu0
  %v6384 = vadd.f32 0.0, %v6383
  %v6385 = vpop.f32.mrb[0].mxu0
  %v6386 = vpop.f32.mrb[0].mxu0
  %v6387 = vadd.f32 0.0, %v6386
  %v6388 = vpop.f32.mrb[0].mxu0
  %6389 = vmatprep.mubr.bf16.mxu0 %v6087
  %6390 = vmatmul.mubr.bf16.gmra.mrb[0].mxu0 %v6086
  %v6391 = vpop.f32.mrb[0].mxu0
  %v6392 = vadd.f32 0.0, %v6391
  %v6393 = vpop.f32.mrb[0].mxu0
  %v6394 = vpop.f32.mrb[0].mxu0
  %v6395 = vadd.f32 0.0, %v6394
  %v6396 = vpop.f32.mrb[0].mxu0
  %6397 = vmatprep.mubr.bf16.mxu0 %v6089
  %6398 = vmatmul.mubr.bf16.gmra.mrb[0].mxu0 %v6088
  %v6399 = vpop.f32.mrb[0].mxu0
  %v6400 = vadd.f32 0.0, %v6399
  %v6401 = vpop.f32.mrb[0].mxu0
  %v6402 = vpop.f32.mrb[0].mxu0
  %v6403 = vadd.f32 0.0, %v6402
  %v6404 = vpop.f32.mrb[0].mxu0
  %6405 = vmatprep.mubr.bf16.mxu0 %v6091
  %6406 = vmatmul.mubr.bf16.gmra.mrb[0].mxu0 %v6090
  %v6407 = vpop.f32.mrb[0].mxu0
  %v6408 = vadd.f32 0.0, %v6407
  %v6409 = vpop.f32.mrb[0].mxu0
  %v6410 = vpop.f32.mrb[0].mxu0
  %v6411 = vadd.f32 0.0, %v6410
  %v6412 = vpop.f32.mrb[0].mxu0
  %6413 = vmatprep.mubr.bf16.mxu0 %v6093
  %6414 = vmatmul.mubr.bf16.gmra.mrb[0].mxu0 %v6092
  %v6415 = vpop.f32.mrb[0].mxu0
  %v6416 = vadd.f32 0.0, %v6415
  %v6417 = vpop.f32.mrb[0].mxu0
  %v6418 = vpop.f32.mrb[0].mxu0
  %v6419 = vadd.f32 0.0, %v6418
  %v6420 = vpop.f32.mrb[0].mxu0
  %6421 = vmatprep.mubr.bf16.mxu0 %v6095
  %6422 = vmatmul.mubr.bf16.gmra.mrb[0].mxu0 %v6094
  %v6423 = vpop.f32.mrb[0].mxu0
  %v6424 = vadd.f32 0.0, %v6423
  %v6425 = vpop.f32.mrb[0].mxu0
  %v6426 = vpop.f32.mrb[0].mxu0
  %v6427 = vadd.f32 0.0, %v6426
  %v6428 = vpop.f32.mrb[0].mxu0
  %6429 = vmatprep.mubr.bf16.mxu0 %v6097
  %6430 = vmatmul.mubr.bf16.gmra.mrb[0].mxu0 %v6096
  %v6431 = vpop.f32.mrb[0].mxu0
  %v6432 = vadd.f32 0.0, %v6431
  %v6433 = vpop.f32.mrb[0].mxu0
  %v6434 = vpop.f32.mrb[0].mxu0
  %v6435 = vadd.f32 0.0, %v6434
  %v6436 = vpop.f32.mrb[0].mxu0
  %6437 = vmatprep.mubr.bf16.mxu0 %v6099
  %6438 = vmatmul.mubr.bf16.gmra.mrb[0].mxu0 %v6098
  %v6439 = vpop.f32.mrb[0].mxu0
  %v6440 = vadd.f32 0.0, %v6439
  %v6441 = vpop.f32.mrb[0].mxu0
  %v6442 = vpop.f32.mrb[0].mxu0
  %v6443 = vadd.f32 0.0, %v6442
  %v6444 = vpop.f32.mrb[0].mxu0
  %6445 = vmatprep.mubr.bf16.mxu0 %v6101
  %6446 = vmatmul.mubr.bf16.gmra.mrb[0].mxu0 %v6100
  %v6447 = vpop.f32.mrb[0].mxu0
  %v6448 = vadd.f32 0.0, %v6447
  %v6449 = vpop.f32.mrb[0].mxu0
  %v6450 = vpop.f32.mrb[0].mxu0
  %v6451 = vadd.f32 0.0, %v6450
  %v6452 = vpop.f32.mrb[0].mxu0
  %6453 = vmatprep.mubr.bf16.mxu0 %v6103
  %6454 = vmatmul.mubr.bf16.gmra.mrb[0].mxu0 %v6102
  %v6455 = vpop.f32.mrb[0].mxu0
  %v6456 = vadd.f32 0.0, %v6455
  %v6457 = vpop.f32.mrb[0].mxu0
  %v6458 = vpop.f32.mrb[0].mxu0
  %v6459 = vadd.f32 0.0, %v6458
  %v6460 = vpop.f32.mrb[0].mxu0
  %6461 = vmatprep.mubr.bf16.mxu0 %v6105
  %6462 = vmatmul.mubr.bf16.gmra.mrb[0].mxu0 %v6104
  %v6463 = vpop.f32.mrb[0].mxu0
  %v6464 = vadd.f32 0.0, %v6463
  %v6465 = vpop.f32.mrb[0].mxu0
  %v6466 = vpop.f32.mrb[0].mxu0
  %v6467 = vadd.f32 0.0, %v6466
  %v6468 = vpop.f32.mrb[0].mxu0
  %6469 = vmatprep.mubr.bf16.mxu0 %v6107
  %6470 = vmatmul.mubr.bf16.gmra.mrb[0].mxu0 %v6106
  %v6471 = vpop.f32.mrb[0].mxu0
  %v6472 = vadd.f32 0.0, %v6471
  %v6473 = vpop.f32.mrb[0].mxu0
  %v6474 = vpop.f32.mrb[0].mxu0
  %v6475 = vadd.f32 0.0, %v6474
  %v6476 = vpop.f32.mrb[0].mxu0
  %6477 = vmatprep.mubr.bf16.mxu0 %v6109
  %6478 = vmatmul.mubr.bf16.gmra.mrb[0].mxu0 %v6108
  %v6479 = vpop.f32.mrb[0].mxu0
  %v6480 = vadd.f32 0.0, %v6479
  %v6481 = vpop.f32.mrb[0].mxu0
  %v6482 = vpop.f32.mrb[0].mxu0
  %v6483 = vadd.f32 0.0, %v6482
  %v6484 = vpop.f32.mrb[0].mxu0
  %6485 = vmatprep.mubr.bf16.mxu0 %v6111
  %6486 = vmatmul.mubr.bf16.gmra.mrb[0].mxu0 %v6110
  %v6487 = vpop.f32.mrb[0].mxu0
  %v6488 = vadd.f32 0.0, %v6487
  %v6489 = vpop.f32.mrb[0].mxu0
  %v6490 = vpop.f32.mrb[0].mxu0
  %v6491 = vadd.f32 0.0, %v6490
  %v6492 = vpop.f32.mrb[0].mxu0
  %6493 = vmatprep.mubr.bf16.mxu0 %v6113
  %6494 = vmatmul.mubr.bf16.gmra.mrb[0].mxu0 %v6112
  %v6495 = vpop.f32.mrb[0].mxu0
  %v6496 = vadd.f32 0.0, %v6495
  %v6497 = vpop.f32.mrb[0].mxu0
  %v6498 = vpop.f32.mrb[0].mxu0
  %v6499 = vadd.f32 0.0, %v6498
  %v6500 = vpop.f32.mrb[0].mxu0
  %6501 = vmatprep.mubr.bf16.mxu0 %v6115
  %6502 = vmatmul.mubr.bf16.gmra.mrb[0].mxu0 %v6114
  %v6503 = vpop.f32.mrb[0].mxu0
  %v6504 = vadd.f32 0.0, %v6503
  %v6505 = vpop.f32.mrb[0].mxu0
  %v6506 = vpop.f32.mrb[0].mxu0
  %v6507 = vadd.f32 0.0, %v6506
  %v6508 = vpop.f32.mrb[0].mxu0
  %6509 = vmatprep.mubr.bf16.mxu0 %v6117
  %6510 = vmatmul.mubr.bf16.gmra.mrb[0].mxu0 %v6116
  %v6511 = vpop.f32.mrb[0].mxu0
  %v6512 = vadd.f32 0.0, %v6511
  %v6513 = vpop.f32.mrb[0].mxu0
  %v6514 = vpop.f32.mrb[0].mxu0
  %v6515 = vadd.f32 0.0, %v6514
  %v6516 = vpop.f32.mrb[0].mxu0
  %6517 = vmatprep.mubr.bf16.mxu0 %v6119
  %6518 = vmatmul.mubr.bf16.gmra.mrb[0].mxu0 %v6118
  %v6519 = vpop.f32.mrb[0].mxu0
  %v6520 = vadd.f32 0.0, %v6519
  %v6521 = vpop.f32.mrb[0].mxu0
  %v6522 = vpop.f32.mrb[0].mxu0
  %v6523 = vadd.f32 0.0, %v6522
  %v6524 = vpop.f32.mrb[0].mxu0
  %6525 = vmatprep.mubr.bf16.mxu0 %v6121
  %6526 = vmatmul.mubr.bf16.gmra.mrb[0].mxu0 %v6120
  %v6527 = vpop.f32.mrb[0].mxu0
  %v6528 = vadd.f32 0.0, %v6527
  %v6529 = vpop.f32.mrb[0].mxu0
  %v6530 = vpop.f32.mrb[0].mxu0
  %v6531 = vadd.f32 0.0, %v6530
  %v6532 = vpop.f32.mrb[0].mxu0
  %6533 = vmatprep.mubr.bf16.mxu0 %v6123
  %6534 = vmatmul.mubr.bf16.gmra.mrb[0].mxu0 %v6122
  %v6535 = vpop.f32.mrb[0].mxu0
  %v6536 = vadd.f32 0.0, %v6535
  %v6537 = vpop.f32.mrb[0].mxu0
  %v6538 = vpop.f32.mrb[0].mxu0
  %v6539 = vadd.f32 0.0, %v6538
  %v6540 = vpop.f32.mrb[0].mxu0
  %6541 = vdwg.mxu0
  %v6542 = vadd.f32 %v5532, %v6288
  %v6543 = vadd.f32 %v5533, %v6291
  %v6544 = vadd.f32 %v5534, %v6296
  %v6545 = vadd.f32 %v5535, %v6299
  %v6546 = vadd.f32 %v5536, %v6304
  %v6547 = vadd.f32 %v5537, %v6307
  %v6548 = vadd.f32 %v5538, %v6312
  %v6549 = vadd.f32 %v5539, %v6315
  %v6550 = vadd.f32 %v5540, %v6320
  %v6551 = vadd.f32 %v5541, %v6323
  %v6552 = vadd.f32 %v5542, %v6328
  %v6553 = vadd.f32 %v5543, %v6331
  %v6554 = vadd.f32 %v5544, %v6336
  %v6555 = vadd.f32 %v5545, %v6339
  %v6556 = vadd.f32 %v5546, %v6344
  %v6557 = vadd.f32 %v5547, %v6347
  %v6558 = vadd.f32 %v5548, %v6352
  %v6559 = vadd.f32 %v5549, %v6355
  %v6560 = vadd.f32 %v5550, %v6360
  %v6561 = vadd.f32 %v5551, %v6363
  %v6562 = vadd.f32 %v5552, %v6368
  %v6563 = vadd.f32 %v5553, %v6371
  %v6564 = vadd.f32 %v5554, %v6376
  %v6565 = vadd.f32 %v5555, %v6379
  %v6566 = vadd.f32 %v5556, %v6384
  %v6567 = vadd.f32 %v5557, %v6387
  %v6568 = vadd.f32 %v5558, %v6392
  %v6569 = vadd.f32 %v5559, %v6395
  %v6570 = vadd.f32 %v5560, %v6400
  %v6571 = vadd.f32 %v5561, %v6403
  %v6572 = vadd.f32 %v5562, %v6408
  %v6573 = vadd.f32 %v5563, %v6411
  %v6574 = vadd.f32 %v5564, %v6416
  %v6575 = vadd.f32 %v5565, %v6419
  %v6576 = vadd.f32 %v5566, %v6424
  %v6577 = vadd.f32 %v5567, %v6427
  %v6578 = vadd.f32 %v5568, %v6432
  %v6579 = vadd.f32 %v5569, %v6435
  %v6580 = vadd.f32 %v5570, %v6440
  %v6581 = vadd.f32 %v5571, %v6443
  %v6582 = vadd.f32 %v5572, %v6448
  %v6583 = vadd.f32 %v5573, %v6451
  %v6584 = vadd.f32 %v5574, %v6456
  %v6585 = vadd.f32 %v5575, %v6459
  %v6586 = vadd.f32 %v5576, %v6464
  %v6587 = vadd.f32 %v5577, %v6467
  %v6588 = vadd.f32 %v5578, %v6472
  %v6589 = vadd.f32 %v5579, %v6475
  %v6590 = vadd.f32 %v5580, %v6480
  %v6591 = vadd.f32 %v5581, %v6483
  %v6592 = vadd.f32 %v5582, %v6488
  %v6593 = vadd.f32 %v5583, %v6491
  %v6594 = vadd.f32 %v5584, %v6496
  %v6595 = vadd.f32 %v5585, %v6499
  %v6596 = vadd.f32 %v5586, %v6504
  %v6597 = vadd.f32 %v5587, %v6507
  %v6598 = vadd.f32 %v5588, %v6512
  %v6599 = vadd.f32 %v5589, %v6515
  %v6600 = vadd.f32 %v5590, %v6520
  %v6601 = vadd.f32 %v5591, %v6523
  %v6602 = vadd.f32 %v5592, %v6528
  %v6603 = vadd.f32 %v5593, %v6531
  %v6604 = vadd.f32 %v5594, %v6536
  %v6605 = vadd.f32 %v5595, %v6539
  %v6606 = vld [vmem:[#allocation2 + $0x10] sm:$0xf8]
  %v6607 = vld [vmem:[#allocation2 + $0x18] sm:$0xf8]
  %v6608 = vld [vmem:[#allocation2 + $0x90] sm:$0x7]
  %v6609 = vld [vmem:[#allocation2 + $0x98] sm:$0x7]
  %v6610 = vld [vmem:[#allocation2 + $0xd0] sm:$0xf8]
  %v6611 = vld [vmem:[#allocation2 + $0xd8] sm:$0xf8]
  %v6612 = vld [vmem:[#allocation2 + $0x150] sm:$0x7]
  %v6613 = vld [vmem:[#allocation2 + $0x158] sm:$0x7]
  %v6614 = vld [vmem:[#allocation2 + $0x190] sm:$0xf8]
  %v6615 = vld [vmem:[#allocation2 + $0x198] sm:$0xf8]
  %v6616 = vld [vmem:[#allocation2 + $0x210] sm:$0x7]
  %v6617 = vld [vmem:[#allocation2 + $0x218] sm:$0x7]
  %v6618 = vld [vmem:[#allocation2 + $0x250] sm:$0xf8]
  %v6619 = vld [vmem:[#allocation2 + $0x258] sm:$0xf8]
  %v6620 = vld [vmem:[#allocation2 + $0x2d0] sm:$0x7]
  %v6621 = vld [vmem:[#allocation2 + $0x2d8] sm:$0x7]
  %v6622 = vld [vmem:[#allocation2 + $0x310] sm:$0xf8]
  %v6623 = vld [vmem:[#allocation2 + $0x318] sm:$0xf8]
  %v6624 = vld [vmem:[#allocation2 + $0x390] sm:$0x7]
  %v6625 = vld [vmem:[#allocation2 + $0x398] sm:$0x7]
  %v6626 = vld [vmem:[#allocation2 + $0x3d0] sm:$0xf8]
  %v6627 = vld [vmem:[#allocation2 + $0x3d8] sm:$0xf8]
  %v6628 = vld [vmem:[#allocation2 + $0x450] sm:$0x7]
  %v6629 = vld [vmem:[#allocation2 + $0x458] sm:$0x7]
  %v6630 = vld [vmem:[#allocation2 + $0x490] sm:$0xf8]
  %v6631 = vld [vmem:[#allocation2 + $0x498] sm:$0xf8]
  %v6632 = vld [vmem:[#allocation2 + $0x510] sm:$0x7]
  %v6633 = vld [vmem:[#allocation2 + $0x518] sm:$0x7]
  %v6634 = vld [vmem:[#allocation2 + $0x550] sm:$0xf8]
  %v6635 = vld [vmem:[#allocation2 + $0x558] sm:$0xf8]
  %v6636 = vld [vmem:[#allocation2 + $0x5d0] sm:$0x7]
  %v6637 = vld [vmem:[#allocation2 + $0x5d8] sm:$0x7]
  %vm6670 = vcmask 1044480
  %v6671 = vrot.slane %v6606, 3
  %v6672 = vrot.slane %v4364, 3
  %v6673 = vsel %vm6670, %v6671, %v6672
  %v6674 = vrot.slane %v6607, 3
  %v6675 = vrot.slane %v4365, 3
  %v6676 = vsel %vm6670, %v6674, %v6675
  %v6677 = vrot.slane %v4366, 3
  %v6678 = vsel %vm6670, %v6672, %v6677
  %v6679 = vrot.slane %v4367, 3
  %v6680 = vsel %vm6670, %v6675, %v6679
  %v6681 = vrot.slane %v4368, 3
  %v6682 = vsel %vm6670, %v6677, %v6681
  %v6683 = vrot.slane %v4369, 3
  %v6684 = vsel %vm6670, %v6679, %v6683
  %v6685 = vrot.slane %v4370, 3
  %v6686 = vsel %vm6670, %v6681, %v6685
  %v6687 = vrot.slane %v4371, 3
  %v6688 = vsel %vm6670, %v6683, %v6687
  %v6689 = vrot.slane %v4372, 3
  %v6690 = vsel %vm6670, %v6685, %v6689
  %v6691 = vrot.slane %v4373, 3
  %v6692 = vsel %vm6670, %v6687, %v6691
  %v6693 = vrot.slane %v4374, 3
  %v6694 = vsel %vm6670, %v6689, %v6693
  %v6695 = vrot.slane %v4375, 3
  %v6696 = vsel %vm6670, %v6691, %v6695
  %v6697 = vrot.slane %v4376, 3
  %v6698 = vsel %vm6670, %v6693, %v6697
  %v6699 = vrot.slane %v4377, 3
  %v6700 = vsel %vm6670, %v6695, %v6699
  %v6701 = vrot.slane %v6608, 3
  %v6702 = vsel %vm6670, %v6697, %v6701
  %v6703 = vrot.slane %v6609, 3
  %v6704 = vsel %vm6670, %v6699, %v6703
  %v6705 = vrot.slane %v6610, 3
  %v6706 = vrot.slane %v4382, 3
  %v6707 = vsel %vm6670, %v6705, %v6706
  %v6708 = vrot.slane %v6611, 3
  %v6709 = vrot.slane %v4383, 3
  %v6710 = vsel %vm6670, %v6708, %v6709
  %v6711 = vrot.slane %v4384, 3
  %v6712 = vsel %vm6670, %v6706, %v6711
  %v6713 = vrot.slane %v4385, 3
  %v6714 = vsel %vm6670, %v6709, %v6713
  %v6715 = vrot.slane %v4386, 3
  %v6716 = vsel %vm6670, %v6711, %v6715
  %v6717 = vrot.slane %v4387, 3
  %v6718 = vsel %vm6670, %v6713, %v6717
  %v6719 = vrot.slane %v4388, 3
  %v6720 = vsel %vm6670, %v6715, %v6719
  %v6721 = vrot.slane %v4389, 3
  %v6722 = vsel %vm6670, %v6717, %v6721
  %v6723 = vrot.slane %v4390, 3
  %v6724 = vsel %vm6670, %v6719, %v6723
  %v6725 = vrot.slane %v4391, 3
  %v6726 = vsel %vm6670, %v6721, %v6725
  %v6727 = vrot.slane %v4392, 3
  %v6728 = vsel %vm6670, %v6723, %v6727
  %v6729 = vrot.slane %v4393, 3
  %v6730 = vsel %vm6670, %v6725, %v6729
  %v6731 = vrot.slane %v4394, 3
  %v6732 = vsel %vm6670, %v6727, %v6731
  %v6733 = vrot.slane %v4395, 3
  %v6734 = vsel %vm6670, %v6729, %v6733
  %v6735 = vrot.slane %v6612, 3
  %v6736 = vsel %vm6670, %v6731, %v6735
  %v6737 = vrot.slane %v6613, 3
  %v6738 = vsel %vm6670, %v6733, %v6737
  %v6739 = vrot.slane %v6614, 3
  %v6740 = vrot.slane %v4400, 3
  %v6741 = vsel %vm6670, %v6739, %v6740
  %v6742 = vrot.slane %v6615, 3
  %v6743 = vrot.slane %v4401, 3
  %v6744 = vsel %vm6670, %v6742, %v6743
  %v6745 = vrot.slane %v4402, 3
  %v6746 = vsel %vm6670, %v6740, %v6745
  %v6747 = vrot.slane %v4403, 3
  %v6748 = vsel %vm6670, %v6743, %v6747
  %v6749 = vrot.slane %v4404, 3
  %v6750 = vsel %vm6670, %v6745, %v6749
  %v6751 = vrot.slane %v4405, 3
  %v6752 = vsel %vm6670, %v6747, %v6751
  %v6753 = vrot.slane %v4406, 3
  %v6754 = vsel %vm6670, %v6749, %v6753
  %v6755 = vrot.slane %v4407, 3
  %v6756 = vsel %vm6670, %v6751, %v6755
  %v6757 = vrot.slane %v4408, 3
  %v6758 = vsel %vm6670, %v6753, %v6757
  %v6759 = vrot.slane %v4409, 3
  %v6760 = vsel %vm6670, %v6755, %v6759
  %v6761 = vrot.slane %v4410, 3
  %v6762 = vsel %vm6670, %v6757, %v6761
  %v6763 = vrot.slane %v4411, 3
  %v6764 = vsel %vm6670, %v6759, %v6763
  %v6765 = vrot.slane %v4412, 3
  %v6766 = vsel %vm6670, %v6761, %v6765
  %v6767 = vrot.slane %v4413, 3
  %v6768 = vsel %vm6670, %v6763, %v6767
  %v6769 = vrot.slane %v6616, 3
  %v6770 = vsel %vm6670, %v6765, %v6769
  %v6771 = vrot.slane %v6617, 3
  %v6772 = vsel %vm6670, %v6767, %v6771
  %v6773 = vrot.slane %v6618, 3
  %v6774 = vrot.slane %v4418, 3
  %v6775 = vsel %vm6670, %v6773, %v6774
  %v6776 = vrot.slane %v6619, 3
  %v6777 = vrot.slane %v4419, 3
  %v6778 = vsel %vm6670, %v6776, %v6777
  %v6779 = vrot.slane %v4420, 3
  %v6780 = vsel %vm6670, %v6774, %v6779
  %v6781 = vrot.slane %v4421, 3
  %v6782 = vsel %vm6670, %v6777, %v6781
  %v6783 = vrot.slane %v4422, 3
  %v6784 = vsel %vm6670, %v6779, %v6783
  %v6785 = vrot.slane %v4423, 3
  %v6786 = vsel %vm6670, %v6781, %v6785
  %v6787 = vrot.slane %v4424, 3
  %v6788 = vsel %vm6670, %v6783, %v6787
  %v6789 = vrot.slane %v4425, 3
  %v6790 = vsel %vm6670, %v6785, %v6789
  %v6791 = vrot.slane %v4426, 3
  %v6792 = vsel %vm6670, %v6787, %v6791
  %v6793 = vrot.slane %v4427, 3
  %v6794 = vsel %vm6670, %v6789, %v6793
  %v6795 = vrot.slane %v4428, 3
  %v6796 = vsel %vm6670, %v6791, %v6795
  %v6797 = vrot.slane %v4429, 3
  %v6798 = vsel %vm6670, %v6793, %v6797
  %v6799 = vrot.slane %v4430, 3
  %v6800 = vsel %vm6670, %v6795, %v6799
  %v6801 = vrot.slane %v4431, 3
  %v6802 = vsel %vm6670, %v6797, %v6801
  %v6803 = vrot.slane %v6620, 3
  %v6804 = vsel %vm6670, %v6799, %v6803
  %v6805 = vrot.slane %v6621, 3
  %v6806 = vsel %vm6670, %v6801, %v6805
  %v6807 = vrot.slane %v6622, 3
  %v6808 = vrot.slane %v4436, 3
  %v6809 = vsel %vm6670, %v6807, %v6808
  %v6810 = vrot.slane %v6623, 3
  %v6811 = vrot.slane %v4437, 3
  %v6812 = vsel %vm6670, %v6810, %v6811
  %v6813 = vrot.slane %v4438, 3
  %v6814 = vsel %vm6670, %v6808, %v6813
  %v6815 = vrot.slane %v4439, 3
  %v6816 = vsel %vm6670, %v6811, %v6815
  %v6817 = vrot.slane %v4440, 3
  %v6818 = vsel %vm6670, %v6813, %v6817
  %v6819 = vrot.slane %v4441, 3
  %v6820 = vsel %vm6670, %v6815, %v6819
  %v6821 = vrot.slane %v4442, 3
  %v6822 = vsel %vm6670, %v6817, %v6821
  %v6823 = vrot.slane %v4443, 3
  %v6824 = vsel %vm6670, %v6819, %v6823
  %v6825 = vrot.slane %v4444, 3
  %v6826 = vsel %vm6670, %v6821, %v6825
  %v6827 = vrot.slane %v4445, 3
  %v6828 = vsel %vm6670, %v6823, %v6827
  %v6829 = vrot.slane %v4446, 3
  %v6830 = vsel %vm6670, %v6825, %v6829
  %v6831 = vrot.slane %v4447, 3
  %v6832 = vsel %vm6670, %v6827, %v6831
  %v6833 = vrot.slane %v4448, 3
  %v6834 = vsel %vm6670, %v6829, %v6833
  %v6835 = vrot.slane %v4449, 3
  %v6836 = vsel %vm6670, %v6831, %v6835
  %v6837 = vrot.slane %v6624, 3
  %v6838 = vsel %vm6670, %v6833, %v6837
  %v6839 = vrot.slane %v6625, 3
  %v6840 = vsel %vm6670, %v6835, %v6839
  %v6841 = vrot.slane %v6626, 3
  %v6842 = vrot.slane %v4454, 3
  %v6843 = vsel %vm6670, %v6841, %v6842
  %v6844 = vrot.slane %v6627, 3
  %v6845 = vrot.slane %v4455, 3
  %v6846 = vsel %vm6670, %v6844, %v6845
  %v6847 = vrot.slane %v4456, 3
  %v6848 = vsel %vm6670, %v6842, %v6847
  %v6849 = vrot.slane %v4457, 3
  %v6850 = vsel %vm6670, %v6845, %v6849
  %v6851 = vrot.slane %v4458, 3
  %v6852 = vsel %vm6670, %v6847, %v6851
  %v6853 = vrot.slane %v4459, 3
  %v6854 = vsel %vm6670, %v6849, %v6853
  %v6855 = vrot.slane %v4460, 3
  %v6856 = vsel %vm6670, %v6851, %v6855
  %v6857 = vrot.slane %v4461, 3
  %v6858 = vsel %vm6670, %v6853, %v6857
  %v6859 = vrot.slane %v4462, 3
  %v6860 = vsel %vm6670, %v6855, %v6859
  %v6861 = vrot.slane %v4463, 3
  %v6862 = vsel %vm6670, %v6857, %v6861
  %v6863 = vrot.slane %v4464, 3
  %v6864 = vsel %vm6670, %v6859, %v6863
  %v6865 = vrot.slane %v4465, 3
  %v6866 = vsel %vm6670, %v6861, %v6865
  %v6867 = vrot.slane %v4466, 3
  %v6868 = vsel %vm6670, %v6863, %v6867
  %v6869 = vrot.slane %v4467, 3
  %v6870 = vsel %vm6670, %v6865, %v6869
  %v6871 = vrot.slane %v6628, 3
  %v6872 = vsel %vm6670, %v6867, %v6871
  %v6873 = vrot.slane %v6629, 3
  %v6874 = vsel %vm6670, %v6869, %v6873
  %v6875 = vrot.slane %v6630, 3
  %v6876 = vrot.slane %v4472, 3
  %v6877 = vsel %vm6670, %v6875, %v6876
  %v6878 = vrot.slane %v6631, 3
  %v6879 = vrot.slane %v4473, 3
  %v6880 = vsel %vm6670, %v6878, %v6879
  %v6881 = vrot.slane %v4474, 3
  %v6882 = vsel %vm6670, %v6876, %v6881
  %v6883 = vrot.slane %v4475, 3
  %v6884 = vsel %vm6670, %v6879, %v6883
  %v6885 = vrot.slane %v4476, 3
  %v6886 = vsel %vm6670, %v6881, %v6885
  %v6887 = vrot.slane %v4477, 3
  %v6888 = vsel %vm6670, %v6883, %v6887
  %v6889 = vrot.slane %v4478, 3
  %v6890 = vsel %vm6670, %v6885, %v6889
  %v6891 = vrot.slane %v4479, 3
  %v6892 = vsel %vm6670, %v6887, %v6891
  %v6893 = vrot.slane %v4480, 3
  %v6894 = vsel %vm6670, %v6889, %v6893
  %v6895 = vrot.slane %v4481, 3
  %v6896 = vsel %vm6670, %v6891, %v6895
  %v6897 = vrot.slane %v4482, 3
  %v6898 = vsel %vm6670, %v6893, %v6897
  %v6899 = vrot.slane %v4483, 3
  %v6900 = vsel %vm6670, %v6895, %v6899
  %v6901 = vrot.slane %v4484, 3
  %v6902 = vsel %vm6670, %v6897, %v6901
  %v6903 = vrot.slane %v4485, 3
  %v6904 = vsel %vm6670, %v6899, %v6903
  %v6905 = vrot.slane %v6632, 3
  %v6906 = vsel %vm6670, %v6901, %v6905
  %v6907 = vrot.slane %v6633, 3
  %v6908 = vsel %vm6670, %v6903, %v6907
  %v6909 = vrot.slane %v6634, 3
  %v6910 = vrot.slane %v4490, 3
  %v6911 = vsel %vm6670, %v6909, %v6910
  %v6912 = vrot.slane %v6635, 3
  %v6913 = vrot.slane %v4491, 3
  %v6914 = vsel %vm6670, %v6912, %v6913
  %v6915 = vrot.slane %v4492, 3
  %v6916 = vsel %vm6670, %v6910, %v6915
  %v6917 = vrot.slane %v4493, 3
  %v6918 = vsel %vm6670, %v6913, %v6917
  %v6919 = vrot.slane %v4494, 3
  %v6920 = vsel %vm6670, %v6915, %v6919
  %v6921 = vrot.slane %v4495, 3
  %v6922 = vsel %vm6670, %v6917, %v6921
  %v6923 = vrot.slane %v4496, 3
  %v6924 = vsel %vm6670, %v6919, %v6923
  %v6925 = vrot.slane %v4497, 3
  %v6926 = vsel %vm6670, %v6921, %v6925
  %v6927 = vrot.slane %v4498, 3
  %v6928 = vsel %vm6670, %v6923, %v6927
  %v6929 = vrot.slane %v4499, 3
  %v6930 = vsel %vm6670, %v6925, %v6929
  %v6931 = vrot.slane %v4500, 3
  %v6932 = vsel %vm6670, %v6927, %v6931
  %v6933 = vrot.slane %v4501, 3
  %v6934 = vsel %vm6670, %v6929, %v6933
  %v6935 = vrot.slane %v4502, 3
  %v6936 = vsel %vm6670, %v6931, %v6935
  %v6937 = vrot.slane %v4503, 3
  %v6938 = vsel %vm6670, %v6933, %v6937
  %v6939 = vrot.slane %v6636, 3
  %v6940 = vsel %vm6670, %v6935, %v6939
  %v6941 = vrot.slane %v6637, 3
  %v6942 = vsel %vm6670, %v6937, %v6941
  %v7071 = vpack.c.bf16 %v6678, %v6673
  %v7072 = vpack.c.bf16 %v6680, %v6676
  %v7073 = vpack.c.bf16 %v6686, %v6682
  %v7074 = vpack.c.bf16 %v6688, %v6684
  %v7075 = vpack.c.bf16 %v6694, %v6690
  %v7076 = vpack.c.bf16 %v6696, %v6692
  %v7077 = vpack.c.bf16 %v6702, %v6698
  %v7078 = vpack.c.bf16 %v6704, %v6700
  %v7079 = vpack.c.bf16 %v6712, %v6707
  %v7080 = vpack.c.bf16 %v6714, %v6710
  %v7081 = vpack.c.bf16 %v6720, %v6716
  %v7082 = vpack.c.bf16 %v6722, %v6718
  %v7083 = vpack.c.bf16 %v6728, %v6724
  %v7084 = vpack.c.bf16 %v6730, %v6726
  %v7085 = vpack.c.bf16 %v6736, %v6732
  %v7086 = vpack.c.bf16 %v6738, %v6734
  %v7087 = vpack.c.bf16 %v6746, %v6741
  %v7088 = vpack.c.bf16 %v6748, %v6744
  %v7089 = vpack.c.bf16 %v6754, %v6750
  %v7090 = vpack.c.bf16 %v6756, %v6752
  %v7091 = vpack.c.bf16 %v6762, %v6758
  %v7092 = vpack.c.bf16 %v6764, %v6760
  %v7093 = vpack.c.bf16 %v6770, %v6766
  %v7094 = vpack.c.bf16 %v6772, %v6768
  %v7095 = vpack.c.bf16 %v6780, %v6775
  %v7096 = vpack.c.bf16 %v6782, %v6778
  %v7097 = vpack.c.bf16 %v6788, %v6784
  %v7098 = vpack.c.bf16 %v6790, %v6786
  %v7099 = vpack.c.bf16 %v6796, %v6792
  %v7100 = vpack.c.bf16 %v6798, %v6794
  %v7101 = vpack.c.bf16 %v6804, %v6800
  %v7102 = vpack.c.bf16 %v6806, %v6802
  %v7103 = vpack.c.bf16 %v6814, %v6809
  %v7104 = vpack.c.bf16 %v6816, %v6812
  %v7105 = vpack.c.bf16 %v6822, %v6818
  %v7106 = vpack.c.bf16 %v6824, %v6820
  %v7107 = vpack.c.bf16 %v6830, %v6826
  %v7108 = vpack.c.bf16 %v6832, %v6828
  %v7109 = vpack.c.bf16 %v6838, %v6834
  %v7110 = vpack.c.bf16 %v6840, %v6836
  %v7111 = vpack.c.bf16 %v6848, %v6843
  %v7112 = vpack.c.bf16 %v6850, %v6846
  %v7113 = vpack.c.bf16 %v6856, %v6852
  %v7114 = vpack.c.bf16 %v6858, %v6854
  %v7115 = vpack.c.bf16 %v6864, %v6860
  %v7116 = vpack.c.bf16 %v6866, %v6862
  %v7117 = vpack.c.bf16 %v6872, %v6868
  %v7118 = vpack.c.bf16 %v6874, %v6870
  %v7119 = vpack.c.bf16 %v6882, %v6877
  %v7120 = vpack.c.bf16 %v6884, %v6880
  %v7121 = vpack.c.bf16 %v6890, %v6886
  %v7122 = vpack.c.bf16 %v6892, %v6888
  %v7123 = vpack.c.bf16 %v6898, %v6894
  %v7124 = vpack.c.bf16 %v6900, %v6896
  %v7125 = vpack.c.bf16 %v6906, %v6902
  %v7126 = vpack.c.bf16 %v6908, %v6904
  %v7127 = vpack.c.bf16 %v6916, %v6911
  %v7128 = vpack.c.bf16 %v6918, %v6914
  %v7129 = vpack.c.bf16 %v6924, %v6920
  %v7130 = vpack.c.bf16 %v6926, %v6922
  %v7131 = vpack.c.bf16 %v6932, %v6928
  %v7132 = vpack.c.bf16 %v6934, %v6930
  %v7133 = vpack.c.bf16 %v6940, %v6936
  %v7134 = vpack.c.bf16 %v6942, %v6938
  %s7135 = scalar_lea.vmem %s4, 640
  %v7136 = vld [vmem:[%s7135] sm:$0xf]
  %v7137 = vld [vmem:[%s7135 + $0x4] sm:$0xf]
  %v7138 = vld [vmem:[%s7135 + $0x8] sm:$0xf]
  %v7139 = vld [vmem:[%s7135 + $0xc] sm:$0xf]
  %v7140 = vld [vmem:[%s7135 + $0x10] sm:$0xf]
  %v7141 = vld [vmem:[%s7135 + $0x14] sm:$0xf]
  %v7142 = vld [vmem:[%s7135 + $0x18] sm:$0xf]
  %v7143 = vld [vmem:[%s7135 + $0x1c] sm:$0xf]
  %v7144 = vld [vmem:[%s7135 + $0x20] sm:$0xf]
  %v7145 = vld [vmem:[%s7135 + $0x24] sm:$0xf]
  %v7146 = vld [vmem:[%s7135 + $0x28] sm:$0xf]
  %v7147 = vld [vmem:[%s7135 + $0x2c] sm:$0xf]
  %v7148 = vld [vmem:[%s7135 + $0x30] sm:$0xf]
  %v7149 = vld [vmem:[%s7135 + $0x34] sm:$0xf]
  %v7150 = vld [vmem:[%s7135 + $0x38] sm:$0xf]
  %v7151 = vld [vmem:[%s7135 + $0x3c] sm:$0xf]
  %v7152 = vld [vmem:[%s7135 + $0x40] sm:$0xf]
  %v7153 = vld [vmem:[%s7135 + $0x44] sm:$0xf]
  %v7154 = vld [vmem:[%s7135 + $0x48] sm:$0xf]
  %v7155 = vld [vmem:[%s7135 + $0x4c] sm:$0xf]
  %v7156 = vld [vmem:[%s7135 + $0x50] sm:$0xf]
  %v7157 = vld [vmem:[%s7135 + $0x54] sm:$0xf]
  %v7158 = vld [vmem:[%s7135 + $0x58] sm:$0xf]
  %v7159 = vld [vmem:[%s7135 + $0x5c] sm:$0xf]
  %v7160 = vld [vmem:[%s7135 + $0x60] sm:$0xf]
  %v7161 = vld [vmem:[%s7135 + $0x64] sm:$0xf]
  %v7162 = vld [vmem:[%s7135 + $0x68] sm:$0xf]
  %v7163 = vld [vmem:[%s7135 + $0x6c] sm:$0xf]
  %v7164 = vld [vmem:[%s7135 + $0x70] sm:$0xf]
  %v7165 = vld [vmem:[%s7135 + $0x74] sm:$0xf]
  %v7166 = vld [vmem:[%s7135 + $0x78] sm:$0xf]
  %v7167 = vld [vmem:[%s7135 + $0x7c] sm:$0xf]
  %v7200 = vunpack.c.l.b16 %v7136
  %v7201 = vunpack.c.l.b16 %v7137
  %v7202 = vunpack.c.l.b16 %v7138
  %v7203 = vunpack.c.l.b16 %v7139
  %v7204 = vunpack.c.l.b16 %v7140
  %v7205 = vunpack.c.l.b16 %v7141
  %v7206 = vunpack.c.l.b16 %v7142
  %v7207 = vunpack.c.l.b16 %v7143
  %v7208 = vunpack.c.l.b16 %v7144
  %v7209 = vunpack.c.l.b16 %v7145
  %v7210 = vunpack.c.l.b16 %v7146
  %v7211 = vunpack.c.l.b16 %v7147
  %v7212 = vunpack.c.l.b16 %v7148
  %v7213 = vunpack.c.l.b16 %v7149
  %v7214 = vunpack.c.l.b16 %v7150
  %v7215 = vunpack.c.l.b16 %v7151
  %v7216 = vunpack.c.l.b16 %v7152
  %v7217 = vunpack.c.l.b16 %v7153
  %v7218 = vunpack.c.l.b16 %v7154
  %v7219 = vunpack.c.l.b16 %v7155
  %v7220 = vunpack.c.l.b16 %v7156
  %v7221 = vunpack.c.l.b16 %v7157
  %v7222 = vunpack.c.l.b16 %v7158
  %v7223 = vunpack.c.l.b16 %v7159
  %v7224 = vunpack.c.l.b16 %v7160
  %v7225 = vunpack.c.l.b16 %v7161
  %v7226 = vunpack.c.l.b16 %v7162
  %v7227 = vunpack.c.l.b16 %v7163
  %v7228 = vunpack.c.l.b16 %v7164
  %v7229 = vunpack.c.l.b16 %v7165
  %v7230 = vunpack.c.l.b16 %v7166
  %v7231 = vunpack.c.l.b16 %v7167
  %v7232 = vpack.c.b16 %v7201, %v7200
  %v7233 = vpack.c.b16 %v7203, %v7202
  %v7234 = vpack.c.b16 %v7205, %v7204
  %v7235 = vpack.c.b16 %v7207, %v7206
  %v7236 = vpack.c.b16 %v7209, %v7208
  %v7237 = vpack.c.b16 %v7211, %v7210
  %v7238 = vpack.c.b16 %v7213, %v7212
  %v7239 = vpack.c.b16 %v7215, %v7214
  %v7240 = vpack.c.b16 %v7217, %v7216
  %v7241 = vpack.c.b16 %v7219, %v7218
  %v7242 = vpack.c.b16 %v7221, %v7220
  %v7243 = vpack.c.b16 %v7223, %v7222
  %v7244 = vpack.c.b16 %v7225, %v7224
  %v7245 = vpack.c.b16 %v7227, %v7226
  %v7246 = vpack.c.b16 %v7229, %v7228
  %v7247 = vpack.c.b16 %v7231, %v7230
  %7264 = vmatprep.subr.bf16.mxu0 0
  %7265 = vmatpush1.bf16.msra.mxu0 %v7232
  %7266 = vmatprep.subr.bf16.mxu0 0
  %7267 = vmatpush1.bf16.msra.mxu0 %v7233
  %7268 = vmatprep.subr.bf16.mxu0 0
  %7269 = vmatpush1.bf16.msra.mxu0 %v7234
  %7270 = vmatprep.subr.bf16.mxu0 0
  %7271 = vmatpush1.bf16.msra.mxu0 %v7235
  %7272 = vmatprep.subr.bf16.mxu0 0
  %7273 = vmatpush1.bf16.msra.mxu0 %v7236
  %7274 = vmatprep.subr.bf16.mxu0 0
  %7275 = vmatpush1.bf16.msra.mxu0 %v7237
  %7276 = vmatprep.subr.bf16.mxu0 0
  %7277 = vmatpush1.bf16.msra.mxu0 %v7238
  %7278 = vmatprep.subr.bf16.mxu0 0
  %7279 = vmatpush1.bf16.msra.mxu0 %v7239
  %7280 = vmatprep.subr.bf16.mxu0 0
  %7281 = vmatpush1.bf16.msra.mxu0 %v7240
  %7282 = vmatprep.subr.bf16.mxu0 0
  %7283 = vmatpush1.bf16.msra.mxu0 %v7241
  %7284 = vmatprep.subr.bf16.mxu0 0
  %7285 = vmatpush1.bf16.msra.mxu0 %v7242
  %7286 = vmatprep.subr.bf16.mxu0 0
  %7287 = vmatpush1.bf16.msra.mxu0 %v7243
  %7288 = vmatprep.subr.bf16.mxu0 0
  %7289 = vmatpush1.bf16.msra.mxu0 %v7244
  %7290 = vmatprep.subr.bf16.mxu0 0
  %7291 = vmatpush1.bf16.msra.mxu0 %v7245
  %7292 = vmatprep.subr.bf16.mxu0 0
  %7293 = vmatpush1.bf16.msra.mxu0 %v7246
  %7294 = vmatprep.subr.bf16.mxu0 0
  %7295 = vmatpush1.bf16.msra.mxu0 %v7247
  %7296 = vmatprep.mubr.bf16.mxu0 %v7072
  %7297 = vmatmul.mubr.bf16.gmra.mrb[0].mxu0 %v7071
  %v7298 = vpop.f32.mrb[0].mxu0
  %v7299 = vadd.f32 0.0, %v7298
  %v7300 = vpop.f32.mrb[0].mxu0
  %v7301 = vpop.f32.mrb[0].mxu0
  %v7302 = vadd.f32 0.0, %v7301
  %v7303 = vpop.f32.mrb[0].mxu0
  %7304 = vmatprep.mubr.bf16.mxu0 %v7074
  %7305 = vmatmul.mubr.bf16.gmra.mrb[0].mxu0 %v7073
  %v7306 = vpop.f32.mrb[0].mxu0
  %v7307 = vadd.f32 0.0, %v7306
  %v7308 = vpop.f32.mrb[0].mxu0
  %v7309 = vpop.f32.mrb[0].mxu0
  %v7310 = vadd.f32 0.0, %v7309
  %v7311 = vpop.f32.mrb[0].mxu0
  %7312 = vmatprep.mubr.bf16.mxu0 %v7076
  %7313 = vmatmul.mubr.bf16.gmra.mrb[0].mxu0 %v7075
  %v7314 = vpop.f32.mrb[0].mxu0
  %v7315 = vadd.f32 0.0, %v7314
  %v7316 = vpop.f32.mrb[0].mxu0
  %v7317 = vpop.f32.mrb[0].mxu0
  %v7318 = vadd.f32 0.0, %v7317
  %v7319 = vpop.f32.mrb[0].mxu0
  %7320 = vmatprep.mubr.bf16.mxu0 %v7078
  %7321 = vmatmul.mubr.bf16.gmra.mrb[0].mxu0 %v7077
  %v7322 = vpop.f32.mrb[0].mxu0
  %v7323 = vadd.f32 0.0, %v7322
  %v7324 = vpop.f32.mrb[0].mxu0
  %v7325 = vpop.f32.mrb[0].mxu0
  %v7326 = vadd.f32 0.0, %v7325
  %v7327 = vpop.f32.mrb[0].mxu0
  %7328 = vmatprep.mubr.bf16.mxu0 %v7080
  %7329 = vmatmul.mubr.bf16.gmra.mrb[0].mxu0 %v7079
  %v7330 = vpop.f32.mrb[0].mxu0
  %v7331 = vadd.f32 0.0, %v7330
  %v7332 = vpop.f32.mrb[0].mxu0
  %v7333 = vpop.f32.mrb[0].mxu0
  %v7334 = vadd.f32 0.0, %v7333
  %v7335 = vpop.f32.mrb[0].mxu0
  %7336 = vmatprep.mubr.bf16.mxu0 %v7082
  %7337 = vmatmul.mubr.bf16.gmra.mrb[0].mxu0 %v7081
  %v7338 = vpop.f32.mrb[0].mxu0
  %v7339 = vadd.f32 0.0, %v7338
  %v7340 = vpop.f32.mrb[0].mxu0
  %v7341 = vpop.f32.mrb[0].mxu0
  %v7342 = vadd.f32 0.0, %v7341
  %v7343 = vpop.f32.mrb[0].mxu0
  %7344 = vmatprep.mubr.bf16.mxu0 %v7084
  %7345 = vmatmul.mubr.bf16.gmra.mrb[0].mxu0 %v7083
  %v7346 = vpop.f32.mrb[0].mxu0
  %v7347 = vadd.f32 0.0, %v7346
  %v7348 = vpop.f32.mrb[0].mxu0
  %v7349 = vpop.f32.mrb[0].mxu0
  %v7350 = vadd.f32 0.0, %v7349
  %v7351 = vpop.f32.mrb[0].mxu0
  %7352 = vmatprep.mubr.bf16.mxu0 %v7086
  %7353 = vmatmul.mubr.bf16.gmra.mrb[0].mxu0 %v7085
  %v7354 = vpop.f32.mrb[0].mxu0
  %v7355 = vadd.f32 0.0, %v7354
  %v7356 = vpop.f32.mrb[0].mxu0
  %v7357 = vpop.f32.mrb[0].mxu0
  %v7358 = vadd.f32 0.0, %v7357
  %v7359 = vpop.f32.mrb[0].mxu0
  %7360 = vmatprep.mubr.bf16.mxu0 %v7088
  %7361 = vmatmul.mubr.bf16.gmra.mrb[0].mxu0 %v7087
  %v7362 = vpop.f32.mrb[0].mxu0
  %v7363 = vadd.f32 0.0, %v7362
  %v7364 = vpop.f32.mrb[0].mxu0
  %v7365 = vpop.f32.mrb[0].mxu0
  %v7366 = vadd.f32 0.0, %v7365
  %v7367 = vpop.f32.mrb[0].mxu0
  %7368 = vmatprep.mubr.bf16.mxu0 %v7090
  %7369 = vmatmul.mubr.bf16.gmra.mrb[0].mxu0 %v7089
  %v7370 = vpop.f32.mrb[0].mxu0
  %v7371 = vadd.f32 0.0, %v7370
  %v7372 = vpop.f32.mrb[0].mxu0
  %v7373 = vpop.f32.mrb[0].mxu0
  %v7374 = vadd.f32 0.0, %v7373
  %v7375 = vpop.f32.mrb[0].mxu0
  %7376 = vmatprep.mubr.bf16.mxu0 %v7092
  %7377 = vmatmul.mubr.bf16.gmra.mrb[0].mxu0 %v7091
  %v7378 = vpop.f32.mrb[0].mxu0
  %v7379 = vadd.f32 0.0, %v7378
  %v7380 = vpop.f32.mrb[0].mxu0
  %v7381 = vpop.f32.mrb[0].mxu0
  %v7382 = vadd.f32 0.0, %v7381
  %v7383 = vpop.f32.mrb[0].mxu0
  %7384 = vmatprep.mubr.bf16.mxu0 %v7094
  %7385 = vmatmul.mubr.bf16.gmra.mrb[0].mxu0 %v7093
  %v7386 = vpop.f32.mrb[0].mxu0
  %v7387 = vadd.f32 0.0, %v7386
  %v7388 = vpop.f32.mrb[0].mxu0
  %v7389 = vpop.f32.mrb[0].mxu0
  %v7390 = vadd.f32 0.0, %v7389
  %v7391 = vpop.f32.mrb[0].mxu0
  %7392 = vmatprep.mubr.bf16.mxu0 %v7096
  %7393 = vmatmul.mubr.bf16.gmra.mrb[0].mxu0 %v7095
  %v7394 = vpop.f32.mrb[0].mxu0
  %v7395 = vadd.f32 0.0, %v7394
  %v7396 = vpop.f32.mrb[0].mxu0
  %v7397 = vpop.f32.mrb[0].mxu0
  %v7398 = vadd.f32 0.0, %v7397
  %v7399 = vpop.f32.mrb[0].mxu0
  %7400 = vmatprep.mubr.bf16.mxu0 %v7098
  %7401 = vmatmul.mubr.bf16.gmra.mrb[0].mxu0 %v7097
  %v7402 = vpop.f32.mrb[0].mxu0
  %v7403 = vadd.f32 0.0, %v7402
  %v7404 = vpop.f32.mrb[0].mxu0
  %v7405 = vpop.f32.mrb[0].mxu0
  %v7406 = vadd.f32 0.0, %v7405
  %v7407 = vpop.f32.mrb[0].mxu0
  %7408 = vmatprep.mubr.bf16.mxu0 %v7100
  %7409 = vmatmul.mubr.bf16.gmra.mrb[0].mxu0 %v7099
  %v7410 = vpop.f32.mrb[0].mxu0
  %v7411 = vadd.f32 0.0, %v7410
  %v7412 = vpop.f32.mrb[0].mxu0
  %v7413 = vpop.f32.mrb[0].mxu0
  %v7414 = vadd.f32 0.0, %v7413
  %v7415 = vpop.f32.mrb[0].mxu0
  %7416 = vmatprep.mubr.bf16.mxu0 %v7102
  %7417 = vmatmul.mubr.bf16.gmra.mrb[0].mxu0 %v7101
  %v7418 = vpop.f32.mrb[0].mxu0
  %v7419 = vadd.f32 0.0, %v7418
  %v7420 = vpop.f32.mrb[0].mxu0
  %v7421 = vpop.f32.mrb[0].mxu0
  %v7422 = vadd.f32 0.0, %v7421
  %v7423 = vpop.f32.mrb[0].mxu0
  %7424 = vmatprep.mubr.bf16.mxu0 %v7104
  %7425 = vmatmul.mubr.bf16.gmra.mrb[0].mxu0 %v7103
  %v7426 = vpop.f32.mrb[0].mxu0
  %v7427 = vadd.f32 0.0, %v7426
  %v7428 = vpop.f32.mrb[0].mxu0
  %v7429 = vpop.f32.mrb[0].mxu0
  %v7430 = vadd.f32 0.0, %v7429
  %v7431 = vpop.f32.mrb[0].mxu0
  %7432 = vmatprep.mubr.bf16.mxu0 %v7106
  %7433 = vmatmul.mubr.bf16.gmra.mrb[0].mxu0 %v7105
  %v7434 = vpop.f32.mrb[0].mxu0
  %v7435 = vadd.f32 0.0, %v7434
  %v7436 = vpop.f32.mrb[0].mxu0
  %v7437 = vpop.f32.mrb[0].mxu0
  %v7438 = vadd.f32 0.0, %v7437
  %v7439 = vpop.f32.mrb[0].mxu0
  %7440 = vmatprep.mubr.bf16.mxu0 %v7108
  %7441 = vmatmul.mubr.bf16.gmra.mrb[0].mxu0 %v7107
  %v7442 = vpop.f32.mrb[0].mxu0
  %v7443 = vadd.f32 0.0, %v7442
  %v7444 = vpop.f32.mrb[0].mxu0
  %v7445 = vpop.f32.mrb[0].mxu0
  %v7446 = vadd.f32 0.0, %v7445
  %v7447 = vpop.f32.mrb[0].mxu0
  %7448 = vmatprep.mubr.bf16.mxu0 %v7110
  %7449 = vmatmul.mubr.bf16.gmra.mrb[0].mxu0 %v7109
  %v7450 = vpop.f32.mrb[0].mxu0
  %v7451 = vadd.f32 0.0, %v7450
  %v7452 = vpop.f32.mrb[0].mxu0
  %v7453 = vpop.f32.mrb[0].mxu0
  %v7454 = vadd.f32 0.0, %v7453
  %v7455 = vpop.f32.mrb[0].mxu0
  %7456 = vmatprep.mubr.bf16.mxu0 %v7112
  %7457 = vmatmul.mubr.bf16.gmra.mrb[0].mxu0 %v7111
  %v7458 = vpop.f32.mrb[0].mxu0
  %v7459 = vadd.f32 0.0, %v7458
  %v7460 = vpop.f32.mrb[0].mxu0
  %v7461 = vpop.f32.mrb[0].mxu0
  %v7462 = vadd.f32 0.0, %v7461
  %v7463 = vpop.f32.mrb[0].mxu0
  %7464 = vmatprep.mubr.bf16.mxu0 %v7114
  %7465 = vmatmul.mubr.bf16.gmra.mrb[0].mxu0 %v7113
  %v7466 = vpop.f32.mrb[0].mxu0
  %v7467 = vadd.f32 0.0, %v7466
  %v7468 = vpop.f32.mrb[0].mxu0
  %v7469 = vpop.f32.mrb[0].mxu0
  %v7470 = vadd.f32 0.0, %v7469
  %v7471 = vpop.f32.mrb[0].mxu0
  %7472 = vmatprep.mubr.bf16.mxu0 %v7116
  %7473 = vmatmul.mubr.bf16.gmra.mrb[0].mxu0 %v7115
  %v7474 = vpop.f32.mrb[0].mxu0
  %v7475 = vadd.f32 0.0, %v7474
  %v7476 = vpop.f32.mrb[0].mxu0
  %v7477 = vpop.f32.mrb[0].mxu0
  %v7478 = vadd.f32 0.0, %v7477
  %v7479 = vpop.f32.mrb[0].mxu0
  %7480 = vmatprep.mubr.bf16.mxu0 %v7118
  %7481 = vmatmul.mubr.bf16.gmra.mrb[0].mxu0 %v7117
  %v7482 = vpop.f32.mrb[0].mxu0
  %v7483 = vadd.f32 0.0, %v7482
  %v7484 = vpop.f32.mrb[0].mxu0
  %v7485 = vpop.f32.mrb[0].mxu0
  %v7486 = vadd.f32 0.0, %v7485
  %v7487 = vpop.f32.mrb[0].mxu0
  %7488 = vmatprep.mubr.bf16.mxu0 %v7120
  %7489 = vmatmul.mubr.bf16.gmra.mrb[0].mxu0 %v7119
  %v7490 = vpop.f32.mrb[0].mxu0
  %v7491 = vadd.f32 0.0, %v7490
  %v7492 = vpop.f32.mrb[0].mxu0
  %v7493 = vpop.f32.mrb[0].mxu0
  %v7494 = vadd.f32 0.0, %v7493
  %v7495 = vpop.f32.mrb[0].mxu0
  %7496 = vmatprep.mubr.bf16.mxu0 %v7122
  %7497 = vmatmul.mubr.bf16.gmra.mrb[0].mxu0 %v7121
  %v7498 = vpop.f32.mrb[0].mxu0
  %v7499 = vadd.f32 0.0, %v7498
  %v7500 = vpop.f32.mrb[0].mxu0
  %v7501 = vpop.f32.mrb[0].mxu0
  %v7502 = vadd.f32 0.0, %v7501
  %v7503 = vpop.f32.mrb[0].mxu0
  %7504 = vmatprep.mubr.bf16.mxu0 %v7124
  %7505 = vmatmul.mubr.bf16.gmra.mrb[0].mxu0 %v7123
  %v7506 = vpop.f32.mrb[0].mxu0
  %v7507 = vadd.f32 0.0, %v7506
  %v7508 = vpop.f32.mrb[0].mxu0
  %v7509 = vpop.f32.mrb[0].mxu0
  %v7510 = vadd.f32 0.0, %v7509
  %v7511 = vpop.f32.mrb[0].mxu0
  %7512 = vmatprep.mubr.bf16.mxu0 %v7126
  %7513 = vmatmul.mubr.bf16.gmra.mrb[0].mxu0 %v7125
  %v7514 = vpop.f32.mrb[0].mxu0
  %v7515 = vadd.f32 0.0, %v7514
  %v7516 = vpop.f32.mrb[0].mxu0
  %v7517 = vpop.f32.mrb[0].mxu0
  %v7518 = vadd.f32 0.0, %v7517
  %v7519 = vpop.f32.mrb[0].mxu0
  %7520 = vmatprep.mubr.bf16.mxu0 %v7128
  %7521 = vmatmul.mubr.bf16.gmra.mrb[0].mxu0 %v7127
  %v7522 = vpop.f32.mrb[0].mxu0
  %v7523 = vadd.f32 0.0, %v7522
  %v7524 = vpop.f32.mrb[0].mxu0
  %v7525 = vpop.f32.mrb[0].mxu0
  %v7526 = vadd.f32 0.0, %v7525
  %v7527 = vpop.f32.mrb[0].mxu0
  %7528 = vmatprep.mubr.bf16.mxu0 %v7130
  %7529 = vmatmul.mubr.bf16.gmra.mrb[0].mxu0 %v7129
  %v7530 = vpop.f32.mrb[0].mxu0
  %v7531 = vadd.f32 0.0, %v7530
  %v7532 = vpop.f32.mrb[0].mxu0
  %v7533 = vpop.f32.mrb[0].mxu0
  %v7534 = vadd.f32 0.0, %v7533
  %v7535 = vpop.f32.mrb[0].mxu0
  %7536 = vmatprep.mubr.bf16.mxu0 %v7132
  %7537 = vmatmul.mubr.bf16.gmra.mrb[0].mxu0 %v7131
  %v7538 = vpop.f32.mrb[0].mxu0
  %v7539 = vadd.f32 0.0, %v7538
  %v7540 = vpop.f32.mrb[0].mxu0
  %v7541 = vpop.f32.mrb[0].mxu0
  %v7542 = vadd.f32 0.0, %v7541
  %v7543 = vpop.f32.mrb[0].mxu0
  %7544 = vmatprep.mubr.bf16.mxu0 %v7134
  %7545 = vmatmul.mubr.bf16.gmra.mrb[0].mxu0 %v7133
  %v7546 = vpop.f32.mrb[0].mxu0
  %v7547 = vadd.f32 0.0, %v7546
  %v7548 = vpop.f32.mrb[0].mxu0
  %v7549 = vpop.f32.mrb[0].mxu0
  %v7550 = vadd.f32 0.0, %v7549
  %v7551 = vpop.f32.mrb[0].mxu0
  %7552 = vdwg.mxu0
  %v7553 = vadd.f32 %v6542, %v7299
  %v7554 = vadd.f32 %v6543, %v7302
  %v7555 = vadd.f32 %v6544, %v7307
  %v7556 = vadd.f32 %v6545, %v7310
  %v7557 = vadd.f32 %v6546, %v7315
  %v7558 = vadd.f32 %v6547, %v7318
  %v7559 = vadd.f32 %v6548, %v7323
  %v7560 = vadd.f32 %v6549, %v7326
  %v7561 = vadd.f32 %v6550, %v7331
  %v7562 = vadd.f32 %v6551, %v7334
  %v7563 = vadd.f32 %v6552, %v7339
  %v7564 = vadd.f32 %v6553, %v7342
  %v7565 = vadd.f32 %v6554, %v7347
  %v7566 = vadd.f32 %v6555, %v7350
  %v7567 = vadd.f32 %v6556, %v7355
  %v7568 = vadd.f32 %v6557, %v7358
  %v7569 = vadd.f32 %v6558, %v7363
  %v7570 = vadd.f32 %v6559, %v7366
  %v7571 = vadd.f32 %v6560, %v7371
  %v7572 = vadd.f32 %v6561, %v7374
  %v7573 = vadd.f32 %v6562, %v7379
  %v7574 = vadd.f32 %v6563, %v7382
  %v7575 = vadd.f32 %v6564, %v7387
  %v7576 = vadd.f32 %v6565, %v7390
  %v7577 = vadd.f32 %v6566, %v7395
  %v7578 = vadd.f32 %v6567, %v7398
  %v7579 = vadd.f32 %v6568, %v7403
  %v7580 = vadd.f32 %v6569, %v7406
  %v7581 = vadd.f32 %v6570, %v7411
  %v7582 = vadd.f32 %v6571, %v7414
  %v7583 = vadd.f32 %v6572, %v7419
  %v7584 = vadd.f32 %v6573, %v7422
  %v7585 = vadd.f32 %v6574, %v7427
  %v7586 = vadd.f32 %v6575, %v7430
  %v7587 = vadd.f32 %v6576, %v7435
  %v7588 = vadd.f32 %v6577, %v7438
  %v7589 = vadd.f32 %v6578, %v7443
  %v7590 = vadd.f32 %v6579, %v7446
  %v7591 = vadd.f32 %v6580, %v7451
  %v7592 = vadd.f32 %v6581, %v7454
  %v7593 = vadd.f32 %v6582, %v7459
  %v7594 = vadd.f32 %v6583, %v7462
  %v7595 = vadd.f32 %v6584, %v7467
  %v7596 = vadd.f32 %v6585, %v7470
  %v7597 = vadd.f32 %v6586, %v7475
  %v7598 = vadd.f32 %v6587, %v7478
  %v7599 = vadd.f32 %v6588, %v7483
  %v7600 = vadd.f32 %v6589, %v7486
  %v7601 = vadd.f32 %v6590, %v7491
  %v7602 = vadd.f32 %v6591, %v7494
  %v7603 = vadd.f32 %v6592, %v7499
  %v7604 = vadd.f32 %v6593, %v7502
  %v7605 = vadd.f32 %v6594, %v7507
  %v7606 = vadd.f32 %v6595, %v7510
  %v7607 = vadd.f32 %v6596, %v7515
  %v7608 = vadd.f32 %v6597, %v7518
  %v7609 = vadd.f32 %v6598, %v7523
  %v7610 = vadd.f32 %v6599, %v7526
  %v7611 = vadd.f32 %v6600, %v7531
  %v7612 = vadd.f32 %v6601, %v7534
  %v7613 = vadd.f32 %v6602, %v7539
  %v7614 = vadd.f32 %v6603, %v7542
  %v7615 = vadd.f32 %v6604, %v7547
  %v7616 = vadd.f32 %v6605, %v7550
  %v7617 = vld [vmem:[#allocation2 + $0x20] sm:$0xfc]
  %v7618 = vld [vmem:[#allocation2 + $0x28] sm:$0xfc]
  %v7619 = vld [vmem:[#allocation2 + $0x30] sm:$0xff]
  %v7620 = vld [vmem:[#allocation2 + $0x38] sm:$0xff]
  %v7621 = vld [vmem:[#allocation2 + $0x40] sm:$0xff]
  %v7622 = vld [vmem:[#allocation2 + $0x48] sm:$0xff]
  %v7623 = vld [vmem:[#allocation2 + $0x50] sm:$0xff]
  %v7624 = vld [vmem:[#allocation2 + $0x58] sm:$0xff]
  %v7625 = vld [vmem:[#allocation2 + $0x60] sm:$0xff]
  %v7626 = vld [vmem:[#allocation2 + $0x68] sm:$0xff]
  %v7627 = vld [vmem:[#allocation2 + $0x70] sm:$0xff]
  %v7628 = vld [vmem:[#allocation2 + $0x78] sm:$0xff]
  %v7629 = vld [vmem:[#allocation2 + $0x80] sm:$0xff]
  %v7630 = vld [vmem:[#allocation2 + $0x88] sm:$0xff]
  %v7631 = vld [vmem:[#allocation2 + $0x90] sm:$0xff]
  %v7632 = vld [vmem:[#allocation2 + $0x98] sm:$0xff]
  %v7633 = vld [vmem:[#allocation2 + $0xa0] sm:$0x3]
  %v7634 = vld [vmem:[#allocation2 + $0xa8] sm:$0x3]
  %v7635 = vld [vmem:[#allocation2 + $0xe0] sm:$0xfc]
  %v7636 = vld [vmem:[#allocation2 + $0xe8] sm:$0xfc]
  %v7637 = vld [vmem:[#allocation2 + $0xf0] sm:$0xff]
  %v7638 = vld [vmem:[#allocation2 + $0xf8] sm:$0xff]
  %v7639 = vld [vmem:[#allocation2 + $0x100] sm:$0xff]
  %v7640 = vld [vmem:[#allocation2 + $0x108] sm:$0xff]
  %v7641 = vld [vmem:[#allocation2 + $0x110] sm:$0xff]
  %v7642 = vld [vmem:[#allocation2 + $0x118] sm:$0xff]
  %v7643 = vld [vmem:[#allocation2 + $0x120] sm:$0xff]
  %v7644 = vld [vmem:[#allocation2 + $0x128] sm:$0xff]
  %v7645 = vld [vmem:[#allocation2 + $0x130] sm:$0xff]
  %v7646 = vld [vmem:[#allocation2 + $0x138] sm:$0xff]
  %v7647 = vld [vmem:[#allocation2 + $0x140] sm:$0xff]
  %v7648 = vld [vmem:[#allocation2 + $0x148] sm:$0xff]
  %v7649 = vld [vmem:[#allocation2 + $0x150] sm:$0xff]
  %v7650 = vld [vmem:[#allocation2 + $0x158] sm:$0xff]
  %v7651 = vld [vmem:[#allocation2 + $0x160] sm:$0x3]
  %v7652 = vld [vmem:[#allocation2 + $0x168] sm:$0x3]
  %v7653 = vld [vmem:[#allocation2 + $0x1a0] sm:$0xfc]
  %v7654 = vld [vmem:[#allocation2 + $0x1a8] sm:$0xfc]
  %v7655 = vld [vmem:[#allocation2 + $0x1b0] sm:$0xff]
  %v7656 = vld [vmem:[#allocation2 + $0x1b8] sm:$0xff]
  %v7657 = vld [vmem:[#allocation2 + $0x1c0] sm:$0xff]
  %v7658 = vld [vmem:[#allocation2 + $0x1c8] sm:$0xff]
  %v7659 = vld [vmem:[#allocation2 + $0x1d0] sm:$0xff]
  %v7660 = vld [vmem:[#allocation2 + $0x1d8] sm:$0xff]
  %v7661 = vld [vmem:[#allocation2 + $0x1e0] sm:$0xff]
  %v7662 = vld [vmem:[#allocation2 + $0x1e8] sm:$0xff]
  %v7663 = vld [vmem:[#allocation2 + $0x1f0] sm:$0xff]
  %v7664 = vld [vmem:[#allocation2 + $0x1f8] sm:$0xff]
  %v7665 = vld [vmem:[#allocation2 + $0x200] sm:$0xff]
  %v7666 = vld [vmem:[#allocation2 + $0x208] sm:$0xff]
  %v7667 = vld [vmem:[#allocation2 + $0x210] sm:$0xff]
  %v7668 = vld [vmem:[#allocation2 + $0x218] sm:$0xff]
  %v7669 = vld [vmem:[#allocation2 + $0x220] sm:$0x3]
  %v7670 = vld [vmem:[#allocation2 + $0x228] sm:$0x3]
  %v7671 = vld [vmem:[#allocation2 + $0x260] sm:$0xfc]
  %v7672 = vld [vmem:[#allocation2 + $0x268] sm:$0xfc]
  %v7673 = vld [vmem:[#allocation2 + $0x270] sm:$0xff]
  %v7674 = vld [vmem:[#allocation2 + $0x278] sm:$0xff]
  %v7675 = vld [vmem:[#allocation2 + $0x280] sm:$0xff]
  %v7676 = vld [vmem:[#allocation2 + $0x288] sm:$0xff]
  %v7677 = vld [vmem:[#allocation2 + $0x290] sm:$0xff]
  %v7678 = vld [vmem:[#allocation2 + $0x298] sm:$0xff]
  %v7679 = vld [vmem:[#allocation2 + $0x2a0] sm:$0xff]
  %v7680 = vld [vmem:[#allocation2 + $0x2a8] sm:$0xff]
  %v7681 = vld [vmem:[#allocation2 + $0x2b0] sm:$0xff]
  %v7682 = vld [vmem:[#allocation2 + $0x2b8] sm:$0xff]
  %v7683 = vld [vmem:[#allocation2 + $0x2c0] sm:$0xff]
  %v7684 = vld [vmem:[#allocation2 + $0x2c8] sm:$0xff]
  %v7685 = vld [vmem:[#allocation2 + $0x2d0] sm:$0xff]
  %v7686 = vld [vmem:[#allocation2 + $0x2d8] sm:$0xff]
  %v7687 = vld [vmem:[#allocation2 + $0x2e0] sm:$0x3]
  %v7688 = vld [vmem:[#allocation2 + $0x2e8] sm:$0x3]
  %v7689 = vld [vmem:[#allocation2 + $0x320] sm:$0xfc]
  %v7690 = vld [vmem:[#allocation2 + $0x328] sm:$0xfc]
  %v7691 = vld [vmem:[#allocation2 + $0x330] sm:$0xff]
  %v7692 = vld [vmem:[#allocation2 + $0x338] sm:$0xff]
  %v7693 = vld [vmem:[#allocation2 + $0x340] sm:$0xff]
  %v7694 = vld [vmem:[#allocation2 + $0x348] sm:$0xff]
  %v7695 = vld [vmem:[#allocation2 + $0x350] sm:$0xff]
  %v7696 = vld [vmem:[#allocation2 + $0x358] sm:$0xff]
  %v7697 = vld [vmem:[#allocation2 + $0x360] sm:$0xff]
  %v7698 = vld [vmem:[#allocation2 + $0x368] sm:$0xff]
  %v7699 = vld [vmem:[#allocation2 + $0x370] sm:$0xff]
  %v7700 = vld [vmem:[#allocation2 + $0x378] sm:$0xff]
  %v7701 = vld [vmem:[#allocation2 + $0x380] sm:$0xff]
  %v7702 = vld [vmem:[#allocation2 + $0x388] sm:$0xff]
  %v7703 = vld [vmem:[#allocation2 + $0x390] sm:$0xff]
  %v7704 = vld [vmem:[#allocation2 + $0x398] sm:$0xff]
  %v7705 = vld [vmem:[#allocation2 + $0x3a0] sm:$0x3]
  %v7706 = vld [vmem:[#allocation2 + $0x3a8] sm:$0x3]
  %v7707 = vld [vmem:[#allocation2 + $0x3e0] sm:$0xfc]
  %v7708 = vld [vmem:[#allocation2 + $0x3e8] sm:$0xfc]
  %v7709 = vld [vmem:[#allocation2 + $0x3f0] sm:$0xff]
  %v7710 = vld [vmem:[#allocation2 + $0x3f8] sm:$0xff]
  %v7711 = vld [vmem:[#allocation2 + $0x400] sm:$0xff]
  %v7712 = vld [vmem:[#allocation2 + $0x408] sm:$0xff]
  %v7713 = vld [vmem:[#allocation2 + $0x410] sm:$0xff]
  %v7714 = vld [vmem:[#allocation2 + $0x418] sm:$0xff]
  %v7715 = vld [vmem:[#allocation2 + $0x420] sm:$0xff]
  %v7716 = vld [vmem:[#allocation2 + $0x428] sm:$0xff]
  %v7717 = vld [vmem:[#allocation2 + $0x430] sm:$0xff]
  %v7718 = vld [vmem:[#allocation2 + $0x438] sm:$0xff]
  %v7719 = vld [vmem:[#allocation2 + $0x440] sm:$0xff]
  %v7720 = vld [vmem:[#allocation2 + $0x448] sm:$0xff]
  %v7721 = vld [vmem:[#allocation2 + $0x450] sm:$0xff]
  %v7722 = vld [vmem:[#allocation2 + $0x458] sm:$0xff]
  %v7723 = vld [vmem:[#allocation2 + $0x460] sm:$0x3]
  %v7724 = vld [vmem:[#allocation2 + $0x468] sm:$0x3]
  %v7725 = vld [vmem:[#allocation2 + $0x4a0] sm:$0xfc]
  %v7726 = vld [vmem:[#allocation2 + $0x4a8] sm:$0xfc]
  %v7727 = vld [vmem:[#allocation2 + $0x4b0] sm:$0xff]
  %v7728 = vld [vmem:[#allocation2 + $0x4b8] sm:$0xff]
  %v7729 = vld [vmem:[#allocation2 + $0x4c0] sm:$0xff]
  %v7730 = vld [vmem:[#allocation2 + $0x4c8] sm:$0xff]
  %v7731 = vld [vmem:[#allocation2 + $0x4d0] sm:$0xff]
  %v7732 = vld [vmem:[#allocation2 + $0x4d8] sm:$0xff]
  %v7733 = vld [vmem:[#allocation2 + $0x4e0] sm:$0xff]
  %v7734 = vld [vmem:[#allocation2 + $0x4e8] sm:$0xff]
  %v7735 = vld [vmem:[#allocation2 + $0x4f0] sm:$0xff]
  %v7736 = vld [vmem:[#allocation2 + $0x4f8] sm:$0xff]
  %v7737 = vld [vmem:[#allocation2 + $0x500] sm:$0xff]
  %v7738 = vld [vmem:[#allocation2 + $0x508] sm:$0xff]
  %v7739 = vld [vmem:[#allocation2 + $0x510] sm:$0xff]
  %v7740 = vld [vmem:[#allocation2 + $0x518] sm:$0xff]
  %v7741 = vld [vmem:[#allocation2 + $0x520] sm:$0x3]
  %v7742 = vld [vmem:[#allocation2 + $0x528] sm:$0x3]
  %v7743 = vld [vmem:[#allocation2 + $0x560] sm:$0xfc]
  %v7744 = vld [vmem:[#allocation2 + $0x568] sm:$0xfc]
  %v7745 = vld [vmem:[#allocation2 + $0x570] sm:$0xff]
  %v7746 = vld [vmem:[#allocation2 + $0x578] sm:$0xff]
  %v7747 = vld [vmem:[#allocation2 + $0x580] sm:$0xff]
  %v7748 = vld [vmem:[#allocation2 + $0x588] sm:$0xff]
  %v7749 = vld [vmem:[#allocation2 + $0x590] sm:$0xff]
  %v7750 = vld [vmem:[#allocation2 + $0x598] sm:$0xff]
  %v7751 = vld [vmem:[#allocation2 + $0x5a0] sm:$0xff]
  %v7752 = vld [vmem:[#allocation2 + $0x5a8] sm:$0xff]
  %v7753 = vld [vmem:[#allocation2 + $0x5b0] sm:$0xff]
  %v7754 = vld [vmem:[#allocation2 + $0x5b8] sm:$0xff]
  %v7755 = vld [vmem:[#allocation2 + $0x5c0] sm:$0xff]
  %v7756 = vld [vmem:[#allocation2 + $0x5c8] sm:$0xff]
  %v7757 = vld [vmem:[#allocation2 + $0x5d0] sm:$0xff]
  %v7758 = vld [vmem:[#allocation2 + $0x5d8] sm:$0xff]
  %v7759 = vld [vmem:[#allocation2 + $0x5e0] sm:$0x3]
  %v7760 = vld [vmem:[#allocation2 + $0x5e8] sm:$0x3]
  %v7905 = vrot.slane %v7617, 2
  %v7906 = vrot.slane %v7619, 2
  %v7907 = vsel %vm3415, %v7905, %v7906
  %v7908 = vrot.slane %v7618, 2
  %v7909 = vrot.slane %v7620, 2
  %v7910 = vsel %vm3415, %v7908, %v7909
  %v7911 = vrot.slane %v7621, 2
  %v7912 = vsel %vm3415, %v7906, %v7911
  %v7913 = vrot.slane %v7622, 2
  %v7914 = vsel %vm3415, %v7909, %v7913
  %v7915 = vrot.slane %v7623, 2
  %v7916 = vsel %vm3415, %v7911, %v7915
  %v7917 = vrot.slane %v7624, 2
  %v7918 = vsel %vm3415, %v7913, %v7917
  %v7919 = vrot.slane %v7625, 2
  %v7920 = vsel %vm3415, %v7915, %v7919
  %v7921 = vrot.slane %v7626, 2
  %v7922 = vsel %vm3415, %v7917, %v7921
  %v7923 = vrot.slane %v7627, 2
  %v7924 = vsel %vm3415, %v7919, %v7923
  %v7925 = vrot.slane %v7628, 2
  %v7926 = vsel %vm3415, %v7921, %v7925
  %v7927 = vrot.slane %v7629, 2
  %v7928 = vsel %vm3415, %v7923, %v7927
  %v7929 = vrot.slane %v7630, 2
  %v7930 = vsel %vm3415, %v7925, %v7929
  %v7931 = vrot.slane %v7631, 2
  %v7932 = vsel %vm3415, %v7927, %v7931
  %v7933 = vrot.slane %v7632, 2
  %v7934 = vsel %vm3415, %v7929, %v7933
  %v7935 = vrot.slane %v7633, 2
  %v7936 = vsel %vm3415, %v7931, %v7935
  %v7937 = vrot.slane %v7634, 2
  %v7938 = vsel %vm3415, %v7933, %v7937
  %v7939 = vrot.slane %v7635, 2
  %v7940 = vrot.slane %v7637, 2
  %v7941 = vsel %vm3415, %v7939, %v7940
  %v7942 = vrot.slane %v7636, 2
  %v7943 = vrot.slane %v7638, 2
  %v7944 = vsel %vm3415, %v7942, %v7943
  %v7945 = vrot.slane %v7639, 2
  %v7946 = vsel %vm3415, %v7940, %v7945
  %v7947 = vrot.slane %v7640, 2
  %v7948 = vsel %vm3415, %v7943, %v7947
  %v7949 = vrot.slane %v7641, 2
  %v7950 = vsel %vm3415, %v7945, %v7949
  %v7951 = vrot.slane %v7642, 2
  %v7952 = vsel %vm3415, %v7947, %v7951
  %v7953 = vrot.slane %v7643, 2
  %v7954 = vsel %vm3415, %v7949, %v7953
  %v7955 = vrot.slane %v7644, 2
  %v7956 = vsel %vm3415, %v7951, %v7955
  %v7957 = vrot.slane %v7645, 2
  %v7958 = vsel %vm3415, %v7953, %v7957
  %v7959 = vrot.slane %v7646, 2
  %v7960 = vsel %vm3415, %v7955, %v7959
  %v7961 = vrot.slane %v7647, 2
  %v7962 = vsel %vm3415, %v7957, %v7961
  %v7963 = vrot.slane %v7648, 2
  %v7964 = vsel %vm3415, %v7959, %v7963
  %v7965 = vrot.slane %v7649, 2
  %v7966 = vsel %vm3415, %v7961, %v7965
  %v7967 = vrot.slane %v7650, 2
  %v7968 = vsel %vm3415, %v7963, %v7967
  %v7969 = vrot.slane %v7651, 2
  %v7970 = vsel %vm3415, %v7965, %v7969
  %v7971 = vrot.slane %v7652, 2
  %v7972 = vsel %vm3415, %v7967, %v7971
  %v7973 = vrot.slane %v7653, 2
  %v7974 = vrot.slane %v7655, 2
  %v7975 = vsel %vm3415, %v7973, %v7974
  %v7976 = vrot.slane %v7654, 2
  %v7977 = vrot.slane %v7656, 2
  %v7978 = vsel %vm3415, %v7976, %v7977
  %v7979 = vrot.slane %v7657, 2
  %v7980 = vsel %vm3415, %v7974, %v7979
  %v7981 = vrot.slane %v7658, 2
  %v7982 = vsel %vm3415, %v7977, %v7981
  %v7983 = vrot.slane %v7659, 2
  %v7984 = vsel %vm3415, %v7979, %v7983
  %v7985 = vrot.slane %v7660, 2
  %v7986 = vsel %vm3415, %v7981, %v7985
  %v7987 = vrot.slane %v7661, 2
  %v7988 = vsel %vm3415, %v7983, %v7987
  %v7989 = vrot.slane %v7662, 2
  %v7990 = vsel %vm3415, %v7985, %v7989
  %v7991 = vrot.slane %v7663, 2
  %v7992 = vsel %vm3415, %v7987, %v7991
  %v7993 = vrot.slane %v7664, 2
  %v7994 = vsel %vm3415, %v7989, %v7993
  %v7995 = vrot.slane %v7665, 2
  %v7996 = vsel %vm3415, %v7991, %v7995
  %v7997 = vrot.slane %v7666, 2
  %v7998 = vsel %vm3415, %v7993, %v7997
  %v7999 = vrot.slane %v7667, 2
  %v8000 = vsel %vm3415, %v7995, %v7999
  %v8001 = vrot.slane %v7668, 2
  %v8002 = vsel %vm3415, %v7997, %v8001
  %v8003 = vrot.slane %v7669, 2
  %v8004 = vsel %vm3415, %v7999, %v8003
  %v8005 = vrot.slane %v7670, 2
  %v8006 = vsel %vm3415, %v8001, %v8005
  %v8007 = vrot.slane %v7671, 2
  %v8008 = vrot.slane %v7673, 2
  %v8009 = vsel %vm3415, %v8007, %v8008
  %v8010 = vrot.slane %v7672, 2
  %v8011 = vrot.slane %v7674, 2
  %v8012 = vsel %vm3415, %v8010, %v8011
  %v8013 = vrot.slane %v7675, 2
  %v8014 = vsel %vm3415, %v8008, %v8013
  %v8015 = vrot.slane %v7676, 2
  %v8016 = vsel %vm3415, %v8011, %v8015
  %v8017 = vrot.slane %v7677, 2
  %v8018 = vsel %vm3415, %v8013, %v8017
  %v8019 = vrot.slane %v7678, 2
  %v8020 = vsel %vm3415, %v8015, %v8019
  %v8021 = vrot.slane %v7679, 2
  %v8022 = vsel %vm3415, %v8017, %v8021
  %v8023 = vrot.slane %v7680, 2
  %v8024 = vsel %vm3415, %v8019, %v8023
  %v8025 = vrot.slane %v7681, 2
  %v8026 = vsel %vm3415, %v8021, %v8025
  %v8027 = vrot.slane %v7682, 2
  %v8028 = vsel %vm3415, %v8023, %v8027
  %v8029 = vrot.slane %v7683, 2
  %v8030 = vsel %vm3415, %v8025, %v8029
  %v8031 = vrot.slane %v7684, 2
  %v8032 = vsel %vm3415, %v8027, %v8031
  %v8033 = vrot.slane %v7685, 2
  %v8034 = vsel %vm3415, %v8029, %v8033
  %v8035 = vrot.slane %v7686, 2
  %v8036 = vsel %vm3415, %v8031, %v8035
  %v8037 = vrot.slane %v7687, 2
  %v8038 = vsel %vm3415, %v8033, %v8037
  %v8039 = vrot.slane %v7688, 2
  %v8040 = vsel %vm3415, %v8035, %v8039
  %v8041 = vrot.slane %v7689, 2
  %v8042 = vrot.slane %v7691, 2
  %v8043 = vsel %vm3415, %v8041, %v8042
  %v8044 = vrot.slane %v7690, 2
  %v8045 = vrot.slane %v7692, 2
  %v8046 = vsel %vm3415, %v8044, %v8045
  %v8047 = vrot.slane %v7693, 2
  %v8048 = vsel %vm3415, %v8042, %v8047
  %v8049 = vrot.slane %v7694, 2
  %v8050 = vsel %vm3415, %v8045, %v8049
  %v8051 = vrot.slane %v7695, 2
  %v8052 = vsel %vm3415, %v8047, %v8051
  %v8053 = vrot.slane %v7696, 2
  %v8054 = vsel %vm3415, %v8049, %v8053
  %v8055 = vrot.slane %v7697, 2
  %v8056 = vsel %vm3415, %v8051, %v8055
  %v8057 = vrot.slane %v7698, 2
  %v8058 = vsel %vm3415, %v8053, %v8057
  %v8059 = vrot.slane %v7699, 2
  %v8060 = vsel %vm3415, %v8055, %v8059
  %v8061 = vrot.slane %v7700, 2
  %v8062 = vsel %vm3415, %v8057, %v8061
  %v8063 = vrot.slane %v7701, 2
  %v8064 = vsel %vm3415, %v8059, %v8063
  %v8065 = vrot.slane %v7702, 2
  %v8066 = vsel %vm3415, %v8061, %v8065
  %v8067 = vrot.slane %v7703, 2
  %v8068 = vsel %vm3415, %v8063, %v8067
  %v8069 = vrot.slane %v7704, 2
  %v8070 = vsel %vm3415, %v8065, %v8069
  %v8071 = vrot.slane %v7705, 2
  %v8072 = vsel %vm3415, %v8067, %v8071
  %v8073 = vrot.slane %v7706, 2
  %v8074 = vsel %vm3415, %v8069, %v8073
  %v8075 = vrot.slane %v7707, 2
  %v8076 = vrot.slane %v7709, 2
  %v8077 = vsel %vm3415, %v8075, %v8076
  %v8078 = vrot.slane %v7708, 2
  %v8079 = vrot.slane %v7710, 2
  %v8080 = vsel %vm3415, %v8078, %v8079
  %v8081 = vrot.slane %v7711, 2
  %v8082 = vsel %vm3415, %v8076, %v8081
  %v8083 = vrot.slane %v7712, 2
  %v8084 = vsel %vm3415, %v8079, %v8083
  %v8085 = vrot.slane %v7713, 2
  %v8086 = vsel %vm3415, %v8081, %v8085
  %v8087 = vrot.slane %v7714, 2
  %v8088 = vsel %vm3415, %v8083, %v8087
  %v8089 = vrot.slane %v7715, 2
  %v8090 = vsel %vm3415, %v8085, %v8089
  %v8091 = vrot.slane %v7716, 2
  %v8092 = vsel %vm3415, %v8087, %v8091
  %v8093 = vrot.slane %v7717, 2
  %v8094 = vsel %vm3415, %v8089, %v8093
  %v8095 = vrot.slane %v7718, 2
  %v8096 = vsel %vm3415, %v8091, %v8095
  %v8097 = vrot.slane %v7719, 2
  %v8098 = vsel %vm3415, %v8093, %v8097
  %v8099 = vrot.slane %v7720, 2
  %v8100 = vsel %vm3415, %v8095, %v8099
  %v8101 = vrot.slane %v7721, 2
  %v8102 = vsel %vm3415, %v8097, %v8101
  %v8103 = vrot.slane %v7722, 2
  %v8104 = vsel %vm3415, %v8099, %v8103
  %v8105 = vrot.slane %v7723, 2
  %v8106 = vsel %vm3415, %v8101, %v8105
  %v8107 = vrot.slane %v7724, 2
  %v8108 = vsel %vm3415, %v8103, %v8107
  %v8109 = vrot.slane %v7725, 2
  %v8110 = vrot.slane %v7727, 2
  %v8111 = vsel %vm3415, %v8109, %v8110
  %v8112 = vrot.slane %v7726, 2
  %v8113 = vrot.slane %v7728, 2
  %v8114 = vsel %vm3415, %v8112, %v8113
  %v8115 = vrot.slane %v7729, 2
  %v8116 = vsel %vm3415, %v8110, %v8115
  %v8117 = vrot.slane %v7730, 2
  %v8118 = vsel %vm3415, %v8113, %v8117
  %v8119 = vrot.slane %v7731, 2
  %v8120 = vsel %vm3415, %v8115, %v8119
  %v8121 = vrot.slane %v7732, 2
  %v8122 = vsel %vm3415, %v8117, %v8121
  %v8123 = vrot.slane %v7733, 2
  %v8124 = vsel %vm3415, %v8119, %v8123
  %v8125 = vrot.slane %v7734, 2
  %v8126 = vsel %vm3415, %v8121, %v8125
  %v8127 = vrot.slane %v7735, 2
  %v8128 = vsel %vm3415, %v8123, %v8127
  %v8129 = vrot.slane %v7736, 2
  %v8130 = vsel %vm3415, %v8125, %v8129
  %v8131 = vrot.slane %v7737, 2
  %v8132 = vsel %vm3415, %v8127, %v8131
  %v8133 = vrot.slane %v7738, 2
  %v8134 = vsel %vm3415, %v8129, %v8133
  %v8135 = vrot.slane %v7739, 2
  %v8136 = vsel %vm3415, %v8131, %v8135
  %v8137 = vrot.slane %v7740, 2
  %v8138 = vsel %vm3415, %v8133, %v8137
  %v8139 = vrot.slane %v7741, 2
  %v8140 = vsel %vm3415, %v8135, %v8139
  %v8141 = vrot.slane %v7742, 2
  %v8142 = vsel %vm3415, %v8137, %v8141
  %v8143 = vrot.slane %v7743, 2
  %v8144 = vrot.slane %v7745, 2
  %v8145 = vsel %vm3415, %v8143, %v8144
  %v8146 = vrot.slane %v7744, 2
  %v8147 = vrot.slane %v7746, 2
  %v8148 = vsel %vm3415, %v8146, %v8147
  %v8149 = vrot.slane %v7747, 2
  %v8150 = vsel %vm3415, %v8144, %v8149
  %v8151 = vrot.slane %v7748, 2
  %v8152 = vsel %vm3415, %v8147, %v8151
  %v8153 = vrot.slane %v7749, 2
  %v8154 = vsel %vm3415, %v8149, %v8153
  %v8155 = vrot.slane %v7750, 2
  %v8156 = vsel %vm3415, %v8151, %v8155
  %v8157 = vrot.slane %v7751, 2
  %v8158 = vsel %vm3415, %v8153, %v8157
  %v8159 = vrot.slane %v7752, 2
  %v8160 = vsel %vm3415, %v8155, %v8159
  %v8161 = vrot.slane %v7753, 2
  %v8162 = vsel %vm3415, %v8157, %v8161
  %v8163 = vrot.slane %v7754, 2
  %v8164 = vsel %vm3415, %v8159, %v8163
  %v8165 = vrot.slane %v7755, 2
  %v8166 = vsel %vm3415, %v8161, %v8165
  %v8167 = vrot.slane %v7756, 2
  %v8168 = vsel %vm3415, %v8163, %v8167
  %v8169 = vrot.slane %v7757, 2
  %v8170 = vsel %vm3415, %v8165, %v8169
  %v8171 = vrot.slane %v7758, 2
  %v8172 = vsel %vm3415, %v8167, %v8171
  %v8173 = vrot.slane %v7759, 2
  %v8174 = vsel %vm3415, %v8169, %v8173
  %v8175 = vrot.slane %v7760, 2
  %v8176 = vsel %vm3415, %v8171, %v8175
  %v8305 = vpack.c.bf16 %v7912, %v7907
  %v8306 = vpack.c.bf16 %v7914, %v7910
  %v8307 = vpack.c.bf16 %v7920, %v7916
  %v8308 = vpack.c.bf16 %v7922, %v7918
  %v8309 = vpack.c.bf16 %v7928, %v7924
  %v8310 = vpack.c.bf16 %v7930, %v7926
  %v8311 = vpack.c.bf16 %v7936, %v7932
  %v8312 = vpack.c.bf16 %v7938, %v7934
  %v8313 = vpack.c.bf16 %v7946, %v7941
  %v8314 = vpack.c.bf16 %v7948, %v7944
  %v8315 = vpack.c.bf16 %v7954, %v7950
  %v8316 = vpack.c.bf16 %v7956, %v7952
  %v8317 = vpack.c.bf16 %v7962, %v7958
  %v8318 = vpack.c.bf16 %v7964, %v7960
  %v8319 = vpack.c.bf16 %v7970, %v7966
  %v8320 = vpack.c.bf16 %v7972, %v7968
  %v8321 = vpack.c.bf16 %v7980, %v7975
  %v8322 = vpack.c.bf16 %v7982, %v7978
  %v8323 = vpack.c.bf16 %v7988, %v7984
  %v8324 = vpack.c.bf16 %v7990, %v7986
  %v8325 = vpack.c.bf16 %v7996, %v7992
  %v8326 = vpack.c.bf16 %v7998, %v7994
  %v8327 = vpack.c.bf16 %v8004, %v8000
  %v8328 = vpack.c.bf16 %v8006, %v8002
  %v8329 = vpack.c.bf16 %v8014, %v8009
  %v8330 = vpack.c.bf16 %v8016, %v8012
  %v8331 = vpack.c.bf16 %v8022, %v8018
  %v8332 = vpack.c.bf16 %v8024, %v8020
  %v8333 = vpack.c.bf16 %v8030, %v8026
  %v8334 = vpack.c.bf16 %v8032, %v8028
  %v8335 = vpack.c.bf16 %v8038, %v8034
  %v8336 = vpack.c.bf16 %v8040, %v8036
  %v8337 = vpack.c.bf16 %v8048, %v8043
  %v8338 = vpack.c.bf16 %v8050, %v8046
  %v8339 = vpack.c.bf16 %v8056, %v8052
  %v8340 = vpack.c.bf16 %v8058, %v8054
  %v8341 = vpack.c.bf16 %v8064, %v8060
  %v8342 = vpack.c.bf16 %v8066, %v8062
  %v8343 = vpack.c.bf16 %v8072, %v8068
  %v8344 = vpack.c.bf16 %v8074, %v8070
  %v8345 = vpack.c.bf16 %v8082, %v8077
  %v8346 = vpack.c.bf16 %v8084, %v8080
  %v8347 = vpack.c.bf16 %v8090, %v8086
  %v8348 = vpack.c.bf16 %v8092, %v8088
  %v8349 = vpack.c.bf16 %v8098, %v8094
  %v8350 = vpack.c.bf16 %v8100, %v8096
  %v8351 = vpack.c.bf16 %v8106, %v8102
  %v8352 = vpack.c.bf16 %v8108, %v8104
  %v8353 = vpack.c.bf16 %v8116, %v8111
  %v8354 = vpack.c.bf16 %v8118, %v8114
  %v8355 = vpack.c.bf16 %v8124, %v8120
  %v8356 = vpack.c.bf16 %v8126, %v8122
  %v8357 = vpack.c.bf16 %v8132, %v8128
  %v8358 = vpack.c.bf16 %v8134, %v8130
  %v8359 = vpack.c.bf16 %v8140, %v8136
  %v8360 = vpack.c.bf16 %v8142, %v8138
  %v8361 = vpack.c.bf16 %v8150, %v8145
  %v8362 = vpack.c.bf16 %v8152, %v8148
  %v8363 = vpack.c.bf16 %v8158, %v8154
  %v8364 = vpack.c.bf16 %v8160, %v8156
  %v8365 = vpack.c.bf16 %v8166, %v8162
  %v8366 = vpack.c.bf16 %v8168, %v8164
  %v8367 = vpack.c.bf16 %v8174, %v8170
  %v8368 = vpack.c.bf16 %v8176, %v8172
  %s8369 = scalar_lea.vmem %s4, 768
  %v8370 = vld [vmem:[%s8369] sm:$0xf]
  %v8371 = vld [vmem:[%s8369 + $0x4] sm:$0xf]
  %v8372 = vld [vmem:[%s8369 + $0x8] sm:$0xf]
  %v8373 = vld [vmem:[%s8369 + $0xc] sm:$0xf]
  %v8374 = vld [vmem:[%s8369 + $0x10] sm:$0xf]
  %v8375 = vld [vmem:[%s8369 + $0x14] sm:$0xf]
  %v8376 = vld [vmem:[%s8369 + $0x18] sm:$0xf]
  %v8377 = vld [vmem:[%s8369 + $0x1c] sm:$0xf]
  %v8378 = vld [vmem:[%s8369 + $0x20] sm:$0xf]
  %v8379 = vld [vmem:[%s8369 + $0x24] sm:$0xf]
  %v8380 = vld [vmem:[%s8369 + $0x28] sm:$0xf]
  %v8381 = vld [vmem:[%s8369 + $0x2c] sm:$0xf]
  %v8382 = vld [vmem:[%s8369 + $0x30] sm:$0xf]
  %v8383 = vld [vmem:[%s8369 + $0x34] sm:$0xf]
  %v8384 = vld [vmem:[%s8369 + $0x38] sm:$0xf]
  %v8385 = vld [vmem:[%s8369 + $0x3c] sm:$0xf]
  %v8386 = vld [vmem:[%s8369 + $0x40] sm:$0xf]
  %v8387 = vld [vmem:[%s8369 + $0x44] sm:$0xf]
  %v8388 = vld [vmem:[%s8369 + $0x48] sm:$0xf]
  %v8389 = vld [vmem:[%s8369 + $0x4c] sm:$0xf]
  %v8390 = vld [vmem:[%s8369 + $0x50] sm:$0xf]
  %v8391 = vld [vmem:[%s8369 + $0x54] sm:$0xf]
  %v8392 = vld [vmem:[%s8369 + $0x58] sm:$0xf]
  %v8393 = vld [vmem:[%s8369 + $0x5c] sm:$0xf]
  %v8394 = vld [vmem:[%s8369 + $0x60] sm:$0xf]
  %v8395 = vld [vmem:[%s8369 + $0x64] sm:$0xf]
  %v8396 = vld [vmem:[%s8369 + $0x68] sm:$0xf]
  %v8397 = vld [vmem:[%s8369 + $0x6c] sm:$0xf]
  %v8398 = vld [vmem:[%s8369 + $0x70] sm:$0xf]
  %v8399 = vld [vmem:[%s8369 + $0x74] sm:$0xf]
  %v8400 = vld [vmem:[%s8369 + $0x78] sm:$0xf]
  %v8401 = vld [vmem:[%s8369 + $0x7c] sm:$0xf]
  %v8434 = vunpack.c.l.b16 %v8370
  %v8435 = vunpack.c.l.b16 %v8371
  %v8436 = vunpack.c.l.b16 %v8372
  %v8437 = vunpack.c.l.b16 %v8373
  %v8438 = vunpack.c.l.b16 %v8374
  %v8439 = vunpack.c.l.b16 %v8375
  %v8440 = vunpack.c.l.b16 %v8376
  %v8441 = vunpack.c.l.b16 %v8377
  %v8442 = vunpack.c.l.b16 %v8378
  %v8443 = vunpack.c.l.b16 %v8379
  %v8444 = vunpack.c.l.b16 %v8380
  %v8445 = vunpack.c.l.b16 %v8381
  %v8446 = vunpack.c.l.b16 %v8382
  %v8447 = vunpack.c.l.b16 %v8383
  %v8448 = vunpack.c.l.b16 %v8384
  %v8449 = vunpack.c.l.b16 %v8385
  %v8450 = vunpack.c.l.b16 %v8386
  %v8451 = vunpack.c.l.b16 %v8387
  %v8452 = vunpack.c.l.b16 %v8388
  %v8453 = vunpack.c.l.b16 %v8389
  %v8454 = vunpack.c.l.b16 %v8390
  %v8455 = vunpack.c.l.b16 %v8391
  %v8456 = vunpack.c.l.b16 %v8392
  %v8457 = vunpack.c.l.b16 %v8393
  %v8458 = vunpack.c.l.b16 %v8394
  %v8459 = vunpack.c.l.b16 %v8395
  %v8460 = vunpack.c.l.b16 %v8396
  %v8461 = vunpack.c.l.b16 %v8397
  %v8462 = vunpack.c.l.b16 %v8398
  %v8463 = vunpack.c.l.b16 %v8399
  %v8464 = vunpack.c.l.b16 %v8400
  %v8465 = vunpack.c.l.b16 %v8401
  %v8466 = vpack.c.b16 %v8435, %v8434
  %v8467 = vpack.c.b16 %v8437, %v8436
  %v8468 = vpack.c.b16 %v8439, %v8438
  %v8469 = vpack.c.b16 %v8441, %v8440
  %v8470 = vpack.c.b16 %v8443, %v8442
  %v8471 = vpack.c.b16 %v8445, %v8444
  %v8472 = vpack.c.b16 %v8447, %v8446
  %v8473 = vpack.c.b16 %v8449, %v8448
  %v8474 = vpack.c.b16 %v8451, %v8450
  %v8475 = vpack.c.b16 %v8453, %v8452
  %v8476 = vpack.c.b16 %v8455, %v8454
  %v8477 = vpack.c.b16 %v8457, %v8456
  %v8478 = vpack.c.b16 %v8459, %v8458
  %v8479 = vpack.c.b16 %v8461, %v8460
  %v8480 = vpack.c.b16 %v8463, %v8462
  %v8481 = vpack.c.b16 %v8465, %v8464
  %8498 = vmatprep.subr.bf16.mxu0 0
  %8499 = vmatpush1.bf16.msra.mxu0 %v8466
  %8500 = vmatprep.subr.bf16.mxu0 0
  %8501 = vmatpush1.bf16.msra.mxu0 %v8467
  %8502 = vmatprep.subr.bf16.mxu0 0
  %8503 = vmatpush1.bf16.msra.mxu0 %v8468
  %8504 = vmatprep.subr.bf16.mxu0 0
  %8505 = vmatpush1.bf16.msra.mxu0 %v8469
  %8506 = vmatprep.subr.bf16.mxu0 0
  %8507 = vmatpush1.bf16.msra.mxu0 %v8470
  %8508 = vmatprep.subr.bf16.mxu0 0
  %8509 = vmatpush1.bf16.msra.mxu0 %v8471
  %8510 = vmatprep.subr.bf16.mxu0 0
  %8511 = vmatpush1.bf16.msra.mxu0 %v8472
  %8512 = vmatprep.subr.bf16.mxu0 0
  %8513 = vmatpush1.bf16.msra.mxu0 %v8473
  %8514 = vmatprep.subr.bf16.mxu0 0
  %8515 = vmatpush1.bf16.msra.mxu0 %v8474
  %8516 = vmatprep.subr.bf16.mxu0 0
  %8517 = vmatpush1.bf16.msra.mxu0 %v8475
  %8518 = vmatprep.subr.bf16.mxu0 0
  %8519 = vmatpush1.bf16.msra.mxu0 %v8476
  %8520 = vmatprep.subr.bf16.mxu0 0
  %8521 = vmatpush1.bf16.msra.mxu0 %v8477
  %8522 = vmatprep.subr.bf16.mxu0 0
  %8523 = vmatpush1.bf16.msra.mxu0 %v8478
  %8524 = vmatprep.subr.bf16.mxu0 0
  %8525 = vmatpush1.bf16.msra.mxu0 %v8479
  %8526 = vmatprep.subr.bf16.mxu0 0
  %8527 = vmatpush1.bf16.msra.mxu0 %v8480
  %8528 = vmatprep.subr.bf16.mxu0 0
  %8529 = vmatpush1.bf16.msra.mxu0 %v8481
  %8530 = vmatprep.mubr.bf16.mxu0 %v8306
  %8531 = vmatmul.mubr.bf16.gmra.mrb[0].mxu0 %v8305
  %v8532 = vpop.f32.mrb[0].mxu0
  %v8533 = vadd.f32 0.0, %v8532
  %v8534 = vpop.f32.mrb[0].mxu0
  %v8535 = vpop.f32.mrb[0].mxu0
  %v8536 = vadd.f32 0.0, %v8535
  %v8537 = vpop.f32.mrb[0].mxu0
  %8538 = vmatprep.mubr.bf16.mxu0 %v8308
  %8539 = vmatmul.mubr.bf16.gmra.mrb[0].mxu0 %v8307
  %v8540 = vpop.f32.mrb[0].mxu0
  %v8541 = vadd.f32 0.0, %v8540
  %v8542 = vpop.f32.mrb[0].mxu0
  %v8543 = vpop.f32.mrb[0].mxu0
  %v8544 = vadd.f32 0.0, %v8543
  %v8545 = vpop.f32.mrb[0].mxu0
  %8546 = vmatprep.mubr.bf16.mxu0 %v8310
  %8547 = vmatmul.mubr.bf16.gmra.mrb[0].mxu0 %v8309
  %v8548 = vpop.f32.mrb[0].mxu0
  %v8549 = vadd.f32 0.0, %v8548
  %v8550 = vpop.f32.mrb[0].mxu0
  %v8551 = vpop.f32.mrb[0].mxu0
  %v8552 = vadd.f32 0.0, %v8551
  %v8553 = vpop.f32.mrb[0].mxu0
  %8554 = vmatprep.mubr.bf16.mxu0 %v8312
  %8555 = vmatmul.mubr.bf16.gmra.mrb[0].mxu0 %v8311
  %v8556 = vpop.f32.mrb[0].mxu0
  %v8557 = vadd.f32 0.0, %v8556
  %v8558 = vpop.f32.mrb[0].mxu0
  %v8559 = vpop.f32.mrb[0].mxu0
  %v8560 = vadd.f32 0.0, %v8559
  %v8561 = vpop.f32.mrb[0].mxu0
  %8562 = vmatprep.mubr.bf16.mxu0 %v8314
  %8563 = vmatmul.mubr.bf16.gmra.mrb[0].mxu0 %v8313
  %v8564 = vpop.f32.mrb[0].mxu0
  %v8565 = vadd.f32 0.0, %v8564
  %v8566 = vpop.f32.mrb[0].mxu0
  %v8567 = vpop.f32.mrb[0].mxu0
  %v8568 = vadd.f32 0.0, %v8567
  %v8569 = vpop.f32.mrb[0].mxu0
  %8570 = vmatprep.mubr.bf16.mxu0 %v8316
  %8571 = vmatmul.mubr.bf16.gmra.mrb[0].mxu0 %v8315
  %v8572 = vpop.f32.mrb[0].mxu0
  %v8573 = vadd.f32 0.0, %v8572
  %v8574 = vpop.f32.mrb[0].mxu0
  %v8575 = vpop.f32.mrb[0].mxu0
  %v8576 = vadd.f32 0.0, %v8575
  %v8577 = vpop.f32.mrb[0].mxu0
  %8578 = vmatprep.mubr.bf16.mxu0 %v8318
  %8579 = vmatmul.mubr.bf16.gmra.mrb[0].mxu0 %v8317
  %v8580 = vpop.f32.mrb[0].mxu0
  %v8581 = vadd.f32 0.0, %v8580
  %v8582 = vpop.f32.mrb[0].mxu0
  %v8583 = vpop.f32.mrb[0].mxu0
  %v8584 = vadd.f32 0.0, %v8583
  %v8585 = vpop.f32.mrb[0].mxu0
  %8586 = vmatprep.mubr.bf16.mxu0 %v8320
  %8587 = vmatmul.mubr.bf16.gmra.mrb[0].mxu0 %v8319
  %v8588 = vpop.f32.mrb[0].mxu0
  %v8589 = vadd.f32 0.0, %v8588
  %v8590 = vpop.f32.mrb[0].mxu0
  %v8591 = vpop.f32.mrb[0].mxu0
  %v8592 = vadd.f32 0.0, %v8591
  %v8593 = vpop.f32.mrb[0].mxu0
  %8594 = vmatprep.mubr.bf16.mxu0 %v8322
  %8595 = vmatmul.mubr.bf16.gmra.mrb[0].mxu0 %v8321
  %v8596 = vpop.f32.mrb[0].mxu0
  %v8597 = vadd.f32 0.0, %v8596
  %v8598 = vpop.f32.mrb[0].mxu0
  %v8599 = vpop.f32.mrb[0].mxu0
  %v8600 = vadd.f32 0.0, %v8599
  %v8601 = vpop.f32.mrb[0].mxu0
  %8602 = vmatprep.mubr.bf16.mxu0 %v8324
  %8603 = vmatmul.mubr.bf16.gmra.mrb[0].mxu0 %v8323
  %v8604 = vpop.f32.mrb[0].mxu0
  %v8605 = vadd.f32 0.0, %v8604
  %v8606 = vpop.f32.mrb[0].mxu0
  %v8607 = vpop.f32.mrb[0].mxu0
  %v8608 = vadd.f32 0.0, %v8607
  %v8609 = vpop.f32.mrb[0].mxu0
  %8610 = vmatprep.mubr.bf16.mxu0 %v8326
  %8611 = vmatmul.mubr.bf16.gmra.mrb[0].mxu0 %v8325
  %v8612 = vpop.f32.mrb[0].mxu0
  %v8613 = vadd.f32 0.0, %v8612
  %v8614 = vpop.f32.mrb[0].mxu0
  %v8615 = vpop.f32.mrb[0].mxu0
  %v8616 = vadd.f32 0.0, %v8615
  %v8617 = vpop.f32.mrb[0].mxu0
  %8618 = vmatprep.mubr.bf16.mxu0 %v8328
  %8619 = vmatmul.mubr.bf16.gmra.mrb[0].mxu0 %v8327
  %v8620 = vpop.f32.mrb[0].mxu0
  %v8621 = vadd.f32 0.0, %v8620
  %v8622 = vpop.f32.mrb[0].mxu0
  %v8623 = vpop.f32.mrb[0].mxu0
  %v8624 = vadd.f32 0.0, %v8623
  %v8625 = vpop.f32.mrb[0].mxu0
  %8626 = vmatprep.mubr.bf16.mxu0 %v8330
  %8627 = vmatmul.mubr.bf16.gmra.mrb[0].mxu0 %v8329
  %v8628 = vpop.f32.mrb[0].mxu0
  %v8629 = vadd.f32 0.0, %v8628
  %v8630 = vpop.f32.mrb[0].mxu0
  %v8631 = vpop.f32.mrb[0].mxu0
  %v8632 = vadd.f32 0.0, %v8631
  %v8633 = vpop.f32.mrb[0].mxu0
  %8634 = vmatprep.mubr.bf16.mxu0 %v8332
  %8635 = vmatmul.mubr.bf16.gmra.mrb[0].mxu0 %v8331
  %v8636 = vpop.f32.mrb[0].mxu0
  %v8637 = vadd.f32 0.0, %v8636
  %v8638 = vpop.f32.mrb[0].mxu0
  %v8639 = vpop.f32.mrb[0].mxu0
  %v8640 = vadd.f32 0.0, %v8639
  %v8641 = vpop.f32.mrb[0].mxu0
  %8642 = vmatprep.mubr.bf16.mxu0 %v8334
  %8643 = vmatmul.mubr.bf16.gmra.mrb[0].mxu0 %v8333
  %v8644 = vpop.f32.mrb[0].mxu0
  %v8645 = vadd.f32 0.0, %v8644
  %v8646 = vpop.f32.mrb[0].mxu0
  %v8647 = vpop.f32.mrb[0].mxu0
  %v8648 = vadd.f32 0.0, %v8647
  %v8649 = vpop.f32.mrb[0].mxu0
  %8650 = vmatprep.mubr.bf16.mxu0 %v8336
  %8651 = vmatmul.mubr.bf16.gmra.mrb[0].mxu0 %v8335
  %v8652 = vpop.f32.mrb[0].mxu0
  %v8653 = vadd.f32 0.0, %v8652
  %v8654 = vpop.f32.mrb[0].mxu0
  %v8655 = vpop.f32.mrb[0].mxu0
  %v8656 = vadd.f32 0.0, %v8655
  %v8657 = vpop.f32.mrb[0].mxu0
  %8658 = vmatprep.mubr.bf16.mxu0 %v8338
  %8659 = vmatmul.mubr.bf16.gmra.mrb[0].mxu0 %v8337
  %v8660 = vpop.f32.mrb[0].mxu0
  %v8661 = vadd.f32 0.0, %v8660
  %v8662 = vpop.f32.mrb[0].mxu0
  %v8663 = vpop.f32.mrb[0].mxu0
  %v8664 = vadd.f32 0.0, %v8663
  %v8665 = vpop.f32.mrb[0].mxu0
  %8666 = vmatprep.mubr.bf16.mxu0 %v8340
  %8667 = vmatmul.mubr.bf16.gmra.mrb[0].mxu0 %v8339
  %v8668 = vpop.f32.mrb[0].mxu0
  %v8669 = vadd.f32 0.0, %v8668
  %v8670 = vpop.f32.mrb[0].mxu0
  %v8671 = vpop.f32.mrb[0].mxu0
  %v8672 = vadd.f32 0.0, %v8671
  %v8673 = vpop.f32.mrb[0].mxu0
  %8674 = vmatprep.mubr.bf16.mxu0 %v8342
  %8675 = vmatmul.mubr.bf16.gmra.mrb[0].mxu0 %v8341
  %v8676 = vpop.f32.mrb[0].mxu0
  %v8677 = vadd.f32 0.0, %v8676
  %v8678 = vpop.f32.mrb[0].mxu0
  %v8679 = vpop.f32.mrb[0].mxu0
  %v8680 = vadd.f32 0.0, %v8679
  %v8681 = vpop.f32.mrb[0].mxu0
  %8682 = vmatprep.mubr.bf16.mxu0 %v8344
  %8683 = vmatmul.mubr.bf16.gmra.mrb[0].mxu0 %v8343
  %v8684 = vpop.f32.mrb[0].mxu0
  %v8685 = vadd.f32 0.0, %v8684
  %v8686 = vpop.f32.mrb[0].mxu0
  %v8687 = vpop.f32.mrb[0].mxu0
  %v8688 = vadd.f32 0.0, %v8687
  %v8689 = vpop.f32.mrb[0].mxu0
  %8690 = vmatprep.mubr.bf16.mxu0 %v8346
  %8691 = vmatmul.mubr.bf16.gmra.mrb[0].mxu0 %v8345
  %v8692 = vpop.f32.mrb[0].mxu0
  %v8693 = vadd.f32 0.0, %v8692
  %v8694 = vpop.f32.mrb[0].mxu0
  %v8695 = vpop.f32.mrb[0].mxu0
  %v8696 = vadd.f32 0.0, %v8695
  %v8697 = vpop.f32.mrb[0].mxu0
  %8698 = vmatprep.mubr.bf16.mxu0 %v8348
  %8699 = vmatmul.mubr.bf16.gmra.mrb[0].mxu0 %v8347
  %v8700 = vpop.f32.mrb[0].mxu0
  %v8701 = vadd.f32 0.0, %v8700
  %v8702 = vpop.f32.mrb[0].mxu0
  %v8703 = vpop.f32.mrb[0].mxu0
  %v8704 = vadd.f32 0.0, %v8703
  %v8705 = vpop.f32.mrb[0].mxu0
  %8706 = vmatprep.mubr.bf16.mxu0 %v8350
  %8707 = vmatmul.mubr.bf16.gmra.mrb[0].mxu0 %v8349
  %v8708 = vpop.f32.mrb[0].mxu0
  %v8709 = vadd.f32 0.0, %v8708
  %v8710 = vpop.f32.mrb[0].mxu0
  %v8711 = vpop.f32.mrb[0].mxu0
  %v8712 = vadd.f32 0.0, %v8711
  %v8713 = vpop.f32.mrb[0].mxu0
  %8714 = vmatprep.mubr.bf16.mxu0 %v8352
  %8715 = vmatmul.mubr.bf16.gmra.mrb[0].mxu0 %v8351
  %v8716 = vpop.f32.mrb[0].mxu0
  %v8717 = vadd.f32 0.0, %v8716
  %v8718 = vpop.f32.mrb[0].mxu0
  %v8719 = vpop.f32.mrb[0].mxu0
  %v8720 = vadd.f32 0.0, %v8719
  %v8721 = vpop.f32.mrb[0].mxu0
  %8722 = vmatprep.mubr.bf16.mxu0 %v8354
  %8723 = vmatmul.mubr.bf16.gmra.mrb[0].mxu0 %v8353
  %v8724 = vpop.f32.mrb[0].mxu0
  %v8725 = vadd.f32 0.0, %v8724
  %v8726 = vpop.f32.mrb[0].mxu0
  %v8727 = vpop.f32.mrb[0].mxu0
  %v8728 = vadd.f32 0.0, %v8727
  %v8729 = vpop.f32.mrb[0].mxu0
  %8730 = vmatprep.mubr.bf16.mxu0 %v8356
  %8731 = vmatmul.mubr.bf16.gmra.mrb[0].mxu0 %v8355
  %v8732 = vpop.f32.mrb[0].mxu0
  %v8733 = vadd.f32 0.0, %v8732
  %v8734 = vpop.f32.mrb[0].mxu0
  %v8735 = vpop.f32.mrb[0].mxu0
  %v8736 = vadd.f32 0.0, %v8735
  %v8737 = vpop.f32.mrb[0].mxu0
  %8738 = vmatprep.mubr.bf16.mxu0 %v8358
  %8739 = vmatmul.mubr.bf16.gmra.mrb[0].mxu0 %v8357
  %v8740 = vpop.f32.mrb[0].mxu0
  %v8741 = vadd.f32 0.0, %v8740
  %v8742 = vpop.f32.mrb[0].mxu0
  %v8743 = vpop.f32.mrb[0].mxu0
  %v8744 = vadd.f32 0.0, %v8743
  %v8745 = vpop.f32.mrb[0].mxu0
  %8746 = vmatprep.mubr.bf16.mxu0 %v8360
  %8747 = vmatmul.mubr.bf16.gmra.mrb[0].mxu0 %v8359
  %v8748 = vpop.f32.mrb[0].mxu0
  %v8749 = vadd.f32 0.0, %v8748
  %v8750 = vpop.f32.mrb[0].mxu0
  %v8751 = vpop.f32.mrb[0].mxu0
  %v8752 = vadd.f32 0.0, %v8751
  %v8753 = vpop.f32.mrb[0].mxu0
  %8754 = vmatprep.mubr.bf16.mxu0 %v8362
  %8755 = vmatmul.mubr.bf16.gmra.mrb[0].mxu0 %v8361
  %v8756 = vpop.f32.mrb[0].mxu0
  %v8757 = vadd.f32 0.0, %v8756
  %v8758 = vpop.f32.mrb[0].mxu0
  %v8759 = vpop.f32.mrb[0].mxu0
  %v8760 = vadd.f32 0.0, %v8759
  %v8761 = vpop.f32.mrb[0].mxu0
  %8762 = vmatprep.mubr.bf16.mxu0 %v8364
  %8763 = vmatmul.mubr.bf16.gmra.mrb[0].mxu0 %v8363
  %v8764 = vpop.f32.mrb[0].mxu0
  %v8765 = vadd.f32 0.0, %v8764
  %v8766 = vpop.f32.mrb[0].mxu0
  %v8767 = vpop.f32.mrb[0].mxu0
  %v8768 = vadd.f32 0.0, %v8767
  %v8769 = vpop.f32.mrb[0].mxu0
  %8770 = vmatprep.mubr.bf16.mxu0 %v8366
  %8771 = vmatmul.mubr.bf16.gmra.mrb[0].mxu0 %v8365
  %v8772 = vpop.f32.mrb[0].mxu0
  %v8773 = vadd.f32 0.0, %v8772
  %v8774 = vpop.f32.mrb[0].mxu0
  %v8775 = vpop.f32.mrb[0].mxu0
  %v8776 = vadd.f32 0.0, %v8775
  %v8777 = vpop.f32.mrb[0].mxu0
  %8778 = vmatprep.mubr.bf16.mxu0 %v8368
  %8779 = vmatmul.mubr.bf16.gmra.mrb[0].mxu0 %v8367
  %v8780 = vpop.f32.mrb[0].mxu0
  %v8781 = vadd.f32 0.0, %v8780
  %v8782 = vpop.f32.mrb[0].mxu0
  %v8783 = vpop.f32.mrb[0].mxu0
  %v8784 = vadd.f32 0.0, %v8783
  %v8785 = vpop.f32.mrb[0].mxu0
  %8786 = vdwg.mxu0
  %v8787 = vadd.f32 %v7553, %v8533
  %v8788 = vadd.f32 %v7554, %v8536
  %v8789 = vadd.f32 %v7555, %v8541
  %v8790 = vadd.f32 %v7556, %v8544
  %v8791 = vadd.f32 %v7557, %v8549
  %v8792 = vadd.f32 %v7558, %v8552
  %v8793 = vadd.f32 %v7559, %v8557
  %v8794 = vadd.f32 %v7560, %v8560
  %v8795 = vadd.f32 %v7561, %v8565
  %v8796 = vadd.f32 %v7562, %v8568
  %v8797 = vadd.f32 %v7563, %v8573
  %v8798 = vadd.f32 %v7564, %v8576
  %v8799 = vadd.f32 %v7565, %v8581
  %v8800 = vadd.f32 %v7566, %v8584
  %v8801 = vadd.f32 %v7567, %v8589
  %v8802 = vadd.f32 %v7568, %v8592
  %v8803 = vadd.f32 %v7569, %v8597
  %v8804 = vadd.f32 %v7570, %v8600
  %v8805 = vadd.f32 %v7571, %v8605
  %v8806 = vadd.f32 %v7572, %v8608
  %v8807 = vadd.f32 %v7573, %v8613
  %v8808 = vadd.f32 %v7574, %v8616
  %v8809 = vadd.f32 %v7575, %v8621
  %v8810 = vadd.f32 %v7576, %v8624
  %v8811 = vadd.f32 %v7577, %v8629
  %v8812 = vadd.f32 %v7578, %v8632
  %v8813 = vadd.f32 %v7579, %v8637
  %v8814 = vadd.f32 %v7580, %v8640
  %v8815 = vadd.f32 %v7581, %v8645
  %v8816 = vadd.f32 %v7582, %v8648
  %v8817 = vadd.f32 %v7583, %v8653
  %v8818 = vadd.f32 %v7584, %v8656
  %v8819 = vadd.f32 %v7585, %v8661
  %v8820 = vadd.f32 %v7586, %v8664
  %v8821 = vadd.f32 %v7587, %v8669
  %v8822 = vadd.f32 %v7588, %v8672
  %v8823 = vadd.f32 %v7589, %v8677
  %v8824 = vadd.f32 %v7590, %v8680
  %v8825 = vadd.f32 %v7591, %v8685
  %v8826 = vadd.f32 %v7592, %v8688
  %v8827 = vadd.f32 %v7593, %v8693
  %v8828 = vadd.f32 %v7594, %v8696
  %v8829 = vadd.f32 %v7595, %v8701
  %v8830 = vadd.f32 %v7596, %v8704
  %v8831 = vadd.f32 %v7597, %v8709
  %v8832 = vadd.f32 %v7598, %v8712
  %v8833 = vadd.f32 %v7599, %v8717
  %v8834 = vadd.f32 %v7600, %v8720
  %v8835 = vadd.f32 %v7601, %v8725
  %v8836 = vadd.f32 %v7602, %v8728
  %v8837 = vadd.f32 %v7603, %v8733
  %v8838 = vadd.f32 %v7604, %v8736
  %v8839 = vadd.f32 %v7605, %v8741
  %v8840 = vadd.f32 %v7606, %v8744
  %v8841 = vadd.f32 %v7607, %v8749
  %v8842 = vadd.f32 %v7608, %v8752
  %v8843 = vadd.f32 %v7609, %v8757
  %v8844 = vadd.f32 %v7610, %v8760
  %v8845 = vadd.f32 %v7611, %v8765
  %v8846 = vadd.f32 %v7612, %v8768
  %v8847 = vadd.f32 %v7613, %v8773
  %v8848 = vadd.f32 %v7614, %v8776
  %v8849 = vadd.f32 %v7615, %v8781
  %v8850 = vadd.f32 %v7616, %v8784
  %v8851 = vld [vmem:[#allocation2 + $0x20] sm:$0xf8]
  %v8852 = vld [vmem:[#allocation2 + $0x28] sm:$0xf8]
  %v8853 = vld [vmem:[#allocation2 + $0xa0] sm:$0x7]
  %v8854 = vld [vmem:[#allocation2 + $0xa8] sm:$0x7]
  %v8855 = vld [vmem:[#allocation2 + $0xe0] sm:$0xf8]
  %v8856 = vld [vmem:[#allocation2 + $0xe8] sm:$0xf8]
  %v8857 = vld [vmem:[#allocation2 + $0x160] sm:$0x7]
  %v8858 = vld [vmem:[#allocation2 + $0x168] sm:$0x7]
  %v8859 = vld [vmem:[#allocation2 + $0x1a0] sm:$0xf8]
  %v8860 = vld [vmem:[#allocation2 + $0x1a8] sm:$0xf8]
  %v8861 = vld [vmem:[#allocation2 + $0x220] sm:$0x7]
  %v8862 = vld [vmem:[#allocation2 + $0x228] sm:$0x7]
  %v8863 = vld [vmem:[#allocation2 + $0x260] sm:$0xf8]
  %v8864 = vld [vmem:[#allocation2 + $0x268] sm:$0xf8]
  %v8865 = vld [vmem:[#allocation2 + $0x2e0] sm:$0x7]
  %v8866 = vld [vmem:[#allocation2 + $0x2e8] sm:$0x7]
  %v8867 = vld [vmem:[#allocation2 + $0x320] sm:$0xf8]
  %v8868 = vld [vmem:[#allocation2 + $0x328] sm:$0xf8]
  %v8869 = vld [vmem:[#allocation2 + $0x3a0] sm:$0x7]
  %v8870 = vld [vmem:[#allocation2 + $0x3a8] sm:$0x7]
  %v8871 = vld [vmem:[#allocation2 + $0x3e0] sm:$0xf8]
  %v8872 = vld [vmem:[#allocation2 + $0x3e8] sm:$0xf8]
  %v8873 = vld [vmem:[#allocation2 + $0x460] sm:$0x7]
  %v8874 = vld [vmem:[#allocation2 + $0x468] sm:$0x7]
  %v8875 = vld [vmem:[#allocation2 + $0x4a0] sm:$0xf8]
  %v8876 = vld [vmem:[#allocation2 + $0x4a8] sm:$0xf8]
  %v8877 = vld [vmem:[#allocation2 + $0x520] sm:$0x7]
  %v8878 = vld [vmem:[#allocation2 + $0x528] sm:$0x7]
  %v8879 = vld [vmem:[#allocation2 + $0x560] sm:$0xf8]
  %v8880 = vld [vmem:[#allocation2 + $0x568] sm:$0xf8]
  %v8881 = vld [vmem:[#allocation2 + $0x5e0] sm:$0x7]
  %v8882 = vld [vmem:[#allocation2 + $0x5e8] sm:$0x7]
  %v8915 = vrot.slane %v8851, 3
  %v8916 = vrot.slane %v7619, 3
  %v8917 = vsel %vm6670, %v8915, %v8916
  %v8918 = vrot.slane %v8852, 3
  %v8919 = vrot.slane %v7620, 3
  %v8920 = vsel %vm6670, %v8918, %v8919
  %v8921 = vrot.slane %v7621, 3
  %v8922 = vsel %vm6670, %v8916, %v8921
  %v8923 = vrot.slane %v7622, 3
  %v8924 = vsel %vm6670, %v8919, %v8923
  %v8925 = vrot.slane %v7623, 3
  %v8926 = vsel %vm6670, %v8921, %v8925
  %v8927 = vrot.slane %v7624, 3
  %v8928 = vsel %vm6670, %v8923, %v8927
  %v8929 = vrot.slane %v7625, 3
  %v8930 = vsel %vm6670, %v8925, %v8929
  %v8931 = vrot.slane %v7626, 3
  %v8932 = vsel %vm6670, %v8927, %v8931
  %v8933 = vrot.slane %v7627, 3
  %v8934 = vsel %vm6670, %v8929, %v8933
  %v8935 = vrot.slane %v7628, 3
  %v8936 = vsel %vm6670, %v8931, %v8935
  %v8937 = vrot.slane %v7629, 3
  %v8938 = vsel %vm6670, %v8933, %v8937
  %v8939 = vrot.slane %v7630, 3
  %v8940 = vsel %vm6670, %v8935, %v8939
  %v8941 = vrot.slane %v7631, 3
  %v8942 = vsel %vm6670, %v8937, %v8941
  %v8943 = vrot.slane %v7632, 3
  %v8944 = vsel %vm6670, %v8939, %v8943
  %v8945 = vrot.slane %v8853, 3
  %v8946 = vsel %vm6670, %v8941, %v8945
  %v8947 = vrot.slane %v8854, 3
  %v8948 = vsel %vm6670, %v8943, %v8947
  %v8949 = vrot.slane %v8855, 3
  %v8950 = vrot.slane %v7637, 3
  %v8951 = vsel %vm6670, %v8949, %v8950
  %v8952 = vrot.slane %v8856, 3
  %v8953 = vrot.slane %v7638, 3
  %v8954 = vsel %vm6670, %v8952, %v8953
  %v8955 = vrot.slane %v7639, 3
  %v8956 = vsel %vm6670, %v8950, %v8955
  %v8957 = vrot.slane %v7640, 3
  %v8958 = vsel %vm6670, %v8953, %v8957
  %v8959 = vrot.slane %v7641, 3
  %v8960 = vsel %vm6670, %v8955, %v8959
  %v8961 = vrot.slane %v7642, 3
  %v8962 = vsel %vm6670, %v8957, %v8961
  %v8963 = vrot.slane %v7643, 3
  %v8964 = vsel %vm6670, %v8959, %v8963
  %v8965 = vrot.slane %v7644, 3
  %v8966 = vsel %vm6670, %v8961, %v8965
  %v8967 = vrot.slane %v7645, 3
  %v8968 = vsel %vm6670, %v8963, %v8967
  %v8969 = vrot.slane %v7646, 3
  %v8970 = vsel %vm6670, %v8965, %v8969
  %v8971 = vrot.slane %v7647, 3
  %v8972 = vsel %vm6670, %v8967, %v8971
  %v8973 = vrot.slane %v7648, 3
  %v8974 = vsel %vm6670, %v8969, %v8973
  %v8975 = vrot.slane %v7649, 3
  %v8976 = vsel %vm6670, %v8971, %v8975
  %v8977 = vrot.slane %v7650, 3
  %v8978 = vsel %vm6670, %v8973, %v8977
  %v8979 = vrot.slane %v8857, 3
  %v8980 = vsel %vm6670, %v8975, %v8979
  %v8981 = vrot.slane %v8858, 3
  %v8982 = vsel %vm6670, %v8977, %v8981
  %v8983 = vrot.slane %v8859, 3
  %v8984 = vrot.slane %v7655, 3
  %v8985 = vsel %vm6670, %v8983, %v8984
  %v8986 = vrot.slane %v8860, 3
  %v8987 = vrot.slane %v7656, 3
  %v8988 = vsel %vm6670, %v8986, %v8987
  %v8989 = vrot.slane %v7657, 3
  %v8990 = vsel %vm6670, %v8984, %v8989
  %v8991 = vrot.slane %v7658, 3
  %v8992 = vsel %vm6670, %v8987, %v8991
  %v8993 = vrot.slane %v7659, 3
  %v8994 = vsel %vm6670, %v8989, %v8993
  %v8995 = vrot.slane %v7660, 3
  %v8996 = vsel %vm6670, %v8991, %v8995
  %v8997 = vrot.slane %v7661, 3
  %v8998 = vsel %vm6670, %v8993, %v8997
  %v8999 = vrot.slane %v7662, 3
  %v9000 = vsel %vm6670, %v8995, %v8999
  %v9001 = vrot.slane %v7663, 3
  %v9002 = vsel %vm6670, %v8997, %v9001
  %v9003 = vrot.slane %v7664, 3
  %v9004 = vsel %vm6670, %v8999, %v9003
  %v9005 = vrot.slane %v7665, 3
  %v9006 = vsel %vm6670, %v9001, %v9005
  %v9007 = vrot.slane %v7666, 3
  %v9008 = vsel %vm6670, %v9003, %v9007
  %v9009 = vrot.slane %v7667, 3
  %v9010 = vsel %vm6670, %v9005, %v9009
  %v9011 = vrot.slane %v7668, 3
  %v9012 = vsel %vm6670, %v9007, %v9011
  %v9013 = vrot.slane %v8861, 3
  %v9014 = vsel %vm6670, %v9009, %v9013
  %v9015 = vrot.slane %v8862, 3
  %v9016 = vsel %vm6670, %v9011, %v9015
  %v9017 = vrot.slane %v8863, 3
  %v9018 = vrot.slane %v7673, 3
  %v9019 = vsel %vm6670, %v9017, %v9018
  %v9020 = vrot.slane %v8864, 3
  %v9021 = vrot.slane %v7674, 3
  %v9022 = vsel %vm6670, %v9020, %v9021
  %v9023 = vrot.slane %v7675, 3
  %v9024 = vsel %vm6670, %v9018, %v9023
  %v9025 = vrot.slane %v7676, 3
  %v9026 = vsel %vm6670, %v9021, %v9025
  %v9027 = vrot.slane %v7677, 3
  %v9028 = vsel %vm6670, %v9023, %v9027
  %v9029 = vrot.slane %v7678, 3
  %v9030 = vsel %vm6670, %v9025, %v9029
  %v9031 = vrot.slane %v7679, 3
  %v9032 = vsel %vm6670, %v9027, %v9031
  %v9033 = vrot.slane %v7680, 3
  %v9034 = vsel %vm6670, %v9029, %v9033
  %v9035 = vrot.slane %v7681, 3
  %v9036 = vsel %vm6670, %v9031, %v9035
  %v9037 = vrot.slane %v7682, 3
  %v9038 = vsel %vm6670, %v9033, %v9037
  %v9039 = vrot.slane %v7683, 3
  %v9040 = vsel %vm6670, %v9035, %v9039
  %v9041 = vrot.slane %v7684, 3
  %v9042 = vsel %vm6670, %v9037, %v9041
  %v9043 = vrot.slane %v7685, 3
  %v9044 = vsel %vm6670, %v9039, %v9043
  %v9045 = vrot.slane %v7686, 3
  %v9046 = vsel %vm6670, %v9041, %v9045
  %v9047 = vrot.slane %v8865, 3
  %v9048 = vsel %vm6670, %v9043, %v9047
  %v9049 = vrot.slane %v8866, 3
  %v9050 = vsel %vm6670, %v9045, %v9049
  %v9051 = vrot.slane %v8867, 3
  %v9052 = vrot.slane %v7691, 3
  %v9053 = vsel %vm6670, %v9051, %v9052
  %v9054 = vrot.slane %v8868, 3
  %v9055 = vrot.slane %v7692, 3
  %v9056 = vsel %vm6670, %v9054, %v9055
  %v9057 = vrot.slane %v7693, 3
  %v9058 = vsel %vm6670, %v9052, %v9057
  %v9059 = vrot.slane %v7694, 3
  %v9060 = vsel %vm6670, %v9055, %v9059
  %v9061 = vrot.slane %v7695, 3
  %v9062 = vsel %vm6670, %v9057, %v9061
  %v9063 = vrot.slane %v7696, 3
  %v9064 = vsel %vm6670, %v9059, %v9063
  %v9065 = vrot.slane %v7697, 3
  %v9066 = vsel %vm6670, %v9061, %v9065
  %v9067 = vrot.slane %v7698, 3
  %v9068 = vsel %vm6670, %v9063, %v9067
  %v9069 = vrot.slane %v7699, 3
  %v9070 = vsel %vm6670, %v9065, %v9069
  %v9071 = vrot.slane %v7700, 3
  %v9072 = vsel %vm6670, %v9067, %v9071
  %v9073 = vrot.slane %v7701, 3
  %v9074 = vsel %vm6670, %v9069, %v9073
  %v9075 = vrot.slane %v7702, 3
  %v9076 = vsel %vm6670, %v9071, %v9075
  %v9077 = vrot.slane %v7703, 3
  %v9078 = vsel %vm6670, %v9073, %v9077
  %v9079 = vrot.slane %v7704, 3
  %v9080 = vsel %vm6670, %v9075, %v9079
  %v9081 = vrot.slane %v8869, 3
  %v9082 = vsel %vm6670, %v9077, %v9081
  %v9083 = vrot.slane %v8870, 3
  %v9084 = vsel %vm6670, %v9079, %v9083
  %v9085 = vrot.slane %v8871, 3
  %v9086 = vrot.slane %v7709, 3
  %v9087 = vsel %vm6670, %v9085, %v9086
  %v9088 = vrot.slane %v8872, 3
  %v9089 = vrot.slane %v7710, 3
  %v9090 = vsel %vm6670, %v9088, %v9089
  %v9091 = vrot.slane %v7711, 3
  %v9092 = vsel %vm6670, %v9086, %v9091
  %v9093 = vrot.slane %v7712, 3
  %v9094 = vsel %vm6670, %v9089, %v9093
  %v9095 = vrot.slane %v7713, 3
  %v9096 = vsel %vm6670, %v9091, %v9095
  %v9097 = vrot.slane %v7714, 3
  %v9098 = vsel %vm6670, %v9093, %v9097
  %v9099 = vrot.slane %v7715, 3
  %v9100 = vsel %vm6670, %v9095, %v9099
  %v9101 = vrot.slane %v7716, 3
  %v9102 = vsel %vm6670, %v9097, %v9101
  %v9103 = vrot.slane %v7717, 3
  %v9104 = vsel %vm6670, %v9099, %v9103
  %v9105 = vrot.slane %v7718, 3
  %v9106 = vsel %vm6670, %v9101, %v9105
  %v9107 = vrot.slane %v7719, 3
  %v9108 = vsel %vm6670, %v9103, %v9107
  %v9109 = vrot.slane %v7720, 3
  %v9110 = vsel %vm6670, %v9105, %v9109
  %v9111 = vrot.slane %v7721, 3
  %v9112 = vsel %vm6670, %v9107, %v9111
  %v9113 = vrot.slane %v7722, 3
  %v9114 = vsel %vm6670, %v9109, %v9113
  %v9115 = vrot.slane %v8873, 3
  %v9116 = vsel %vm6670, %v9111, %v9115
  %v9117 = vrot.slane %v8874, 3
  %v9118 = vsel %vm6670, %v9113, %v9117
  %v9119 = vrot.slane %v8875, 3
  %v9120 = vrot.slane %v7727, 3
  %v9121 = vsel %vm6670, %v9119, %v9120
  %v9122 = vrot.slane %v8876, 3
  %v9123 = vrot.slane %v7728, 3
  %v9124 = vsel %vm6670, %v9122, %v9123
  %v9125 = vrot.slane %v7729, 3
  %v9126 = vsel %vm6670, %v9120, %v9125
  %v9127 = vrot.slane %v7730, 3
  %v9128 = vsel %vm6670, %v9123, %v9127
  %v9129 = vrot.slane %v7731, 3
  %v9130 = vsel %vm6670, %v9125, %v9129
  %v9131 = vrot.slane %v7732, 3
  %v9132 = vsel %vm6670, %v9127, %v9131
  %v9133 = vrot.slane %v7733, 3
  %v9134 = vsel %vm6670, %v9129, %v9133
  %v9135 = vrot.slane %v7734, 3
  %v9136 = vsel %vm6670, %v9131, %v9135
  %v9137 = vrot.slane %v7735, 3
  %v9138 = vsel %vm6670, %v9133, %v9137
  %v9139 = vrot.slane %v7736, 3
  %v9140 = vsel %vm6670, %v9135, %v9139
  %v9141 = vrot.slane %v7737, 3
  %v9142 = vsel %vm6670, %v9137, %v9141
  %v9143 = vrot.slane %v7738, 3
  %v9144 = vsel %vm6670, %v9139, %v9143
  %v9145 = vrot.slane %v7739, 3
  %v9146 = vsel %vm6670, %v9141, %v9145
  %v9147 = vrot.slane %v7740, 3
  %v9148 = vsel %vm6670, %v9143, %v9147
  %v9149 = vrot.slane %v8877, 3
  %v9150 = vsel %vm6670, %v9145, %v9149
  %v9151 = vrot.slane %v8878, 3
  %v9152 = vsel %vm6670, %v9147, %v9151
  %v9153 = vrot.slane %v8879, 3
  %v9154 = vrot.slane %v7745, 3
  %v9155 = vsel %vm6670, %v9153, %v9154
  %v9156 = vrot.slane %v8880, 3
  %v9157 = vrot.slane %v7746, 3
  %v9158 = vsel %vm6670, %v9156, %v9157
  %v9159 = vrot.slane %v7747, 3
  %v9160 = vsel %vm6670, %v9154, %v9159
  %v9161 = vrot.slane %v7748, 3
  %v9162 = vsel %vm6670, %v9157, %v9161
  %v9163 = vrot.slane %v7749, 3
  %v9164 = vsel %vm6670, %v9159, %v9163
  %v9165 = vrot.slane %v7750, 3
  %v9166 = vsel %vm6670, %v9161, %v9165
  %v9167 = vrot.slane %v7751, 3
  %v9168 = vsel %vm6670, %v9163, %v9167
  %v9169 = vrot.slane %v7752, 3
  %v9170 = vsel %vm6670, %v9165, %v9169
  %v9171 = vrot.slane %v7753, 3
  %v9172 = vsel %vm6670, %v9167, %v9171
  %v9173 = vrot.slane %v7754, 3
  %v9174 = vsel %vm6670, %v9169, %v9173
  %v9175 = vrot.slane %v7755, 3
  %v9176 = vsel %vm6670, %v9171, %v9175
  %v9177 = vrot.slane %v7756, 3
  %v9178 = vsel %vm6670, %v9173, %v9177
  %v9179 = vrot.slane %v7757, 3
  %v9180 = vsel %vm6670, %v9175, %v9179
  %v9181 = vrot.slane %v7758, 3
  %v9182 = vsel %vm6670, %v9177, %v9181
  %v9183 = vrot.slane %v8881, 3
  %v9184 = vsel %vm6670, %v9179, %v9183
  %v9185 = vrot.slane %v8882, 3
  %v9186 = vsel %vm6670, %v9181, %v9185
  %v9315 = vpack.c.bf16 %v8922, %v8917
  %v9316 = vpack.c.bf16 %v8924, %v8920
  %v9317 = vpack.c.bf16 %v8930, %v8926
  %v9318 = vpack.c.bf16 %v8932, %v8928
  %v9319 = vpack.c.bf16 %v8938, %v8934
  %v9320 = vpack.c.bf16 %v8940, %v8936
  %v9321 = vpack.c.bf16 %v8946, %v8942
  %v9322 = vpack.c.bf16 %v8948, %v8944
  %v9323 = vpack.c.bf16 %v8956, %v8951
  %v9324 = vpack.c.bf16 %v8958, %v8954
  %v9325 = vpack.c.bf16 %v8964, %v8960
  %v9326 = vpack.c.bf16 %v8966, %v8962
  %v9327 = vpack.c.bf16 %v8972, %v8968
  %v9328 = vpack.c.bf16 %v8974, %v8970
  %v9329 = vpack.c.bf16 %v8980, %v8976
  %v9330 = vpack.c.bf16 %v8982, %v8978
  %v9331 = vpack.c.bf16 %v8990, %v8985
  %v9332 = vpack.c.bf16 %v8992, %v8988
  %v9333 = vpack.c.bf16 %v8998, %v8994
  %v9334 = vpack.c.bf16 %v9000, %v8996
  %v9335 = vpack.c.bf16 %v9006, %v9002
  %v9336 = vpack.c.bf16 %v9008, %v9004
  %v9337 = vpack.c.bf16 %v9014, %v9010
  %v9338 = vpack.c.bf16 %v9016, %v9012
  %v9339 = vpack.c.bf16 %v9024, %v9019
  %v9340 = vpack.c.bf16 %v9026, %v9022
  %v9341 = vpack.c.bf16 %v9032, %v9028
  %v9342 = vpack.c.bf16 %v9034, %v9030
  %v9343 = vpack.c.bf16 %v9040, %v9036
  %v9344 = vpack.c.bf16 %v9042, %v9038
  %v9345 = vpack.c.bf16 %v9048, %v9044
  %v9346 = vpack.c.bf16 %v9050, %v9046
  %v9347 = vpack.c.bf16 %v9058, %v9053
  %v9348 = vpack.c.bf16 %v9060, %v9056
  %v9349 = vpack.c.bf16 %v9066, %v9062
  %v9350 = vpack.c.bf16 %v9068, %v9064
  %v9351 = vpack.c.bf16 %v9074, %v9070
  %v9352 = vpack.c.bf16 %v9076, %v9072
  %v9353 = vpack.c.bf16 %v9082, %v9078
  %v9354 = vpack.c.bf16 %v9084, %v9080
  %v9355 = vpack.c.bf16 %v9092, %v9087
  %v9356 = vpack.c.bf16 %v9094, %v9090
  %v9357 = vpack.c.bf16 %v9100, %v9096
  %v9358 = vpack.c.bf16 %v9102, %v9098
  %v9359 = vpack.c.bf16 %v9108, %v9104
  %v9360 = vpack.c.bf16 %v9110, %v9106
  %v9361 = vpack.c.bf16 %v9116, %v9112
  %v9362 = vpack.c.bf16 %v9118, %v9114
  %v9363 = vpack.c.bf16 %v9126, %v9121
  %v9364 = vpack.c.bf16 %v9128, %v9124
  %v9365 = vpack.c.bf16 %v9134, %v9130
  %v9366 = vpack.c.bf16 %v9136, %v9132
  %v9367 = vpack.c.bf16 %v9142, %v9138
  %v9368 = vpack.c.bf16 %v9144, %v9140
  %v9369 = vpack.c.bf16 %v9150, %v9146
  %v9370 = vpack.c.bf16 %v9152, %v9148
  %v9371 = vpack.c.bf16 %v9160, %v9155
  %v9372 = vpack.c.bf16 %v9162, %v9158
  %v9373 = vpack.c.bf16 %v9168, %v9164
  %v9374 = vpack.c.bf16 %v9170, %v9166
  %v9375 = vpack.c.bf16 %v9176, %v9172
  %v9376 = vpack.c.bf16 %v9178, %v9174
  %v9377 = vpack.c.bf16 %v9184, %v9180
  %v9378 = vpack.c.bf16 %v9186, %v9182
  %s9379 = scalar_lea.vmem %s4, 896
  %v9380 = vld [vmem:[%s9379] sm:$0xf]
  %v9381 = vld [vmem:[%s9379 + $0x4] sm:$0xf]
  %v9382 = vld [vmem:[%s9379 + $0x8] sm:$0xf]
  %v9383 = vld [vmem:[%s9379 + $0xc] sm:$0xf]
  %v9384 = vld [vmem:[%s9379 + $0x10] sm:$0xf]
  %v9385 = vld [vmem:[%s9379 + $0x14] sm:$0xf]
  %v9386 = vld [vmem:[%s9379 + $0x18] sm:$0xf]
  %v9387 = vld [vmem:[%s9379 + $0x1c] sm:$0xf]
  %v9388 = vld [vmem:[%s9379 + $0x20] sm:$0xf]
  %v9389 = vld [vmem:[%s9379 + $0x24] sm:$0xf]
  %v9390 = vld [vmem:[%s9379 + $0x28] sm:$0xf]
  %v9391 = vld [vmem:[%s9379 + $0x2c] sm:$0xf]
  %v9392 = vld [vmem:[%s9379 + $0x30] sm:$0xf]
  %v9393 = vld [vmem:[%s9379 + $0x34] sm:$0xf]
  %v9394 = vld [vmem:[%s9379 + $0x38] sm:$0xf]
  %v9395 = vld [vmem:[%s9379 + $0x3c] sm:$0xf]
  %v9396 = vld [vmem:[%s9379 + $0x40] sm:$0xf]
  %v9397 = vld [vmem:[%s9379 + $0x44] sm:$0xf]
  %v9398 = vld [vmem:[%s9379 + $0x48] sm:$0xf]
  %v9399 = vld [vmem:[%s9379 + $0x4c] sm:$0xf]
  %v9400 = vld [vmem:[%s9379 + $0x50] sm:$0xf]
  %v9401 = vld [vmem:[%s9379 + $0x54] sm:$0xf]
  %v9402 = vld [vmem:[%s9379 + $0x58] sm:$0xf]
  %v9403 = vld [vmem:[%s9379 + $0x5c] sm:$0xf]
  %v9404 = vld [vmem:[%s9379 + $0x60] sm:$0xf]
  %v9405 = vld [vmem:[%s9379 + $0x64] sm:$0xf]
  %v9406 = vld [vmem:[%s9379 + $0x68] sm:$0xf]
  %v9407 = vld [vmem:[%s9379 + $0x6c] sm:$0xf]
  %v9408 = vld [vmem:[%s9379 + $0x70] sm:$0xf]
  %v9409 = vld [vmem:[%s9379 + $0x74] sm:$0xf]
  %v9410 = vld [vmem:[%s9379 + $0x78] sm:$0xf]
  %v9411 = vld [vmem:[%s9379 + $0x7c] sm:$0xf]
  %v9444 = vunpack.c.l.b16 %v9380
  %v9445 = vunpack.c.l.b16 %v9381
  %v9446 = vunpack.c.l.b16 %v9382
  %v9447 = vunpack.c.l.b16 %v9383
  %v9448 = vunpack.c.l.b16 %v9384
  %v9449 = vunpack.c.l.b16 %v9385
  %v9450 = vunpack.c.l.b16 %v9386
  %v9451 = vunpack.c.l.b16 %v9387
  %v9452 = vunpack.c.l.b16 %v9388
  %v9453 = vunpack.c.l.b16 %v9389
  %v9454 = vunpack.c.l.b16 %v9390
  %v9455 = vunpack.c.l.b16 %v9391
  %v9456 = vunpack.c.l.b16 %v9392
  %v9457 = vunpack.c.l.b16 %v9393
  %v9458 = vunpack.c.l.b16 %v9394
  %v9459 = vunpack.c.l.b16 %v9395
  %v9460 = vunpack.c.l.b16 %v9396
  %v9461 = vunpack.c.l.b16 %v9397
  %v9462 = vunpack.c.l.b16 %v9398
  %v9463 = vunpack.c.l.b16 %v9399
  %v9464 = vunpack.c.l.b16 %v9400
  %v9465 = vunpack.c.l.b16 %v9401
  %v9466 = vunpack.c.l.b16 %v9402
  %v9467 = vunpack.c.l.b16 %v9403
  %v9468 = vunpack.c.l.b16 %v9404
  %v9469 = vunpack.c.l.b16 %v9405
  %v9470 = vunpack.c.l.b16 %v9406
  %v9471 = vunpack.c.l.b16 %v9407
  %v9472 = vunpack.c.l.b16 %v9408
  %v9473 = vunpack.c.l.b16 %v9409
  %v9474 = vunpack.c.l.b16 %v9410
  %v9475 = vunpack.c.l.b16 %v9411
  %v9476 = vpack.c.b16 %v9445, %v9444
  %v9477 = vpack.c.b16 %v9447, %v9446
  %v9478 = vpack.c.b16 %v9449, %v9448
  %v9479 = vpack.c.b16 %v9451, %v9450
  %v9480 = vpack.c.b16 %v9453, %v9452
  %v9481 = vpack.c.b16 %v9455, %v9454
  %v9482 = vpack.c.b16 %v9457, %v9456
  %v9483 = vpack.c.b16 %v9459, %v9458
  %v9484 = vpack.c.b16 %v9461, %v9460
  %v9485 = vpack.c.b16 %v9463, %v9462
  %v9486 = vpack.c.b16 %v9465, %v9464
  %v9487 = vpack.c.b16 %v9467, %v9466
  %v9488 = vpack.c.b16 %v9469, %v9468
  %v9489 = vpack.c.b16 %v9471, %v9470
  %v9490 = vpack.c.b16 %v9473, %v9472
  %v9491 = vpack.c.b16 %v9475, %v9474
  %9508 = vmatprep.subr.bf16.mxu0 0
  %9509 = vmatpush1.bf16.msra.mxu0 %v9476
  %9510 = vmatprep.subr.bf16.mxu0 0
  %9511 = vmatpush1.bf16.msra.mxu0 %v9477
  %9512 = vmatprep.subr.bf16.mxu0 0
  %9513 = vmatpush1.bf16.msra.mxu0 %v9478
  %9514 = vmatprep.subr.bf16.mxu0 0
  %9515 = vmatpush1.bf16.msra.mxu0 %v9479
  %9516 = vmatprep.subr.bf16.mxu0 0
  %9517 = vmatpush1.bf16.msra.mxu0 %v9480
  %9518 = vmatprep.subr.bf16.mxu0 0
  %9519 = vmatpush1.bf16.msra.mxu0 %v9481
  %9520 = vmatprep.subr.bf16.mxu0 0
  %9521 = vmatpush1.bf16.msra.mxu0 %v9482
  %9522 = vmatprep.subr.bf16.mxu0 0
  %9523 = vmatpush1.bf16.msra.mxu0 %v9483
  %9524 = vmatprep.subr.bf16.mxu0 0
  %9525 = vmatpush1.bf16.msra.mxu0 %v9484
  %9526 = vmatprep.subr.bf16.mxu0 0
  %9527 = vmatpush1.bf16.msra.mxu0 %v9485
  %9528 = vmatprep.subr.bf16.mxu0 0
  %9529 = vmatpush1.bf16.msra.mxu0 %v9486
  %9530 = vmatprep.subr.bf16.mxu0 0
  %9531 = vmatpush1.bf16.msra.mxu0 %v9487
  %9532 = vmatprep.subr.bf16.mxu0 0
  %9533 = vmatpush1.bf16.msra.mxu0 %v9488
  %9534 = vmatprep.subr.bf16.mxu0 0
  %9535 = vmatpush1.bf16.msra.mxu0 %v9489
  %9536 = vmatprep.subr.bf16.mxu0 0
  %9537 = vmatpush1.bf16.msra.mxu0 %v9490
  %9538 = vmatprep.subr.bf16.mxu0 0
  %9539 = vmatpush1.bf16.msra.mxu0 %v9491
  %9540 = vmatprep.mubr.bf16.mxu0 %v9316
  %9541 = vmatmul.mubr.bf16.gmra.mrb[0].mxu0 %v9315
  %v9542 = vpop.f32.mrb[0].mxu0
  %v9543 = vadd.f32 0.0, %v9542
  %v9544 = vpop.f32.mrb[0].mxu0
  %v9545 = vpop.f32.mrb[0].mxu0
  %v9546 = vadd.f32 0.0, %v9545
  %v9547 = vpop.f32.mrb[0].mxu0
  %9548 = vmatprep.mubr.bf16.mxu0 %v9318
  %9549 = vmatmul.mubr.bf16.gmra.mrb[0].mxu0 %v9317
  %v9550 = vpop.f32.mrb[0].mxu0
  %v9551 = vadd.f32 0.0, %v9550
  %v9552 = vpop.f32.mrb[0].mxu0
  %v9553 = vpop.f32.mrb[0].mxu0
  %v9554 = vadd.f32 0.0, %v9553
  %v9555 = vpop.f32.mrb[0].mxu0
  %9556 = vmatprep.mubr.bf16.mxu0 %v9320
  %9557 = vmatmul.mubr.bf16.gmra.mrb[0].mxu0 %v9319
  %v9558 = vpop.f32.mrb[0].mxu0
  %v9559 = vadd.f32 0.0, %v9558
  %v9560 = vpop.f32.mrb[0].mxu0
  %v9561 = vpop.f32.mrb[0].mxu0
  %v9562 = vadd.f32 0.0, %v9561
  %v9563 = vpop.f32.mrb[0].mxu0
  %9564 = vmatprep.mubr.bf16.mxu0 %v9322
  %9565 = vmatmul.mubr.bf16.gmra.mrb[0].mxu0 %v9321
  %v9566 = vpop.f32.mrb[0].mxu0
  %v9567 = vadd.f32 0.0, %v9566
  %v9568 = vpop.f32.mrb[0].mxu0
  %v9569 = vpop.f32.mrb[0].mxu0
  %v9570 = vadd.f32 0.0, %v9569
  %v9571 = vpop.f32.mrb[0].mxu0
  %9572 = vmatprep.mubr.bf16.mxu0 %v9324
  %9573 = vmatmul.mubr.bf16.gmra.mrb[0].mxu0 %v9323
  %v9574 = vpop.f32.mrb[0].mxu0
  %v9575 = vadd.f32 0.0, %v9574
  %v9576 = vpop.f32.mrb[0].mxu0
  %v9577 = vpop.f32.mrb[0].mxu0
  %v9578 = vadd.f32 0.0, %v9577
  %v9579 = vpop.f32.mrb[0].mxu0
  %9580 = vmatprep.mubr.bf16.mxu0 %v9326
  %9581 = vmatmul.mubr.bf16.gmra.mrb[0].mxu0 %v9325
  %v9582 = vpop.f32.mrb[0].mxu0
  %v9583 = vadd.f32 0.0, %v9582
  %v9584 = vpop.f32.mrb[0].mxu0
  %v9585 = vpop.f32.mrb[0].mxu0
  %v9586 = vadd.f32 0.0, %v9585
  %v9587 = vpop.f32.mrb[0].mxu0
  %9588 = vmatprep.mubr.bf16.mxu0 %v9328
  %9589 = vmatmul.mubr.bf16.gmra.mrb[0].mxu0 %v9327
  %v9590 = vpop.f32.mrb[0].mxu0
  %v9591 = vadd.f32 0.0, %v9590
  %v9592 = vpop.f32.mrb[0].mxu0
  %v9593 = vpop.f32.mrb[0].mxu0
  %v9594 = vadd.f32 0.0, %v9593
  %v9595 = vpop.f32.mrb[0].mxu0
  %9596 = vmatprep.mubr.bf16.mxu0 %v9330
  %9597 = vmatmul.mubr.bf16.gmra.mrb[0].mxu0 %v9329
  %v9598 = vpop.f32.mrb[0].mxu0
  %v9599 = vadd.f32 0.0, %v9598
  %v9600 = vpop.f32.mrb[0].mxu0
  %v9601 = vpop.f32.mrb[0].mxu0
  %v9602 = vadd.f32 0.0, %v9601
  %v9603 = vpop.f32.mrb[0].mxu0
  %9604 = vmatprep.mubr.bf16.mxu0 %v9332
  %9605 = vmatmul.mubr.bf16.gmra.mrb[0].mxu0 %v9331
  %v9606 = vpop.f32.mrb[0].mxu0
  %v9607 = vadd.f32 0.0, %v9606
  %v9608 = vpop.f32.mrb[0].mxu0
  %v9609 = vpop.f32.mrb[0].mxu0
  %v9610 = vadd.f32 0.0, %v9609
  %v9611 = vpop.f32.mrb[0].mxu0
  %9612 = vmatprep.mubr.bf16.mxu0 %v9334
  %9613 = vmatmul.mubr.bf16.gmra.mrb[0].mxu0 %v9333
  %v9614 = vpop.f32.mrb[0].mxu0
  %v9615 = vadd.f32 0.0, %v9614
  %v9616 = vpop.f32.mrb[0].mxu0
  %v9617 = vpop.f32.mrb[0].mxu0
  %v9618 = vadd.f32 0.0, %v9617
  %v9619 = vpop.f32.mrb[0].mxu0
  %9620 = vmatprep.mubr.bf16.mxu0 %v9336
  %9621 = vmatmul.mubr.bf16.gmra.mrb[0].mxu0 %v9335
  %v9622 = vpop.f32.mrb[0].mxu0
  %v9623 = vadd.f32 0.0, %v9622
  %v9624 = vpop.f32.mrb[0].mxu0
  %v9625 = vpop.f32.mrb[0].mxu0
  %v9626 = vadd.f32 0.0, %v9625
  %v9627 = vpop.f32.mrb[0].mxu0
  %9628 = vmatprep.mubr.bf16.mxu0 %v9338
  %9629 = vmatmul.mubr.bf16.gmra.mrb[0].mxu0 %v9337
  %v9630 = vpop.f32.mrb[0].mxu0
  %v9631 = vadd.f32 0.0, %v9630
  %v9632 = vpop.f32.mrb[0].mxu0
  %v9633 = vpop.f32.mrb[0].mxu0
  %v9634 = vadd.f32 0.0, %v9633
  %v9635 = vpop.f32.mrb[0].mxu0
  %9636 = vmatprep.mubr.bf16.mxu0 %v9340
  %9637 = vmatmul.mubr.bf16.gmra.mrb[0].mxu0 %v9339
  %v9638 = vpop.f32.mrb[0].mxu0
  %v9639 = vadd.f32 0.0, %v9638
  %v9640 = vpop.f32.mrb[0].mxu0
  %v9641 = vpop.f32.mrb[0].mxu0
  %v9642 = vadd.f32 0.0, %v9641
  %v9643 = vpop.f32.mrb[0].mxu0
  %9644 = vmatprep.mubr.bf16.mxu0 %v9342
  %9645 = vmatmul.mubr.bf16.gmra.mrb[0].mxu0 %v9341
  %v9646 = vpop.f32.mrb[0].mxu0
  %v9647 = vadd.f32 0.0, %v9646
  %v9648 = vpop.f32.mrb[0].mxu0
  %v9649 = vpop.f32.mrb[0].mxu0
  %v9650 = vadd.f32 0.0, %v9649
  %v9651 = vpop.f32.mrb[0].mxu0
  %9652 = vmatprep.mubr.bf16.mxu0 %v9344
  %9653 = vmatmul.mubr.bf16.gmra.mrb[0].mxu0 %v9343
  %v9654 = vpop.f32.mrb[0].mxu0
  %v9655 = vadd.f32 0.0, %v9654
  %v9656 = vpop.f32.mrb[0].mxu0
  %v9657 = vpop.f32.mrb[0].mxu0
  %v9658 = vadd.f32 0.0, %v9657
  %v9659 = vpop.f32.mrb[0].mxu0
  %9660 = vmatprep.mubr.bf16.mxu0 %v9346
  %9661 = vmatmul.mubr.bf16.gmra.mrb[0].mxu0 %v9345
  %v9662 = vpop.f32.mrb[0].mxu0
  %v9663 = vadd.f32 0.0, %v9662
  %v9664 = vpop.f32.mrb[0].mxu0
  %v9665 = vpop.f32.mrb[0].mxu0
  %v9666 = vadd.f32 0.0, %v9665
  %v9667 = vpop.f32.mrb[0].mxu0
  %9668 = vmatprep.mubr.bf16.mxu0 %v9348
  %9669 = vmatmul.mubr.bf16.gmra.mrb[0].mxu0 %v9347
  %v9670 = vpop.f32.mrb[0].mxu0
  %v9671 = vadd.f32 0.0, %v9670
  %v9672 = vpop.f32.mrb[0].mxu0
  %v9673 = vpop.f32.mrb[0].mxu0
  %v9674 = vadd.f32 0.0, %v9673
  %v9675 = vpop.f32.mrb[0].mxu0
  %9676 = vmatprep.mubr.bf16.mxu0 %v9350
  %9677 = vmatmul.mubr.bf16.gmra.mrb[0].mxu0 %v9349
  %v9678 = vpop.f32.mrb[0].mxu0
  %v9679 = vadd.f32 0.0, %v9678
  %v9680 = vpop.f32.mrb[0].mxu0
  %v9681 = vpop.f32.mrb[0].mxu0
  %v9682 = vadd.f32 0.0, %v9681
  %v9683 = vpop.f32.mrb[0].mxu0
  %9684 = vmatprep.mubr.bf16.mxu0 %v9352
  %9685 = vmatmul.mubr.bf16.gmra.mrb[0].mxu0 %v9351
  %v9686 = vpop.f32.mrb[0].mxu0
  %v9687 = vadd.f32 0.0, %v9686
  %v9688 = vpop.f32.mrb[0].mxu0
  %v9689 = vpop.f32.mrb[0].mxu0
  %v9690 = vadd.f32 0.0, %v9689
  %v9691 = vpop.f32.mrb[0].mxu0
  %9692 = vmatprep.mubr.bf16.mxu0 %v9354
  %9693 = vmatmul.mubr.bf16.gmra.mrb[0].mxu0 %v9353
  %v9694 = vpop.f32.mrb[0].mxu0
  %v9695 = vadd.f32 0.0, %v9694
  %v9696 = vpop.f32.mrb[0].mxu0
  %v9697 = vpop.f32.mrb[0].mxu0
  %v9698 = vadd.f32 0.0, %v9697
  %v9699 = vpop.f32.mrb[0].mxu0
  %9700 = vmatprep.mubr.bf16.mxu0 %v9356
  %9701 = vmatmul.mubr.bf16.gmra.mrb[0].mxu0 %v9355
  %v9702 = vpop.f32.mrb[0].mxu0
  %v9703 = vadd.f32 0.0, %v9702
  %v9704 = vpop.f32.mrb[0].mxu0
  %v9705 = vpop.f32.mrb[0].mxu0
  %v9706 = vadd.f32 0.0, %v9705
  %v9707 = vpop.f32.mrb[0].mxu0
  %9708 = vmatprep.mubr.bf16.mxu0 %v9358
  %9709 = vmatmul.mubr.bf16.gmra.mrb[0].mxu0 %v9357
  %v9710 = vpop.f32.mrb[0].mxu0
  %v9711 = vadd.f32 0.0, %v9710
  %v9712 = vpop.f32.mrb[0].mxu0
  %v9713 = vpop.f32.mrb[0].mxu0
  %v9714 = vadd.f32 0.0, %v9713
  %v9715 = vpop.f32.mrb[0].mxu0
  %9716 = vmatprep.mubr.bf16.mxu0 %v9360
  %9717 = vmatmul.mubr.bf16.gmra.mrb[0].mxu0 %v9359
  %v9718 = vpop.f32.mrb[0].mxu0
  %v9719 = vadd.f32 0.0, %v9718
  %v9720 = vpop.f32.mrb[0].mxu0
  %v9721 = vpop.f32.mrb[0].mxu0
  %v9722 = vadd.f32 0.0, %v9721
  %v9723 = vpop.f32.mrb[0].mxu0
  %9724 = vmatprep.mubr.bf16.mxu0 %v9362
  %9725 = vmatmul.mubr.bf16.gmra.mrb[0].mxu0 %v9361
  %v9726 = vpop.f32.mrb[0].mxu0
  %v9727 = vadd.f32 0.0, %v9726
  %v9728 = vpop.f32.mrb[0].mxu0
  %v9729 = vpop.f32.mrb[0].mxu0
  %v9730 = vadd.f32 0.0, %v9729
  %v9731 = vpop.f32.mrb[0].mxu0
  %9732 = vmatprep.mubr.bf16.mxu0 %v9364
  %9733 = vmatmul.mubr.bf16.gmra.mrb[0].mxu0 %v9363
  %v9734 = vpop.f32.mrb[0].mxu0
  %v9735 = vadd.f32 0.0, %v9734
  %v9736 = vpop.f32.mrb[0].mxu0
  %v9737 = vpop.f32.mrb[0].mxu0
  %v9738 = vadd.f32 0.0, %v9737
  %v9739 = vpop.f32.mrb[0].mxu0
  %9740 = vmatprep.mubr.bf16.mxu0 %v9366
  %9741 = vmatmul.mubr.bf16.gmra.mrb[0].mxu0 %v9365
  %v9742 = vpop.f32.mrb[0].mxu0
  %v9743 = vadd.f32 0.0, %v9742
  %v9744 = vpop.f32.mrb[0].mxu0
  %v9745 = vpop.f32.mrb[0].mxu0
  %v9746 = vadd.f32 0.0, %v9745
  %v9747 = vpop.f32.mrb[0].mxu0
  %9748 = vmatprep.mubr.bf16.mxu0 %v9368
  %9749 = vmatmul.mubr.bf16.gmra.mrb[0].mxu0 %v9367
  %v9750 = vpop.f32.mrb[0].mxu0
  %v9751 = vadd.f32 0.0, %v9750
  %v9752 = vpop.f32.mrb[0].mxu0
  %v9753 = vpop.f32.mrb[0].mxu0
  %v9754 = vadd.f32 0.0, %v9753
  %v9755 = vpop.f32.mrb[0].mxu0
  %9756 = vmatprep.mubr.bf16.mxu0 %v9370
  %9757 = vmatmul.mubr.bf16.gmra.mrb[0].mxu0 %v9369
  %v9758 = vpop.f32.mrb[0].mxu0
  %v9759 = vadd.f32 0.0, %v9758
  %v9760 = vpop.f32.mrb[0].mxu0
  %v9761 = vpop.f32.mrb[0].mxu0
  %v9762 = vadd.f32 0.0, %v9761
  %v9763 = vpop.f32.mrb[0].mxu0
  %9764 = vmatprep.mubr.bf16.mxu0 %v9372
  %9765 = vmatmul.mubr.bf16.gmra.mrb[0].mxu0 %v9371
  %v9766 = vpop.f32.mrb[0].mxu0
  %v9767 = vadd.f32 0.0, %v9766
  %v9768 = vpop.f32.mrb[0].mxu0
  %v9769 = vpop.f32.mrb[0].mxu0
  %v9770 = vadd.f32 0.0, %v9769
  %v9771 = vpop.f32.mrb[0].mxu0
  %9772 = vmatprep.mubr.bf16.mxu0 %v9374
  %9773 = vmatmul.mubr.bf16.gmra.mrb[0].mxu0 %v9373
  %v9774 = vpop.f32.mrb[0].mxu0
  %v9775 = vadd.f32 0.0, %v9774
  %v9776 = vpop.f32.mrb[0].mxu0
  %v9777 = vpop.f32.mrb[0].mxu0
  %v9778 = vadd.f32 0.0, %v9777
  %v9779 = vpop.f32.mrb[0].mxu0
  %9780 = vmatprep.mubr.bf16.mxu0 %v9376
  %9781 = vmatmul.mubr.bf16.gmra.mrb[0].mxu0 %v9375
  %v9782 = vpop.f32.mrb[0].mxu0
  %v9783 = vadd.f32 0.0, %v9782
  %v9784 = vpop.f32.mrb[0].mxu0
  %v9785 = vpop.f32.mrb[0].mxu0
  %v9786 = vadd.f32 0.0, %v9785
  %v9787 = vpop.f32.mrb[0].mxu0
  %9788 = vmatprep.mubr.bf16.mxu0 %v9378
  %9789 = vmatmul.mubr.bf16.gmra.mrb[0].mxu0 %v9377
  %v9790 = vpop.f32.mrb[0].mxu0
  %v9791 = vadd.f32 0.0, %v9790
  %v9792 = vpop.f32.mrb[0].mxu0
  %v9793 = vpop.f32.mrb[0].mxu0
  %v9794 = vadd.f32 0.0, %v9793
  %v9795 = vpop.f32.mrb[0].mxu0
  %9796 = vdwg.mxu0
  %v9797 = vadd.f32 %v8787, %v9543
  %v9798 = vadd.f32 %v8788, %v9546
  %v9799 = vadd.f32 %v8789, %v9551
  %v9800 = vadd.f32 %v8790, %v9554
  %v9801 = vadd.f32 %v8791, %v9559
  %v9802 = vadd.f32 %v8792, %v9562
  %v9803 = vadd.f32 %v8793, %v9567
  %v9804 = vadd.f32 %v8794, %v9570
  %v9805 = vadd.f32 %v8795, %v9575
  %v9806 = vadd.f32 %v8796, %v9578
  %v9807 = vadd.f32 %v8797, %v9583
  %v9808 = vadd.f32 %v8798, %v9586
  %v9809 = vadd.f32 %v8799, %v9591
  %v9810 = vadd.f32 %v8800, %v9594
  %v9811 = vadd.f32 %v8801, %v9599
  %v9812 = vadd.f32 %v8802, %v9602
  %v9813 = vadd.f32 %v8803, %v9607
  %v9814 = vadd.f32 %v8804, %v9610
  %v9815 = vadd.f32 %v8805, %v9615
  %v9816 = vadd.f32 %v8806, %v9618
  %v9817 = vadd.f32 %v8807, %v9623
  %v9818 = vadd.f32 %v8808, %v9626
  %v9819 = vadd.f32 %v8809, %v9631
  %v9820 = vadd.f32 %v8810, %v9634
  %v9821 = vadd.f32 %v8811, %v9639
  %v9822 = vadd.f32 %v8812, %v9642
  %v9823 = vadd.f32 %v8813, %v9647
  %v9824 = vadd.f32 %v8814, %v9650
  %v9825 = vadd.f32 %v8815, %v9655
  %v9826 = vadd.f32 %v8816, %v9658
  %v9827 = vadd.f32 %v8817, %v9663
  %v9828 = vadd.f32 %v8818, %v9666
  %v9829 = vadd.f32 %v8819, %v9671
  %v9830 = vadd.f32 %v8820, %v9674
  %v9831 = vadd.f32 %v8821, %v9679
  %v9832 = vadd.f32 %v8822, %v9682
  %v9833 = vadd.f32 %v8823, %v9687
  %v9834 = vadd.f32 %v8824, %v9690
  %v9835 = vadd.f32 %v8825, %v9695
  %v9836 = vadd.f32 %v8826, %v9698
  %v9837 = vadd.f32 %v8827, %v9703
  %v9838 = vadd.f32 %v8828, %v9706
  %v9839 = vadd.f32 %v8829, %v9711
  %v9840 = vadd.f32 %v8830, %v9714
  %v9841 = vadd.f32 %v8831, %v9719
  %v9842 = vadd.f32 %v8832, %v9722
  %v9843 = vadd.f32 %v8833, %v9727
  %v9844 = vadd.f32 %v8834, %v9730
  %v9845 = vadd.f32 %v8835, %v9735
  %v9846 = vadd.f32 %v8836, %v9738
  %v9847 = vadd.f32 %v8837, %v9743
  %v9848 = vadd.f32 %v8838, %v9746
  %v9849 = vadd.f32 %v8839, %v9751
  %v9850 = vadd.f32 %v8840, %v9754
  %v9851 = vadd.f32 %v8841, %v9759
  %v9852 = vadd.f32 %v8842, %v9762
  %v9853 = vadd.f32 %v8843, %v9767
  %v9854 = vadd.f32 %v8844, %v9770
  %v9855 = vadd.f32 %v8845, %v9775
  %v9856 = vadd.f32 %v8846, %v9778
  %v9857 = vadd.f32 %v8847, %v9783
  %v9858 = vadd.f32 %v8848, %v9786
  %v9859 = vadd.f32 %v8849, %v9791
  %v9860 = vadd.f32 %v8850, %v9794
  %v9861 = vld [vmem:[#allocation2 + $0x20] sm:$0xf0]
  %v9862 = vld [vmem:[#allocation2 + $0x28] sm:$0xf0]
  %v9863 = vld [vmem:[#allocation2 + $0xa0] sm:$0xf]
  %v9864 = vld [vmem:[#allocation2 + $0xa8] sm:$0xf]
  %v9865 = vld [vmem:[#allocation2 + $0xe0] sm:$0xf0]
  %v9866 = vld [vmem:[#allocation2 + $0xe8] sm:$0xf0]
  %v9867 = vld [vmem:[#allocation2 + $0x160] sm:$0xf]
  %v9868 = vld [vmem:[#allocation2 + $0x168] sm:$0xf]
  %v9869 = vld [vmem:[#allocation2 + $0x1a0] sm:$0xf0]
  %v9870 = vld [vmem:[#allocation2 + $0x1a8] sm:$0xf0]
  %v9871 = vld [vmem:[#allocation2 + $0x220] sm:$0xf]
  %v9872 = vld [vmem:[#allocation2 + $0x228] sm:$0xf]
  %v9873 = vld [vmem:[#allocation2 + $0x260] sm:$0xf0]
  %v9874 = vld [vmem:[#allocation2 + $0x268] sm:$0xf0]
  %v9875 = vld [vmem:[#allocation2 + $0x2e0] sm:$0xf]
  %v9876 = vld [vmem:[#allocation2 + $0x2e8] sm:$0xf]
  %v9877 = vld [vmem:[#allocation2 + $0x320] sm:$0xf0]
  %v9878 = vld [vmem:[#allocation2 + $0x328] sm:$0xf0]
  %v9879 = vld [vmem:[#allocation2 + $0x3a0] sm:$0xf]
  %v9880 = vld [vmem:[#allocation2 + $0x3a8] sm:$0xf]
  %v9881 = vld [vmem:[#allocation2 + $0x3e0] sm:$0xf0]
  %v9882 = vld [vmem:[#allocation2 + $0x3e8] sm:$0xf0]
  %v9883 = vld [vmem:[#allocation2 + $0x460] sm:$0xf]
  %v9884 = vld [vmem:[#allocation2 + $0x468] sm:$0xf]
  %v9885 = vld [vmem:[#allocation2 + $0x4a0] sm:$0xf0]
  %v9886 = vld [vmem:[#allocation2 + $0x4a8] sm:$0xf0]
  %v9887 = vld [vmem:[#allocation2 + $0x520] sm:$0xf]
  %v9888 = vld [vmem:[#allocation2 + $0x528] sm:$0xf]
  %v9889 = vld [vmem:[#allocation2 + $0x560] sm:$0xf0]
  %v9890 = vld [vmem:[#allocation2 + $0x568] sm:$0xf0]
  %v9891 = vld [vmem:[#allocation2 + $0x5e0] sm:$0xf]
  %v9892 = vld [vmem:[#allocation2 + $0x5e8] sm:$0xf]
  %vm9925 = vcmask 1043456
  %v9926 = vrot.slane %v9861, 4
  %v9927 = vrot.slane %v7619, 4
  %v9928 = vsel %vm9925, %v9926, %v9927
  %v9929 = vrot.slane %v9862, 4
  %v9930 = vrot.slane %v7620, 4
  %v9931 = vsel %vm9925, %v9929, %v9930
  %v9932 = vrot.slane %v7621, 4
  %v9933 = vsel %vm9925, %v9927, %v9932
  %v9934 = vrot.slane %v7622, 4
  %v9935 = vsel %vm9925, %v9930, %v9934
  %v9936 = vrot.slane %v7623, 4
  %v9937 = vsel %vm9925, %v9932, %v9936
  %v9938 = vrot.slane %v7624, 4
  %v9939 = vsel %vm9925, %v9934, %v9938
  %v9940 = vrot.slane %v7625, 4
  %v9941 = vsel %vm9925, %v9936, %v9940
  %v9942 = vrot.slane %v7626, 4
  %v9943 = vsel %vm9925, %v9938, %v9942
  %v9944 = vrot.slane %v7627, 4
  %v9945 = vsel %vm9925, %v9940, %v9944
  %v9946 = vrot.slane %v7628, 4
  %v9947 = vsel %vm9925, %v9942, %v9946
  %v9948 = vrot.slane %v7629, 4
  %v9949 = vsel %vm9925, %v9944, %v9948
  %v9950 = vrot.slane %v7630, 4
  %v9951 = vsel %vm9925, %v9946, %v9950
  %v9952 = vrot.slane %v7631, 4
  %v9953 = vsel %vm9925, %v9948, %v9952
  %v9954 = vrot.slane %v7632, 4
  %v9955 = vsel %vm9925, %v9950, %v9954
  %v9956 = vrot.slane %v9863, 4
  %v9957 = vsel %vm9925, %v9952, %v9956
  %v9958 = vrot.slane %v9864, 4
  %v9959 = vsel %vm9925, %v9954, %v9958
  %v9960 = vrot.slane %v9865, 4
  %v9961 = vrot.slane %v7637, 4
  %v9962 = vsel %vm9925, %v9960, %v9961
  %v9963 = vrot.slane %v9866, 4
  %v9964 = vrot.slane %v7638, 4
  %v9965 = vsel %vm9925, %v9963, %v9964
  %v9966 = vrot.slane %v7639, 4
  %v9967 = vsel %vm9925, %v9961, %v9966
  %v9968 = vrot.slane %v7640, 4
  %v9969 = vsel %vm9925, %v9964, %v9968
  %v9970 = vrot.slane %v7641, 4
  %v9971 = vsel %vm9925, %v9966, %v9970
  %v9972 = vrot.slane %v7642, 4
  %v9973 = vsel %vm9925, %v9968, %v9972
  %v9974 = vrot.slane %v7643, 4
  %v9975 = vsel %vm9925, %v9970, %v9974
  %v9976 = vrot.slane %v7644, 4
  %v9977 = vsel %vm9925, %v9972, %v9976
  %v9978 = vrot.slane %v7645, 4
  %v9979 = vsel %vm9925, %v9974, %v9978
  %v9980 = vrot.slane %v7646, 4
  %v9981 = vsel %vm9925, %v9976, %v9980
  %v9982 = vrot.slane %v7647, 4
  %v9983 = vsel %vm9925, %v9978, %v9982
  %v9984 = vrot.slane %v7648, 4
  %v9985 = vsel %vm9925, %v9980, %v9984
  %v9986 = vrot.slane %v7649, 4
  %v9987 = vsel %vm9925, %v9982, %v9986
  %v9988 = vrot.slane %v7650, 4
  %v9989 = vsel %vm9925, %v9984, %v9988
  %v9990 = vrot.slane %v9867, 4
  %v9991 = vsel %vm9925, %v9986, %v9990
  %v9992 = vrot.slane %v9868, 4
  %v9993 = vsel %vm9925, %v9988, %v9992
  %v9994 = vrot.slane %v9869, 4
  %v9995 = vrot.slane %v7655, 4
  %v9996 = vsel %vm9925, %v9994, %v9995
  %v9997 = vrot.slane %v9870, 4
  %v9998 = vrot.slane %v7656, 4
  %v9999 = vsel %vm9925, %v9997, %v9998
  %v10000 = vrot.slane %v7657, 4
  %v10001 = vsel %vm9925, %v9995, %v10000
  %v10002 = vrot.slane %v7658, 4
  %v10003 = vsel %vm9925, %v9998, %v10002
  %v10004 = vrot.slane %v7659, 4
  %v10005 = vsel %vm9925, %v10000, %v10004
  %v10006 = vrot.slane %v7660, 4
  %v10007 = vsel %vm9925, %v10002, %v10006
  %v10008 = vrot.slane %v7661, 4
  %v10009 = vsel %vm9925, %v10004, %v10008
  %v10010 = vrot.slane %v7662, 4
  %v10011 = vsel %vm9925, %v10006, %v10010
  %v10012 = vrot.slane %v7663, 4
  %v10013 = vsel %vm9925, %v10008, %v10012
  %v10014 = vrot.slane %v7664, 4
  %v10015 = vsel %vm9925, %v10010, %v10014
  %v10016 = vrot.slane %v7665, 4
  %v10017 = vsel %vm9925, %v10012, %v10016
  %v10018 = vrot.slane %v7666, 4
  %v10019 = vsel %vm9925, %v10014, %v10018
  %v10020 = vrot.slane %v7667, 4
  %v10021 = vsel %vm9925, %v10016, %v10020
  %v10022 = vrot.slane %v7668, 4
  %v10023 = vsel %vm9925, %v10018, %v10022
  %v10024 = vrot.slane %v9871, 4
  %v10025 = vsel %vm9925, %v10020, %v10024
  %v10026 = vrot.slane %v9872, 4
  %v10027 = vsel %vm9925, %v10022, %v10026
  %v10028 = vrot.slane %v9873, 4
  %v10029 = vrot.slane %v7673, 4
  %v10030 = vsel %vm9925, %v10028, %v10029
  %v10031 = vrot.slane %v9874, 4
  %v10032 = vrot.slane %v7674, 4
  %v10033 = vsel %vm9925, %v10031, %v10032
  %v10034 = vrot.slane %v7675, 4
  %v10035 = vsel %vm9925, %v10029, %v10034
  %v10036 = vrot.slane %v7676, 4
  %v10037 = vsel %vm9925, %v10032, %v10036
  %v10038 = vrot.slane %v7677, 4
  %v10039 = vsel %vm9925, %v10034, %v10038
  %v10040 = vrot.slane %v7678, 4
  %v10041 = vsel %vm9925, %v10036, %v10040
  %v10042 = vrot.slane %v7679, 4
  %v10043 = vsel %vm9925, %v10038, %v10042
  %v10044 = vrot.slane %v7680, 4
  %v10045 = vsel %vm9925, %v10040, %v10044
  %v10046 = vrot.slane %v7681, 4
  %v10047 = vsel %vm9925, %v10042, %v10046
  %v10048 = vrot.slane %v7682, 4
  %v10049 = vsel %vm9925, %v10044, %v10048
  %v10050 = vrot.slane %v7683, 4
  %v10051 = vsel %vm9925, %v10046, %v10050
  %v10052 = vrot.slane %v7684, 4
  %v10053 = vsel %vm9925, %v10048, %v10052
  %v10054 = vrot.slane %v7685, 4
  %v10055 = vsel %vm9925, %v10050, %v10054
  %v10056 = vrot.slane %v7686, 4
  %v10057 = vsel %vm9925, %v10052, %v10056
  %v10058 = vrot.slane %v9875, 4
  %v10059 = vsel %vm9925, %v10054, %v10058
  %v10060 = vrot.slane %v9876, 4
  %v10061 = vsel %vm9925, %v10056, %v10060
  %v10062 = vrot.slane %v9877, 4
  %v10063 = vrot.slane %v7691, 4
  %v10064 = vsel %vm9925, %v10062, %v10063
  %v10065 = vrot.slane %v9878, 4
  %v10066 = vrot.slane %v7692, 4
  %v10067 = vsel %vm9925, %v10065, %v10066
  %v10068 = vrot.slane %v7693, 4
  %v10069 = vsel %vm9925, %v10063, %v10068
  %v10070 = vrot.slane %v7694, 4
  %v10071 = vsel %vm9925, %v10066, %v10070
  %v10072 = vrot.slane %v7695, 4
  %v10073 = vsel %vm9925, %v10068, %v10072
  %v10074 = vrot.slane %v7696, 4
  %v10075 = vsel %vm9925, %v10070, %v10074
  %v10076 = vrot.slane %v7697, 4
  %v10077 = vsel %vm9925, %v10072, %v10076
  %v10078 = vrot.slane %v7698, 4
  %v10079 = vsel %vm9925, %v10074, %v10078
  %v10080 = vrot.slane %v7699, 4
  %v10081 = vsel %vm9925, %v10076, %v10080
  %v10082 = vrot.slane %v7700, 4
  %v10083 = vsel %vm9925, %v10078, %v10082
  %v10084 = vrot.slane %v7701, 4
  %v10085 = vsel %vm9925, %v10080, %v10084
  %v10086 = vrot.slane %v7702, 4
  %v10087 = vsel %vm9925, %v10082, %v10086
  %v10088 = vrot.slane %v7703, 4
  %v10089 = vsel %vm9925, %v10084, %v10088
  %v10090 = vrot.slane %v7704, 4
  %v10091 = vsel %vm9925, %v10086, %v10090
  %v10092 = vrot.slane %v9879, 4
  %v10093 = vsel %vm9925, %v10088, %v10092
  %v10094 = vrot.slane %v9880, 4
  %v10095 = vsel %vm9925, %v10090, %v10094
  %v10096 = vrot.slane %v9881, 4
  %v10097 = vrot.slane %v7709, 4
  %v10098 = vsel %vm9925, %v10096, %v10097
  %v10099 = vrot.slane %v9882, 4
  %v10100 = vrot.slane %v7710, 4
  %v10101 = vsel %vm9925, %v10099, %v10100
  %v10102 = vrot.slane %v7711, 4
  %v10103 = vsel %vm9925, %v10097, %v10102
  %v10104 = vrot.slane %v7712, 4
  %v10105 = vsel %vm9925, %v10100, %v10104
  %v10106 = vrot.slane %v7713, 4
  %v10107 = vsel %vm9925, %v10102, %v10106
  %v10108 = vrot.slane %v7714, 4
  %v10109 = vsel %vm9925, %v10104, %v10108
  %v10110 = vrot.slane %v7715, 4
  %v10111 = vsel %vm9925, %v10106, %v10110
  %v10112 = vrot.slane %v7716, 4
  %v10113 = vsel %vm9925, %v10108, %v10112
  %v10114 = vrot.slane %v7717, 4
  %v10115 = vsel %vm9925, %v10110, %v10114
  %v10116 = vrot.slane %v7718, 4
  %v10117 = vsel %vm9925, %v10112, %v10116
  %v10118 = vrot.slane %v7719, 4
  %v10119 = vsel %vm9925, %v10114, %v10118
  %v10120 = vrot.slane %v7720, 4
  %v10121 = vsel %vm9925, %v10116, %v10120
  %v10122 = vrot.slane %v7721, 4
  %v10123 = vsel %vm9925, %v10118, %v10122
  %v10124 = vrot.slane %v7722, 4
  %v10125 = vsel %vm9925, %v10120, %v10124
  %v10126 = vrot.slane %v9883, 4
  %v10127 = vsel %vm9925, %v10122, %v10126
  %v10128 = vrot.slane %v9884, 4
  %v10129 = vsel %vm9925, %v10124, %v10128
  %v10130 = vrot.slane %v9885, 4
  %v10131 = vrot.slane %v7727, 4
  %v10132 = vsel %vm9925, %v10130, %v10131
  %v10133 = vrot.slane %v9886, 4
  %v10134 = vrot.slane %v7728, 4
  %v10135 = vsel %vm9925, %v10133, %v10134
  %v10136 = vrot.slane %v7729, 4
  %v10137 = vsel %vm9925, %v10131, %v10136
  %v10138 = vrot.slane %v7730, 4
  %v10139 = vsel %vm9925, %v10134, %v10138
  %v10140 = vrot.slane %v7731, 4
  %v10141 = vsel %vm9925, %v10136, %v10140
  %v10142 = vrot.slane %v7732, 4
  %v10143 = vsel %vm9925, %v10138, %v10142
  %v10144 = vrot.slane %v7733, 4
  %v10145 = vsel %vm9925, %v10140, %v10144
  %v10146 = vrot.slane %v7734, 4
  %v10147 = vsel %vm9925, %v10142, %v10146
  %v10148 = vrot.slane %v7735, 4
  %v10149 = vsel %vm9925, %v10144, %v10148
  %v10150 = vrot.slane %v7736, 4
  %v10151 = vsel %vm9925, %v10146, %v10150
  %v10152 = vrot.slane %v7737, 4
  %v10153 = vsel %vm9925, %v10148, %v10152
  %v10154 = vrot.slane %v7738, 4
  %v10155 = vsel %vm9925, %v10150, %v10154
  %v10156 = vrot.slane %v7739, 4
  %v10157 = vsel %vm9925, %v10152, %v10156
  %v10158 = vrot.slane %v7740, 4
  %v10159 = vsel %vm9925, %v10154, %v10158
  %v10160 = vrot.slane %v9887, 4
  %v10161 = vsel %vm9925, %v10156, %v10160
  %v10162 = vrot.slane %v9888, 4
  %v10163 = vsel %vm9925, %v10158, %v10162
  %v10164 = vrot.slane %v9889, 4
  %v10165 = vrot.slane %v7745, 4
  %v10166 = vsel %vm9925, %v10164, %v10165
  %v10167 = vrot.slane %v9890, 4
  %v10168 = vrot.slane %v7746, 4
  %v10169 = vsel %vm9925, %v10167, %v10168
  %v10170 = vrot.slane %v7747, 4
  %v10171 = vsel %vm9925, %v10165, %v10170
  %v10172 = vrot.slane %v7748, 4
  %v10173 = vsel %vm9925, %v10168, %v10172
  %v10174 = vrot.slane %v7749, 4
  %v10175 = vsel %vm9925, %v10170, %v10174
  %v10176 = vrot.slane %v7750, 4
  %v10177 = vsel %vm9925, %v10172, %v10176
  %v10178 = vrot.slane %v7751, 4
  %v10179 = vsel %vm9925, %v10174, %v10178
  %v10180 = vrot.slane %v7752, 4
  %v10181 = vsel %vm9925, %v10176, %v10180
  %v10182 = vrot.slane %v7753, 4
  %v10183 = vsel %vm9925, %v10178, %v10182
  %v10184 = vrot.slane %v7754, 4
  %v10185 = vsel %vm9925, %v10180, %v10184
  %v10186 = vrot.slane %v7755, 4
  %v10187 = vsel %vm9925, %v10182, %v10186
  %v10188 = vrot.slane %v7756, 4
  %v10189 = vsel %vm9925, %v10184, %v10188
  %v10190 = vrot.slane %v7757, 4
  %v10191 = vsel %vm9925, %v10186, %v10190
  %v10192 = vrot.slane %v7758, 4
  %v10193 = vsel %vm9925, %v10188, %v10192
  %v10194 = vrot.slane %v9891, 4
  %v10195 = vsel %vm9925, %v10190, %v10194
  %v10196 = vrot.slane %v9892, 4
  %v10197 = vsel %vm9925, %v10192, %v10196
  %v10326 = vpack.c.bf16 %v9933, %v9928
  %v10327 = vpack.c.bf16 %v9935, %v9931
  %v10328 = vpack.c.bf16 %v9941, %v9937
  %v10329 = vpack.c.bf16 %v9943, %v9939
  %v10330 = vpack.c.bf16 %v9949, %v9945
  %v10331 = vpack.c.bf16 %v9951, %v9947
  %v10332 = vpack.c.bf16 %v9957, %v9953
  %v10333 = vpack.c.bf16 %v9959, %v9955
  %v10334 = vpack.c.bf16 %v9967, %v9962
  %v10335 = vpack.c.bf16 %v9969, %v9965
  %v10336 = vpack.c.bf16 %v9975, %v9971
  %v10337 = vpack.c.bf16 %v9977, %v9973
  %v10338 = vpack.c.bf16 %v9983, %v9979
  %v10339 = vpack.c.bf16 %v9985, %v9981
  %v10340 = vpack.c.bf16 %v9991, %v9987
  %v10341 = vpack.c.bf16 %v9993, %v9989
  %v10342 = vpack.c.bf16 %v10001, %v9996
  %v10343 = vpack.c.bf16 %v10003, %v9999
  %v10344 = vpack.c.bf16 %v10009, %v10005
  %v10345 = vpack.c.bf16 %v10011, %v10007
  %v10346 = vpack.c.bf16 %v10017, %v10013
  %v10347 = vpack.c.bf16 %v10019, %v10015
  %v10348 = vpack.c.bf16 %v10025, %v10021
  %v10349 = vpack.c.bf16 %v10027, %v10023
  %v10350 = vpack.c.bf16 %v10035, %v10030
  %v10351 = vpack.c.bf16 %v10037, %v10033
  %v10352 = vpack.c.bf16 %v10043, %v10039
  %v10353 = vpack.c.bf16 %v10045, %v10041
  %v10354 = vpack.c.bf16 %v10051, %v10047
  %v10355 = vpack.c.bf16 %v10053, %v10049
  %v10356 = vpack.c.bf16 %v10059, %v10055
  %v10357 = vpack.c.bf16 %v10061, %v10057
  %v10358 = vpack.c.bf16 %v10069, %v10064
  %v10359 = vpack.c.bf16 %v10071, %v10067
  %v10360 = vpack.c.bf16 %v10077, %v10073
  %v10361 = vpack.c.bf16 %v10079, %v10075
  %v10362 = vpack.c.bf16 %v10085, %v10081
  %v10363 = vpack.c.bf16 %v10087, %v10083
  %v10364 = vpack.c.bf16 %v10093, %v10089
  %v10365 = vpack.c.bf16 %v10095, %v10091
  %v10366 = vpack.c.bf16 %v10103, %v10098
  %v10367 = vpack.c.bf16 %v10105, %v10101
  %v10368 = vpack.c.bf16 %v10111, %v10107
  %v10369 = vpack.c.bf16 %v10113, %v10109
  %v10370 = vpack.c.bf16 %v10119, %v10115
  %v10371 = vpack.c.bf16 %v10121, %v10117
  %v10372 = vpack.c.bf16 %v10127, %v10123
  %v10373 = vpack.c.bf16 %v10129, %v10125
  %v10374 = vpack.c.bf16 %v10137, %v10132
  %v10375 = vpack.c.bf16 %v10139, %v10135
  %v10376 = vpack.c.bf16 %v10145, %v10141
  %v10377 = vpack.c.bf16 %v10147, %v10143
  %v10378 = vpack.c.bf16 %v10153, %v10149
  %v10379 = vpack.c.bf16 %v10155, %v10151
  %v10380 = vpack.c.bf16 %v10161, %v10157
  %v10381 = vpack.c.bf16 %v10163, %v10159
  %v10382 = vpack.c.bf16 %v10171, %v10166
  %v10383 = vpack.c.bf16 %v10173, %v10169
  %v10384 = vpack.c.bf16 %v10179, %v10175
  %v10385 = vpack.c.bf16 %v10181, %v10177
  %v10386 = vpack.c.bf16 %v10187, %v10183
  %v10387 = vpack.c.bf16 %v10189, %v10185
  %v10388 = vpack.c.bf16 %v10195, %v10191
  %v10389 = vpack.c.bf16 %v10197, %v10193
  %s10390 = scalar_lea.vmem %s4, 1024
  %v10391 = vld [vmem:[%s10390] sm:$0xf]
  %v10392 = vld [vmem:[%s10390 + $0x4] sm:$0xf]
  %v10393 = vld [vmem:[%s10390 + $0x8] sm:$0xf]
  %v10394 = vld [vmem:[%s10390 + $0xc] sm:$0xf]
  %v10395 = vld [vmem:[%s10390 + $0x10] sm:$0xf]
  %v10396 = vld [vmem:[%s10390 + $0x14] sm:$0xf]
  %v10397 = vld [vmem:[%s10390 + $0x18] sm:$0xf]
  %v10398 = vld [vmem:[%s10390 + $0x1c] sm:$0xf]
  %v10399 = vld [vmem:[%s10390 + $0x20] sm:$0xf]
  %v10400 = vld [vmem:[%s10390 + $0x24] sm:$0xf]
  %v10401 = vld [vmem:[%s10390 + $0x28] sm:$0xf]
  %v10402 = vld [vmem:[%s10390 + $0x2c] sm:$0xf]
  %v10403 = vld [vmem:[%s10390 + $0x30] sm:$0xf]
  %v10404 = vld [vmem:[%s10390 + $0x34] sm:$0xf]
  %v10405 = vld [vmem:[%s10390 + $0x38] sm:$0xf]
  %v10406 = vld [vmem:[%s10390 + $0x3c] sm:$0xf]
  %v10407 = vld [vmem:[%s10390 + $0x40] sm:$0xf]
  %v10408 = vld [vmem:[%s10390 + $0x44] sm:$0xf]
  %v10409 = vld [vmem:[%s10390 + $0x48] sm:$0xf]
  %v10410 = vld [vmem:[%s10390 + $0x4c] sm:$0xf]
  %v10411 = vld [vmem:[%s10390 + $0x50] sm:$0xf]
  %v10412 = vld [vmem:[%s10390 + $0x54] sm:$0xf]
  %v10413 = vld [vmem:[%s10390 + $0x58] sm:$0xf]
  %v10414 = vld [vmem:[%s10390 + $0x5c] sm:$0xf]
  %v10415 = vld [vmem:[%s10390 + $0x60] sm:$0xf]
  %v10416 = vld [vmem:[%s10390 + $0x64] sm:$0xf]
  %v10417 = vld [vmem:[%s10390 + $0x68] sm:$0xf]
  %v10418 = vld [vmem:[%s10390 + $0x6c] sm:$0xf]
  %v10419 = vld [vmem:[%s10390 + $0x70] sm:$0xf]
  %v10420 = vld [vmem:[%s10390 + $0x74] sm:$0xf]
  %v10421 = vld [vmem:[%s10390 + $0x78] sm:$0xf]
  %v10422 = vld [vmem:[%s10390 + $0x7c] sm:$0xf]
  %v10455 = vunpack.c.l.b16 %v10391
  %v10456 = vunpack.c.l.b16 %v10392
  %v10457 = vunpack.c.l.b16 %v10393
  %v10458 = vunpack.c.l.b16 %v10394
  %v10459 = vunpack.c.l.b16 %v10395
  %v10460 = vunpack.c.l.b16 %v10396
  %v10461 = vunpack.c.l.b16 %v10397
  %v10462 = vunpack.c.l.b16 %v10398
  %v10463 = vunpack.c.l.b16 %v10399
  %v10464 = vunpack.c.l.b16 %v10400
  %v10465 = vunpack.c.l.b16 %v10401
  %v10466 = vunpack.c.l.b16 %v10402
  %v10467 = vunpack.c.l.b16 %v10403
  %v10468 = vunpack.c.l.b16 %v10404
  %v10469 = vunpack.c.l.b16 %v10405
  %v10470 = vunpack.c.l.b16 %v10406
  %v10471 = vunpack.c.l.b16 %v10407
  %v10472 = vunpack.c.l.b16 %v10408
  %v10473 = vunpack.c.l.b16 %v10409
  %v10474 = vunpack.c.l.b16 %v10410
  %v10475 = vunpack.c.l.b16 %v10411
  %v10476 = vunpack.c.l.b16 %v10412
  %v10477 = vunpack.c.l.b16 %v10413
  %v10478 = vunpack.c.l.b16 %v10414
  %v10479 = vunpack.c.l.b16 %v10415
  %v10480 = vunpack.c.l.b16 %v10416
  %v10481 = vunpack.c.l.b16 %v10417
  %v10482 = vunpack.c.l.b16 %v10418
  %v10483 = vunpack.c.l.b16 %v10419
  %v10484 = vunpack.c.l.b16 %v10420
  %v10485 = vunpack.c.l.b16 %v10421
  %v10486 = vunpack.c.l.b16 %v10422
  %v10487 = vpack.c.b16 %v10456, %v10455
  %v10488 = vpack.c.b16 %v10458, %v10457
  %v10489 = vpack.c.b16 %v10460, %v10459
  %v10490 = vpack.c.b16 %v10462, %v10461
  %v10491 = vpack.c.b16 %v10464, %v10463
  %v10492 = vpack.c.b16 %v10466, %v10465
  %v10493 = vpack.c.b16 %v10468, %v10467
  %v10494 = vpack.c.b16 %v10470, %v10469
  %v10495 = vpack.c.b16 %v10472, %v10471
  %v10496 = vpack.c.b16 %v10474, %v10473
  %v10497 = vpack.c.b16 %v10476, %v10475
  %v10498 = vpack.c.b16 %v10478, %v10477
  %v10499 = vpack.c.b16 %v10480, %v10479
  %v10500 = vpack.c.b16 %v10482, %v10481
  %v10501 = vpack.c.b16 %v10484, %v10483
  %v10502 = vpack.c.b16 %v10486, %v10485
  %10519 = vmatprep.subr.bf16.mxu0 0
  %10520 = vmatpush1.bf16.msra.mxu0 %v10487
  %10521 = vmatprep.subr.bf16.mxu0 0
  %10522 = vmatpush1.bf16.msra.mxu0 %v10488
  %10523 = vmatprep.subr.bf16.mxu0 0
  %10524 = vmatpush1.bf16.msra.mxu0 %v10489
  %10525 = vmatprep.subr.bf16.mxu0 0
  %10526 = vmatpush1.bf16.msra.mxu0 %v10490
  %10527 = vmatprep.subr.bf16.mxu0 0
  %10528 = vmatpush1.bf16.msra.mxu0 %v10491
  %10529 = vmatprep.subr.bf16.mxu0 0
  %10530 = vmatpush1.bf16.msra.mxu0 %v10492
  %10531 = vmatprep.subr.bf16.mxu0 0
  %10532 = vmatpush1.bf16.msra.mxu0 %v10493
  %10533 = vmatprep.subr.bf16.mxu0 0
  %10534 = vmatpush1.bf16.msra.mxu0 %v10494
  %10535 = vmatprep.subr.bf16.mxu0 0
  %10536 = vmatpush1.bf16.msra.mxu0 %v10495
  %10537 = vmatprep.subr.bf16.mxu0 0
  %10538 = vmatpush1.bf16.msra.mxu0 %v10496
  %10539 = vmatprep.subr.bf16.mxu0 0
  %10540 = vmatpush1.bf16.msra.mxu0 %v10497
  %10541 = vmatprep.subr.bf16.mxu0 0
  %10542 = vmatpush1.bf16.msra.mxu0 %v10498
  %10543 = vmatprep.subr.bf16.mxu0 0
  %10544 = vmatpush1.bf16.msra.mxu0 %v10499
  %10545 = vmatprep.subr.bf16.mxu0 0
  %10546 = vmatpush1.bf16.msra.mxu0 %v10500
  %10547 = vmatprep.subr.bf16.mxu0 0
  %10548 = vmatpush1.bf16.msra.mxu0 %v10501
  %10549 = vmatprep.subr.bf16.mxu0 0
  %10550 = vmatpush1.bf16.msra.mxu0 %v10502
  %10551 = vmatprep.mubr.bf16.mxu0 %v10327
  %10552 = vmatmul.mubr.bf16.gmra.mrb[0].mxu0 %v10326
  %v10553 = vpop.f32.mrb[0].mxu0
  %v10554 = vadd.f32 0.0, %v10553
  %v10555 = vpop.f32.mrb[0].mxu0
  %v10556 = vpop.f32.mrb[0].mxu0
  %v10557 = vadd.f32 0.0, %v10556
  %v10558 = vpop.f32.mrb[0].mxu0
  %10559 = vmatprep.mubr.bf16.mxu0 %v10329
  %10560 = vmatmul.mubr.bf16.gmra.mrb[0].mxu0 %v10328
  %v10561 = vpop.f32.mrb[0].mxu0
  %v10562 = vadd.f32 0.0, %v10561
  %v10563 = vpop.f32.mrb[0].mxu0
  %v10564 = vpop.f32.mrb[0].mxu0
  %v10565 = vadd.f32 0.0, %v10564
  %v10566 = vpop.f32.mrb[0].mxu0
  %10567 = vmatprep.mubr.bf16.mxu0 %v10331
  %10568 = vmatmul.mubr.bf16.gmra.mrb[0].mxu0 %v10330
  %v10569 = vpop.f32.mrb[0].mxu0
  %v10570 = vadd.f32 0.0, %v10569
  %v10571 = vpop.f32.mrb[0].mxu0
  %v10572 = vpop.f32.mrb[0].mxu0
  %v10573 = vadd.f32 0.0, %v10572
  %v10574 = vpop.f32.mrb[0].mxu0
  %10575 = vmatprep.mubr.bf16.mxu0 %v10333
  %10576 = vmatmul.mubr.bf16.gmra.mrb[0].mxu0 %v10332
  %v10577 = vpop.f32.mrb[0].mxu0
  %v10578 = vadd.f32 0.0, %v10577
  %v10579 = vpop.f32.mrb[0].mxu0
  %v10580 = vpop.f32.mrb[0].mxu0
  %v10581 = vadd.f32 0.0, %v10580
  %v10582 = vpop.f32.mrb[0].mxu0
  %10583 = vmatprep.mubr.bf16.mxu0 %v10335
  %10584 = vmatmul.mubr.bf16.gmra.mrb[0].mxu0 %v10334
  %v10585 = vpop.f32.mrb[0].mxu0
  %v10586 = vadd.f32 0.0, %v10585
  %v10587 = vpop.f32.mrb[0].mxu0
  %v10588 = vpop.f32.mrb[0].mxu0
  %v10589 = vadd.f32 0.0, %v10588
  %v10590 = vpop.f32.mrb[0].mxu0
  %10591 = vmatprep.mubr.bf16.mxu0 %v10337
  %10592 = vmatmul.mubr.bf16.gmra.mrb[0].mxu0 %v10336
  %v10593 = vpop.f32.mrb[0].mxu0
  %v10594 = vadd.f32 0.0, %v10593
  %v10595 = vpop.f32.mrb[0].mxu0
  %v10596 = vpop.f32.mrb[0].mxu0
  %v10597 = vadd.f32 0.0, %v10596
  %v10598 = vpop.f32.mrb[0].mxu0
  %10599 = vmatprep.mubr.bf16.mxu0 %v10339
  %10600 = vmatmul.mubr.bf16.gmra.mrb[0].mxu0 %v10338
  %v10601 = vpop.f32.mrb[0].mxu0
  %v10602 = vadd.f32 0.0, %v10601
  %v10603 = vpop.f32.mrb[0].mxu0
  %v10604 = vpop.f32.mrb[0].mxu0
  %v10605 = vadd.f32 0.0, %v10604
  %v10606 = vpop.f32.mrb[0].mxu0
  %10607 = vmatprep.mubr.bf16.mxu0 %v10341
  %10608 = vmatmul.mubr.bf16.gmra.mrb[0].mxu0 %v10340
  %v10609 = vpop.f32.mrb[0].mxu0
  %v10610 = vadd.f32 0.0, %v10609
  %v10611 = vpop.f32.mrb[0].mxu0
  %v10612 = vpop.f32.mrb[0].mxu0
  %v10613 = vadd.f32 0.0, %v10612
  %v10614 = vpop.f32.mrb[0].mxu0
  %10615 = vmatprep.mubr.bf16.mxu0 %v10343
  %10616 = vmatmul.mubr.bf16.gmra.mrb[0].mxu0 %v10342
  %v10617 = vpop.f32.mrb[0].mxu0
  %v10618 = vadd.f32 0.0, %v10617
  %v10619 = vpop.f32.mrb[0].mxu0
  %v10620 = vpop.f32.mrb[0].mxu0
  %v10621 = vadd.f32 0.0, %v10620
  %v10622 = vpop.f32.mrb[0].mxu0
  %10623 = vmatprep.mubr.bf16.mxu0 %v10345
  %10624 = vmatmul.mubr.bf16.gmra.mrb[0].mxu0 %v10344
  %v10625 = vpop.f32.mrb[0].mxu0
  %v10626 = vadd.f32 0.0, %v10625
  %v10627 = vpop.f32.mrb[0].mxu0
  %v10628 = vpop.f32.mrb[0].mxu0
  %v10629 = vadd.f32 0.0, %v10628
  %v10630 = vpop.f32.mrb[0].mxu0
  %10631 = vmatprep.mubr.bf16.mxu0 %v10347
  %10632 = vmatmul.mubr.bf16.gmra.mrb[0].mxu0 %v10346
  %v10633 = vpop.f32.mrb[0].mxu0
  %v10634 = vadd.f32 0.0, %v10633
  %v10635 = vpop.f32.mrb[0].mxu0
  %v10636 = vpop.f32.mrb[0].mxu0
  %v10637 = vadd.f32 0.0, %v10636
  %v10638 = vpop.f32.mrb[0].mxu0
  %10639 = vmatprep.mubr.bf16.mxu0 %v10349
  %10640 = vmatmul.mubr.bf16.gmra.mrb[0].mxu0 %v10348
  %v10641 = vpop.f32.mrb[0].mxu0
  %v10642 = vadd.f32 0.0, %v10641
  %v10643 = vpop.f32.mrb[0].mxu0
  %v10644 = vpop.f32.mrb[0].mxu0
  %v10645 = vadd.f32 0.0, %v10644
  %v10646 = vpop.f32.mrb[0].mxu0
  %10647 = vmatprep.mubr.bf16.mxu0 %v10351
  %10648 = vmatmul.mubr.bf16.gmra.mrb[0].mxu0 %v10350
  %v10649 = vpop.f32.mrb[0].mxu0
  %v10650 = vadd.f32 0.0, %v10649
  %v10651 = vpop.f32.mrb[0].mxu0
  %v10652 = vpop.f32.mrb[0].mxu0
  %v10653 = vadd.f32 0.0, %v10652
  %v10654 = vpop.f32.mrb[0].mxu0
  %10655 = vmatprep.mubr.bf16.mxu0 %v10353
  %10656 = vmatmul.mubr.bf16.gmra.mrb[0].mxu0 %v10352
  %v10657 = vpop.f32.mrb[0].mxu0
  %v10658 = vadd.f32 0.0, %v10657
  %v10659 = vpop.f32.mrb[0].mxu0
  %v10660 = vpop.f32.mrb[0].mxu0
  %v10661 = vadd.f32 0.0, %v10660
  %v10662 = vpop.f32.mrb[0].mxu0
  %10663 = vmatprep.mubr.bf16.mxu0 %v10355
  %10664 = vmatmul.mubr.bf16.gmra.mrb[0].mxu0 %v10354
  %v10665 = vpop.f32.mrb[0].mxu0
  %v10666 = vadd.f32 0.0, %v10665
  %v10667 = vpop.f32.mrb[0].mxu0
  %v10668 = vpop.f32.mrb[0].mxu0
  %v10669 = vadd.f32 0.0, %v10668
  %v10670 = vpop.f32.mrb[0].mxu0
  %10671 = vmatprep.mubr.bf16.mxu0 %v10357
  %10672 = vmatmul.mubr.bf16.gmra.mrb[0].mxu0 %v10356
  %v10673 = vpop.f32.mrb[0].mxu0
  %v10674 = vadd.f32 0.0, %v10673
  %v10675 = vpop.f32.mrb[0].mxu0
  %v10676 = vpop.f32.mrb[0].mxu0
  %v10677 = vadd.f32 0.0, %v10676
  %v10678 = vpop.f32.mrb[0].mxu0
  %10679 = vmatprep.mubr.bf16.mxu0 %v10359
  %10680 = vmatmul.mubr.bf16.gmra.mrb[0].mxu0 %v10358
  %v10681 = vpop.f32.mrb[0].mxu0
  %v10682 = vadd.f32 0.0, %v10681
  %v10683 = vpop.f32.mrb[0].mxu0
  %v10684 = vpop.f32.mrb[0].mxu0
  %v10685 = vadd.f32 0.0, %v10684
  %v10686 = vpop.f32.mrb[0].mxu0
  %10687 = vmatprep.mubr.bf16.mxu0 %v10361
  %10688 = vmatmul.mubr.bf16.gmra.mrb[0].mxu0 %v10360
  %v10689 = vpop.f32.mrb[0].mxu0
  %v10690 = vadd.f32 0.0, %v10689
  %v10691 = vpop.f32.mrb[0].mxu0
  %v10692 = vpop.f32.mrb[0].mxu0
  %v10693 = vadd.f32 0.0, %v10692
  %v10694 = vpop.f32.mrb[0].mxu0
  %10695 = vmatprep.mubr.bf16.mxu0 %v10363
  %10696 = vmatmul.mubr.bf16.gmra.mrb[0].mxu0 %v10362
  %v10697 = vpop.f32.mrb[0].mxu0
  %v10698 = vadd.f32 0.0, %v10697
  %v10699 = vpop.f32.mrb[0].mxu0
  %v10700 = vpop.f32.mrb[0].mxu0
  %v10701 = vadd.f32 0.0, %v10700
  %v10702 = vpop.f32.mrb[0].mxu0
  %10703 = vmatprep.mubr.bf16.mxu0 %v10365
  %10704 = vmatmul.mubr.bf16.gmra.mrb[0].mxu0 %v10364
  %v10705 = vpop.f32.mrb[0].mxu0
  %v10706 = vadd.f32 0.0, %v10705
  %v10707 = vpop.f32.mrb[0].mxu0
  %v10708 = vpop.f32.mrb[0].mxu0
  %v10709 = vadd.f32 0.0, %v10708
  %v10710 = vpop.f32.mrb[0].mxu0
  %10711 = vmatprep.mubr.bf16.mxu0 %v10367
  %10712 = vmatmul.mubr.bf16.gmra.mrb[0].mxu0 %v10366
  %v10713 = vpop.f32.mrb[0].mxu0
  %v10714 = vadd.f32 0.0, %v10713
  %v10715 = vpop.f32.mrb[0].mxu0
  %v10716 = vpop.f32.mrb[0].mxu0
  %v10717 = vadd.f32 0.0, %v10716
  %v10718 = vpop.f32.mrb[0].mxu0
  %10719 = vmatprep.mubr.bf16.mxu0 %v10369
  %10720 = vmatmul.mubr.bf16.gmra.mrb[0].mxu0 %v10368
  %v10721 = vpop.f32.mrb[0].mxu0
  %v10722 = vadd.f32 0.0, %v10721
  %v10723 = vpop.f32.mrb[0].mxu0
  %v10724 = vpop.f32.mrb[0].mxu0
  %v10725 = vadd.f32 0.0, %v10724
  %v10726 = vpop.f32.mrb[0].mxu0
  %10727 = vmatprep.mubr.bf16.mxu0 %v10371
  %10728 = vmatmul.mubr.bf16.gmra.mrb[0].mxu0 %v10370
  %v10729 = vpop.f32.mrb[0].mxu0
  %v10730 = vadd.f32 0.0, %v10729
  %v10731 = vpop.f32.mrb[0].mxu0
  %v10732 = vpop.f32.mrb[0].mxu0
  %v10733 = vadd.f32 0.0, %v10732
  %v10734 = vpop.f32.mrb[0].mxu0
  %10735 = vmatprep.mubr.bf16.mxu0 %v10373
  %10736 = vmatmul.mubr.bf16.gmra.mrb[0].mxu0 %v10372
  %v10737 = vpop.f32.mrb[0].mxu0
  %v10738 = vadd.f32 0.0, %v10737
  %v10739 = vpop.f32.mrb[0].mxu0
  %v10740 = vpop.f32.mrb[0].mxu0
  %v10741 = vadd.f32 0.0, %v10740
  %v10742 = vpop.f32.mrb[0].mxu0
  %10743 = vmatprep.mubr.bf16.mxu0 %v10375
  %10744 = vmatmul.mubr.bf16.gmra.mrb[0].mxu0 %v10374
  %v10745 = vpop.f32.mrb[0].mxu0
  %v10746 = vadd.f32 0.0, %v10745
  %v10747 = vpop.f32.mrb[0].mxu0
  %v10748 = vpop.f32.mrb[0].mxu0
  %v10749 = vadd.f32 0.0, %v10748
  %v10750 = vpop.f32.mrb[0].mxu0
  %10751 = vmatprep.mubr.bf16.mxu0 %v10377
  %10752 = vmatmul.mubr.bf16.gmra.mrb[0].mxu0 %v10376
  %v10753 = vpop.f32.mrb[0].mxu0
  %v10754 = vadd.f32 0.0, %v10753
  %v10755 = vpop.f32.mrb[0].mxu0
  %v10756 = vpop.f32.mrb[0].mxu0
  %v10757 = vadd.f32 0.0, %v10756
  %v10758 = vpop.f32.mrb[0].mxu0
  %10759 = vmatprep.mubr.bf16.mxu0 %v10379
  %10760 = vmatmul.mubr.bf16.gmra.mrb[0].mxu0 %v10378
  %v10761 = vpop.f32.mrb[0].mxu0
  %v10762 = vadd.f32 0.0, %v10761
  %v10763 = vpop.f32.mrb[0].mxu0
  %v10764 = vpop.f32.mrb[0].mxu0
  %v10765 = vadd.f32 0.0, %v10764
  %v10766 = vpop.f32.mrb[0].mxu0
  %10767 = vmatprep.mubr.bf16.mxu0 %v10381
  %10768 = vmatmul.mubr.bf16.gmra.mrb[0].mxu0 %v10380
  %v10769 = vpop.f32.mrb[0].mxu0
  %v10770 = vadd.f32 0.0, %v10769
  %v10771 = vpop.f32.mrb[0].mxu0
  %v10772 = vpop.f32.mrb[0].mxu0
  %v10773 = vadd.f32 0.0, %v10772
  %v10774 = vpop.f32.mrb[0].mxu0
  %10775 = vmatprep.mubr.bf16.mxu0 %v10383
  %10776 = vmatmul.mubr.bf16.gmra.mrb[0].mxu0 %v10382
  %v10777 = vpop.f32.mrb[0].mxu0
  %v10778 = vadd.f32 0.0, %v10777
  %v10779 = vpop.f32.mrb[0].mxu0
  %v10780 = vpop.f32.mrb[0].mxu0
  %v10781 = vadd.f32 0.0, %v10780
  %v10782 = vpop.f32.mrb[0].mxu0
  %10783 = vmatprep.mubr.bf16.mxu0 %v10385
  %10784 = vmatmul.mubr.bf16.gmra.mrb[0].mxu0 %v10384
  %v10785 = vpop.f32.mrb[0].mxu0
  %v10786 = vadd.f32 0.0, %v10785
  %v10787 = vpop.f32.mrb[0].mxu0
  %v10788 = vpop.f32.mrb[0].mxu0
  %v10789 = vadd.f32 0.0, %v10788
  %v10790 = vpop.f32.mrb[0].mxu0
  %10791 = vmatprep.mubr.bf16.mxu0 %v10387
  %10792 = vmatmul.mubr.bf16.gmra.mrb[0].mxu0 %v10386
  %v10793 = vpop.f32.mrb[0].mxu0
  %v10794 = vadd.f32 0.0, %v10793
  %v10795 = vpop.f32.mrb[0].mxu0
  %v10796 = vpop.f32.mrb[0].mxu0
  %v10797 = vadd.f32 0.0, %v10796
  %v10798 = vpop.f32.mrb[0].mxu0
  %10799 = vmatprep.mubr.bf16.mxu0 %v10389
  %10800 = vmatmul.mubr.bf16.gmra.mrb[0].mxu0 %v10388
  %v10801 = vpop.f32.mrb[0].mxu0
  %v10802 = vadd.f32 0.0, %v10801
  %v10803 = vpop.f32.mrb[0].mxu0
  %v10804 = vpop.f32.mrb[0].mxu0
  %v10805 = vadd.f32 0.0, %v10804
  %v10806 = vpop.f32.mrb[0].mxu0
  %10807 = vdwg.mxu0
  %v10808 = vadd.f32 %v9797, %v10554
  %v10809 = vadd.f32 %v9798, %v10557
  %v10810 = vadd.f32 %v9799, %v10562
  %v10811 = vadd.f32 %v9800, %v10565
  %v10812 = vadd.f32 %v9801, %v10570
  %v10813 = vadd.f32 %v9802, %v10573
  %v10814 = vadd.f32 %v9803, %v10578
  %v10815 = vadd.f32 %v9804, %v10581
  %v10816 = vadd.f32 %v9805, %v10586
  %v10817 = vadd.f32 %v9806, %v10589
  %v10818 = vadd.f32 %v9807, %v10594
  %v10819 = vadd.f32 %v9808, %v10597
  %v10820 = vadd.f32 %v9809, %v10602
  %v10821 = vadd.f32 %v9810, %v10605
  %v10822 = vadd.f32 %v9811, %v10610
  %v10823 = vadd.f32 %v9812, %v10613
  %v10824 = vadd.f32 %v9813, %v10618
  %v10825 = vadd.f32 %v9814, %v10621
  %v10826 = vadd.f32 %v9815, %v10626
  %v10827 = vadd.f32 %v9816, %v10629
  %v10828 = vadd.f32 %v9817, %v10634
  %v10829 = vadd.f32 %v9818, %v10637
  %v10830 = vadd.f32 %v9819, %v10642
  %v10831 = vadd.f32 %v9820, %v10645
  %v10832 = vadd.f32 %v9821, %v10650
  %v10833 = vadd.f32 %v9822, %v10653
  %v10834 = vadd.f32 %v9823, %v10658
  %v10835 = vadd.f32 %v9824, %v10661
  %v10836 = vadd.f32 %v9825, %v10666
  %v10837 = vadd.f32 %v9826, %v10669
  %v10838 = vadd.f32 %v9827, %v10674
  %v10839 = vadd.f32 %v9828, %v10677
  %v10840 = vadd.f32 %v9829, %v10682
  %v10841 = vadd.f32 %v9830, %v10685
  %v10842 = vadd.f32 %v9831, %v10690
  %v10843 = vadd.f32 %v9832, %v10693
  %v10844 = vadd.f32 %v9833, %v10698
  %v10845 = vadd.f32 %v9834, %v10701
  %v10846 = vadd.f32 %v9835, %v10706
  %v10847 = vadd.f32 %v9836, %v10709
  %v10848 = vadd.f32 %v9837, %v10714
  %v10849 = vadd.f32 %v9838, %v10717
  %v10850 = vadd.f32 %v9839, %v10722
  %v10851 = vadd.f32 %v9840, %v10725
  %v10852 = vadd.f32 %v9841, %v10730
  %v10853 = vadd.f32 %v9842, %v10733
  %v10854 = vadd.f32 %v9843, %v10738
  %v10855 = vadd.f32 %v9844, %v10741
  %v10856 = vadd.f32 %v9845, %v10746
  %v10857 = vadd.f32 %v9846, %v10749
  %v10858 = vadd.f32 %v9847, %v10754
  %v10859 = vadd.f32 %v9848, %v10757
  %v10860 = vadd.f32 %v9849, %v10762
  %v10861 = vadd.f32 %v9850, %v10765
  %v10862 = vadd.f32 %v9851, %v10770
  %v10863 = vadd.f32 %v9852, %v10773
  %v10864 = vadd.f32 %v9853, %v10778
  %v10865 = vadd.f32 %v9854, %v10781
  %v10866 = vadd.f32 %v9855, %v10786
  %v10867 = vadd.f32 %v9856, %v10789
  %v10868 = vadd.f32 %v9857, %v10794
  %v10869 = vadd.f32 %v9858, %v10797
  %v10870 = vadd.f32 %v9859, %v10802
  %v10871 = vadd.f32 %v9860, %v10805
  %v10872 = vld [vmem:[%s5] sm:$0x1]
  %v10874 = vlaneseq
  %v10875 = vshrl.u32 %v10874, 7
  %v10876 = vsub.s32 0, %v10875
  %v10877 = vrot.slane %v10872, %v10876
  %v10879 = vadd.f32 %v10808, %v10877
  %v10880 = vadd.f32 %v10809, %v10877
  %v10881 = vadd.f32 %v10810, %v10877
  %v10882 = vadd.f32 %v10811, %v10877
  %v10883 = vadd.f32 %v10812, %v10877
  %v10884 = vadd.f32 %v10813, %v10877
  %v10885 = vadd.f32 %v10814, %v10877
  %v10886 = vadd.f32 %v10815, %v10877
  %v10887 = vadd.f32 %v10816, %v10877
  %v10888 = vadd.f32 %v10817, %v10877
  %v10889 = vadd.f32 %v10818, %v10877
  %v10890 = vadd.f32 %v10819, %v10877
  %v10891 = vadd.f32 %v10820, %v10877
  %v10892 = vadd.f32 %v10821, %v10877
  %v10893 = vadd.f32 %v10822, %v10877
  %v10894 = vadd.f32 %v10823, %v10877
  %v10895 = vadd.f32 %v10824, %v10877
  %v10896 = vadd.f32 %v10825, %v10877
  %v10897 = vadd.f32 %v10826, %v10877
  %v10898 = vadd.f32 %v10827, %v10877
  %v10899 = vadd.f32 %v10828, %v10877
  %v10900 = vadd.f32 %v10829, %v10877
  %v10901 = vadd.f32 %v10830, %v10877
  %v10902 = vadd.f32 %v10831, %v10877
  %v10903 = vadd.f32 %v10832, %v10877
  %v10904 = vadd.f32 %v10833, %v10877
  %v10905 = vadd.f32 %v10834, %v10877
  %v10906 = vadd.f32 %v10835, %v10877
  %v10907 = vadd.f32 %v10836, %v10877
  %v10908 = vadd.f32 %v10837, %v10877
  %v10909 = vadd.f32 %v10838, %v10877
  %v10910 = vadd.f32 %v10839, %v10877
  %v10911 = vadd.f32 %v10840, %v10877
  %v10912 = vadd.f32 %v10841, %v10877
  %v10913 = vadd.f32 %v10842, %v10877
  %v10914 = vadd.f32 %v10843, %v10877
  %v10915 = vadd.f32 %v10844, %v10877
  %v10916 = vadd.f32 %v10845, %v10877
  %v10917 = vadd.f32 %v10846, %v10877
  %v10918 = vadd.f32 %v10847, %v10877
  %v10919 = vadd.f32 %v10848, %v10877
  %v10920 = vadd.f32 %v10849, %v10877
  %v10921 = vadd.f32 %v10850, %v10877
  %v10922 = vadd.f32 %v10851, %v10877
  %v10923 = vadd.f32 %v10852, %v10877
  %v10924 = vadd.f32 %v10853, %v10877
  %v10925 = vadd.f32 %v10854, %v10877
  %v10926 = vadd.f32 %v10855, %v10877
  %v10927 = vadd.f32 %v10856, %v10877
  %v10928 = vadd.f32 %v10857, %v10877
  %v10929 = vadd.f32 %v10858, %v10877
  %v10930 = vadd.f32 %v10859, %v10877
  %v10931 = vadd.f32 %v10860, %v10877
  %v10932 = vadd.f32 %v10861, %v10877
  %v10933 = vadd.f32 %v10862, %v10877
  %v10934 = vadd.f32 %v10863, %v10877
  %v10935 = vadd.f32 %v10864, %v10877
  %v10936 = vadd.f32 %v10865, %v10877
  %v10937 = vadd.f32 %v10866, %v10877
  %v10938 = vadd.f32 %v10867, %v10877
  %v10939 = vadd.f32 %v10868, %v10877
  %v10940 = vadd.f32 %v10869, %v10877
  %v10941 = vadd.f32 %v10870, %v10877
  %v10942 = vadd.f32 %v10871, %v10877
  %v10943 = vmax.f32 %v10879, 0.0
  %v10944 = vmax.f32 %v10880, 0.0
  %v10945 = vmax.f32 %v10881, 0.0
  %v10946 = vmax.f32 %v10882, 0.0
  %v10947 = vmax.f32 %v10883, 0.0
  %v10948 = vmax.f32 %v10884, 0.0
  %v10949 = vmax.f32 %v10885, 0.0
  %v10950 = vmax.f32 %v10886, 0.0
  %v10951 = vmax.f32 %v10887, 0.0
  %v10952 = vmax.f32 %v10888, 0.0
  %v10953 = vmax.f32 %v10889, 0.0
  %v10954 = vmax.f32 %v10890, 0.0
  %v10955 = vmax.f32 %v10891, 0.0
  %v10956 = vmax.f32 %v10892, 0.0
  %v10957 = vmax.f32 %v10893, 0.0
  %v10958 = vmax.f32 %v10894, 0.0
  %v10959 = vmax.f32 %v10895, 0.0
  %v10960 = vmax.f32 %v10896, 0.0
  %v10961 = vmax.f32 %v10897, 0.0
  %v10962 = vmax.f32 %v10898, 0.0
  %v10963 = vmax.f32 %v10899, 0.0
  %v10964 = vmax.f32 %v10900, 0.0
  %v10965 = vmax.f32 %v10901, 0.0
  %v10966 = vmax.f32 %v10902, 0.0
  %v10967 = vmax.f32 %v10903, 0.0
  %v10968 = vmax.f32 %v10904, 0.0
  %v10969 = vmax.f32 %v10905, 0.0
  %v10970 = vmax.f32 %v10906, 0.0
  %v10971 = vmax.f32 %v10907, 0.0
  %v10972 = vmax.f32 %v10908, 0.0
  %v10973 = vmax.f32 %v10909, 0.0
  %v10974 = vmax.f32 %v10910, 0.0
  %v10975 = vmax.f32 %v10911, 0.0
  %v10976 = vmax.f32 %v10912, 0.0
  %v10977 = vmax.f32 %v10913, 0.0
  %v10978 = vmax.f32 %v10914, 0.0
  %v10979 = vmax.f32 %v10915, 0.0
  %v10980 = vmax.f32 %v10916, 0.0
  %v10981 = vmax.f32 %v10917, 0.0
  %v10982 = vmax.f32 %v10918, 0.0
  %v10983 = vmax.f32 %v10919, 0.0
  %v10984 = vmax.f32 %v10920, 0.0
  %v10985 = vmax.f32 %v10921, 0.0
  %v10986 = vmax.f32 %v10922, 0.0
  %v10987 = vmax.f32 %v10923, 0.0
  %v10988 = vmax.f32 %v10924, 0.0
  %v10989 = vmax.f32 %v10925, 0.0
  %v10990 = vmax.f32 %v10926, 0.0
  %v10991 = vmax.f32 %v10927, 0.0
  %v10992 = vmax.f32 %v10928, 0.0
  %v10993 = vmax.f32 %v10929, 0.0
  %v10994 = vmax.f32 %v10930, 0.0
  %v10995 = vmax.f32 %v10931, 0.0
  %v10996 = vmax.f32 %v10932, 0.0
  %v10997 = vmax.f32 %v10933, 0.0
  %v10998 = vmax.f32 %v10934, 0.0
  %v10999 = vmax.f32 %v10935, 0.0
  %v11000 = vmax.f32 %v10936, 0.0
  %v11001 = vmax.f32 %v10937, 0.0
  %v11002 = vmax.f32 %v10938, 0.0
  %v11003 = vmax.f32 %v10939, 0.0
  %v11004 = vmax.f32 %v10940, 0.0
  %v11005 = vmax.f32 %v10941, 0.0
  %v11006 = vmax.f32 %v10942, 0.0
  %v11007 = vld [vmem:[%s6] sm:$0xff]
  %v11008 = vld [vmem:[%s6 + $0x8] sm:$0xff]
  %v11009 = vld [vmem:[%s6 + $0x10] sm:$0xff]
  %v11010 = vld [vmem:[%s6 + $0x18] sm:$0xff]
  %v11011 = vld [vmem:[%s6 + $0x20] sm:$0xff]
  %v11012 = vld [vmem:[%s6 + $0x28] sm:$0xff]
  %v11013 = vld [vmem:[%s6 + $0x30] sm:$0xff]
  %v11014 = vld [vmem:[%s6 + $0x38] sm:$0xff]
  %v11015 = vmul.f32 %v10943, %v11007
  %v11016 = vmul.f32 %v10944, %v11008
  %v11017 = vmul.f32 %v10945, %v11009
  %v11018 = vmul.f32 %v10946, %v11010
  %v11019 = vmul.f32 %v10947, %v11011
  %v11020 = vmul.f32 %v10948, %v11012
  %v11021 = vmul.f32 %v10949, %v11013
  %v11022 = vmul.f32 %v10950, %v11014
  %v11023 = vmul.f32 %v10951, %v11007
  %v11024 = vmul.f32 %v10952, %v11008
  %v11025 = vmul.f32 %v10953, %v11009
  %v11026 = vmul.f32 %v10954, %v11010
  %v11027 = vmul.f32 %v10955, %v11011
  %v11028 = vmul.f32 %v10956, %v11012
  %v11029 = vmul.f32 %v10957, %v11013
  %v11030 = vmul.f32 %v10958, %v11014
  %v11031 = vmul.f32 %v10959, %v11007
  %v11032 = vmul.f32 %v10960, %v11008
  %v11033 = vmul.f32 %v10961, %v11009
  %v11034 = vmul.f32 %v10962, %v11010
  %v11035 = vmul.f32 %v10963, %v11011
  %v11036 = vmul.f32 %v10964, %v11012
  %v11037 = vmul.f32 %v10965, %v11013
  %v11038 = vmul.f32 %v10966, %v11014
  %v11039 = vmul.f32 %v10967, %v11007
  %v11040 = vmul.f32 %v10968, %v11008
  %v11041 = vmul.f32 %v10969, %v11009
  %v11042 = vmul.f32 %v10970, %v11010
  %v11043 = vmul.f32 %v10971, %v11011
  %v11044 = vmul.f32 %v10972, %v11012
  %v11045 = vmul.f32 %v10973, %v11013
  %v11046 = vmul.f32 %v10974, %v11014
  %v11047 = vmul.f32 %v10975, %v11007
  %v11048 = vmul.f32 %v10976, %v11008
  %v11049 = vmul.f32 %v10977, %v11009
  %v11050 = vmul.f32 %v10978, %v11010
  %v11051 = vmul.f32 %v10979, %v11011
  %v11052 = vmul.f32 %v10980, %v11012
  %v11053 = vmul.f32 %v10981, %v11013
  %v11054 = vmul.f32 %v10982, %v11014
  %v11055 = vmul.f32 %v10983, %v11007
  %v11056 = vmul.f32 %v10984, %v11008
  %v11057 = vmul.f32 %v10985, %v11009
  %v11058 = vmul.f32 %v10986, %v11010
  %v11059 = vmul.f32 %v10987, %v11011
  %v11060 = vmul.f32 %v10988, %v11012
  %v11061 = vmul.f32 %v10989, %v11013
  %v11062 = vmul.f32 %v10990, %v11014
  %v11063 = vmul.f32 %v10991, %v11007
  %v11064 = vmul.f32 %v10992, %v11008
  %v11065 = vmul.f32 %v10993, %v11009
  %v11066 = vmul.f32 %v10994, %v11010
  %v11067 = vmul.f32 %v10995, %v11011
  %v11068 = vmul.f32 %v10996, %v11012
  %v11069 = vmul.f32 %v10997, %v11013
  %v11070 = vmul.f32 %v10998, %v11014
  %v11071 = vmul.f32 %v10999, %v11007
  %v11072 = vmul.f32 %v11000, %v11008
  %v11073 = vmul.f32 %v11001, %v11009
  %v11074 = vmul.f32 %v11002, %v11010
  %v11075 = vmul.f32 %v11003, %v11011
  %v11076 = vmul.f32 %v11004, %v11012
  %v11077 = vmul.f32 %v11005, %v11013
  %v11078 = vmul.f32 %v11006, %v11014
  %11079 = vadd.xlane.f32.xlu0 %v11015
  %v11080 = vpop.xlane.xlu0 %11079
  %11081 = vadd.xlane.f32.xlu0 %v11016
  %v11082 = vpop.xlane.xlu0 %11081
  %11083 = vadd.xlane.f32.xlu0 %v11017
  %v11084 = vpop.xlane.xlu0 %11083
  %11085 = vadd.xlane.f32.xlu0 %v11018
  %v11086 = vpop.xlane.xlu0 %11085
  %11087 = vadd.xlane.f32.xlu0 %v11019
  %v11088 = vpop.xlane.xlu0 %11087
  %11089 = vadd.xlane.f32.xlu0 %v11020
  %v11090 = vpop.xlane.xlu0 %11089
  %11091 = vadd.xlane.f32.xlu0 %v11021
  %v11092 = vpop.xlane.xlu0 %11091
  %11093 = vadd.xlane.f32.xlu0 %v11022
  %v11094 = vpop.xlane.xlu0 %11093
  %11095 = vadd.xlane.f32.xlu0 %v11023
  %v11096 = vpop.xlane.xlu0 %11095
  %11097 = vadd.xlane.f32.xlu0 %v11024
  %v11098 = vpop.xlane.xlu0 %11097
  %11099 = vadd.xlane.f32.xlu0 %v11025
  %v11100 = vpop.xlane.xlu0 %11099
  %11101 = vadd.xlane.f32.xlu0 %v11026
  %v11102 = vpop.xlane.xlu0 %11101
  %11103 = vadd.xlane.f32.xlu0 %v11027
  %v11104 = vpop.xlane.xlu0 %11103
  %11105 = vadd.xlane.f32.xlu0 %v11028
  %v11106 = vpop.xlane.xlu0 %11105
  %11107 = vadd.xlane.f32.xlu0 %v11029
  %v11108 = vpop.xlane.xlu0 %11107
  %11109 = vadd.xlane.f32.xlu0 %v11030
  %v11110 = vpop.xlane.xlu0 %11109
  %11111 = vadd.xlane.f32.xlu0 %v11031
  %v11112 = vpop.xlane.xlu0 %11111
  %11113 = vadd.xlane.f32.xlu0 %v11032
  %v11114 = vpop.xlane.xlu0 %11113
  %11115 = vadd.xlane.f32.xlu0 %v11033
  %v11116 = vpop.xlane.xlu0 %11115
  %11117 = vadd.xlane.f32.xlu0 %v11034
  %v11118 = vpop.xlane.xlu0 %11117
  %11119 = vadd.xlane.f32.xlu0 %v11035
  %v11120 = vpop.xlane.xlu0 %11119
  %11121 = vadd.xlane.f32.xlu0 %v11036
  %v11122 = vpop.xlane.xlu0 %11121
  %11123 = vadd.xlane.f32.xlu0 %v11037
  %v11124 = vpop.xlane.xlu0 %11123
  %11125 = vadd.xlane.f32.xlu0 %v11038
  %v11126 = vpop.xlane.xlu0 %11125
  %11127 = vadd.xlane.f32.xlu0 %v11039
  %v11128 = vpop.xlane.xlu0 %11127
  %11129 = vadd.xlane.f32.xlu0 %v11040
  %v11130 = vpop.xlane.xlu0 %11129
  %11131 = vadd.xlane.f32.xlu0 %v11041
  %v11132 = vpop.xlane.xlu0 %11131
  %11133 = vadd.xlane.f32.xlu0 %v11042
  %v11134 = vpop.xlane.xlu0 %11133
  %11135 = vadd.xlane.f32.xlu0 %v11043
  %v11136 = vpop.xlane.xlu0 %11135
  %11137 = vadd.xlane.f32.xlu0 %v11044
  %v11138 = vpop.xlane.xlu0 %11137
  %11139 = vadd.xlane.f32.xlu0 %v11045
  %v11140 = vpop.xlane.xlu0 %11139
  %11141 = vadd.xlane.f32.xlu0 %v11046
  %v11142 = vpop.xlane.xlu0 %11141
  %11143 = vadd.xlane.f32.xlu0 %v11047
  %v11144 = vpop.xlane.xlu0 %11143
  %11145 = vadd.xlane.f32.xlu0 %v11048
  %v11146 = vpop.xlane.xlu0 %11145
  %11147 = vadd.xlane.f32.xlu0 %v11049
  %v11148 = vpop.xlane.xlu0 %11147
  %11149 = vadd.xlane.f32.xlu0 %v11050
  %v11150 = vpop.xlane.xlu0 %11149
  %11151 = vadd.xlane.f32.xlu0 %v11051
  %v11152 = vpop.xlane.xlu0 %11151
  %11153 = vadd.xlane.f32.xlu0 %v11052
  %v11154 = vpop.xlane.xlu0 %11153
  %11155 = vadd.xlane.f32.xlu0 %v11053
  %v11156 = vpop.xlane.xlu0 %11155
  %11157 = vadd.xlane.f32.xlu0 %v11054
  %v11158 = vpop.xlane.xlu0 %11157
  %11159 = vadd.xlane.f32.xlu0 %v11055
  %v11160 = vpop.xlane.xlu0 %11159
  %11161 = vadd.xlane.f32.xlu0 %v11056
  %v11162 = vpop.xlane.xlu0 %11161
  %11163 = vadd.xlane.f32.xlu0 %v11057
  %v11164 = vpop.xlane.xlu0 %11163
  %11165 = vadd.xlane.f32.xlu0 %v11058
  %v11166 = vpop.xlane.xlu0 %11165
  %11167 = vadd.xlane.f32.xlu0 %v11059
  %v11168 = vpop.xlane.xlu0 %11167
  %11169 = vadd.xlane.f32.xlu0 %v11060
  %v11170 = vpop.xlane.xlu0 %11169
  %11171 = vadd.xlane.f32.xlu0 %v11061
  %v11172 = vpop.xlane.xlu0 %11171
  %11173 = vadd.xlane.f32.xlu0 %v11062
  %v11174 = vpop.xlane.xlu0 %11173
  %11175 = vadd.xlane.f32.xlu0 %v11063
  %v11176 = vpop.xlane.xlu0 %11175
  %11177 = vadd.xlane.f32.xlu0 %v11064
  %v11178 = vpop.xlane.xlu0 %11177
  %11179 = vadd.xlane.f32.xlu0 %v11065
  %v11180 = vpop.xlane.xlu0 %11179
  %11181 = vadd.xlane.f32.xlu0 %v11066
  %v11182 = vpop.xlane.xlu0 %11181
  %11183 = vadd.xlane.f32.xlu0 %v11067
  %v11184 = vpop.xlane.xlu0 %11183
  %11185 = vadd.xlane.f32.xlu0 %v11068
  %v11186 = vpop.xlane.xlu0 %11185
  %11187 = vadd.xlane.f32.xlu0 %v11069
  %v11188 = vpop.xlane.xlu0 %11187
  %11189 = vadd.xlane.f32.xlu0 %v11070
  %v11190 = vpop.xlane.xlu0 %11189
  %11191 = vadd.xlane.f32.xlu0 %v11071
  %v11192 = vpop.xlane.xlu0 %11191
  %11193 = vadd.xlane.f32.xlu0 %v11072
  %v11194 = vpop.xlane.xlu0 %11193
  %11195 = vadd.xlane.f32.xlu0 %v11073
  %v11196 = vpop.xlane.xlu0 %11195
  %11197 = vadd.xlane.f32.xlu0 %v11074
  %v11198 = vpop.xlane.xlu0 %11197
  %11199 = vadd.xlane.f32.xlu0 %v11075
  %v11200 = vpop.xlane.xlu0 %11199
  %11201 = vadd.xlane.f32.xlu0 %v11076
  %v11202 = vpop.xlane.xlu0 %11201
  %11203 = vadd.xlane.f32.xlu0 %v11077
  %v11204 = vpop.xlane.xlu0 %11203
  %11205 = vadd.xlane.f32.xlu0 %v11078
  %v11206 = vpop.xlane.xlu0 %11205
  %v11271 = vlaneseq
  %v11272 = vand.u32 %v11271, 127
  %v11273 = vlaneseq
  %v11274 = vshrl.u32 %v11273, 7
  %v11275 = vsub.s32 %v11272, %v11274
  %v11276 = vrot.slane %v11080, %v11275
  %v11277 = vadd.s32 %v11272, 4294967288
  %v11278 = vlaneseq
  %v11279 = vshrl.u32 %v11278, 7
  %v11280 = vsub.s32 %v11277, %v11279
  %v11281 = vrot.slane %v11082, %v11280
  %vm11282 = vcmask 130112
  %v11283 = vsel %vm11282, %v11281, %v11276
  %v11284 = vadd.s32 %v11272, 4294967280
  %v11285 = vlaneseq
  %v11286 = vshrl.u32 %v11285, 7
  %v11287 = vsub.s32 %v11284, %v11286
  %v11288 = vrot.slane %v11084, %v11287
  %vm11289 = vcmask 195712
  %v11290 = vsel %vm11289, %v11288, %v11283
  %v11291 = vadd.s32 %v11272, 4294967272
  %v11292 = vlaneseq
  %v11293 = vshrl.u32 %v11292, 7
  %v11294 = vsub.s32 %v11291, %v11293
  %v11295 = vrot.slane %v11086, %v11294
  %vm11296 = vcmask 261312
  %v11297 = vsel %vm11296, %v11295, %v11290
  %v11298 = vadd.s32 %v11272, 4294967264
  %v11299 = vlaneseq
  %v11300 = vshrl.u32 %v11299, 7
  %v11301 = vsub.s32 %v11298, %v11300
  %v11302 = vrot.slane %v11088, %v11301
  %vm11303 = vcmask 326912
  %v11304 = vsel %vm11303, %v11302, %v11297
  %v11305 = vadd.s32 %v11272, 4294967256
  %v11306 = vlaneseq
  %v11307 = vshrl.u32 %v11306, 7
  %v11308 = vsub.s32 %v11305, %v11307
  %v11309 = vrot.slane %v11090, %v11308
  %vm11310 = vcmask 392512
  %v11311 = vsel %vm11310, %v11309, %v11304
  %v11312 = vadd.s32 %v11272, 4294967248
  %v11313 = vlaneseq
  %v11314 = vshrl.u32 %v11313, 7
  %v11315 = vsub.s32 %v11312, %v11314
  %v11316 = vrot.slane %v11092, %v11315
  %vm11317 = vcmask 458112
  %v11318 = vsel %vm11317, %v11316, %v11311
  %v11319 = vadd.s32 %v11272, 4294967240
  %v11320 = vlaneseq
  %v11321 = vshrl.u32 %v11320, 7
  %v11322 = vsub.s32 %v11319, %v11321
  %v11323 = vrot.slane %v11094, %v11322
  %vm11324 = vcmask 523712
  %v11325 = vsel %vm11324, %v11323, %v11318
  %v11326 = vlaneseq
  %v11327 = vshrl.u32 %v11326, 7
  %v11328 = vsub.s32 %v11272, %v11327
  %v11329 = vrot.slane %v11096, %v11328
  %v11330 = vlaneseq
  %v11331 = vshrl.u32 %v11330, 7
  %v11332 = vsub.s32 %v11277, %v11331
  %v11333 = vrot.slane %v11098, %v11332
  %v11334 = vsel %vm11282, %v11333, %v11329
  %v11335 = vlaneseq
  %v11336 = vshrl.u32 %v11335, 7
  %v11337 = vsub.s32 %v11284, %v11336
  %v11338 = vrot.slane %v11100, %v11337
  %v11339 = vsel %vm11289, %v11338, %v11334
  %v11340 = vlaneseq
  %v11341 = vshrl.u32 %v11340, 7
  %v11342 = vsub.s32 %v11291, %v11341
  %v11343 = vrot.slane %v11102, %v11342
  %v11344 = vsel %vm11296, %v11343, %v11339
  %v11345 = vlaneseq
  %v11346 = vshrl.u32 %v11345, 7
  %v11347 = vsub.s32 %v11298, %v11346
  %v11348 = vrot.slane %v11104, %v11347
  %v11349 = vsel %vm11303, %v11348, %v11344
  %v11350 = vlaneseq
  %v11351 = vshrl.u32 %v11350, 7
  %v11352 = vsub.s32 %v11305, %v11351
  %v11353 = vrot.slane %v11106, %v11352
  %v11354 = vsel %vm11310, %v11353, %v11349
  %v11355 = vlaneseq
  %v11356 = vshrl.u32 %v11355, 7
  %v11357 = vsub.s32 %v11312, %v11356
  %v11358 = vrot.slane %v11108, %v11357
  %v11359 = vsel %vm11317, %v11358, %v11354
  %v11360 = vlaneseq
  %v11361 = vshrl.u32 %v11360, 7
  %v11362 = vsub.s32 %v11319, %v11361
  %v11363 = vrot.slane %v11110, %v11362
  %v11364 = vsel %vm11324, %v11363, %v11359
  %v11365 = vlaneseq
  %v11366 = vshrl.u32 %v11365, 7
  %v11367 = vsub.s32 %v11272, %v11366
  %v11368 = vrot.slane %v11112, %v11367
  %v11369 = vlaneseq
  %v11370 = vshrl.u32 %v11369, 7
  %v11371 = vsub.s32 %v11277, %v11370
  %v11372 = vrot.slane %v11114, %v11371
  %v11373 = vsel %vm11282, %v11372, %v11368
  %v11374 = vlaneseq
  %v11375 = vshrl.u32 %v11374, 7
  %v11376 = vsub.s32 %v11284, %v11375
  %v11377 = vrot.slane %v11116, %v11376
  %v11378 = vsel %vm11289, %v11377, %v11373
  %v11379 = vlaneseq
  %v11380 = vshrl.u32 %v11379, 7
  %v11381 = vsub.s32 %v11291, %v11380
  %v11382 = vrot.slane %v11118, %v11381
  %v11383 = vsel %vm11296, %v11382, %v11378
  %v11384 = vlaneseq
  %v11385 = vshrl.u32 %v11384, 7
  %v11386 = vsub.s32 %v11298, %v11385
  %v11387 = vrot.slane %v11120, %v11386
  %v11388 = vsel %vm11303, %v11387, %v11383
  %v11389 = vlaneseq
  %v11390 = vshrl.u32 %v11389, 7
  %v11391 = vsub.s32 %v11305, %v11390
  %v11392 = vrot.slane %v11122, %v11391
  %v11393 = vsel %vm11310, %v11392, %v11388
  %v11394 = vlaneseq
  %v11395 = vshrl.u32 %v11394, 7
  %v11396 = vsub.s32 %v11312, %v11395
  %v11397 = vrot.slane %v11124, %v11396
  %v11398 = vsel %vm11317, %v11397, %v11393
  %v11399 = vlaneseq
  %v11400 = vshrl.u32 %v11399, 7
  %v11401 = vsub.s32 %v11319, %v11400
  %v11402 = vrot.slane %v11126, %v11401
  %v11403 = vsel %vm11324, %v11402, %v11398
  %v11404 = vlaneseq
  %v11405 = vshrl.u32 %v11404, 7
  %v11406 = vsub.s32 %v11272, %v11405
  %v11407 = vrot.slane %v11128, %v11406
  %v11408 = vlaneseq
  %v11409 = vshrl.u32 %v11408, 7
  %v11410 = vsub.s32 %v11277, %v11409
  %v11411 = vrot.slane %v11130, %v11410
  %v11412 = vsel %vm11282, %v11411, %v11407
  %v11413 = vlaneseq
  %v11414 = vshrl.u32 %v11413, 7
  %v11415 = vsub.s32 %v11284, %v11414
  %v11416 = vrot.slane %v11132, %v11415
  %v11417 = vsel %vm11289, %v11416, %v11412
  %v11418 = vlaneseq
  %v11419 = vshrl.u32 %v11418, 7
  %v11420 = vsub.s32 %v11291, %v11419
  %v11421 = vrot.slane %v11134, %v11420
  %v11422 = vsel %vm11296, %v11421, %v11417
  %v11423 = vlaneseq
  %v11424 = vshrl.u32 %v11423, 7
  %v11425 = vsub.s32 %v11298, %v11424
  %v11426 = vrot.slane %v11136, %v11425
  %v11427 = vsel %vm11303, %v11426, %v11422
  %v11428 = vlaneseq
  %v11429 = vshrl.u32 %v11428, 7
  %v11430 = vsub.s32 %v11305, %v11429
  %v11431 = vrot.slane %v11138, %v11430
  %v11432 = vsel %vm11310, %v11431, %v11427
  %v11433 = vlaneseq
  %v11434 = vshrl.u32 %v11433, 7
  %v11435 = vsub.s32 %v11312, %v11434
  %v11436 = vrot.slane %v11140, %v11435
  %v11437 = vsel %vm11317, %v11436, %v11432
  %v11438 = vlaneseq
  %v11439 = vshrl.u32 %v11438, 7
  %v11440 = vsub.s32 %v11319, %v11439
  %v11441 = vrot.slane %v11142, %v11440
  %v11442 = vsel %vm11324, %v11441, %v11437
  %v11443 = vlaneseq
  %v11444 = vshrl.u32 %v11443, 7
  %v11445 = vsub.s32 %v11272, %v11444
  %v11446 = vrot.slane %v11144, %v11445
  %v11447 = vlaneseq
  %v11448 = vshrl.u32 %v11447, 7
  %v11449 = vsub.s32 %v11277, %v11448
  %v11450 = vrot.slane %v11146, %v11449
  %v11451 = vsel %vm11282, %v11450, %v11446
  %v11452 = vlaneseq
  %v11453 = vshrl.u32 %v11452, 7
  %v11454 = vsub.s32 %v11284, %v11453
  %v11455 = vrot.slane %v11148, %v11454
  %v11456 = vsel %vm11289, %v11455, %v11451
  %v11457 = vlaneseq
  %v11458 = vshrl.u32 %v11457, 7
  %v11459 = vsub.s32 %v11291, %v11458
  %v11460 = vrot.slane %v11150, %v11459
  %v11461 = vsel %vm11296, %v11460, %v11456
  %v11462 = vlaneseq
  %v11463 = vshrl.u32 %v11462, 7
  %v11464 = vsub.s32 %v11298, %v11463
  %v11465 = vrot.slane %v11152, %v11464
  %v11466 = vsel %vm11303, %v11465, %v11461
  %v11467 = vlaneseq
  %v11468 = vshrl.u32 %v11467, 7
  %v11469 = vsub.s32 %v11305, %v11468
  %v11470 = vrot.slane %v11154, %v11469
  %v11471 = vsel %vm11310, %v11470, %v11466
  %v11472 = vlaneseq
  %v11473 = vshrl.u32 %v11472, 7
  %v11474 = vsub.s32 %v11312, %v11473
  %v11475 = vrot.slane %v11156, %v11474
  %v11476 = vsel %vm11317, %v11475, %v11471
  %v11477 = vlaneseq
  %v11478 = vshrl.u32 %v11477, 7
  %v11479 = vsub.s32 %v11319, %v11478
  %v11480 = vrot.slane %v11158, %v11479
  %v11481 = vsel %vm11324, %v11480, %v11476
  %v11482 = vlaneseq
  %v11483 = vshrl.u32 %v11482, 7
  %v11484 = vsub.s32 %v11272, %v11483
  %v11485 = vrot.slane %v11160, %v11484
  %v11486 = vlaneseq
  %v11487 = vshrl.u32 %v11486, 7
  %v11488 = vsub.s32 %v11277, %v11487
  %v11489 = vrot.slane %v11162, %v11488
  %v11490 = vsel %vm11282, %v11489, %v11485
  %v11491 = vlaneseq
  %v11492 = vshrl.u32 %v11491, 7
  %v11493 = vsub.s32 %v11284, %v11492
  %v11494 = vrot.slane %v11164, %v11493
  %v11495 = vsel %vm11289, %v11494, %v11490
  %v11496 = vlaneseq
  %v11497 = vshrl.u32 %v11496, 7
  %v11498 = vsub.s32 %v11291, %v11497
  %v11499 = vrot.slane %v11166, %v11498
  %v11500 = vsel %vm11296, %v11499, %v11495
  %v11501 = vlaneseq
  %v11502 = vshrl.u32 %v11501, 7
  %v11503 = vsub.s32 %v11298, %v11502
  %v11504 = vrot.slane %v11168, %v11503
  %v11505 = vsel %vm11303, %v11504, %v11500
  %v11506 = vlaneseq
  %v11507 = vshrl.u32 %v11506, 7
  %v11508 = vsub.s32 %v11305, %v11507
  %v11509 = vrot.slane %v11170, %v11508
  %v11510 = vsel %vm11310, %v11509, %v11505
  %v11511 = vlaneseq
  %v11512 = vshrl.u32 %v11511, 7
  %v11513 = vsub.s32 %v11312, %v11512
  %v11514 = vrot.slane %v11172, %v11513
  %v11515 = vsel %vm11317, %v11514, %v11510
  %v11516 = vlaneseq
  %v11517 = vshrl.u32 %v11516, 7
  %v11518 = vsub.s32 %v11319, %v11517
  %v11519 = vrot.slane %v11174, %v11518
  %v11520 = vsel %vm11324, %v11519, %v11515
  %v11521 = vlaneseq
  %v11522 = vshrl.u32 %v11521, 7
  %v11523 = vsub.s32 %v11272, %v11522
  %v11524 = vrot.slane %v11176, %v11523
  %v11525 = vlaneseq
  %v11526 = vshrl.u32 %v11525, 7
  %v11527 = vsub.s32 %v11277, %v11526
  %v11528 = vrot.slane %v11178, %v11527
  %v11529 = vsel %vm11282, %v11528, %v11524
  %v11530 = vlaneseq
  %v11531 = vshrl.u32 %v11530, 7
  %v11532 = vsub.s32 %v11284, %v11531
  %v11533 = vrot.slane %v11180, %v11532
  %v11534 = vsel %vm11289, %v11533, %v11529
  %v11535 = vlaneseq
  %v11536 = vshrl.u32 %v11535, 7
  %v11537 = vsub.s32 %v11291, %v11536
  %v11538 = vrot.slane %v11182, %v11537
  %v11539 = vsel %vm11296, %v11538, %v11534
  %v11540 = vlaneseq
  %v11541 = vshrl.u32 %v11540, 7
  %v11542 = vsub.s32 %v11298, %v11541
  %v11543 = vrot.slane %v11184, %v11542
  %v11544 = vsel %vm11303, %v11543, %v11539
  %v11545 = vlaneseq
  %v11546 = vshrl.u32 %v11545, 7
  %v11547 = vsub.s32 %v11305, %v11546
  %v11548 = vrot.slane %v11186, %v11547
  %v11549 = vsel %vm11310, %v11548, %v11544
  %v11550 = vlaneseq
  %v11551 = vshrl.u32 %v11550, 7
  %v11552 = vsub.s32 %v11312, %v11551
  %v11553 = vrot.slane %v11188, %v11552
  %v11554 = vsel %vm11317, %v11553, %v11549
  %v11555 = vlaneseq
  %v11556 = vshrl.u32 %v11555, 7
  %v11557 = vsub.s32 %v11319, %v11556
  %v11558 = vrot.slane %v11190, %v11557
  %v11559 = vsel %vm11324, %v11558, %v11554
  %v11560 = vlaneseq
  %v11561 = vshrl.u32 %v11560, 7
  %v11562 = vsub.s32 %v11272, %v11561
  %v11563 = vrot.slane %v11192, %v11562
  %v11564 = vlaneseq
  %v11565 = vshrl.u32 %v11564, 7
  %v11566 = vsub.s32 %v11277, %v11565
  %v11567 = vrot.slane %v11194, %v11566
  %v11568 = vsel %vm11282, %v11567, %v11563
  %v11569 = vlaneseq
  %v11570 = vshrl.u32 %v11569, 7
  %v11571 = vsub.s32 %v11284, %v11570
  %v11572 = vrot.slane %v11196, %v11571
  %v11573 = vsel %vm11289, %v11572, %v11568
  %v11574 = vlaneseq
  %v11575 = vshrl.u32 %v11574, 7
  %v11576 = vsub.s32 %v11291, %v11575
  %v11577 = vrot.slane %v11198, %v11576
  %v11578 = vsel %vm11296, %v11577, %v11573
  %v11579 = vlaneseq
  %v11580 = vshrl.u32 %v11579, 7
  %v11581 = vsub.s32 %v11298, %v11580
  %v11582 = vrot.slane %v11200, %v11581
  %v11583 = vsel %vm11303, %v11582, %v11578
  %v11584 = vlaneseq
  %v11585 = vshrl.u32 %v11584, 7
  %v11586 = vsub.s32 %v11305, %v11585
  %v11587 = vrot.slane %v11202, %v11586
  %v11588 = vsel %vm11310, %v11587, %v11583
  %v11589 = vlaneseq
  %v11590 = vshrl.u32 %v11589, 7
  %v11591 = vsub.s32 %v11312, %v11590
  %v11592 = vrot.slane %v11204, %v11591
  %v11593 = vsel %vm11317, %v11592, %v11588
  %v11594 = vlaneseq
  %v11595 = vshrl.u32 %v11594, 7
  %v11596 = vsub.s32 %v11319, %v11595
  %v11597 = vrot.slane %v11206, %v11596
  %v11598 = vsel %vm11324, %v11597, %v11593
  %vm11599 = vcmask 1041409
  %v11600 = vsel %vm11599, %v11364, %v11325
  %vm11601 = vcmask 1042434
  %v11602 = vsel %vm11601, %v11403, %v11600
  %vm11603 = vcmask 1043459
  %v11604 = vsel %vm11603, %v11442, %v11602
  %vm11605 = vcmask 1044484
  %v11606 = vsel %vm11605, %v11481, %v11604
  %vm11607 = vcmask 1045509
  %v11608 = vsel %vm11607, %v11520, %v11606
  %vm11609 = vcmask 1046534
  %v11610 = vsel %vm11609, %v11559, %v11608
  %vm11611 = vcmask 1047559
  %v11612 = vsel %vm11611, %v11598, %v11610
  %vm11614 = vcmask 523264
  %v11615 = vsel %vm11614, %v11612, 0.0
  %11616 = vadd.xlane.f32.xlu0 %v11615
  %v11617 = vpop.xlane.xlu0 %11616
  %v11618 = vld [vmem:[%s7] sm:$0x1]
  %v11620 = vlaneseq
  %v11621 = vshrl.u32 %v11620, 7
  %v11622 = vsub.s32 0, %v11621
  %v11623 = vrot.slane %v11618, %v11622
  %v11625 = vadd.f32 %v11617, %v11623
  %11626 = vst [vmem:[%s8] sm:$0xff] %v11625
  // Predicated region
  $region34: #{discriminator_forward.1} parent=0 // pred_check
    _
  $region35: #{discriminator_forward.1} parent=0 // pred_check_branch
    %11628 = sbr.rel (0) target = $region37
  $region36: #{discriminator_forward.1} parent=0 // pred_region
    _
  $region37: #{discriminator_forward.1} parent=0 // pred_fallthru
    _
  // Predicated region
  $region38: #{discriminator_forward.1} parent=0 // pred_check
    _
  $region39: #{discriminator_forward.1} parent=0 // pred_check_branch
    %11630 = sbr.rel (0) target = $region41
  $region40: #{discriminator_forward.1} parent=0 // pred_region
    _
  $region41: #{discriminator_forward.1} parent=0 // pred_fallthru
    _

</llo_original>
